<compile_context>
chip_gen: v6e
topology: v6e:2x2x1
jax: 0.10.0
libtpu: 0.0.40
codegen_flags: <defaults>
</compile_context>

<pallas_src>
import math

import jax
import jax.numpy as jnp
from jax import lax
from jax.experimental import pallas as pl
from jax.experimental.pallas import tpu as pltpu

NUM_BLOCKS = 5          # len(self.lins)
BN_EPS = 1e-5
INV_SQRT2 = 1.0 / math.sqrt(2.0)
LANE = 128
COMPUTE_DTYPE = jnp.bfloat16   # MXU-native; accumulate in fp32


def _gelu(x):
    # Exact (erf) GELU — PyTorch nn.GELU() default.
    return 0.5 * x * (1.0 + lax.erf(x * INV_SQRT2))


def _bn_eval(x, gamma, beta, mean, var):
    # BatchNorm1d in eval mode with running statistics (reference only; the
    # kernel uses pre-folded scale/shift).
    return (x - mean) * lax.rsqrt(var + BN_EPS) * gamma + beta


def _round_up(n, m):
    return (n + m - 1) // m * m


# ----------------------------------------------------------------------------
# Kernel
# ----------------------------------------------------------------------------
def _brain_kernel(x_ref, w0_ref, b0_ref,
                  wa_ref, ba_ref,
                  wb_ref, bb_ref, sb_ref, shb_ref,
                  w1_ref, b1_ref, out_ref):
    # self.conv: Linear(in_dim, h) -> GELU -> Dropout(0.5) (identity in eval)
    x = jnp.dot(x_ref[...], w0_ref[...], preferred_element_type=jnp.float32)
    x = _gelu(x + b0_ref[...])
    residual = x

    # 5 residual blocks:
    #   [Dropout] -> Linear -> GELU -> BN_a -> Dropout -> Linear -> GELU -> BN_b
    #   then x += residual.  BN_a is folded into (wb, bb); BN_b is scale/shift.
    for i in range(NUM_BLOCKS):  # static unroll (5 iterations)
        h1 = jnp.dot(x.astype(COMPUTE_DTYPE), wa_ref[i],
                     preferred_element_type=jnp.float32) + ba_ref[i]
        h1 = _gelu(h1)
        h2 = jnp.dot(h1.astype(COMPUTE_DTYPE), wb_ref[i],
                     preferred_element_type=jnp.float32) + bb_ref[i]
        h2 = _gelu(h2)
        h2 = h2 * sb_ref[i] + shb_ref[i]          # BN_b (eval), pre-folded
        x = h2 + residual
        residual = x

    # self.lin1: Linear(h, out_dim)  (out dim lane-padded in the wrapper)
    out = jnp.dot(x.astype(COMPUTE_DTYPE), w1_ref[...],
                  preferred_element_type=jnp.float32) + b1_ref[...]
    out_ref[...] = out.astype(out_ref.dtype)


# ----------------------------------------------------------------------------
# Parameter preparation (BN folding + bf16 cast)
# ----------------------------------------------------------------------------
def fold_params(raw_params):
    """Fold eval-mode BatchNorms and cast weights to bf16.

    BN_a(y) = y*scale_a + shift_a is folded into the block's second Linear:
      (y*scale_a + shift_a) @ wb + bb == y @ (scale_a^T * wb) + (shift_a @ wb + bb)
    BN_b is kept as a fused scale/shift pair applied in the kernel.
    """
    (w0, b0, wa, ba, ga, bta, ma, va,
     wb, bb, gb, btb, mb, vb, w1, b1) = raw_params

    scale_a = ga * lax.rsqrt(va + BN_EPS)            # (5, 1, h)
    shift_a = bta - ma * scale_a
    wbf = jnp.swapaxes(scale_a, 1, 2) * wb           # scale rows of wb: (5, h, h)
    bbf = jnp.matmul(shift_a, wb) + bb               # (5, 1, h), kept fp32

    scale_b = gb * lax.rsqrt(vb + BN_EPS)
    shift_b = btb - mb * scale_b

    return (w0.astype(COMPUTE_DTYPE), b0,
            wa.astype(COMPUTE_DTYPE), ba,
            wbf.astype(COMPUTE_DTYPE), bbf,
            scale_b, shift_b,
            w1.astype(COMPUTE_DTYPE), b1)


# ----------------------------------------------------------------------------
# Wrapper
# ----------------------------------------------------------------------------
def brain_network_forward(x, kernel_params, *, bm=128):
    """Full forward pass in one pallas_call, tiled over the batch."""
    (w0, b0, wa, ba, wbf, bbf, sb, shb, w1, b1) = kernel_params
    B, in_dim = x.shape
    out_dim = w1.shape[1]

    # Layout padding: dense lanes on the K of the first matmul, on the output,
    # and a full MXU-row batch tile.
    in_pad = _round_up(in_dim, LANE)
    out_pad = _round_up(out_dim, LANE)
    b_pad = _round_up(B, bm)

    x_p = jnp.zeros((b_pad, in_pad), COMPUTE_DTYPE).at[:B, :in_dim].set(
        x.astype(COMPUTE_DTYPE))
    w0_p = jnp.zeros((in_pad, w0.shape[1]), w0.dtype).at[:in_dim, :].set(w0)
    w1_p = jnp.zeros((w1.shape[0], out_pad), w1.dtype).at[:, :out_dim].set(w1)
    b1_p = jnp.zeros((1, out_pad), b1.dtype).at[:, :out_dim].set(b1)

    params = (w0_p, b0, wa, ba, wbf, bbf, sb, shb, w1_p, b1_p)

    # Explicit scoped-VMEM budget (defaults: 16 MiB v5e / 32 MiB v6e,v7x).
    param_bytes = sum(int(a.size) * a.dtype.itemsize for a in params)
    tile_bytes = bm * in_pad * 2 + bm * out_pad * 4
    vmem_limit = int(min(max(2 * param_bytes + 2 * tile_bytes + (8 << 20),
                             32 << 20), 64 << 20))

    def call(single_buffer):
        def full_spec(arr):
            nd = arr.ndim
            idx = lambda i, _nd=nd: (0,) * _nd
            if single_buffer:
                # Grid-invariant parameter: hold one VMEM copy instead of the
                # default double buffer (halves resident weight VMEM).
                return pl.BlockSpec(arr.shape, idx, pipeline_mode=pl.Buffered(1))
            return pl.BlockSpec(arr.shape, idx)

        in_specs = [pl.BlockSpec((bm, in_pad), lambda i: (i, 0))]
        in_specs += [full_spec(a) for a in params]
        out_specs = pl.BlockSpec((bm, out_pad), lambda i: (i, 0))

        return pl.pallas_call(
            _brain_kernel,
            out_shape=jax.ShapeDtypeStruct((b_pad, out_pad), jnp.float32),
            grid_spec=pltpu.PrefetchScalarGridSpec(
                num_scalar_prefetch=0,
                grid=(b_pad // bm,),
                in_specs=in_specs,
                out_specs=out_specs,
            ),
            compiler_params=pltpu.CompilerParams(
                dimension_semantics=("parallel",),
                vmem_limit_bytes=vmem_limit),
        )(x_p, *params)

    try:
        out = call(single_buffer=True)
    except Exception:
        # pl.Buffered(1) not supported on this jax version/backend: fall back
        # to default double buffering (correctness unchanged).
        out = call(single_buffer=False)

    return out[:B, :out_dim]


# ----------------------------------------------------------------------------
# Synthetic parameters + pure-JAX reference
# ----------------------------------------------------------------------------
def init_params(key, in_dim, h, out_dim):
    """Deterministic synthetic parameters (shapes from BrainNetworkLarge.__init__).

    NOTE: the PyTorch module zero-inits the last BatchNorm gamma of each block
    and uses default BN stats (mean=0, var=1); here we use small random values
    so every op in the kernel is numerically exercised.
    """
    ks = jax.random.split(key, 16)

    def lin(kw, kb, fan_in, fan_out, stack=None):
        bound = 1.0 / math.sqrt(fan_in)
        wshape = (fan_in, fan_out) if stack is None else (stack, fan_in, fan_out)
        bshape = (1, fan_out) if stack is None else (stack, 1, fan_out)
        w = jax.random.uniform(kw, wshape, jnp.float32, -bound, bound)
        b = jax.random.uniform(kb, bshape, jnp.float32, -bound, bound)
        return w, b

    def bn(kg, kb, km, kv):
        shp = (NUM_BLOCKS, 1, h)
        gamma = 1.0 + 0.1 * jax.random.normal(kg, shp, jnp.float32)
        beta = 0.1 * jax.random.normal(kb, shp, jnp.float32)
        mean = 0.1 * jax.random.normal(km, shp, jnp.float32)
        var = 1.0 + 0.5 * jax.random.uniform(kv, shp, jnp.float32)
        return gamma, beta, mean, var

    w0, b0 = lin(ks[0], ks[1], in_dim, h)                       # self.conv[0]
    wa, ba = lin(ks[2], ks[3], h, h, stack=NUM_BLOCKS)          # lins[i][1]
    wb, bb = lin(ks[4], ks[5], h, h, stack=NUM_BLOCKS)          # lins[i][5]
    ga, bta, ma, va = bn(ks[6], ks[7], ks[8], ks[9])            # lins[i][3]
    gb, btb, mb, vb = bn(ks[10], ks[11], ks[12], ks[13])        # lins[i][7]
    w1, b1 = lin(ks[14], ks[15], h, out_dim)                    # self.lin1
    return (w0, b0, wa, ba, ga, bta, ma, va,
            wb, bb, gb, btb, mb, vb, w1, b1)


def reference_forward(x, raw_params):
    """Pure-JAX reference: the original (unfolded) eval-mode math, at matched
    bf16-matmul / fp32-accumulate precision."""
    (w0, b0, wa, ba, ga, bta, ma, va,
     wb, bb, gb, btb, mb, vb, w1, b1) = raw_params

    def mm(a, w):
        return jnp.dot(a.astype(COMPUTE_DTYPE), w.astype(COMPUTE_DTYPE),
                       preferred_element_type=jnp.float32)

    h = _gelu(mm(x, w0) + b0)
    res = h
    for i in range(NUM_BLOCKS):
        h1 = _bn_eval(_gelu(mm(h, wa[i]) + ba[i]), ga[i], bta[i], ma[i], va[i])
        h2 = _bn_eval(_gelu(mm(h1, wb[i]) + bb[i]), gb[i], btb[i], mb[i], vb[i])
        h = h2 + res
        res = h
    return mm(h, w1) + b1


if __name__ == "__main__":
    # Small shapes consistent with the module: in_dim=256 (vs 15724), h=128
    # (vs 4096), out_dim=64, batch=256 (two 128-row MXU tiles -> 2 grid steps).
    in_dim, hdim, out_dim, batch = 256, 128, 64, 256

    key = jax.random.PRNGKey(0)
    kx, kp = jax.random.split(key)
    x = jax.random.normal(kx, (batch, in_dim), jnp.float32)
    raw = init_params(kp, in_dim, hdim, out_dim)

    kernel_params = fold_params(raw)
    out = brain_network_forward(x, kernel_params, bm=128)
    out = jax.block_until_ready(out)

    ref = reference_forward(x, raw)
    assert out.shape == (batch, out_dim)
    max_err = float(jnp.max(jnp.abs(out - ref)))
    assert jnp.allclose(out, ref, rtol=5e-2, atol=5e-2), max_err

    print("KERNEL_OK")
</pallas_src>

<mosaic_0001>
module attributes {stable_mosaic.version = 11 : i64} {
  func.func @_brain_kernel(%arg0: i32, %arg1: memref<128x256xbf16, #tpu.memory_space<vmem>>, %arg2: memref<256x128xbf16, #tpu.memory_space<vmem>>, %arg3: memref<1x128xf32, #tpu.memory_space<vmem>>, %arg4: memref<5x128x128xbf16, #tpu.memory_space<vmem>>, %arg5: memref<5x1x128xf32, #tpu.memory_space<vmem>>, %arg6: memref<5x128x128xbf16, #tpu.memory_space<vmem>>, %arg7: memref<5x1x128xf32, #tpu.memory_space<vmem>>, %arg8: memref<5x1x128xf32, #tpu.memory_space<vmem>>, %arg9: memref<5x1x128xf32, #tpu.memory_space<vmem>>, %arg10: memref<128x128xbf16, #tpu.memory_space<vmem>>, %arg11: memref<1x128xf32, #tpu.memory_space<vmem>>, %arg12: memref<128x128xf32, #tpu.memory_space<vmem>>) attributes {dimension_semantics = [#tpu.dimension_semantics<parallel>], iteration_bounds = array<i64: 2>, scalar_prefetch = 0 : i64, scratch_operands = 0 : i64, tpu.core_type = #tpu.core_type<tc>, window_params = [{transform_indices = @transform_0, window_bounds = array<i64: 128, 256>}, {pipeline_mode = #tpu.pipeline_mode<synchronous>, transform_indices = @transform_1, window_bounds = array<i64: 256, 128>}, {pipeline_mode = #tpu.pipeline_mode<synchronous>, transform_indices = @transform_2, window_bounds = array<i64: 1, 128>}, {pipeline_mode = #tpu.pipeline_mode<synchronous>, transform_indices = @transform_3, window_bounds = array<i64: 5, 128, 128>}, {pipeline_mode = #tpu.pipeline_mode<synchronous>, transform_indices = @transform_4, window_bounds = array<i64: 5, 1, 128>}, {pipeline_mode = #tpu.pipeline_mode<synchronous>, transform_indices = @transform_5, window_bounds = array<i64: 5, 128, 128>}, {pipeline_mode = #tpu.pipeline_mode<synchronous>, transform_indices = @transform_6, window_bounds = array<i64: 5, 1, 128>}, {pipeline_mode = #tpu.pipeline_mode<synchronous>, transform_indices = @transform_7, window_bounds = array<i64: 5, 1, 128>}, {pipeline_mode = #tpu.pipeline_mode<synchronous>, transform_indices = @transform_8, window_bounds = array<i64: 5, 1, 128>}, {pipeline_mode = #tpu.pipeline_mode<synchronous>, transform_indices = @transform_9, window_bounds = array<i64: 128, 128>}, {pipeline_mode = #tpu.pipeline_mode<synchronous>, transform_indices = @transform_10, window_bounds = array<i64: 1, 128>}, {transform_indices = @transform_11, window_bounds = array<i64: 128, 128>}]} {
    %c0 = arith.constant 0 : index
    %c0_0 = arith.constant 0 : index
    %0 = vector.load %arg1[%c0, %c0_0] : memref<128x256xbf16, #tpu.memory_space<vmem>>, vector<128x256xbf16>
    %c0_1 = arith.constant 0 : index
    %c0_2 = arith.constant 0 : index
    %1 = vector.load %arg2[%c0_1, %c0_2] : memref<256x128xbf16, #tpu.memory_space<vmem>>, vector<256x128xbf16>
    %cst = arith.constant dense<0.000000e+00> : vector<128x128xf32>
    %2 = tpu.matmul %0, %1, %cst {dimension_numbers = #tpu.dot_dimension_numbers<[1], [0], [0], [1], [0, 0, 1, 1], [], []>} : vector<128x256xbf16>, vector<256x128xbf16>, vector<128x128xf32> -> vector<128x128xf32>
    %c0_3 = arith.constant 0 : index
    %c0_4 = arith.constant 0 : index
    %3 = vector.load %arg3[%c0_3, %c0_4] : memref<1x128xf32, #tpu.memory_space<vmem>>, vector<1x128xf32>
    %4 = vector.broadcast %3 : vector<1x128xf32> to vector<128x128xf32>
    %5 = arith.addf %2, %4 : vector<128x128xf32>
    %cst_5 = arith.constant 5.000000e-01 : f32
    %6 = vector.broadcast %cst_5 : f32 to vector<128x128xf32>
    %7 = arith.mulf %6, %5 : vector<128x128xf32>
    %cst_6 = arith.constant 0.707106769 : f32
    %8 = vector.broadcast %cst_6 : f32 to vector<128x128xf32>
    %9 = arith.mulf %5, %8 : vector<128x128xf32>
    %10 = math.erf %9 : vector<128x128xf32>
    %cst_7 = arith.constant 1.000000e+00 : f32
    %11 = vector.broadcast %cst_7 : f32 to vector<128x128xf32>
    %12 = arith.addf %11, %10 : vector<128x128xf32>
    %13 = arith.mulf %7, %12 : vector<128x128xf32>
    %14 = arith.truncf %13 : vector<128x128xf32> to vector<128x128xbf16>
    %c0_8 = arith.constant 0 : index
    %c0_9 = arith.constant 0 : index
    %c0_10 = arith.constant 0 : index
    %15 = vector.load %arg4[%c0_8, %c0_9, %c0_10] : memref<5x128x128xbf16, #tpu.memory_space<vmem>>, vector<1x128x128xbf16>
    %16 = vector.shape_cast %15 : vector<1x128x128xbf16> to vector<128x128xbf16>
    %cst_11 = arith.constant dense<0.000000e+00> : vector<128x128xf32>
    %17 = tpu.matmul %14, %16, %cst_11 {dimension_numbers = #tpu.dot_dimension_numbers<[1], [0], [0], [1], [0, 0, 1, 1], [], []>} : vector<128x128xbf16>, vector<128x128xbf16>, vector<128x128xf32> -> vector<128x128xf32>
    %c0_12 = arith.constant 0 : index
    %c0_13 = arith.constant 0 : index
    %c0_14 = arith.constant 0 : index
    %18 = vector.load %arg5[%c0_12, %c0_13, %c0_14] : memref<5x1x128xf32, #tpu.memory_space<vmem>>, vector<1x1x128xf32>
    %19 = vector.shape_cast %18 : vector<1x1x128xf32> to vector<1x128xf32>
    %20 = vector.broadcast %19 : vector<1x128xf32> to vector<128x128xf32>
    %21 = arith.addf %17, %20 : vector<128x128xf32>
    %cst_15 = arith.constant 5.000000e-01 : f32
    %22 = vector.broadcast %cst_15 : f32 to vector<128x128xf32>
    %23 = arith.mulf %22, %21 : vector<128x128xf32>
    %cst_16 = arith.constant 0.707106769 : f32
    %24 = vector.broadcast %cst_16 : f32 to vector<128x128xf32>
    %25 = arith.mulf %21, %24 : vector<128x128xf32>
    %26 = math.erf %25 : vector<128x128xf32>
    %cst_17 = arith.constant 1.000000e+00 : f32
    %27 = vector.broadcast %cst_17 : f32 to vector<128x128xf32>
    %28 = arith.addf %27, %26 : vector<128x128xf32>
    %29 = arith.mulf %23, %28 : vector<128x128xf32>
    %30 = arith.truncf %29 : vector<128x128xf32> to vector<128x128xbf16>
    %c0_18 = arith.constant 0 : index
    %c0_19 = arith.constant 0 : index
    %c0_20 = arith.constant 0 : index
    %31 = vector.load %arg6[%c0_18, %c0_19, %c0_20] : memref<5x128x128xbf16, #tpu.memory_space<vmem>>, vector<1x128x128xbf16>
    %32 = vector.shape_cast %31 : vector<1x128x128xbf16> to vector<128x128xbf16>
    %cst_21 = arith.constant dense<0.000000e+00> : vector<128x128xf32>
    %33 = tpu.matmul %30, %32, %cst_21 {dimension_numbers = #tpu.dot_dimension_numbers<[1], [0], [0], [1], [0, 0, 1, 1], [], []>} : vector<128x128xbf16>, vector<128x128xbf16>, vector<128x128xf32> -> vector<128x128xf32>
    %c0_22 = arith.constant 0 : index
    %c0_23 = arith.constant 0 : index
    %c0_24 = arith.constant 0 : index
    %34 = vector.load %arg7[%c0_22, %c0_23, %c0_24] : memref<5x1x128xf32, #tpu.memory_space<vmem>>, vector<1x1x128xf32>
    %35 = vector.shape_cast %34 : vector<1x1x128xf32> to vector<1x128xf32>
    %36 = vector.broadcast %35 : vector<1x128xf32> to vector<128x128xf32>
    %37 = arith.addf %33, %36 : vector<128x128xf32>
    %cst_25 = arith.constant 5.000000e-01 : f32
    %38 = vector.broadcast %cst_25 : f32 to vector<128x128xf32>
    %39 = arith.mulf %38, %37 : vector<128x128xf32>
    %cst_26 = arith.constant 0.707106769 : f32
    %40 = vector.broadcast %cst_26 : f32 to vector<128x128xf32>
    %41 = arith.mulf %37, %40 : vector<128x128xf32>
    %42 = math.erf %41 : vector<128x128xf32>
    %cst_27 = arith.constant 1.000000e+00 : f32
    %43 = vector.broadcast %cst_27 : f32 to vector<128x128xf32>
    %44 = arith.addf %43, %42 : vector<128x128xf32>
    %45 = arith.mulf %39, %44 : vector<128x128xf32>
    %c0_28 = arith.constant 0 : index
    %c0_29 = arith.constant 0 : index
    %c0_30 = arith.constant 0 : index
    %46 = vector.load %arg8[%c0_28, %c0_29, %c0_30] : memref<5x1x128xf32, #tpu.memory_space<vmem>>, vector<1x1x128xf32>
    %47 = vector.shape_cast %46 : vector<1x1x128xf32> to vector<1x128xf32>
    %48 = vector.broadcast %47 : vector<1x128xf32> to vector<128x128xf32>
    %49 = arith.mulf %45, %48 : vector<128x128xf32>
    %c0_31 = arith.constant 0 : index
    %c0_32 = arith.constant 0 : index
    %c0_33 = arith.constant 0 : index
    %50 = vector.load %arg9[%c0_31, %c0_32, %c0_33] : memref<5x1x128xf32, #tpu.memory_space<vmem>>, vector<1x1x128xf32>
    %51 = vector.shape_cast %50 : vector<1x1x128xf32> to vector<1x128xf32>
    %52 = vector.broadcast %51 : vector<1x128xf32> to vector<128x128xf32>
    %53 = arith.addf %49, %52 : vector<128x128xf32>
    %54 = arith.addf %53, %13 : vector<128x128xf32>
    %55 = arith.truncf %54 : vector<128x128xf32> to vector<128x128xbf16>
    %c1 = arith.constant 1 : index
    %c0_34 = arith.constant 0 : index
    %c0_35 = arith.constant 0 : index
    %56 = vector.load %arg4[%c1, %c0_34, %c0_35] : memref<5x128x128xbf16, #tpu.memory_space<vmem>>, vector<1x128x128xbf16>
    %57 = vector.shape_cast %56 : vector<1x128x128xbf16> to vector<128x128xbf16>
    %cst_36 = arith.constant dense<0.000000e+00> : vector<128x128xf32>
    %58 = tpu.matmul %55, %57, %cst_36 {dimension_numbers = #tpu.dot_dimension_numbers<[1], [0], [0], [1], [0, 0, 1, 1], [], []>} : vector<128x128xbf16>, vector<128x128xbf16>, vector<128x128xf32> -> vector<128x128xf32>
    %c1_37 = arith.constant 1 : index
    %c0_38 = arith.constant 0 : index
    %c0_39 = arith.constant 0 : index
    %59 = vector.load %arg5[%c1_37, %c0_38, %c0_39] : memref<5x1x128xf32, #tpu.memory_space<vmem>>, vector<1x1x128xf32>
    %60 = vector.shape_cast %59 : vector<1x1x128xf32> to vector<1x128xf32>
    %61 = vector.broadcast %60 : vector<1x128xf32> to vector<128x128xf32>
    %62 = arith.addf %58, %61 : vector<128x128xf32>
    %cst_40 = arith.constant 5.000000e-01 : f32
    %63 = vector.broadcast %cst_40 : f32 to vector<128x128xf32>
    %64 = arith.mulf %63, %62 : vector<128x128xf32>
    %cst_41 = arith.constant 0.707106769 : f32
    %65 = vector.broadcast %cst_41 : f32 to vector<128x128xf32>
    %66 = arith.mulf %62, %65 : vector<128x128xf32>
    %67 = math.erf %66 : vector<128x128xf32>
    %cst_42 = arith.constant 1.000000e+00 : f32
    %68 = vector.broadcast %cst_42 : f32 to vector<128x128xf32>
    %69 = arith.addf %68, %67 : vector<128x128xf32>
    %70 = arith.mulf %64, %69 : vector<128x128xf32>
    %71 = arith.truncf %70 : vector<128x128xf32> to vector<128x128xbf16>
    %c1_43 = arith.constant 1 : index
    %c0_44 = arith.constant 0 : index
    %c0_45 = arith.constant 0 : index
    %72 = vector.load %arg6[%c1_43, %c0_44, %c0_45] : memref<5x128x128xbf16, #tpu.memory_space<vmem>>, vector<1x128x128xbf16>
    %73 = vector.shape_cast %72 : vector<1x128x128xbf16> to vector<128x128xbf16>
    %cst_46 = arith.constant dense<0.000000e+00> : vector<128x128xf32>
    %74 = tpu.matmul %71, %73, %cst_46 {dimension_numbers = #tpu.dot_dimension_numbers<[1], [0], [0], [1], [0, 0, 1, 1], [], []>} : vector<128x128xbf16>, vector<128x128xbf16>, vector<128x128xf32> -> vector<128x128xf32>
    %c1_47 = arith.constant 1 : index
    %c0_48 = arith.constant 0 : index
    %c0_49 = arith.constant 0 : index
    %75 = vector.load %arg7[%c1_47, %c0_48, %c0_49] : memref<5x1x128xf32, #tpu.memory_space<vmem>>, vector<1x1x128xf32>
    %76 = vector.shape_cast %75 : vector<1x1x128xf32> to vector<1x128xf32>
    %77 = vector.broadcast %76 : vector<1x128xf32> to vector<128x128xf32>
    %78 = arith.addf %74, %77 : vector<128x128xf32>
    %cst_50 = arith.constant 5.000000e-01 : f32
    %79 = vector.broadcast %cst_50 : f32 to vector<128x128xf32>
    %80 = arith.mulf %79, %78 : vector<128x128xf32>
    %cst_51 = arith.constant 0.707106769 : f32
    %81 = vector.broadcast %cst_51 : f32 to vector<128x128xf32>
    %82 = arith.mulf %78, %81 : vector<128x128xf32>
    %83 = math.erf %82 : vector<128x128xf32>
    %cst_52 = arith.constant 1.000000e+00 : f32
    %84 = vector.broadcast %cst_52 : f32 to vector<128x128xf32>
    %85 = arith.addf %84, %83 : vector<128x128xf32>
    %86 = arith.mulf %80, %85 : vector<128x128xf32>
    %c1_53 = arith.constant 1 : index
    %c0_54 = arith.constant 0 : index
    %c0_55 = arith.constant 0 : index
    %87 = vector.load %arg8[%c1_53, %c0_54, %c0_55] : memref<5x1x128xf32, #tpu.memory_space<vmem>>, vector<1x1x128xf32>
    %88 = vector.shape_cast %87 : vector<1x1x128xf32> to vector<1x128xf32>
    %89 = vector.broadcast %88 : vector<1x128xf32> to vector<128x128xf32>
    %90 = arith.mulf %86, %89 : vector<128x128xf32>
    %c1_56 = arith.constant 1 : index
    %c0_57 = arith.constant 0 : index
    %c0_58 = arith.constant 0 : index
    %91 = vector.load %arg9[%c1_56, %c0_57, %c0_58] : memref<5x1x128xf32, #tpu.memory_space<vmem>>, vector<1x1x128xf32>
    %92 = vector.shape_cast %91 : vector<1x1x128xf32> to vector<1x128xf32>
    %93 = vector.broadcast %92 : vector<1x128xf32> to vector<128x128xf32>
    %94 = arith.addf %90, %93 : vector<128x128xf32>
    %95 = arith.addf %94, %54 : vector<128x128xf32>
    %96 = arith.truncf %95 : vector<128x128xf32> to vector<128x128xbf16>
    %c2 = arith.constant 2 : index
    %c0_59 = arith.constant 0 : index
    %c0_60 = arith.constant 0 : index
    %97 = vector.load %arg4[%c2, %c0_59, %c0_60] : memref<5x128x128xbf16, #tpu.memory_space<vmem>>, vector<1x128x128xbf16>
    %98 = vector.shape_cast %97 : vector<1x128x128xbf16> to vector<128x128xbf16>
    %cst_61 = arith.constant dense<0.000000e+00> : vector<128x128xf32>
    %99 = tpu.matmul %96, %98, %cst_61 {dimension_numbers = #tpu.dot_dimension_numbers<[1], [0], [0], [1], [0, 0, 1, 1], [], []>} : vector<128x128xbf16>, vector<128x128xbf16>, vector<128x128xf32> -> vector<128x128xf32>
    %c2_62 = arith.constant 2 : index
    %c0_63 = arith.constant 0 : index
    %c0_64 = arith.constant 0 : index
    %100 = vector.load %arg5[%c2_62, %c0_63, %c0_64] : memref<5x1x128xf32, #tpu.memory_space<vmem>>, vector<1x1x128xf32>
    %101 = vector.shape_cast %100 : vector<1x1x128xf32> to vector<1x128xf32>
    %102 = vector.broadcast %101 : vector<1x128xf32> to vector<128x128xf32>
    %103 = arith.addf %99, %102 : vector<128x128xf32>
    %cst_65 = arith.constant 5.000000e-01 : f32
    %104 = vector.broadcast %cst_65 : f32 to vector<128x128xf32>
    %105 = arith.mulf %104, %103 : vector<128x128xf32>
    %cst_66 = arith.constant 0.707106769 : f32
    %106 = vector.broadcast %cst_66 : f32 to vector<128x128xf32>
    %107 = arith.mulf %103, %106 : vector<128x128xf32>
    %108 = math.erf %107 : vector<128x128xf32>
    %cst_67 = arith.constant 1.000000e+00 : f32
    %109 = vector.broadcast %cst_67 : f32 to vector<128x128xf32>
    %110 = arith.addf %109, %108 : vector<128x128xf32>
    %111 = arith.mulf %105, %110 : vector<128x128xf32>
    %112 = arith.truncf %111 : vector<128x128xf32> to vector<128x128xbf16>
    %c2_68 = arith.constant 2 : index
    %c0_69 = arith.constant 0 : index
    %c0_70 = arith.constant 0 : index
    %113 = vector.load %arg6[%c2_68, %c0_69, %c0_70] : memref<5x128x128xbf16, #tpu.memory_space<vmem>>, vector<1x128x128xbf16>
    %114 = vector.shape_cast %113 : vector<1x128x128xbf16> to vector<128x128xbf16>
    %cst_71 = arith.constant dense<0.000000e+00> : vector<128x128xf32>
    %115 = tpu.matmul %112, %114, %cst_71 {dimension_numbers = #tpu.dot_dimension_numbers<[1], [0], [0], [1], [0, 0, 1, 1], [], []>} : vector<128x128xbf16>, vector<128x128xbf16>, vector<128x128xf32> -> vector<128x128xf32>
    %c2_72 = arith.constant 2 : index
    %c0_73 = arith.constant 0 : index
    %c0_74 = arith.constant 0 : index
    %116 = vector.load %arg7[%c2_72, %c0_73, %c0_74] : memref<5x1x128xf32, #tpu.memory_space<vmem>>, vector<1x1x128xf32>
    %117 = vector.shape_cast %116 : vector<1x1x128xf32> to vector<1x128xf32>
    %118 = vector.broadcast %117 : vector<1x128xf32> to vector<128x128xf32>
    %119 = arith.addf %115, %118 : vector<128x128xf32>
    %cst_75 = arith.constant 5.000000e-01 : f32
    %120 = vector.broadcast %cst_75 : f32 to vector<128x128xf32>
    %121 = arith.mulf %120, %119 : vector<128x128xf32>
    %cst_76 = arith.constant 0.707106769 : f32
    %122 = vector.broadcast %cst_76 : f32 to vector<128x128xf32>
    %123 = arith.mulf %119, %122 : vector<128x128xf32>
    %124 = math.erf %123 : vector<128x128xf32>
    %cst_77 = arith.constant 1.000000e+00 : f32
    %125 = vector.broadcast %cst_77 : f32 to vector<128x128xf32>
    %126 = arith.addf %125, %124 : vector<128x128xf32>
    %127 = arith.mulf %121, %126 : vector<128x128xf32>
    %c2_78 = arith.constant 2 : index
    %c0_79 = arith.constant 0 : index
    %c0_80 = arith.constant 0 : index
    %128 = vector.load %arg8[%c2_78, %c0_79, %c0_80] : memref<5x1x128xf32, #tpu.memory_space<vmem>>, vector<1x1x128xf32>
    %129 = vector.shape_cast %128 : vector<1x1x128xf32> to vector<1x128xf32>
    %130 = vector.broadcast %129 : vector<1x128xf32> to vector<128x128xf32>
    %131 = arith.mulf %127, %130 : vector<128x128xf32>
    %c2_81 = arith.constant 2 : index
    %c0_82 = arith.constant 0 : index
    %c0_83 = arith.constant 0 : index
    %132 = vector.load %arg9[%c2_81, %c0_82, %c0_83] : memref<5x1x128xf32, #tpu.memory_space<vmem>>, vector<1x1x128xf32>
    %133 = vector.shape_cast %132 : vector<1x1x128xf32> to vector<1x128xf32>
    %134 = vector.broadcast %133 : vector<1x128xf32> to vector<128x128xf32>
    %135 = arith.addf %131, %134 : vector<128x128xf32>
    %136 = arith.addf %135, %95 : vector<128x128xf32>
    %137 = arith.truncf %136 : vector<128x128xf32> to vector<128x128xbf16>
    %c3 = arith.constant 3 : index
    %c0_84 = arith.constant 0 : index
    %c0_85 = arith.constant 0 : index
    %138 = vector.load %arg4[%c3, %c0_84, %c0_85] : memref<5x128x128xbf16, #tpu.memory_space<vmem>>, vector<1x128x128xbf16>
    %139 = vector.shape_cast %138 : vector<1x128x128xbf16> to vector<128x128xbf16>
    %cst_86 = arith.constant dense<0.000000e+00> : vector<128x128xf32>
    %140 = tpu.matmul %137, %139, %cst_86 {dimension_numbers = #tpu.dot_dimension_numbers<[1], [0], [0], [1], [0, 0, 1, 1], [], []>} : vector<128x128xbf16>, vector<128x128xbf16>, vector<128x128xf32> -> vector<128x128xf32>
    %c3_87 = arith.constant 3 : index
    %c0_88 = arith.constant 0 : index
    %c0_89 = arith.constant 0 : index
    %141 = vector.load %arg5[%c3_87, %c0_88, %c0_89] : memref<5x1x128xf32, #tpu.memory_space<vmem>>, vector<1x1x128xf32>
    %142 = vector.shape_cast %141 : vector<1x1x128xf32> to vector<1x128xf32>
    %143 = vector.broadcast %142 : vector<1x128xf32> to vector<128x128xf32>
    %144 = arith.addf %140, %143 : vector<128x128xf32>
    %cst_90 = arith.constant 5.000000e-01 : f32
    %145 = vector.broadcast %cst_90 : f32 to vector<128x128xf32>
    %146 = arith.mulf %145, %144 : vector<128x128xf32>
    %cst_91 = arith.constant 0.707106769 : f32
    %147 = vector.broadcast %cst_91 : f32 to vector<128x128xf32>
    %148 = arith.mulf %144, %147 : vector<128x128xf32>
    %149 = math.erf %148 : vector<128x128xf32>
    %cst_92 = arith.constant 1.000000e+00 : f32
    %150 = vector.broadcast %cst_92 : f32 to vector<128x128xf32>
    %151 = arith.addf %150, %149 : vector<128x128xf32>
    %152 = arith.mulf %146, %151 : vector<128x128xf32>
    %153 = arith.truncf %152 : vector<128x128xf32> to vector<128x128xbf16>
    %c3_93 = arith.constant 3 : index
    %c0_94 = arith.constant 0 : index
    %c0_95 = arith.constant 0 : index
    %154 = vector.load %arg6[%c3_93, %c0_94, %c0_95] : memref<5x128x128xbf16, #tpu.memory_space<vmem>>, vector<1x128x128xbf16>
    %155 = vector.shape_cast %154 : vector<1x128x128xbf16> to vector<128x128xbf16>
    %cst_96 = arith.constant dense<0.000000e+00> : vector<128x128xf32>
    %156 = tpu.matmul %153, %155, %cst_96 {dimension_numbers = #tpu.dot_dimension_numbers<[1], [0], [0], [1], [0, 0, 1, 1], [], []>} : vector<128x128xbf16>, vector<128x128xbf16>, vector<128x128xf32> -> vector<128x128xf32>
    %c3_97 = arith.constant 3 : index
    %c0_98 = arith.constant 0 : index
    %c0_99 = arith.constant 0 : index
    %157 = vector.load %arg7[%c3_97, %c0_98, %c0_99] : memref<5x1x128xf32, #tpu.memory_space<vmem>>, vector<1x1x128xf32>
    %158 = vector.shape_cast %157 : vector<1x1x128xf32> to vector<1x128xf32>
    %159 = vector.broadcast %158 : vector<1x128xf32> to vector<128x128xf32>
    %160 = arith.addf %156, %159 : vector<128x128xf32>
    %cst_100 = arith.constant 5.000000e-01 : f32
    %161 = vector.broadcast %cst_100 : f32 to vector<128x128xf32>
    %162 = arith.mulf %161, %160 : vector<128x128xf32>
    %cst_101 = arith.constant 0.707106769 : f32
    %163 = vector.broadcast %cst_101 : f32 to vector<128x128xf32>
    %164 = arith.mulf %160, %163 : vector<128x128xf32>
    %165 = math.erf %164 : vector<128x128xf32>
    %cst_102 = arith.constant 1.000000e+00 : f32
    %166 = vector.broadcast %cst_102 : f32 to vector<128x128xf32>
    %167 = arith.addf %166, %165 : vector<128x128xf32>
    %168 = arith.mulf %162, %167 : vector<128x128xf32>
    %c3_103 = arith.constant 3 : index
    %c0_104 = arith.constant 0 : index
    %c0_105 = arith.constant 0 : index
    %169 = vector.load %arg8[%c3_103, %c0_104, %c0_105] : memref<5x1x128xf32, #tpu.memory_space<vmem>>, vector<1x1x128xf32>
    %170 = vector.shape_cast %169 : vector<1x1x128xf32> to vector<1x128xf32>
    %171 = vector.broadcast %170 : vector<1x128xf32> to vector<128x128xf32>
    %172 = arith.mulf %168, %171 : vector<128x128xf32>
    %c3_106 = arith.constant 3 : index
    %c0_107 = arith.constant 0 : index
    %c0_108 = arith.constant 0 : index
    %173 = vector.load %arg9[%c3_106, %c0_107, %c0_108] : memref<5x1x128xf32, #tpu.memory_space<vmem>>, vector<1x1x128xf32>
    %174 = vector.shape_cast %173 : vector<1x1x128xf32> to vector<1x128xf32>
    %175 = vector.broadcast %174 : vector<1x128xf32> to vector<128x128xf32>
    %176 = arith.addf %172, %175 : vector<128x128xf32>
    %177 = arith.addf %176, %136 : vector<128x128xf32>
    %178 = arith.truncf %177 : vector<128x128xf32> to vector<128x128xbf16>
    %c4 = arith.constant 4 : index
    %c0_109 = arith.constant 0 : index
    %c0_110 = arith.constant 0 : index
    %179 = vector.load %arg4[%c4, %c0_109, %c0_110] : memref<5x128x128xbf16, #tpu.memory_space<vmem>>, vector<1x128x128xbf16>
    %180 = vector.shape_cast %179 : vector<1x128x128xbf16> to vector<128x128xbf16>
    %cst_111 = arith.constant dense<0.000000e+00> : vector<128x128xf32>
    %181 = tpu.matmul %178, %180, %cst_111 {dimension_numbers = #tpu.dot_dimension_numbers<[1], [0], [0], [1], [0, 0, 1, 1], [], []>} : vector<128x128xbf16>, vector<128x128xbf16>, vector<128x128xf32> -> vector<128x128xf32>
    %c4_112 = arith.constant 4 : index
    %c0_113 = arith.constant 0 : index
    %c0_114 = arith.constant 0 : index
    %182 = vector.load %arg5[%c4_112, %c0_113, %c0_114] : memref<5x1x128xf32, #tpu.memory_space<vmem>>, vector<1x1x128xf32>
    %183 = vector.shape_cast %182 : vector<1x1x128xf32> to vector<1x128xf32>
    %184 = vector.broadcast %183 : vector<1x128xf32> to vector<128x128xf32>
    %185 = arith.addf %181, %184 : vector<128x128xf32>
    %cst_115 = arith.constant 5.000000e-01 : f32
    %186 = vector.broadcast %cst_115 : f32 to vector<128x128xf32>
    %187 = arith.mulf %186, %185 : vector<128x128xf32>
    %cst_116 = arith.constant 0.707106769 : f32
    %188 = vector.broadcast %cst_116 : f32 to vector<128x128xf32>
    %189 = arith.mulf %185, %188 : vector<128x128xf32>
    %190 = math.erf %189 : vector<128x128xf32>
    %cst_117 = arith.constant 1.000000e+00 : f32
    %191 = vector.broadcast %cst_117 : f32 to vector<128x128xf32>
    %192 = arith.addf %191, %190 : vector<128x128xf32>
    %193 = arith.mulf %187, %192 : vector<128x128xf32>
    %194 = arith.truncf %193 : vector<128x128xf32> to vector<128x128xbf16>
    %c4_118 = arith.constant 4 : index
    %c0_119 = arith.constant 0 : index
    %c0_120 = arith.constant 0 : index
    %195 = vector.load %arg6[%c4_118, %c0_119, %c0_120] : memref<5x128x128xbf16, #tpu.memory_space<vmem>>, vector<1x128x128xbf16>
    %196 = vector.shape_cast %195 : vector<1x128x128xbf16> to vector<128x128xbf16>
    %cst_121 = arith.constant dense<0.000000e+00> : vector<128x128xf32>
    %197 = tpu.matmul %194, %196, %cst_121 {dimension_numbers = #tpu.dot_dimension_numbers<[1], [0], [0], [1], [0, 0, 1, 1], [], []>} : vector<128x128xbf16>, vector<128x128xbf16>, vector<128x128xf32> -> vector<128x128xf32>
    %c4_122 = arith.constant 4 : index
    %c0_123 = arith.constant 0 : index
    %c0_124 = arith.constant 0 : index
    %198 = vector.load %arg7[%c4_122, %c0_123, %c0_124] : memref<5x1x128xf32, #tpu.memory_space<vmem>>, vector<1x1x128xf32>
    %199 = vector.shape_cast %198 : vector<1x1x128xf32> to vector<1x128xf32>
    %200 = vector.broadcast %199 : vector<1x128xf32> to vector<128x128xf32>
    %201 = arith.addf %197, %200 : vector<128x128xf32>
    %cst_125 = arith.constant 5.000000e-01 : f32
    %202 = vector.broadcast %cst_125 : f32 to vector<128x128xf32>
    %203 = arith.mulf %202, %201 : vector<128x128xf32>
    %cst_126 = arith.constant 0.707106769 : f32
    %204 = vector.broadcast %cst_126 : f32 to vector<128x128xf32>
    %205 = arith.mulf %201, %204 : vector<128x128xf32>
    %206 = math.erf %205 : vector<128x128xf32>
    %cst_127 = arith.constant 1.000000e+00 : f32
    %207 = vector.broadcast %cst_127 : f32 to vector<128x128xf32>
    %208 = arith.addf %207, %206 : vector<128x128xf32>
    %209 = arith.mulf %203, %208 : vector<128x128xf32>
    %c4_128 = arith.constant 4 : index
    %c0_129 = arith.constant 0 : index
    %c0_130 = arith.constant 0 : index
    %210 = vector.load %arg8[%c4_128, %c0_129, %c0_130] : memref<5x1x128xf32, #tpu.memory_space<vmem>>, vector<1x1x128xf32>
    %211 = vector.shape_cast %210 : vector<1x1x128xf32> to vector<1x128xf32>
    %212 = vector.broadcast %211 : vector<1x128xf32> to vector<128x128xf32>
    %213 = arith.mulf %209, %212 : vector<128x128xf32>
    %c4_131 = arith.constant 4 : index
    %c0_132 = arith.constant 0 : index
    %c0_133 = arith.constant 0 : index
    %214 = vector.load %arg9[%c4_131, %c0_132, %c0_133] : memref<5x1x128xf32, #tpu.memory_space<vmem>>, vector<1x1x128xf32>
    %215 = vector.shape_cast %214 : vector<1x1x128xf32> to vector<1x128xf32>
    %216 = vector.broadcast %215 : vector<1x128xf32> to vector<128x128xf32>
    %217 = arith.addf %213, %216 : vector<128x128xf32>
    %218 = arith.addf %217, %177 : vector<128x128xf32>
    %219 = arith.truncf %218 : vector<128x128xf32> to vector<128x128xbf16>
    %c0_134 = arith.constant 0 : index
    %c0_135 = arith.constant 0 : index
    %220 = vector.load %arg10[%c0_134, %c0_135] : memref<128x128xbf16, #tpu.memory_space<vmem>>, vector<128x128xbf16>
    %cst_136 = arith.constant dense<0.000000e+00> : vector<128x128xf32>
    %221 = tpu.matmul %219, %220, %cst_136 {dimension_numbers = #tpu.dot_dimension_numbers<[1], [0], [0], [1], [0, 0, 1, 1], [], []>} : vector<128x128xbf16>, vector<128x128xbf16>, vector<128x128xf32> -> vector<128x128xf32>
    %c0_137 = arith.constant 0 : index
    %c0_138 = arith.constant 0 : index
    %222 = vector.load %arg11[%c0_137, %c0_138] : memref<1x128xf32, #tpu.memory_space<vmem>>, vector<1x128xf32>
    %223 = vector.broadcast %222 : vector<1x128xf32> to vector<128x128xf32>
    %224 = arith.addf %221, %223 : vector<128x128xf32>
    %c0_139 = arith.constant 0 : index
    %c0_140 = arith.constant 0 : index
    %225 = vector.load %arg12[%c0_139, %c0_140] : memref<128x128xf32, #tpu.memory_space<vmem>>, vector<128x128xf32>
    tpu.vector_store %arg12[%c0_139, %c0_140], %224 {strides = array<i32>} : memref<128x128xf32, #tpu.memory_space<vmem>>, vector<128x128xf32>,
    return
  }
  func.func @transform_0(%arg0: i32) -> (i32, i32) {
    %c0_i32 = arith.constant 0 : i32
    %c0_i32_0 = arith.constant 0 : i32
    return %arg0, %c0_i32 : i32, i32
  }
  func.func @transform_1(%arg0: i32) -> (i32, i32) {
    %c0_i32 = arith.constant 0 : i32
    %c0_i32_0 = arith.constant 0 : i32
    %c0_i32_1 = arith.constant 0 : i32
    return %c0_i32, %c0_i32_0 : i32, i32
  }
  func.func @transform_2(%arg0: i32) -> (i32, i32) {
    %c0_i32 = arith.constant 0 : i32
    %c0_i32_0 = arith.constant 0 : i32
    %c0_i32_1 = arith.constant 0 : i32
    return %c0_i32, %c0_i32_0 : i32, i32
  }
  func.func @transform_3(%arg0: i32) -> (i32, i32, i32) {
    %c0_i32 = arith.constant 0 : i32
    %c0_i32_0 = arith.constant 0 : i32
    %c0_i32_1 = arith.constant 0 : i32
    %c0_i32_2 = arith.constant 0 : i32
    return %c0_i32, %c0_i32_0, %c0_i32_1 : i32, i32, i32
  }
  func.func @transform_4(%arg0: i32) -> (i32, i32, i32) {
    %c0_i32 = arith.constant 0 : i32
    %c0_i32_0 = arith.constant 0 : i32
    %c0_i32_1 = arith.constant 0 : i32
    %c0_i32_2 = arith.constant 0 : i32
    return %c0_i32, %c0_i32_0, %c0_i32_1 : i32, i32, i32
  }
  func.func @transform_5(%arg0: i32) -> (i32, i32, i32) {
    %c0_i32 = arith.constant 0 : i32
    %c0_i32_0 = arith.constant 0 : i32
    %c0_i32_1 = arith.constant 0 : i32
    %c0_i32_2 = arith.constant 0 : i32
    return %c0_i32, %c0_i32_0, %c0_i32_1 : i32, i32, i32
  }
  func.func @transform_6(%arg0: i32) -> (i32, i32, i32) {
    %c0_i32 = arith.constant 0 : i32
    %c0_i32_0 = arith.constant 0 : i32
    %c0_i32_1 = arith.constant 0 : i32
    %c0_i32_2 = arith.constant 0 : i32
    return %c0_i32, %c0_i32_0, %c0_i32_1 : i32, i32, i32
  }
  func.func @transform_7(%arg0: i32) -> (i32, i32, i32) {
    %c0_i32 = arith.constant 0 : i32
    %c0_i32_0 = arith.constant 0 : i32
    %c0_i32_1 = arith.constant 0 : i32
    %c0_i32_2 = arith.constant 0 : i32
    return %c0_i32, %c0_i32_0, %c0_i32_1 : i32, i32, i32
  }
  func.func @transform_8(%arg0: i32) -> (i32, i32, i32) {
    %c0_i32 = arith.constant 0 : i32
    %c0_i32_0 = arith.constant 0 : i32
    %c0_i32_1 = arith.constant 0 : i32
    %c0_i32_2 = arith.constant 0 : i32
    return %c0_i32, %c0_i32_0, %c0_i32_1 : i32, i32, i32
  }
  func.func @transform_9(%arg0: i32) -> (i32, i32) {
    %c0_i32 = arith.constant 0 : i32
    %c0_i32_0 = arith.constant 0 : i32
    %c0_i32_1 = arith.constant 0 : i32
    return %c0_i32, %c0_i32_0 : i32, i32
  }
  func.func @transform_10(%arg0: i32) -> (i32, i32) {
    %c0_i32 = arith.constant 0 : i32
    %c0_i32_0 = arith.constant 0 : i32
    %c0_i32_1 = arith.constant 0 : i32
    return %c0_i32, %c0_i32_0 : i32, i32
  }
  func.func @transform_11(%arg0: i32) -> (i32, i32) {
    %c0_i32 = arith.constant 0 : i32
    %c0_i32_0 = arith.constant 0 : i32
    return %arg0, %c0_i32 : i32, i32
  }
}

module attributes {stable_mosaic.version = 11 : i64} {
  func.func @_brain_kernel(%arg0: i32, %arg1: memref<128x256xbf16, #tpu.memory_space<vmem>>, %arg2: memref<256x128xbf16, #tpu.memory_space<vmem>>, %arg3: memref<1x128xf32, #tpu.memory_space<vmem>>, %arg4: memref<5x128x128xbf16, #tpu.memory_space<vmem>>, %arg5: memref<5x1x128xf32, #tpu.memory_space<vmem>>, %arg6: memref<5x128x128xbf16, #tpu.memory_space<vmem>>, %arg7: memref<5x1x128xf32, #tpu.memory_space<vmem>>, %arg8: memref<5x1x128xf32, #tpu.memory_space<vmem>>, %arg9: memref<5x1x128xf32, #tpu.memory_space<vmem>>, %arg10: memref<128x128xbf16, #tpu.memory_space<vmem>>, %arg11: memref<1x128xf32, #tpu.memory_space<vmem>>, %arg12: memref<128x128xf32, #tpu.memory_space<vmem>>) attributes {dimension_semantics = [#tpu.dimension_semantics<parallel>], iteration_bounds = array<i64: 2>, scalar_prefetch = 0 : i64, scratch_operands = 0 : i64, tpu.core_type = #tpu.core_type<tc>, window_params = [{transform_indices = @transform_0, window_bounds = array<i64: 128, 256>}, {pipeline_mode = #tpu.pipeline_mode<synchronous>, transform_indices = @transform_1, window_bounds = array<i64: 256, 128>}, {pipeline_mode = #tpu.pipeline_mode<synchronous>, transform_indices = @transform_2, window_bounds = array<i64: 1, 128>}, {pipeline_mode = #tpu.pipeline_mode<synchronous>, transform_indices = @transform_3, window_bounds = array<i64: 5, 128, 128>}, {pipeline_mode = #tpu.pipeline_mode<synchronous>, transform_indices = @transform_4, window_bounds = array<i64: 5, 1, 128>}, {pipeline_mode = #tpu.pipeline_mode<synchronous>, transform_indices = @transform_5, window_bounds = array<i64: 5, 128, 128>}, {pipeline_mode = #tpu.pipeline_mode<synchronous>, transform_indices = @transform_6, window_bounds = array<i64: 5, 1, 128>}, {pipeline_mode = #tpu.pipeline_mode<synchronous>, transform_indices = @transform_7, window_bounds = array<i64: 5, 1, 128>}, {pipeline_mode = #tpu.pipeline_mode<synchronous>, transform_indices = @transform_8, window_bounds = array<i64: 5, 1, 128>}, {pipeline_mode = #tpu.pipeline_mode<synchronous>, transform_indices = @transform_9, window_bounds = array<i64: 128, 128>}, {pipeline_mode = #tpu.pipeline_mode<synchronous>, transform_indices = @transform_10, window_bounds = array<i64: 1, 128>}, {transform_indices = @transform_11, window_bounds = array<i64: 128, 128>}]} {
    %c0 = arith.constant 0 : index
    %c0_0 = arith.constant 0 : index
    %0 = vector.load %arg1[%c0, %c0_0] : memref<128x256xbf16, #tpu.memory_space<vmem>>, vector<128x256xbf16>
    %c0_1 = arith.constant 0 : index
    %c0_2 = arith.constant 0 : index
    %1 = vector.load %arg2[%c0_1, %c0_2] : memref<256x128xbf16, #tpu.memory_space<vmem>>, vector<256x128xbf16>
    %cst = arith.constant dense<0.000000e+00> : vector<128x128xf32>
    %2 = tpu.matmul %0, %1, %cst {dimension_numbers = #tpu.dot_dimension_numbers<[1], [0], [0], [1], [0, 0, 1, 1], [], []>} : vector<128x256xbf16>, vector<256x128xbf16>, vector<128x128xf32> -> vector<128x128xf32>
    %c0_3 = arith.constant 0 : index
    %c0_4 = arith.constant 0 : index
    %3 = vector.load %arg3[%c0_3, %c0_4] : memref<1x128xf32, #tpu.memory_space<vmem>>, vector<1x128xf32>
    %4 = vector.broadcast %3 : vector<1x128xf32> to vector<128x128xf32>
    %5 = arith.addf %2, %4 : vector<128x128xf32>
    %cst_5 = arith.constant 5.000000e-01 : f32
    %6 = vector.broadcast %cst_5 : f32 to vector<128x128xf32>
    %7 = arith.mulf %6, %5 : vector<128x128xf32>
    %cst_6 = arith.constant 0.707106769 : f32
    %8 = vector.broadcast %cst_6 : f32 to vector<128x128xf32>
    %9 = arith.mulf %5, %8 : vector<128x128xf32>
    %10 = math.erf %9 : vector<128x128xf32>
    %cst_7 = arith.constant 1.000000e+00 : f32
    %11 = vector.broadcast %cst_7 : f32 to vector<128x128xf32>
    %12 = arith.addf %11, %10 : vector<128x128xf32>
    %13 = arith.mulf %7, %12 : vector<128x128xf32>
    %14 = arith.truncf %13 : vector<128x128xf32> to vector<128x128xbf16>
    %c0_8 = arith.constant 0 : index
    %c0_9 = arith.constant 0 : index
    %c0_10 = arith.constant 0 : index
    %15 = vector.load %arg4[%c0_8, %c0_9, %c0_10] : memref<5x128x128xbf16, #tpu.memory_space<vmem>>, vector<1x128x128xbf16>
    %16 = vector.shape_cast %15 : vector<1x128x128xbf16> to vector<128x128xbf16>
    %cst_11 = arith.constant dense<0.000000e+00> : vector<128x128xf32>
    %17 = tpu.matmul %14, %16, %cst_11 {dimension_numbers = #tpu.dot_dimension_numbers<[1], [0], [0], [1], [0, 0, 1, 1], [], []>} : vector<128x128xbf16>, vector<128x128xbf16>, vector<128x128xf32> -> vector<128x128xf32>
    %c0_12 = arith.constant 0 : index
    %c0_13 = arith.constant 0 : index
    %c0_14 = arith.constant 0 : index
    %18 = vector.load %arg5[%c0_12, %c0_13, %c0_14] : memref<5x1x128xf32, #tpu.memory_space<vmem>>, vector<1x1x128xf32>
    %19 = vector.shape_cast %18 : vector<1x1x128xf32> to vector<1x128xf32>
    %20 = vector.broadcast %19 : vector<1x128xf32> to vector<128x128xf32>
    %21 = arith.addf %17, %20 : vector<128x128xf32>
    %cst_15 = arith.constant 5.000000e-01 : f32
    %22 = vector.broadcast %cst_15 : f32 to vector<128x128xf32>
    %23 = arith.mulf %22, %21 : vector<128x128xf32>
    %cst_16 = arith.constant 0.707106769 : f32
    %24 = vector.broadcast %cst_16 : f32 to vector<128x128xf32>
    %25 = arith.mulf %21, %24 : vector<128x128xf32>
    %26 = math.erf %25 : vector<128x128xf32>
    %cst_17 = arith.constant 1.000000e+00 : f32
    %27 = vector.broadcast %cst_17 : f32 to vector<128x128xf32>
    %28 = arith.addf %27, %26 : vector<128x128xf32>
    %29 = arith.mulf %23, %28 : vector<128x128xf32>
    %30 = arith.truncf %29 : vector<128x128xf32> to vector<128x128xbf16>
    %c0_18 = arith.constant 0 : index
    %c0_19 = arith.constant 0 : index
    %c0_20 = arith.constant 0 : index
    %31 = vector.load %arg6[%c0_18, %c0_19, %c0_20] : memref<5x128x128xbf16, #tpu.memory_space<vmem>>, vector<1x128x128xbf16>
    %32 = vector.shape_cast %31 : vector<1x128x128xbf16> to vector<128x128xbf16>
    %cst_21 = arith.constant dense<0.000000e+00> : vector<128x128xf32>
    %33 = tpu.matmul %30, %32, %cst_21 {dimension_numbers = #tpu.dot_dimension_numbers<[1], [0], [0], [1], [0, 0, 1, 1], [], []>} : vector<128x128xbf16>, vector<128x128xbf16>, vector<128x128xf32> -> vector<128x128xf32>
    %c0_22 = arith.constant 0 : index
    %c0_23 = arith.constant 0 : index
    %c0_24 = arith.constant 0 : index
    %34 = vector.load %arg7[%c0_22, %c0_23, %c0_24] : memref<5x1x128xf32, #tpu.memory_space<vmem>>, vector<1x1x128xf32>
    %35 = vector.shape_cast %34 : vector<1x1x128xf32> to vector<1x128xf32>
    %36 = vector.broadcast %35 : vector<1x128xf32> to vector<128x128xf32>
    %37 = arith.addf %33, %36 : vector<128x128xf32>
    %cst_25 = arith.constant 5.000000e-01 : f32
    %38 = vector.broadcast %cst_25 : f32 to vector<128x128xf32>
    %39 = arith.mulf %38, %37 : vector<128x128xf32>
    %cst_26 = arith.constant 0.707106769 : f32
    %40 = vector.broadcast %cst_26 : f32 to vector<128x128xf32>
    %41 = arith.mulf %37, %40 : vector<128x128xf32>
    %42 = math.erf %41 : vector<128x128xf32>
    %cst_27 = arith.constant 1.000000e+00 : f32
    %43 = vector.broadcast %cst_27 : f32 to vector<128x128xf32>
    %44 = arith.addf %43, %42 : vector<128x128xf32>
    %45 = arith.mulf %39, %44 : vector<128x128xf32>
    %c0_28 = arith.constant 0 : index
    %c0_29 = arith.constant 0 : index
    %c0_30 = arith.constant 0 : index
    %46 = vector.load %arg8[%c0_28, %c0_29, %c0_30] : memref<5x1x128xf32, #tpu.memory_space<vmem>>, vector<1x1x128xf32>
    %47 = vector.shape_cast %46 : vector<1x1x128xf32> to vector<1x128xf32>
    %48 = vector.broadcast %47 : vector<1x128xf32> to vector<128x128xf32>
    %49 = arith.mulf %45, %48 : vector<128x128xf32>
    %c0_31 = arith.constant 0 : index
    %c0_32 = arith.constant 0 : index
    %c0_33 = arith.constant 0 : index
    %50 = vector.load %arg9[%c0_31, %c0_32, %c0_33] : memref<5x1x128xf32, #tpu.memory_space<vmem>>, vector<1x1x128xf32>
    %51 = vector.shape_cast %50 : vector<1x1x128xf32> to vector<1x128xf32>
    %52 = vector.broadcast %51 : vector<1x128xf32> to vector<128x128xf32>
    %53 = arith.addf %49, %52 : vector<128x128xf32>
    %54 = arith.addf %53, %13 : vector<128x128xf32>
    %55 = arith.truncf %54 : vector<128x128xf32> to vector<128x128xbf16>
    %c1 = arith.constant 1 : index
    %c0_34 = arith.constant 0 : index
    %c0_35 = arith.constant 0 : index
    %56 = vector.load %arg4[%c1, %c0_34, %c0_35] : memref<5x128x128xbf16, #tpu.memory_space<vmem>>, vector<1x128x128xbf16>
    %57 = vector.shape_cast %56 : vector<1x128x128xbf16> to vector<128x128xbf16>
    %cst_36 = arith.constant dense<0.000000e+00> : vector<128x128xf32>
    %58 = tpu.matmul %55, %57, %cst_36 {dimension_numbers = #tpu.dot_dimension_numbers<[1], [0], [0], [1], [0, 0, 1, 1], [], []>} : vector<128x128xbf16>, vector<128x128xbf16>, vector<128x128xf32> -> vector<128x128xf32>
    %c1_37 = arith.constant 1 : index
    %c0_38 = arith.constant 0 : index
    %c0_39 = arith.constant 0 : index
    %59 = vector.load %arg5[%c1_37, %c0_38, %c0_39] : memref<5x1x128xf32, #tpu.memory_space<vmem>>, vector<1x1x128xf32>
    %60 = vector.shape_cast %59 : vector<1x1x128xf32> to vector<1x128xf32>
    %61 = vector.broadcast %60 : vector<1x128xf32> to vector<128x128xf32>
    %62 = arith.addf %58, %61 : vector<128x128xf32>
    %cst_40 = arith.constant 5.000000e-01 : f32
    %63 = vector.broadcast %cst_40 : f32 to vector<128x128xf32>
    %64 = arith.mulf %63, %62 : vector<128x128xf32>
    %cst_41 = arith.constant 0.707106769 : f32
    %65 = vector.broadcast %cst_41 : f32 to vector<128x128xf32>
    %66 = arith.mulf %62, %65 : vector<128x128xf32>
    %67 = math.erf %66 : vector<128x128xf32>
    %cst_42 = arith.constant 1.000000e+00 : f32
    %68 = vector.broadcast %cst_42 : f32 to vector<128x128xf32>
    %69 = arith.addf %68, %67 : vector<128x128xf32>
    %70 = arith.mulf %64, %69 : vector<128x128xf32>
    %71 = arith.truncf %70 : vector<128x128xf32> to vector<128x128xbf16>
    %c1_43 = arith.constant 1 : index
    %c0_44 = arith.constant 0 : index
    %c0_45 = arith.constant 0 : index
    %72 = vector.load %arg6[%c1_43, %c0_44, %c0_45] : memref<5x128x128xbf16, #tpu.memory_space<vmem>>, vector<1x128x128xbf16>
    %73 = vector.shape_cast %72 : vector<1x128x128xbf16> to vector<128x128xbf16>
    %cst_46 = arith.constant dense<0.000000e+00> : vector<128x128xf32>
    %74 = tpu.matmul %71, %73, %cst_46 {dimension_numbers = #tpu.dot_dimension_numbers<[1], [0], [0], [1], [0, 0, 1, 1], [], []>} : vector<128x128xbf16>, vector<128x128xbf16>, vector<128x128xf32> -> vector<128x128xf32>
    %c1_47 = arith.constant 1 : index
    %c0_48 = arith.constant 0 : index
    %c0_49 = arith.constant 0 : index
    %75 = vector.load %arg7[%c1_47, %c0_48, %c0_49] : memref<5x1x128xf32, #tpu.memory_space<vmem>>, vector<1x1x128xf32>
    %76 = vector.shape_cast %75 : vector<1x1x128xf32> to vector<1x128xf32>
    %77 = vector.broadcast %76 : vector<1x128xf32> to vector<128x128xf32>
    %78 = arith.addf %74, %77 : vector<128x128xf32>
    %cst_50 = arith.constant 5.000000e-01 : f32
    %79 = vector.broadcast %cst_50 : f32 to vector<128x128xf32>
    %80 = arith.mulf %79, %78 : vector<128x128xf32>
    %cst_51 = arith.constant 0.707106769 : f32
    %81 = vector.broadcast %cst_51 : f32 to vector<128x128xf32>
    %82 = arith.mulf %78, %81 : vector<128x128xf32>
    %83 = math.erf %82 : vector<128x128xf32>
    %cst_52 = arith.constant 1.000000e+00 : f32
    %84 = vector.broadcast %cst_52 : f32 to vector<128x128xf32>
    %85 = arith.addf %84, %83 : vector<128x128xf32>
    %86 = arith.mulf %80, %85 : vector<128x128xf32>
    %c1_53 = arith.constant 1 : index
    %c0_54 = arith.constant 0 : index
    %c0_55 = arith.constant 0 : index
    %87 = vector.load %arg8[%c1_53, %c0_54, %c0_55] : memref<5x1x128xf32, #tpu.memory_space<vmem>>, vector<1x1x128xf32>
    %88 = vector.shape_cast %87 : vector<1x1x128xf32> to vector<1x128xf32>
    %89 = vector.broadcast %88 : vector<1x128xf32> to vector<128x128xf32>
    %90 = arith.mulf %86, %89 : vector<128x128xf32>
    %c1_56 = arith.constant 1 : index
    %c0_57 = arith.constant 0 : index
    %c0_58 = arith.constant 0 : index
    %91 = vector.load %arg9[%c1_56, %c0_57, %c0_58] : memref<5x1x128xf32, #tpu.memory_space<vmem>>, vector<1x1x128xf32>
    %92 = vector.shape_cast %91 : vector<1x1x128xf32> to vector<1x128xf32>
    %93 = vector.broadcast %92 : vector<1x128xf32> to vector<128x128xf32>
    %94 = arith.addf %90, %93 : vector<128x128xf32>
    %95 = arith.addf %94, %54 : vector<128x128xf32>
    %96 = arith.truncf %95 : vector<128x128xf32> to vector<128x128xbf16>
    %c2 = arith.constant 2 : index
    %c0_59 = arith.constant 0 : index
    %c0_60 = arith.constant 0 : index
    %97 = vector.load %arg4[%c2, %c0_59, %c0_60] : memref<5x128x128xbf16, #tpu.memory_space<vmem>>, vector<1x128x128xbf16>
    %98 = vector.shape_cast %97 : vector<1x128x128xbf16> to vector<128x128xbf16>
    %cst_61 = arith.constant dense<0.000000e+00> : vector<128x128xf32>
    %99 = tpu.matmul %96, %98, %cst_61 {dimension_numbers = #tpu.dot_dimension_numbers<[1], [0], [0], [1], [0, 0, 1, 1], [], []>} : vector<128x128xbf16>, vector<128x128xbf16>, vector<128x128xf32> -> vector<128x128xf32>
    %c2_62 = arith.constant 2 : index
    %c0_63 = arith.constant 0 : index
    %c0_64 = arith.constant 0 : index
    %100 = vector.load %arg5[%c2_62, %c0_63, %c0_64] : memref<5x1x128xf32, #tpu.memory_space<vmem>>, vector<1x1x128xf32>
    %101 = vector.shape_cast %100 : vector<1x1x128xf32> to vector<1x128xf32>
    %102 = vector.broadcast %101 : vector<1x128xf32> to vector<128x128xf32>
    %103 = arith.addf %99, %102 : vector<128x128xf32>
    %cst_65 = arith.constant 5.000000e-01 : f32
    %104 = vector.broadcast %cst_65 : f32 to vector<128x128xf32>
    %105 = arith.mulf %104, %103 : vector<128x128xf32>
    %cst_66 = arith.constant 0.707106769 : f32
    %106 = vector.broadcast %cst_66 : f32 to vector<128x128xf32>
    %107 = arith.mulf %103, %106 : vector<128x128xf32>
    %108 = math.erf %107 : vector<128x128xf32>
    %cst_67 = arith.constant 1.000000e+00 : f32
    %109 = vector.broadcast %cst_67 : f32 to vector<128x128xf32>
    %110 = arith.addf %109, %108 : vector<128x128xf32>
    %111 = arith.mulf %105, %110 : vector<128x128xf32>
    %112 = arith.truncf %111 : vector<128x128xf32> to vector<128x128xbf16>
    %c2_68 = arith.constant 2 : index
    %c0_69 = arith.constant 0 : index
    %c0_70 = arith.constant 0 : index
    %113 = vector.load %arg6[%c2_68, %c0_69, %c0_70] : memref<5x128x128xbf16, #tpu.memory_space<vmem>>, vector<1x128x128xbf16>
    %114 = vector.shape_cast %113 : vector<1x128x128xbf16> to vector<128x128xbf16>
    %cst_71 = arith.constant dense<0.000000e+00> : vector<128x128xf32>
    %115 = tpu.matmul %112, %114, %cst_71 {dimension_numbers = #tpu.dot_dimension_numbers<[1], [0], [0], [1], [0, 0, 1, 1], [], []>} : vector<128x128xbf16>, vector<128x128xbf16>, vector<128x128xf32> -> vector<128x128xf32>
    %c2_72 = arith.constant 2 : index
    %c0_73 = arith.constant 0 : index
    %c0_74 = arith.constant 0 : index
    %116 = vector.load %arg7[%c2_72, %c0_73, %c0_74] : memref<5x1x128xf32, #tpu.memory_space<vmem>>, vector<1x1x128xf32>
    %117 = vector.shape_cast %116 : vector<1x1x128xf32> to vector<1x128xf32>
    %118 = vector.broadcast %117 : vector<1x128xf32> to vector<128x128xf32>
    %119 = arith.addf %115, %118 : vector<128x128xf32>
    %cst_75 = arith.constant 5.000000e-01 : f32
    %120 = vector.broadcast %cst_75 : f32 to vector<128x128xf32>
    %121 = arith.mulf %120, %119 : vector<128x128xf32>
    %cst_76 = arith.constant 0.707106769 : f32
    %122 = vector.broadcast %cst_76 : f32 to vector<128x128xf32>
    %123 = arith.mulf %119, %122 : vector<128x128xf32>
    %124 = math.erf %123 : vector<128x128xf32>
    %cst_77 = arith.constant 1.000000e+00 : f32
    %125 = vector.broadcast %cst_77 : f32 to vector<128x128xf32>
    %126 = arith.addf %125, %124 : vector<128x128xf32>
    %127 = arith.mulf %121, %126 : vector<128x128xf32>
    %c2_78 = arith.constant 2 : index
    %c0_79 = arith.constant 0 : index
    %c0_80 = arith.constant 0 : index
    %128 = vector.load %arg8[%c2_78, %c0_79, %c0_80] : memref<5x1x128xf32, #tpu.memory_space<vmem>>, vector<1x1x128xf32>
    %129 = vector.shape_cast %128 : vector<1x1x128xf32> to vector<1x128xf32>
    %130 = vector.broadcast %129 : vector<1x128xf32> to vector<128x128xf32>
    %131 = arith.mulf %127, %130 : vector<128x128xf32>
    %c2_81 = arith.constant 2 : index
    %c0_82 = arith.constant 0 : index
    %c0_83 = arith.constant 0 : index
    %132 = vector.load %arg9[%c2_81, %c0_82, %c0_83] : memref<5x1x128xf32, #tpu.memory_space<vmem>>, vector<1x1x128xf32>
    %133 = vector.shape_cast %132 : vector<1x1x128xf32> to vector<1x128xf32>
    %134 = vector.broadcast %133 : vector<1x128xf32> to vector<128x128xf32>
    %135 = arith.addf %131, %134 : vector<128x128xf32>
    %136 = arith.addf %135, %95 : vector<128x128xf32>
    %137 = arith.truncf %136 : vector<128x128xf32> to vector<128x128xbf16>
    %c3 = arith.constant 3 : index
    %c0_84 = arith.constant 0 : index
    %c0_85 = arith.constant 0 : index
    %138 = vector.load %arg4[%c3, %c0_84, %c0_85] : memref<5x128x128xbf16, #tpu.memory_space<vmem>>, vector<1x128x128xbf16>
    %139 = vector.shape_cast %138 : vector<1x128x128xbf16> to vector<128x128xbf16>
    %cst_86 = arith.constant dense<0.000000e+00> : vector<128x128xf32>
    %140 = tpu.matmul %137, %139, %cst_86 {dimension_numbers = #tpu.dot_dimension_numbers<[1], [0], [0], [1], [0, 0, 1, 1], [], []>} : vector<128x128xbf16>, vector<128x128xbf16>, vector<128x128xf32> -> vector<128x128xf32>
    %c3_87 = arith.constant 3 : index
    %c0_88 = arith.constant 0 : index
    %c0_89 = arith.constant 0 : index
    %141 = vector.load %arg5[%c3_87, %c0_88, %c0_89] : memref<5x1x128xf32, #tpu.memory_space<vmem>>, vector<1x1x128xf32>
    %142 = vector.shape_cast %141 : vector<1x1x128xf32> to vector<1x128xf32>
    %143 = vector.broadcast %142 : vector<1x128xf32> to vector<128x128xf32>
    %144 = arith.addf %140, %143 : vector<128x128xf32>
    %cst_90 = arith.constant 5.000000e-01 : f32
    %145 = vector.broadcast %cst_90 : f32 to vector<128x128xf32>
    %146 = arith.mulf %145, %144 : vector<128x128xf32>
    %cst_91 = arith.constant 0.707106769 : f32
    %147 = vector.broadcast %cst_91 : f32 to vector<128x128xf32>
    %148 = arith.mulf %144, %147 : vector<128x128xf32>
    %149 = math.erf %148 : vector<128x128xf32>
    %cst_92 = arith.constant 1.000000e+00 : f32
    %150 = vector.broadcast %cst_92 : f32 to vector<128x128xf32>
    %151 = arith.addf %150, %149 : vector<128x128xf32>
    %152 = arith.mulf %146, %151 : vector<128x128xf32>
    %153 = arith.truncf %152 : vector<128x128xf32> to vector<128x128xbf16>
    %c3_93 = arith.constant 3 : index
    %c0_94 = arith.constant 0 : index
    %c0_95 = arith.constant 0 : index
    %154 = vector.load %arg6[%c3_93, %c0_94, %c0_95] : memref<5x128x128xbf16, #tpu.memory_space<vmem>>, vector<1x128x128xbf16>
    %155 = vector.shape_cast %154 : vector<1x128x128xbf16> to vector<128x128xbf16>
    %cst_96 = arith.constant dense<0.000000e+00> : vector<128x128xf32>
    %156 = tpu.matmul %153, %155, %cst_96 {dimension_numbers = #tpu.dot_dimension_numbers<[1], [0], [0], [1], [0, 0, 1, 1], [], []>} : vector<128x128xbf16>, vector<128x128xbf16>, vector<128x128xf32> -> vector<128x128xf32>
    %c3_97 = arith.constant 3 : index
    %c0_98 = arith.constant 0 : index
    %c0_99 = arith.constant 0 : index
    %157 = vector.load %arg7[%c3_97, %c0_98, %c0_99] : memref<5x1x128xf32, #tpu.memory_space<vmem>>, vector<1x1x128xf32>
    %158 = vector.shape_cast %157 : vector<1x1x128xf32> to vector<1x128xf32>
    %159 = vector.broadcast %158 : vector<1x128xf32> to vector<128x128xf32>
    %160 = arith.addf %156, %159 : vector<128x128xf32>
    %cst_100 = arith.constant 5.000000e-01 : f32
    %161 = vector.broadcast %cst_100 : f32 to vector<128x128xf32>
    %162 = arith.mulf %161, %160 : vector<128x128xf32>
    %cst_101 = arith.constant 0.707106769 : f32
    %163 = vector.broadcast %cst_101 : f32 to vector<128x128xf32>
    %164 = arith.mulf %160, %163 : vector<128x128xf32>
    %165 = math.erf %164 : vector<128x128xf32>
    %cst_102 = arith.constant 1.000000e+00 : f32
    %166 = vector.broadcast %cst_102 : f32 to vector<128x128xf32>
    %167 = arith.addf %166, %165 : vector<128x128xf32>
    %168 = arith.mulf %162, %167 : vector<128x128xf32>
    %c3_103 = arith.constant 3 : index
    %c0_104 = arith.constant 0 : index
    %c0_105 = arith.constant 0 : index
    %169 = vector.load %arg8[%c3_103, %c0_104, %c0_105] : memref<5x1x128xf32, #tpu.memory_space<vmem>>, vector<1x1x128xf32>
    %170 = vector.shape_cast %169 : vector<1x1x128xf32> to vector<1x128xf32>
    %171 = vector.broadcast %170 : vector<1x128xf32> to vector<128x128xf32>
    %172 = arith.mulf %168, %171 : vector<128x128xf32>
    %c3_106 = arith.constant 3 : index
    %c0_107 = arith.constant 0 : index
    %c0_108 = arith.constant 0 : index
    %173 = vector.load %arg9[%c3_106, %c0_107, %c0_108] : memref<5x1x128xf32, #tpu.memory_space<vmem>>, vector<1x1x128xf32>
    %174 = vector.shape_cast %173 : vector<1x1x128xf32> to vector<1x128xf32>
    %175 = vector.broadcast %174 : vector<1x128xf32> to vector<128x128xf32>
    %176 = arith.addf %172, %175 : vector<128x128xf32>
    %177 = arith.addf %176, %136 : vector<128x128xf32>
    %178 = arith.truncf %177 : vector<128x128xf32> to vector<128x128xbf16>
    %c4 = arith.constant 4 : index
    %c0_109 = arith.constant 0 : index
    %c0_110 = arith.constant 0 : index
    %179 = vector.load %arg4[%c4, %c0_109, %c0_110] : memref<5x128x128xbf16, #tpu.memory_space<vmem>>, vector<1x128x128xbf16>
    %180 = vector.shape_cast %179 : vector<1x128x128xbf16> to vector<128x128xbf16>
    %cst_111 = arith.constant dense<0.000000e+00> : vector<128x128xf32>
    %181 = tpu.matmul %178, %180, %cst_111 {dimension_numbers = #tpu.dot_dimension_numbers<[1], [0], [0], [1], [0, 0, 1, 1], [], []>} : vector<128x128xbf16>, vector<128x128xbf16>, vector<128x128xf32> -> vector<128x128xf32>
    %c4_112 = arith.constant 4 : index
    %c0_113 = arith.constant 0 : index
    %c0_114 = arith.constant 0 : index
    %182 = vector.load %arg5[%c4_112, %c0_113, %c0_114] : memref<5x1x128xf32, #tpu.memory_space<vmem>>, vector<1x1x128xf32>
    %183 = vector.shape_cast %182 : vector<1x1x128xf32> to vector<1x128xf32>
    %184 = vector.broadcast %183 : vector<1x128xf32> to vector<128x128xf32>
    %185 = arith.addf %181, %184 : vector<128x128xf32>
    %cst_115 = arith.constant 5.000000e-01 : f32
    %186 = vector.broadcast %cst_115 : f32 to vector<128x128xf32>
    %187 = arith.mulf %186, %185 : vector<128x128xf32>
    %cst_116 = arith.constant 0.707106769 : f32
    %188 = vector.broadcast %cst_116 : f32 to vector<128x128xf32>
    %189 = arith.mulf %185, %188 : vector<128x128xf32>
    %190 = math.erf %189 : vector<128x128xf32>
    %cst_117 = arith.constant 1.000000e+00 : f32
    %191 = vector.broadcast %cst_117 : f32 to vector<128x128xf32>
    %192 = arith.addf %191, %190 : vector<128x128xf32>
    %193 = arith.mulf %187, %192 : vector<128x128xf32>
    %194 = arith.truncf %193 : vector<128x128xf32> to vector<128x128xbf16>
    %c4_118 = arith.constant 4 : index
    %c0_119 = arith.constant 0 : index
    %c0_120 = arith.constant 0 : index
    %195 = vector.load %arg6[%c4_118, %c0_119, %c0_120] : memref<5x128x128xbf16, #tpu.memory_space<vmem>>, vector<1x128x128xbf16>
    %196 = vector.shape_cast %195 : vector<1x128x128xbf16> to vector<128x128xbf16>
    %cst_121 = arith.constant dense<0.000000e+00> : vector<128x128xf32>
    %197 = tpu.matmul %194, %196, %cst_121 {dimension_numbers = #tpu.dot_dimension_numbers<[1], [0], [0], [1], [0, 0, 1, 1], [], []>} : vector<128x128xbf16>, vector<128x128xbf16>, vector<128x128xf32> -> vector<128x128xf32>
    %c4_122 = arith.constant 4 : index
    %c0_123 = arith.constant 0 : index
    %c0_124 = arith.constant 0 : index
    %198 = vector.load %arg7[%c4_122, %c0_123, %c0_124] : memref<5x1x128xf32, #tpu.memory_space<vmem>>, vector<1x1x128xf32>
    %199 = vector.shape_cast %198 : vector<1x1x128xf32> to vector<1x128xf32>
    %200 = vector.broadcast %199 : vector<1x128xf32> to vector<128x128xf32>
    %201 = arith.addf %197, %200 : vector<128x128xf32>
    %cst_125 = arith.constant 5.000000e-01 : f32
    %202 = vector.broadcast %cst_125 : f32 to vector<128x128xf32>
    %203 = arith.mulf %202, %201 : vector<128x128xf32>
    %cst_126 = arith.constant 0.707106769 : f32
    %204 = vector.broadcast %cst_126 : f32 to vector<128x128xf32>
    %205 = arith.mulf %201, %204 : vector<128x128xf32>
    %206 = math.erf %205 : vector<128x128xf32>
    %cst_127 = arith.constant 1.000000e+00 : f32
    %207 = vector.broadcast %cst_127 : f32 to vector<128x128xf32>
    %208 = arith.addf %207, %206 : vector<128x128xf32>
    %209 = arith.mulf %203, %208 : vector<128x128xf32>
    %c4_128 = arith.constant 4 : index
    %c0_129 = arith.constant 0 : index
    %c0_130 = arith.constant 0 : index
    %210 = vector.load %arg8[%c4_128, %c0_129, %c0_130] : memref<5x1x128xf32, #tpu.memory_space<vmem>>, vector<1x1x128xf32>
    %211 = vector.shape_cast %210 : vector<1x1x128xf32> to vector<1x128xf32>
    %212 = vector.broadcast %211 : vector<1x128xf32> to vector<128x128xf32>
    %213 = arith.mulf %209, %212 : vector<128x128xf32>
    %c4_131 = arith.constant 4 : index
    %c0_132 = arith.constant 0 : index
    %c0_133 = arith.constant 0 : index
    %214 = vector.load %arg9[%c4_131, %c0_132, %c0_133] : memref<5x1x128xf32, #tpu.memory_space<vmem>>, vector<1x1x128xf32>
    %215 = vector.shape_cast %214 : vector<1x1x128xf32> to vector<1x128xf32>
    %216 = vector.broadcast %215 : vector<1x128xf32> to vector<128x128xf32>
    %217 = arith.addf %213, %216 : vector<128x128xf32>
    %218 = arith.addf %217, %177 : vector<128x128xf32>
    %219 = arith.truncf %218 : vector<128x128xf32> to vector<128x128xbf16>
    %c0_134 = arith.constant 0 : index
    %c0_135 = arith.constant 0 : index
    %220 = vector.load %arg10[%c0_134, %c0_135] : memref<128x128xbf16, #tpu.memory_space<vmem>>, vector<128x128xbf16>
    %cst_136 = arith.constant dense<0.000000e+00> : vector<128x128xf32>
    %221 = tpu.matmul %219, %220, %cst_136 {dimension_numbers = #tpu.dot_dimension_numbers<[1], [0], [0], [1], [0, 0, 1, 1], [], []>} : vector<128x128xbf16>, vector<128x128xbf16>, vector<128x128xf32> -> vector<128x128xf32>
    %c0_137 = arith.constant 0 : index
    %c0_138 = arith.constant 0 : index
    %222 = vector.load %arg11[%c0_137, %c0_138] : memref<1x128xf32, #tpu.memory_space<vmem>>, vector<1x128xf32>
    %223 = vector.broadcast %222 : vector<1x128xf32> to vector<128x128xf32>
    %224 = arith.addf %221, %223 : vector<128x128xf32>
    %c0_139 = arith.constant 0 : index
    %c0_140 = arith.constant 0 : index
    %225 = vector.load %arg12[%c0_139, %c0_140] : memref<128x128xf32, #tpu.memory_space<vmem>>, vector<128x128xf32>
    tpu.vector_store %arg12[%c0_139, %c0_140], %224 {strides = array<i32>} : memref<128x128xf32, #tpu.memory_space<vmem>>, vector<128x128xf32>,
    return
  }
  func.func @transform_0(%arg0: i32) -> (i32, i32) {
    %c0_i32 = arith.constant 0 : i32
    %c0_i32_0 = arith.constant 0 : i32
    return %arg0, %c0_i32 : i32, i32
  }
  func.func @transform_1(%arg0: i32) -> (i32, i32) {
    %c0_i32 = arith.constant 0 : i32
    %c0_i32_0 = arith.constant 0 : i32
    %c0_i32_1 = arith.constant 0 : i32
    return %c0_i32, %c0_i32_0 : i32, i32
  }
  func.func @transform_2(%arg0: i32) -> (i32, i32) {
    %c0_i32 = arith.constant 0 : i32
    %c0_i32_0 = arith.constant 0 : i32
    %c0_i32_1 = arith.constant 0 : i32
    return %c0_i32, %c0_i32_0 : i32, i32
  }
  func.func @transform_3(%arg0: i32) -> (i32, i32, i32) {
    %c0_i32 = arith.constant 0 : i32
    %c0_i32_0 = arith.constant 0 : i32
    %c0_i32_1 = arith.constant 0 : i32
    %c0_i32_2 = arith.constant 0 : i32
    return %c0_i32, %c0_i32_0, %c0_i32_1 : i32, i32, i32
  }
  func.func @transform_4(%arg0: i32) -> (i32, i32, i32) {
    %c0_i32 = arith.constant 0 : i32
    %c0_i32_0 = arith.constant 0 : i32
    %c0_i32_1 = arith.constant 0 : i32
    %c0_i32_2 = arith.constant 0 : i32
    return %c0_i32, %c0_i32_0, %c0_i32_1 : i32, i32, i32
  }
  func.func @transform_5(%arg0: i32) -> (i32, i32, i32) {
    %c0_i32 = arith.constant 0 : i32
    %c0_i32_0 = arith.constant 0 : i32
    %c0_i32_1 = arith.constant 0 : i32
    %c0_i32_2 = arith.constant 0 : i32
    return %c0_i32, %c0_i32_0, %c0_i32_1 : i32, i32, i32
  }
  func.func @transform_6(%arg0: i32) -> (i32, i32, i32) {
    %c0_i32 = arith.constant 0 : i32
    %c0_i32_0 = arith.constant 0 : i32
    %c0_i32_1 = arith.constant 0 : i32
    %c0_i32_2 = arith.constant 0 : i32
    return %c0_i32, %c0_i32_0, %c0_i32_1 : i32, i32, i32
  }
  func.func @transform_7(%arg0: i32) -> (i32, i32, i32) {
    %c0_i32 = arith.constant 0 : i32
    %c0_i32_0 = arith.constant 0 : i32
    %c0_i32_1 = arith.constant 0 : i32
    %c0_i32_2 = arith.constant 0 : i32
    return %c0_i32, %c0_i32_0, %c0_i32_1 : i32, i32, i32
  }
  func.func @transform_8(%arg0: i32) -> (i32, i32, i32) {
    %c0_i32 = arith.constant 0 : i32
    %c0_i32_0 = arith.constant 0 : i32
    %c0_i32_1 = arith.constant 0 : i32
    %c0_i32_2 = arith.constant 0 : i32
    return %c0_i32, %c0_i32_0, %c0_i32_1 : i32, i32, i32
  }
  func.func @transform_9(%arg0: i32) -> (i32, i32) {
    %c0_i32 = arith.constant 0 : i32
    %c0_i32_0 = arith.constant 0 : i32
    %c0_i32_1 = arith.constant 0 : i32
    return %c0_i32, %c0_i32_0 : i32, i32
  }
  func.func @transform_10(%arg0: i32) -> (i32, i32) {
    %c0_i32 = arith.constant 0 : i32
    %c0_i32_0 = arith.constant 0 : i32
    %c0_i32_1 = arith.constant 0 : i32
    return %c0_i32, %c0_i32_0 : i32, i32
  }
  func.func @transform_11(%arg0: i32) -> (i32, i32) {
    %c0_i32 = arith.constant 0 : i32
    %c0_i32_0 = arith.constant 0 : i32
    return %arg0, %c0_i32 : i32, i32
  }
}

</mosaic_0001>

<llo_original>
// kernel: tpu_custom_call.1
$region0: #{tpu_custom_call.1}
  #allocation0 [shape = 'u32[]', space=smem, size = 0x4, offset = 0x4, fixed_abs, tag = 'smem constant byte address 0x4 - core index']
  #allocation1 [shape = 'u32[144,128]{1,0:T(1,128)}', space=vmem, size = 0x12000, scoped, tag = 'internal scratch']
  %s0 = inlined_call_operand.hbm [shape: bf16[256,256], index: 0, kind: input, shape index: {}]
  %s1 = inlined_call_operand.hbm [shape: bf16[256,128], index: 1, kind: input, shape index: {}]
  %s2 = inlined_call_operand.hbm [shape: f32[1,128], index: 2, kind: input, shape index: {}]
  %s3 = inlined_call_operand.hbm [shape: bf16[5,128,128], index: 3, kind: input, shape index: {}]
  %s4 = inlined_call_operand.vmem [shape: f32[5,1,128], index: 4, kind: input, shape index: {}]
  %s5 = inlined_call_operand.hbm [shape: bf16[5,128,128], index: 5, kind: input, shape index: {}]
  %s6 = inlined_call_operand.vmem [shape: f32[5,1,128], index: 6, kind: input, shape index: {}]
  %s7 = inlined_call_operand.hbm [shape: f32[5,1,128], index: 7, kind: input, shape index: {}]
  %s8 = inlined_call_operand.hbm [shape: f32[5,1,128], index: 8, kind: input, shape index: {}]
  %s9 = inlined_call_operand.hbm [shape: bf16[128,128], index: 9, kind: input, shape index: {}]
  %s10 = inlined_call_operand.vmem [shape: f32[1,128], index: 10, kind: input, shape index: {}]
  %s11 = inlined_call_operand.hbm [shape: f32[256,128], index: 11, kind: output, shape index: {}]
  %s12 = sld [smem:[#allocation0]]
  $region109: #{tpu_custom_call.1} parent=0
    _
  %s14 = ssub.s32 1, %s12
  %s15 = scalar_select 0, %s14, %s12
  $region1: #{tpu_custom_call.1} parent=0
    #allocation2 [shape = 'u8[131072]{0}', space=vmem, size = 0x20000, scoped, tag = 'input window, operand 0']
    #allocation3 [shape = 's32[2]{0}', space=sflag, size = 0x8, scoped, tag = 'scoped memory for tpu_custom_call.1']
    #allocation4 [shape = 's32[2]{0}', space=sflag, size = 0x8, scoped, tag = 'scoped memory for tpu_custom_call.1']
    #allocation5 [shape = 'u8[65536]{0}', space=vmem, size = 0x10000, scoped, tag = 'input window, operand 1, single buffered']
    #allocation6 [shape = 's32[1]{0}', space=sflag, size = 0x4, scoped, tag = 'scoped memory for tpu_custom_call.1']
    #allocation7 [shape = 'u8[512]{0}', space=vmem, size = 0x400, scoped, tag = 'input window, operand 2, single buffered']
    #allocation8 [shape = 'u8[163840]{0}', space=vmem, size = 0x28000, scoped, tag = 'input window, operand 3, single buffered']
    #allocation9 [shape = 's32[1]{0}', space=sflag, size = 0x4, scoped, tag = 'scoped memory for tpu_custom_call.1']
    #allocation10 [shape = 'u8[163840]{0}', space=vmem, size = 0x28000, scoped, tag = 'input window, operand 5, single buffered']
    #allocation11 [shape = 'u8[2560]{0}', space=vmem, size = 0xc00, scoped, tag = 'input window, operand 7, single buffered']
    #allocation12 [shape = 's32[1]{0}', space=sflag, size = 0x4, scoped, tag = 'scoped memory for tpu_custom_call.1']
    #allocation13 [shape = 'u8[2560]{0}', space=vmem, size = 0xc00, scoped, tag = 'input window, operand 8, single buffered']
    #allocation14 [shape = 'u8[32768]{0}', space=vmem, size = 0x8000, scoped, tag = 'input window, operand 9, single buffered']
    #allocation15 [shape = 's32[1]{0}', space=sflag, size = 0x4, scoped, tag = 'scoped memory for tpu_custom_call.1']
    #allocation16 [shape = 'u8[131072]{0}', space=vmem, size = 0x20000, scoped, tag = 'output window, operand 0']
    %16 = vsyncpa [#allocation3], 0
    %s17 = scalar_lea.sflag [#allocation3], 1
    %18 = vsyncpa %s17, 0
    %19 = vsyncpa [#allocation6], 0
    %20 = vsyncpa [#allocation9], 0
    %21 = vsyncpa [#allocation12], 0
    %22 = vsyncpa [#allocation15], 0
    %23 = vsyncpa [#allocation4], 0
    %s24 = scalar_lea.sflag [#allocation4], 1
    %25 = vsyncpa %s24, 0
    loop: start=0, step=1, limit=4
    $region2: #{tpu_custom_call.1} parent=1 // loop_pre_header
      _
    $region3: #{tpu_custom_call.1} parent=1 // loop_header
      %s27 = sphi 0, %s31
      %p28 = scmp.ge.s32.totalorder %s27, 4
      %s37 = sphi 0, %s39
      %s40 = sphi 0, %s37
      %s41 = sphi 0, %s40
      %s57 = sphi 0, %s41
      %s61 = sphi 0, %s61
      %s63 = sphi 0, %s61
      %s64 = sphi 0, %s63
      %s78 = sphi 0, %s64
      %s82 = sphi 0, %s82
      %s84 = sphi 0, %s82
      %s85 = sphi 0, %s84
      %s99 = sphi 0, %s85
      %s103 = sphi 0, %s103
      %s105 = sphi 0, %s103
      %s106 = sphi 0, %s105
      %s120 = sphi 0, %s106
      %s124 = sphi 0, %s124
      %s126 = sphi 0, %s124
      %s127 = sphi 0, %s126
      %s141 = sphi 0, %s127
      %s145 = sphi 0, %s145
      %s147 = sphi 0, %s145
      %s148 = sphi 0, %s147
      %s162 = sphi 0, %s148
      %s166 = sphi 0, %s166
      %s168 = sphi 0, %s166
      %s169 = sphi 0, %s168
      %s183 = sphi 0, %s169
      %s187 = sphi 0, %s187
      %s189 = sphi 0, %s187
      %s190 = sphi 0, %s189
      %s204 = sphi 0, %s190
      %s208 = sphi 0, %s208
      %s210 = sphi 0, %s208
      %s211 = sphi 0, %s210
      %s225 = sphi 0, %s211
      %s229 = sphi 0, %s229
      %s231 = sphi 0, %s229
      %s232 = sphi 0, %s231
      %s246 = sphi 0, %s232
      %s250 = sphi 0, %s250
      %s252 = sphi 0, %s250
      %s253 = sphi 0, %s252
      %s267 = sphi 0, %s253
      %s273 = sphi 0, %s275
      %s276 = sphi 0, %s273
      %s277 = sphi 0, %s276
      %s293 = sphi 0, %s277
    $region4: #{tpu_custom_call.1} parent=1 // loop_header_branch
      %30 = sbr.rel (%p28) target = $region8
    $region5: #{tpu_custom_call.1} parent=1 // loop_body
      %s32 = ssub.s32 %s27, 1
      %s33 = ssub.s32 %s27, 2
      %s34 = sadd.s32 %s27, 1
      %s35 = ssub.s32 %s27, %s34
      %p36 = scmp.eq.s32.totalorder %s35, 0
      %s38 = sadd.s32 %s37, 1
      %s39 = scalar_select %p36, %s37, %s38
      %p42 = pneg %p36
      %p43 = scmp.eq.s32.totalorder %s27, 1
      %p44 = por %p42, %p43
      %p45 = scmp.ne.s32.totalorder %s37, %s40
      %p46 = scmp.eq.s32.totalorder %s27, 0
      %p47 = por %p45, %p46
      %p48 = scmp.ne.s32.totalorder %s37, %s40
      %p49 = scmp.eq.s32.totalorder %s32, 1
      %p50 = por %p48, %p49
      %p51 = scmp.ne.s32.totalorder %s40, %s41
      %p52 = scmp.eq.s32.totalorder %s32, 0
      %p53 = por %p51, %p52
      %p54 = scmp.ne.s32.totalorder %s40, %s41
      %p55 = scmp.eq.s32.totalorder %s33, 1
      %p56 = por %p54, %p55
      %p58 = scmp.ne.s32.totalorder %s41, %s57
      %p59 = scmp.eq.s32.totalorder %s33, 0
      %p60 = por %p58, %p59
      %s62 = sadd.s32 %s61, 1
      %p65 = scmp.eq.s32.totalorder %s27, 1
      %p66 = scmp.ne.s32.totalorder %s61, %s63
      %p67 = scmp.eq.s32.totalorder %s27, 0
      %p68 = por %p66, %p67
      %p69 = scmp.ne.s32.totalorder %s61, %s63
      %p70 = scmp.eq.s32.totalorder %s32, 1
      %p71 = por %p69, %p70
      %p72 = scmp.ne.s32.totalorder %s63, %s64
      %p73 = scmp.eq.s32.totalorder %s32, 0
      %p74 = por %p72, %p73
      %p75 = scmp.ne.s32.totalorder %s63, %s64
      %p76 = scmp.eq.s32.totalorder %s33, 1
      %p77 = por %p75, %p76
      %p79 = scmp.ne.s32.totalorder %s64, %s78
      %p80 = scmp.eq.s32.totalorder %s33, 0
      %p81 = por %p79, %p80
      %s83 = sadd.s32 %s82, 1
      %p86 = scmp.eq.s32.totalorder %s27, 1
      %p87 = scmp.ne.s32.totalorder %s82, %s84
      %p88 = scmp.eq.s32.totalorder %s27, 0
      %p89 = por %p87, %p88
      %p90 = scmp.ne.s32.totalorder %s82, %s84
      %p91 = scmp.eq.s32.totalorder %s32, 1
      %p92 = por %p90, %p91
      %p93 = scmp.ne.s32.totalorder %s84, %s85
      %p94 = scmp.eq.s32.totalorder %s32, 0
      %p95 = por %p93, %p94
      %p96 = scmp.ne.s32.totalorder %s84, %s85
      %p97 = scmp.eq.s32.totalorder %s33, 1
      %p98 = por %p96, %p97
      %p100 = scmp.ne.s32.totalorder %s85, %s99
      %p101 = scmp.eq.s32.totalorder %s33, 0
      %p102 = por %p100, %p101
      %s104 = sadd.s32 %s103, 1
      %p107 = scmp.eq.s32.totalorder %s27, 1
      %p108 = scmp.ne.s32.totalorder %s103, %s105
      %p109 = scmp.eq.s32.totalorder %s27, 0
      %p110 = por %p108, %p109
      %p111 = scmp.ne.s32.totalorder %s103, %s105
      %p112 = scmp.eq.s32.totalorder %s32, 1
      %p113 = por %p111, %p112
      %p114 = scmp.ne.s32.totalorder %s105, %s106
      %p115 = scmp.eq.s32.totalorder %s32, 0
      %p116 = por %p114, %p115
      %p117 = scmp.ne.s32.totalorder %s105, %s106
      %p118 = scmp.eq.s32.totalorder %s33, 1
      %p119 = por %p117, %p118
      %p121 = scmp.ne.s32.totalorder %s106, %s120
      %p122 = scmp.eq.s32.totalorder %s33, 0
      %p123 = por %p121, %p122
      %s125 = sadd.s32 %s124, 1
      %p128 = scmp.eq.s32.totalorder %s27, 1
      %p129 = scmp.ne.s32.totalorder %s124, %s126
      %p130 = scmp.eq.s32.totalorder %s27, 0
      %p131 = por %p129, %p130
      %p132 = scmp.ne.s32.totalorder %s124, %s126
      %p133 = scmp.eq.s32.totalorder %s32, 1
      %p134 = por %p132, %p133
      %p135 = scmp.ne.s32.totalorder %s126, %s127
      %p136 = scmp.eq.s32.totalorder %s32, 0
      %p137 = por %p135, %p136
      %p138 = scmp.ne.s32.totalorder %s126, %s127
      %p139 = scmp.eq.s32.totalorder %s33, 1
      %p140 = por %p138, %p139
      %p142 = scmp.ne.s32.totalorder %s127, %s141
      %p143 = scmp.eq.s32.totalorder %s33, 0
      %p144 = por %p142, %p143
      %s146 = sadd.s32 %s145, 1
      %p149 = scmp.eq.s32.totalorder %s27, 1
      %p150 = scmp.ne.s32.totalorder %s145, %s147
      %p151 = scmp.eq.s32.totalorder %s27, 0
      %p152 = por %p150, %p151
      %p153 = scmp.ne.s32.totalorder %s145, %s147
      %p154 = scmp.eq.s32.totalorder %s32, 1
      %p155 = por %p153, %p154
      %p156 = scmp.ne.s32.totalorder %s147, %s148
      %p157 = scmp.eq.s32.totalorder %s32, 0
      %p158 = por %p156, %p157
      %p159 = scmp.ne.s32.totalorder %s147, %s148
      %p160 = scmp.eq.s32.totalorder %s33, 1
      %p161 = por %p159, %p160
      %p163 = scmp.ne.s32.totalorder %s148, %s162
      %p164 = scmp.eq.s32.totalorder %s33, 0
      %p165 = por %p163, %p164
      %s167 = sadd.s32 %s166, 1
      %p170 = scmp.eq.s32.totalorder %s27, 1
      %p171 = scmp.ne.s32.totalorder %s166, %s168
      %p172 = scmp.eq.s32.totalorder %s27, 0
      %p173 = por %p171, %p172
      %p174 = scmp.ne.s32.totalorder %s166, %s168
      %p175 = scmp.eq.s32.totalorder %s32, 1
      %p176 = por %p174, %p175
      %p177 = scmp.ne.s32.totalorder %s168, %s169
      %p178 = scmp.eq.s32.totalorder %s32, 0
      %p179 = por %p177, %p178
      %p180 = scmp.ne.s32.totalorder %s168, %s169
      %p181 = scmp.eq.s32.totalorder %s33, 1
      %p182 = por %p180, %p181
      %p184 = scmp.ne.s32.totalorder %s169, %s183
      %p185 = scmp.eq.s32.totalorder %s33, 0
      %p186 = por %p184, %p185
      %s188 = sadd.s32 %s187, 1
      %p191 = scmp.eq.s32.totalorder %s27, 1
      %p192 = scmp.ne.s32.totalorder %s187, %s189
      %p193 = scmp.eq.s32.totalorder %s27, 0
      %p194 = por %p192, %p193
      %p195 = scmp.ne.s32.totalorder %s187, %s189
      %p196 = scmp.eq.s32.totalorder %s32, 1
      %p197 = por %p195, %p196
      %p198 = scmp.ne.s32.totalorder %s189, %s190
      %p199 = scmp.eq.s32.totalorder %s32, 0
      %p200 = por %p198, %p199
      %p201 = scmp.ne.s32.totalorder %s189, %s190
      %p202 = scmp.eq.s32.totalorder %s33, 1
      %p203 = por %p201, %p202
      %p205 = scmp.ne.s32.totalorder %s190, %s204
      %p206 = scmp.eq.s32.totalorder %s33, 0
      %p207 = por %p205, %p206
      %s209 = sadd.s32 %s208, 1
      %p212 = scmp.eq.s32.totalorder %s27, 1
      %p213 = scmp.ne.s32.totalorder %s208, %s210
      %p214 = scmp.eq.s32.totalorder %s27, 0
      %p215 = por %p213, %p214
      %p216 = scmp.ne.s32.totalorder %s208, %s210
      %p217 = scmp.eq.s32.totalorder %s32, 1
      %p218 = por %p216, %p217
      %p219 = scmp.ne.s32.totalorder %s210, %s211
      %p220 = scmp.eq.s32.totalorder %s32, 0
      %p221 = por %p219, %p220
      %p222 = scmp.ne.s32.totalorder %s210, %s211
      %p223 = scmp.eq.s32.totalorder %s33, 1
      %p224 = por %p222, %p223
      %p226 = scmp.ne.s32.totalorder %s211, %s225
      %p227 = scmp.eq.s32.totalorder %s33, 0
      %p228 = por %p226, %p227
      %s230 = sadd.s32 %s229, 1
      %p233 = scmp.eq.s32.totalorder %s27, 1
      %p234 = scmp.ne.s32.totalorder %s229, %s231
      %p235 = scmp.eq.s32.totalorder %s27, 0
      %p236 = por %p234, %p235
      %p237 = scmp.ne.s32.totalorder %s229, %s231
      %p238 = scmp.eq.s32.totalorder %s32, 1
      %p239 = por %p237, %p238
      %p240 = scmp.ne.s32.totalorder %s231, %s232
      %p241 = scmp.eq.s32.totalorder %s32, 0
      %p242 = por %p240, %p241
      %p243 = scmp.ne.s32.totalorder %s231, %s232
      %p244 = scmp.eq.s32.totalorder %s33, 1
      %p245 = por %p243, %p244
      %p247 = scmp.ne.s32.totalorder %s232, %s246
      %p248 = scmp.eq.s32.totalorder %s33, 0
      %p249 = por %p247, %p248
      %s251 = sadd.s32 %s250, 1
      %p254 = scmp.eq.s32.totalorder %s27, 1
      %p255 = scmp.ne.s32.totalorder %s250, %s252
      %p256 = scmp.eq.s32.totalorder %s27, 0
      %p257 = por %p255, %p256
      %p258 = scmp.ne.s32.totalorder %s250, %s252
      %p259 = scmp.eq.s32.totalorder %s32, 1
      %p260 = por %p258, %p259
      %p261 = scmp.ne.s32.totalorder %s252, %s253
      %p262 = scmp.eq.s32.totalorder %s32, 0
      %p263 = por %p261, %p262
      %p264 = scmp.ne.s32.totalorder %s252, %s253
      %p265 = scmp.eq.s32.totalorder %s33, 1
      %p266 = por %p264, %p265
      %p268 = scmp.ne.s32.totalorder %s253, %s267
      %p269 = scmp.eq.s32.totalorder %s33, 0
      %p270 = por %p268, %p269
      %s271 = ssub.s32 %s27, %s34
      %p272 = scmp.eq.s32.totalorder %s271, 0
      %s274 = sadd.s32 %s273, 1
      %s275 = scalar_select %p272, %s273, %s274
      %p278 = pneg %p272
      %p279 = scmp.eq.s32.totalorder %s27, 1
      %p280 = por %p278, %p279
      %p281 = scmp.ne.s32.totalorder %s273, %s276
      %p282 = scmp.eq.s32.totalorder %s27, 0
      %p283 = por %p281, %p282
      %p284 = scmp.ne.s32.totalorder %s273, %s276
      %p285 = scmp.eq.s32.totalorder %s32, 1
      %p286 = por %p284, %p285
      %p287 = scmp.ne.s32.totalorder %s276, %s277
      %p288 = scmp.eq.s32.totalorder %s32, 0
      %p289 = por %p287, %p288
      %p290 = scmp.ne.s32.totalorder %s276, %s277
      %p291 = scmp.eq.s32.totalorder %s33, 1
      %p292 = por %p290, %p291
      %p294 = scmp.ne.s32.totalorder %s277, %s293
      %p295 = scmp.eq.s32.totalorder %s33, 0
      %p296 = por %p294, %p295
      %p297 = scmp.le.s32.totalorder 1, %s27
      %p298 = scmp.lt.s32.totalorder %s27, 3
      %p299 = pnand %p297, %p298
      %p300 = pneg %p299
      // Predicated region
      $region9: #{tpu_custom_call.1} parent=5 // pred_check
        _
      $region10: #{tpu_custom_call.1} parent=5 // pred_check_branch
        %302 = sbr.rel (%p299) target = $region12
      $region11: #{tpu_custom_call.1} parent=5 // pred_region
        %s303 = ssub.s32 %s27, 1
        // Predicated region
        $region13: #{tpu_custom_call.1} parent=11 // pred_check
          %p304 = pneg %p74
        $region14: #{tpu_custom_call.1} parent=11 // pred_check_branch
          %306 = sbr.rel (%p304) target = $region16
        $region15: #{tpu_custom_call.1} parent=11 // pred_region
          %s308 = ssub.s32 2048, 2048
          %309 = vsyncadd [#allocation6], %s308
          %s310 = sshll.u32 [#allocation5], 4
          %s311 = int_to_ptr.vmem [resolvable:$true] %s310
          %316 = dma.hbm_to_vmem [thread:$0]  %s1, 2048, %s311, [#allocation6], 64, 64, 4
        $region16: #{tpu_custom_call.1} parent=11 // pred_fallthru
          _
        // Predicated region
        $region17: #{tpu_custom_call.1} parent=11 // pred_check
          %p317 = pneg %p95
        $region18: #{tpu_custom_call.1} parent=11 // pred_check_branch
          %319 = sbr.rel (%p317) target = $region20
        $region19: #{tpu_custom_call.1} parent=11 // pred_region
          %s321 = ssub.s32 16, 16
          %322 = vsyncadd [#allocation6], %s321
          %s324 = sshll.u32 [#allocation7], 4
          %s325 = int_to_ptr.vmem [resolvable:$true] %s324
          %327 = dma.hbm_to_vmem [thread:$0]  %s2, 16, %s325, [#allocation6]
        $region20: #{tpu_custom_call.1} parent=11 // pred_fallthru
          _
        // Predicated region
        $region21: #{tpu_custom_call.1} parent=11 // pred_check
          %p328 = pneg %p116
        $region22: #{tpu_custom_call.1} parent=11 // pred_check_branch
          %330 = sbr.rel (%p328) target = $region24
        $region23: #{tpu_custom_call.1} parent=11 // pred_region
          %s332 = ssub.s32 5120, 5120
          %333 = vsyncadd [#allocation9], %s332
          %s334 = sshll.u32 [#allocation8], 4
          %s335 = int_to_ptr.vmem [resolvable:$true] %s334
          %340 = dma.hbm_to_vmem [thread:$0]  %s3, 5120, %s335, [#allocation9], 64, 64, 4
        $region24: #{tpu_custom_call.1} parent=11 // pred_fallthru
          _
        // Predicated region
        $region25: #{tpu_custom_call.1} parent=11 // pred_check
          %p341 = pneg %p137
        $region26: #{tpu_custom_call.1} parent=11 // pred_check_branch
          %343 = sbr.rel (%p341) target = $region28
        $region27: #{tpu_custom_call.1} parent=11 // pred_region
          _
        $region28: #{tpu_custom_call.1} parent=11 // pred_fallthru
          _
        // Predicated region
        $region29: #{tpu_custom_call.1} parent=11 // pred_check
          %p344 = pneg %p158
        $region30: #{tpu_custom_call.1} parent=11 // pred_check_branch
          %346 = sbr.rel (%p344) target = $region32
        $region31: #{tpu_custom_call.1} parent=11 // pred_region
          %s348 = ssub.s32 5120, 5120
          %349 = vsyncadd [#allocation9], %s348
          %s350 = sshll.u32 [#allocation10], 4
          %s351 = int_to_ptr.vmem [resolvable:$true] %s350
          %356 = dma.hbm_to_vmem [thread:$0]  %s5, 5120, %s351, [#allocation9], 64, 64, 4
        $region32: #{tpu_custom_call.1} parent=11 // pred_fallthru
          _
        // Predicated region
        $region33: #{tpu_custom_call.1} parent=11 // pred_check
          %p357 = pneg %p179
        $region34: #{tpu_custom_call.1} parent=11 // pred_check_branch
          %359 = sbr.rel (%p357) target = $region36
        $region35: #{tpu_custom_call.1} parent=11 // pred_region
          _
        $region36: #{tpu_custom_call.1} parent=11 // pred_fallthru
          _
        // Predicated region
        $region37: #{tpu_custom_call.1} parent=11 // pred_check
          %p360 = pneg %p200
        $region38: #{tpu_custom_call.1} parent=11 // pred_check_branch
          %362 = sbr.rel (%p360) target = $region40
        $region39: #{tpu_custom_call.1} parent=11 // pred_region
          %s364 = ssub.s32 80, 80
          %365 = vsyncadd [#allocation12], %s364
          %s366 = sshll.u32 [#allocation11], 4
          %s367 = int_to_ptr.vmem [resolvable:$true] %s366
          %372 = dma.hbm_to_vmem [thread:$0]  %s7, 80, %s367, [#allocation12], 16, 16, 1
        $region40: #{tpu_custom_call.1} parent=11 // pred_fallthru
          _
        // Predicated region
        $region41: #{tpu_custom_call.1} parent=11 // pred_check
          %p373 = pneg %p221
        $region42: #{tpu_custom_call.1} parent=11 // pred_check_branch
          %375 = sbr.rel (%p373) target = $region44
        $region43: #{tpu_custom_call.1} parent=11 // pred_region
          %s377 = ssub.s32 80, 80
          %378 = vsyncadd [#allocation12], %s377
          %s379 = sshll.u32 [#allocation13], 4
          %s380 = int_to_ptr.vmem [resolvable:$true] %s379
          %385 = dma.hbm_to_vmem [thread:$0]  %s8, 80, %s380, [#allocation12], 16, 16, 1
        $region44: #{tpu_custom_call.1} parent=11 // pred_fallthru
          _
        // Predicated region
        $region45: #{tpu_custom_call.1} parent=11 // pred_check
          %p386 = pneg %p242
        $region46: #{tpu_custom_call.1} parent=11 // pred_check_branch
          %388 = sbr.rel (%p386) target = $region48
        $region47: #{tpu_custom_call.1} parent=11 // pred_region
          %s390 = ssub.s32 1024, 1024
          %391 = vsyncadd [#allocation15], %s390
          %s392 = sshll.u32 [#allocation14], 4
          %s393 = int_to_ptr.vmem [resolvable:$true] %s392
          %398 = dma.hbm_to_vmem [thread:$0]  %s9, 1024, %s393, [#allocation15], 64, 64, 4
        $region48: #{tpu_custom_call.1} parent=11 // pred_fallthru
          _
        // Predicated region
        $region49: #{tpu_custom_call.1} parent=11 // pred_check
          %p399 = pneg %p263
        $region50: #{tpu_custom_call.1} parent=11 // pred_check_branch
          %401 = sbr.rel (%p399) target = $region52
        $region51: #{tpu_custom_call.1} parent=11 // pred_region
          _
        $region52: #{tpu_custom_call.1} parent=11 // pred_fallthru
          _
      $region12: #{tpu_custom_call.1} parent=5 // pred_fallthru
        _
      %p402 = scmp.lt.s32.totalorder %s27, 2
      // Predicated region
      $region53: #{tpu_custom_call.1} parent=5 // pred_check
        %p403 = pneg %p402
      $region54: #{tpu_custom_call.1} parent=5 // pred_check_branch
        %405 = sbr.rel (%p403) target = $region56
      $region55: #{tpu_custom_call.1} parent=5 // pred_region
        // Predicated region
        $region57: #{tpu_custom_call.1} parent=55 // pred_check
          %p406 = pneg %p47
        $region58: #{tpu_custom_call.1} parent=55 // pred_check_branch
          %408 = sbr.rel (%p406) target = $region60
        $region59: #{tpu_custom_call.1} parent=55 // pred_region
          %s409 = sand.u32 %s37, 1
          %s410 = scalar_lea.sflag [#allocation3], %s409
          %s411 = sand.u32 %s37, 1
          %s412 = smul.addr %s411, 128
          %s413 = scalar_lea.vmem [#allocation2], %s412
          %s414 = smul.u32 16, %s27
          %s416 = ssub.s32 2048, 2048
          %417 = vsyncadd %s410, %s416
          %s418 = smul.addr %s414, 2
          %s419 = smul.addr %s418, 64
          %s420 = scalar_lea.hbm %s0, %s419
          %s421 = sshll.u32 %s413, 4
          %s422 = int_to_ptr.vmem [resolvable:$true] %s421
          %427 = dma.hbm_to_vmem [thread:$0]  %s420, 2048, %s422, %s410, 128, 128, 8
        $region60: #{tpu_custom_call.1} parent=55 // pred_fallthru
          _
      $region56: #{tpu_custom_call.1} parent=5 // pred_fallthru
        _
      %p428 = scmp.le.s32.totalorder 1, %s27
      %p429 = scmp.lt.s32.totalorder %s27, 3
      %p430 = pnand %p428, %p429
      %p431 = pneg %p430
      // Predicated region
      $region61: #{tpu_custom_call.1} parent=5 // pred_check
        _
      $region62: #{tpu_custom_call.1} parent=5 // pred_check_branch
        %433 = sbr.rel (%p430) target = $region64
      $region63: #{tpu_custom_call.1} parent=5 // pred_region
        %s434 = ssub.s32 %s27, 1
        %s435 = sand.u32 %s40, 1
        %s436 = scalar_lea.sflag [#allocation3], %s435
        %s437 = sand.u32 %s40, 1
        %s438 = smul.addr %s437, 128
        %s439 = scalar_lea.vmem [#allocation2], %s438
        // Predicated region
        $region65: #{tpu_custom_call.1} parent=63 // pred_check
          %p440 = pneg %p53
        $region66: #{tpu_custom_call.1} parent=63 // pred_check_branch
          %442 = sbr.rel (%p440) target = $region68
        $region67: #{tpu_custom_call.1} parent=63 // pred_region
          %443 = dma.done %s436, 2048
        $region68: #{tpu_custom_call.1} parent=63 // pred_fallthru
          _
        // Predicated region
        $region69: #{tpu_custom_call.1} parent=63 // pred_check
          %p444 = pneg %p74
        $region70: #{tpu_custom_call.1} parent=63 // pred_check_branch
          %446 = sbr.rel (%p444) target = $region72
        $region71: #{tpu_custom_call.1} parent=63 // pred_region
          %447 = dma.done [#allocation6], 2048
        $region72: #{tpu_custom_call.1} parent=63 // pred_fallthru
          _
        // Predicated region
        $region73: #{tpu_custom_call.1} parent=63 // pred_check
          %p448 = pneg %p95
        $region74: #{tpu_custom_call.1} parent=63 // pred_check_branch
          %450 = sbr.rel (%p448) target = $region76
        $region75: #{tpu_custom_call.1} parent=63 // pred_region
          %451 = dma.done [#allocation6], 16
        $region76: #{tpu_custom_call.1} parent=63 // pred_fallthru
          _
        // Predicated region
        $region77: #{tpu_custom_call.1} parent=63 // pred_check
          %p452 = pneg %p116
        $region78: #{tpu_custom_call.1} parent=63 // pred_check_branch
          %454 = sbr.rel (%p452) target = $region80
        $region79: #{tpu_custom_call.1} parent=63 // pred_region
          %455 = dma.done [#allocation9], 5120
        $region80: #{tpu_custom_call.1} parent=63 // pred_fallthru
          _
        // Predicated region
        $region81: #{tpu_custom_call.1} parent=63 // pred_check
          %p456 = pneg %p158
        $region82: #{tpu_custom_call.1} parent=63 // pred_check_branch
          %458 = sbr.rel (%p456) target = $region84
        $region83: #{tpu_custom_call.1} parent=63 // pred_region
          %459 = dma.done [#allocation9], 5120
        $region84: #{tpu_custom_call.1} parent=63 // pred_fallthru
          _
        // Predicated region
        $region85: #{tpu_custom_call.1} parent=63 // pred_check
          %p460 = pneg %p200
        $region86: #{tpu_custom_call.1} parent=63 // pred_check_branch
          %462 = sbr.rel (%p460) target = $region88
        $region87: #{tpu_custom_call.1} parent=63 // pred_region
          %463 = dma.done [#allocation12], 80
        $region88: #{tpu_custom_call.1} parent=63 // pred_fallthru
          _
        // Predicated region
        $region89: #{tpu_custom_call.1} parent=63 // pred_check
          %p464 = pneg %p221
        $region90: #{tpu_custom_call.1} parent=63 // pred_check_branch
          %466 = sbr.rel (%p464) target = $region92
        $region91: #{tpu_custom_call.1} parent=63 // pred_region
          %467 = dma.done [#allocation12], 80
        $region92: #{tpu_custom_call.1} parent=63 // pred_fallthru
          _
        // Predicated region
        $region93: #{tpu_custom_call.1} parent=63 // pred_check
          %p468 = pneg %p242
        $region94: #{tpu_custom_call.1} parent=63 // pred_check_branch
          %470 = sbr.rel (%p468) target = $region96
        $region95: #{tpu_custom_call.1} parent=63 // pred_region
          %471 = dma.done [#allocation15], 1024
        $region96: #{tpu_custom_call.1} parent=63 // pred_fallthru
          _
        %s472 = sand.u32 %s40, 1
        %s473 = scalar_lea.sflag [#allocation3], %s472
        %s474 = sand.u32 %s40, 1
        %s475 = smul.addr %s474, 128
        %s476 = scalar_lea.vmem [#allocation2], %s475
        %p477 = pneg %p53
        %p478 = pneg %p50
        %p479 = pneg %p74
        %p480 = pneg %p71
        %p481 = pneg %p95
        %p482 = pneg %p92
        %p483 = pneg %p116
        %p484 = pneg %p113
        %p485 = pneg %p137
        %p486 = pneg %p134
        %p487 = pneg %p158
        %p488 = pneg %p155
        %p489 = pneg %p179
        %p490 = pneg %p176
        %p491 = pneg %p200
        %p492 = pneg %p197
        %p493 = pneg %p221
        %p494 = pneg %p218
        %p495 = pneg %p242
        %p496 = pneg %p239
        %p497 = pneg %p263
        %p498 = pneg %p260
        %p499 = pneg %p289
        %p500 = pneg %p286
        %s501 = sand.u32 %s276, 1
        %s502 = scalar_lea.sflag [#allocation4], %s501
        %s503 = sand.u32 %s276, 1
        %s504 = smul.addr %s503, 128
        %s505 = scalar_lea.vmem [#allocation16], %s504
        %s506 = smul.u32 16, %s32
        %s507 = smul.u32 16, %s32
        %v509 = vld [vmem:[%s439] sm:$0xff]
        %v510 = vld [vmem:[%s439 + $0x8] sm:$0xff]
        %v511 = vld [vmem:[%s439 + $0x10] sm:$0xff]
        %v512 = vld [vmem:[%s439 + $0x18] sm:$0xff]
        %v513 = vld [vmem:[%s439 + $0x20] sm:$0xff]
        %v514 = vld [vmem:[%s439 + $0x28] sm:$0xff]
        %v515 = vld [vmem:[%s439 + $0x30] sm:$0xff]
        %v516 = vld [vmem:[%s439 + $0x38] sm:$0xff]
        %v517 = vld [vmem:[%s439 + $0x40] sm:$0xff]
        %v518 = vld [vmem:[%s439 + $0x48] sm:$0xff]
        %v519 = vld [vmem:[%s439 + $0x50] sm:$0xff]
        %v520 = vld [vmem:[%s439 + $0x58] sm:$0xff]
        %v521 = vld [vmem:[%s439 + $0x60] sm:$0xff]
        %v522 = vld [vmem:[%s439 + $0x68] sm:$0xff]
        %v523 = vld [vmem:[%s439 + $0x70] sm:$0xff]
        %v524 = vld [vmem:[%s439 + $0x78] sm:$0xff]
        %v525 = vld [vmem:[#allocation5] sm:$0xf]
        %v526 = vld [vmem:[#allocation5 + $0x4] sm:$0xf]
        %v527 = vld [vmem:[#allocation5 + $0x8] sm:$0xf]
        %v528 = vld [vmem:[#allocation5 + $0xc] sm:$0xf]
        %v529 = vld [vmem:[#allocation5 + $0x10] sm:$0xf]
        %v530 = vld [vmem:[#allocation5 + $0x14] sm:$0xf]
        %v531 = vld [vmem:[#allocation5 + $0x18] sm:$0xf]
        %v532 = vld [vmem:[#allocation5 + $0x1c] sm:$0xf]
        %v533 = vld [vmem:[#allocation5 + $0x20] sm:$0xf]
        %v534 = vld [vmem:[#allocation5 + $0x24] sm:$0xf]
        %v535 = vld [vmem:[#allocation5 + $0x28] sm:$0xf]
        %v536 = vld [vmem:[#allocation5 + $0x2c] sm:$0xf]
        %v537 = vld [vmem:[#allocation5 + $0x30] sm:$0xf]
        %v538 = vld [vmem:[#allocation5 + $0x34] sm:$0xf]
        %v539 = vld [vmem:[#allocation5 + $0x38] sm:$0xf]
        %v540 = vld [vmem:[#allocation5 + $0x3c] sm:$0xf]
        %v541 = vld [vmem:[#allocation5 + $0x40] sm:$0xf]
        %v542 = vld [vmem:[#allocation5 + $0x44] sm:$0xf]
        %v543 = vld [vmem:[#allocation5 + $0x48] sm:$0xf]
        %v544 = vld [vmem:[#allocation5 + $0x4c] sm:$0xf]
        %v545 = vld [vmem:[#allocation5 + $0x50] sm:$0xf]
        %v546 = vld [vmem:[#allocation5 + $0x54] sm:$0xf]
        %v547 = vld [vmem:[#allocation5 + $0x58] sm:$0xf]
        %v548 = vld [vmem:[#allocation5 + $0x5c] sm:$0xf]
        %v549 = vld [vmem:[#allocation5 + $0x60] sm:$0xf]
        %v550 = vld [vmem:[#allocation5 + $0x64] sm:$0xf]
        %v551 = vld [vmem:[#allocation5 + $0x68] sm:$0xf]
        %v552 = vld [vmem:[#allocation5 + $0x6c] sm:$0xf]
        %v553 = vld [vmem:[#allocation5 + $0x70] sm:$0xf]
        %v554 = vld [vmem:[#allocation5 + $0x74] sm:$0xf]
        %v555 = vld [vmem:[#allocation5 + $0x78] sm:$0xf]
        %v556 = vld [vmem:[#allocation5 + $0x7c] sm:$0xf]
        %v557 = vld [vmem:[#allocation7] sm:$0x1]
        %v559 = vlaneseq
        %v560 = vshrl.u32 %v559, 7
        %v561 = vsub.s32 0, %v560
        %v562 = vrot.slane %v557, %v561
        %v580 = vunpack.c.l.b16 %v509
        %v581 = vunpack.c.h.b16 %v509
        %v582 = vunpack.c.l.b16 %v510
        %v583 = vunpack.c.h.b16 %v510
        %v584 = vunpack.c.l.b16 %v511
        %v585 = vunpack.c.h.b16 %v511
        %v586 = vunpack.c.l.b16 %v512
        %v587 = vunpack.c.h.b16 %v512
        %v588 = vunpack.c.l.b16 %v513
        %v589 = vunpack.c.h.b16 %v513
        %v590 = vunpack.c.l.b16 %v514
        %v591 = vunpack.c.h.b16 %v514
        %v592 = vunpack.c.l.b16 %v515
        %v593 = vunpack.c.h.b16 %v515
        %v594 = vunpack.c.l.b16 %v516
        %v595 = vunpack.c.h.b16 %v516
        %v596 = vunpack.c.l.b16 %v517
        %v597 = vunpack.c.h.b16 %v517
        %v598 = vunpack.c.l.b16 %v518
        %v599 = vunpack.c.h.b16 %v518
        %v600 = vunpack.c.l.b16 %v519
        %v601 = vunpack.c.h.b16 %v519
        %v602 = vunpack.c.l.b16 %v520
        %v603 = vunpack.c.h.b16 %v520
        %v604 = vunpack.c.l.b16 %v521
        %v605 = vunpack.c.h.b16 %v521
        %v606 = vunpack.c.l.b16 %v522
        %v607 = vunpack.c.h.b16 %v522
        %v608 = vunpack.c.l.b16 %v523
        %v609 = vunpack.c.h.b16 %v523
        %v610 = vunpack.c.l.b16 %v524
        %v611 = vunpack.c.h.b16 %v524
        %v612 = vpack.c.b16 %v582, %v580
        %v613 = vpack.c.b16 %v583, %v581
        %v614 = vpack.c.b16 %v586, %v584
        %v615 = vpack.c.b16 %v587, %v585
        %v616 = vpack.c.b16 %v590, %v588
        %v617 = vpack.c.b16 %v591, %v589
        %v618 = vpack.c.b16 %v594, %v592
        %v619 = vpack.c.b16 %v595, %v593
        %v620 = vpack.c.b16 %v598, %v596
        %v621 = vpack.c.b16 %v599, %v597
        %v622 = vpack.c.b16 %v602, %v600
        %v623 = vpack.c.b16 %v603, %v601
        %v624 = vpack.c.b16 %v606, %v604
        %v625 = vpack.c.b16 %v607, %v605
        %v626 = vpack.c.b16 %v610, %v608
        %v627 = vpack.c.b16 %v611, %v609
        %v676 = vunpack.c.l.b16 %v525
        %v677 = vunpack.c.l.b16 %v526
        %v678 = vunpack.c.l.b16 %v527
        %v679 = vunpack.c.l.b16 %v528
        %v680 = vunpack.c.l.b16 %v529
        %v681 = vunpack.c.l.b16 %v530
        %v682 = vunpack.c.l.b16 %v531
        %v683 = vunpack.c.l.b16 %v532
        %v684 = vunpack.c.l.b16 %v533
        %v685 = vunpack.c.l.b16 %v534
        %v686 = vunpack.c.l.b16 %v535
        %v687 = vunpack.c.l.b16 %v536
        %v688 = vunpack.c.l.b16 %v537
        %v689 = vunpack.c.l.b16 %v538
        %v690 = vunpack.c.l.b16 %v539
        %v691 = vunpack.c.l.b16 %v540
        %v692 = vunpack.c.l.b16 %v541
        %v693 = vunpack.c.l.b16 %v542
        %v694 = vunpack.c.l.b16 %v543
        %v695 = vunpack.c.l.b16 %v544
        %v696 = vunpack.c.l.b16 %v545
        %v697 = vunpack.c.l.b16 %v546
        %v698 = vunpack.c.l.b16 %v547
        %v699 = vunpack.c.l.b16 %v548
        %v700 = vunpack.c.l.b16 %v549
        %v701 = vunpack.c.l.b16 %v550
        %v702 = vunpack.c.l.b16 %v551
        %v703 = vunpack.c.l.b16 %v552
        %v704 = vunpack.c.l.b16 %v553
        %v705 = vunpack.c.l.b16 %v554
        %v706 = vunpack.c.l.b16 %v555
        %v707 = vunpack.c.l.b16 %v556
        %v708 = vpack.c.b16 %v677, %v676
        %v709 = vpack.c.b16 %v679, %v678
        %v710 = vpack.c.b16 %v681, %v680
        %v711 = vpack.c.b16 %v683, %v682
        %v712 = vpack.c.b16 %v685, %v684
        %v713 = vpack.c.b16 %v687, %v686
        %v714 = vpack.c.b16 %v689, %v688
        %v715 = vpack.c.b16 %v691, %v690
        %v716 = vpack.c.b16 %v693, %v692
        %v717 = vpack.c.b16 %v695, %v694
        %v718 = vpack.c.b16 %v697, %v696
        %v719 = vpack.c.b16 %v699, %v698
        %v720 = vpack.c.b16 %v701, %v700
        %v721 = vpack.c.b16 %v703, %v702
        %v722 = vpack.c.b16 %v705, %v704
        %v723 = vpack.c.b16 %v707, %v706
        %740 = vmatprep.subr.bf16.mxu0 0
        %741 = vmatpush1.bf16.msra.mxu0 %v715
        %742 = vmatprep.subr.bf16.mxu0 0
        %743 = vmatpush1.bf16.msra.mxu0 %v714
        %744 = vmatprep.subr.bf16.mxu0 0
        %745 = vmatpush1.bf16.msra.mxu0 %v713
        %746 = vmatprep.subr.bf16.mxu0 0
        %747 = vmatpush1.bf16.msra.mxu0 %v712
        %748 = vmatprep.subr.bf16.mxu0 0
        %749 = vmatpush1.bf16.msra.mxu0 %v711
        %750 = vmatprep.subr.bf16.mxu0 0
        %751 = vmatpush1.bf16.msra.mxu0 %v710
        %752 = vmatprep.subr.bf16.mxu0 0
        %753 = vmatpush1.bf16.msra.mxu0 %v709
        %754 = vmatprep.subr.bf16.mxu0 0
        %755 = vmatpush1.bf16.msra.mxu0 %v708
        %756 = vmatprep.subr.bf16.mxu0 0
        %757 = vmatpush2.bf16.msra.mxu0 %v723
        %758 = vmatprep.subr.bf16.mxu0 0
        %759 = vmatpush2.bf16.msra.mxu0 %v722
        %760 = vmatprep.subr.bf16.mxu0 0
        %761 = vmatpush2.bf16.msra.mxu0 %v721
        %762 = vmatprep.subr.bf16.mxu0 0
        %763 = vmatpush2.bf16.msra.mxu0 %v720
        %764 = vmatprep.subr.bf16.mxu0 0
        %765 = vmatpush2.bf16.msra.mxu0 %v719
        %766 = vmatprep.subr.bf16.mxu0 0
        %767 = vmatpush2.bf16.msra.mxu0 %v718
        %768 = vmatprep.subr.bf16.mxu0 0
        %769 = vmatpush2.bf16.msra.mxu0 %v717
        %770 = vmatprep.subr.bf16.mxu0 0
        %771 = vmatpush2.bf16.msra.mxu0 %v716
        %772 = vmatprep.mubr.bf16.mxu0 %v613
        %773 = vmatmul.mubr.bf16.gmra.mxu0 %v612
        %v774 = vpop.f32.mrf.mxu0
        %v775 = vadd.f32 %v562, %v774
        %v776 = vpop.f32.mrf.mxu0
        %v777 = vpop.f32.mrf.mxu0
        %v778 = vadd.f32 %v562, %v777
        %v779 = vpop.f32.mrf.mxu0
        %780 = vmatprep.mubr.bf16.mxu0 %v615
        %781 = vmatmul.mubr.bf16.gmra.mxu0 %v614
        %v782 = vpop.f32.mrf.mxu0
        %v783 = vadd.f32 %v562, %v782
        %v784 = vpop.f32.mrf.mxu0
        %v785 = vpop.f32.mrf.mxu0
        %v786 = vadd.f32 %v562, %v785
        %v787 = vpop.f32.mrf.mxu0
        %788 = vmatprep.mubr.bf16.mxu0 %v617
        %789 = vmatmul.mubr.bf16.gmra.mxu0 %v616
        %v790 = vpop.f32.mrf.mxu0
        %v791 = vadd.f32 %v562, %v790
        %v792 = vpop.f32.mrf.mxu0
        %v793 = vpop.f32.mrf.mxu0
        %v794 = vadd.f32 %v562, %v793
        %v795 = vpop.f32.mrf.mxu0
        %796 = vmatprep.mubr.bf16.mxu0 %v619
        %797 = vmatmul.mubr.bf16.gmra.mxu0 %v618
        %v798 = vpop.f32.mrf.mxu0
        %v799 = vadd.f32 %v562, %v798
        %v800 = vpop.f32.mrf.mxu0
        %v801 = vpop.f32.mrf.mxu0
        %v802 = vadd.f32 %v562, %v801
        %v803 = vpop.f32.mrf.mxu0
        %804 = vmatprep.mubr.bf16.mxu0 %v621
        %805 = vmatmul.mubr.bf16.gmra.mxu0 %v620
        %v806 = vpop.f32.mrf.mxu0
        %v807 = vadd.f32 %v562, %v806
        %v808 = vpop.f32.mrf.mxu0
        %v809 = vpop.f32.mrf.mxu0
        %v810 = vadd.f32 %v562, %v809
        %v811 = vpop.f32.mrf.mxu0
        %812 = vmatprep.mubr.bf16.mxu0 %v623
        %813 = vmatmul.mubr.bf16.gmra.mxu0 %v622
        %v814 = vpop.f32.mrf.mxu0
        %v815 = vadd.f32 %v562, %v814
        %v816 = vpop.f32.mrf.mxu0
        %v817 = vpop.f32.mrf.mxu0
        %v818 = vadd.f32 %v562, %v817
        %v819 = vpop.f32.mrf.mxu0
        %820 = vmatprep.mubr.bf16.mxu0 %v625
        %821 = vmatmul.mubr.bf16.gmra.mxu0 %v624
        %v822 = vpop.f32.mrf.mxu0
        %v823 = vadd.f32 %v562, %v822
        %v824 = vpop.f32.mrf.mxu0
        %v825 = vpop.f32.mrf.mxu0
        %v826 = vadd.f32 %v562, %v825
        %v827 = vpop.f32.mrf.mxu0
        %828 = vmatprep.mubr.bf16.mxu0 %v627
        %829 = vmatmul.mubr.bf16.gmra.mxu0 %v626
        %v830 = vpop.f32.mrf.mxu0
        %v831 = vadd.f32 %v562, %v830
        %v832 = vpop.f32.mrf.mxu0
        %v833 = vpop.f32.mrf.mxu0
        %v834 = vadd.f32 %v562, %v833
        %v835 = vpop.f32.mrf.mxu0
        %836 = vdwg.mxu0
        %v837 = vmul.f32 %v775, 0.5
        %v838 = vmul.f32 %v778, 0.5
        %v839 = vmul.f32 %v783, 0.5
        %v840 = vmul.f32 %v786, 0.5
        %v841 = vmul.f32 %v791, 0.5
        %v842 = vmul.f32 %v794, 0.5
        %v843 = vmul.f32 %v799, 0.5
        %v844 = vmul.f32 %v802, 0.5
        %v845 = vmul.f32 %v807, 0.5
        %v846 = vmul.f32 %v810, 0.5
        %v847 = vmul.f32 %v815, 0.5
        %v848 = vmul.f32 %v818, 0.5
        %v849 = vmul.f32 %v823, 0.5
        %v850 = vmul.f32 %v826, 0.5
        %v851 = vmul.f32 %v831, 0.5
        %v852 = vmul.f32 %v834, 0.5
        %v853 = vmul.f32 %v775, 0.70710677
        %v854 = vmul.f32 %v778, 0.70710677
        %v855 = vmul.f32 %v783, 0.70710677
        %v856 = vmul.f32 %v786, 0.70710677
        %v857 = vmul.f32 %v791, 0.70710677
        %v858 = vmul.f32 %v794, 0.70710677
        %v859 = vmul.f32 %v799, 0.70710677
        %v860 = vmul.f32 %v802, 0.70710677
        %v861 = vmul.f32 %v807, 0.70710677
        %v862 = vmul.f32 %v810, 0.70710677
        %v863 = vmul.f32 %v815, 0.70710677
        %v864 = vmul.f32 %v818, 0.70710677
        %v865 = vmul.f32 %v823, 0.70710677
        %v866 = vmul.f32 %v826, 0.70710677
        %v867 = vmul.f32 %v831, 0.70710677
        %v868 = vmul.f32 %v834, 0.70710677
        %v869 = verf.f32.pop %v853
        %v870 = verf.f32.pop %v854
        %v871 = verf.f32.pop %v855
        %v872 = verf.f32.pop %v856
        %v873 = verf.f32.pop %v857
        %v874 = verf.f32.pop %v858
        %v875 = verf.f32.pop %v859
        %v876 = verf.f32.pop %v860
        %v877 = verf.f32.pop %v861
        %v878 = verf.f32.pop %v862
        %v879 = verf.f32.pop %v863
        %v880 = verf.f32.pop %v864
        %v881 = verf.f32.pop %v865
        %v882 = verf.f32.pop %v866
        %v883 = verf.f32.pop %v867
        %v884 = verf.f32.pop %v868
        %v885 = vadd.f32 %v869, 1.0
        %v886 = vadd.f32 %v870, 1.0
        %v887 = vadd.f32 %v871, 1.0
        %v888 = vadd.f32 %v872, 1.0
        %v889 = vadd.f32 %v873, 1.0
        %v890 = vadd.f32 %v874, 1.0
        %v891 = vadd.f32 %v875, 1.0
        %v892 = vadd.f32 %v876, 1.0
        %v893 = vadd.f32 %v877, 1.0
        %v894 = vadd.f32 %v878, 1.0
        %v895 = vadd.f32 %v879, 1.0
        %v896 = vadd.f32 %v880, 1.0
        %v897 = vadd.f32 %v881, 1.0
        %v898 = vadd.f32 %v882, 1.0
        %v899 = vadd.f32 %v883, 1.0
        %v900 = vadd.f32 %v884, 1.0
        %v901 = vmul.f32 %v837, %v885
        %v902 = vmul.f32 %v838, %v886
        %v903 = vmul.f32 %v839, %v887
        %v904 = vmul.f32 %v840, %v888
        %v905 = vmul.f32 %v841, %v889
        %v906 = vmul.f32 %v842, %v890
        %v907 = vmul.f32 %v843, %v891
        %v908 = vmul.f32 %v844, %v892
        %v909 = vmul.f32 %v845, %v893
        %v910 = vmul.f32 %v846, %v894
        %v911 = vmul.f32 %v847, %v895
        %v912 = vmul.f32 %v848, %v896
        %v913 = vmul.f32 %v849, %v897
        %v914 = vmul.f32 %v850, %v898
        %v915 = vmul.f32 %v851, %v899
        %v916 = vmul.f32 %v852, %v900
        %v917 = vpack.c.bf16 %v902, %v901
        %v918 = vpack.c.bf16 %v904, %v903
        %v919 = vpack.c.bf16 %v906, %v905
        %v920 = vpack.c.bf16 %v908, %v907
        %v921 = vpack.c.bf16 %v910, %v909
        %v922 = vpack.c.bf16 %v912, %v911
        %v923 = vpack.c.bf16 %v914, %v913
        %v924 = vpack.c.bf16 %v916, %v915
        %v925 = vld [vmem:[#allocation8] sm:$0xf]
        %v926 = vld [vmem:[#allocation8 + $0x4] sm:$0xf]
        %v927 = vld [vmem:[#allocation8 + $0x8] sm:$0xf]
        %v928 = vld [vmem:[#allocation8 + $0xc] sm:$0xf]
        %v929 = vld [vmem:[#allocation8 + $0x10] sm:$0xf]
        %v930 = vld [vmem:[#allocation8 + $0x14] sm:$0xf]
        %v931 = vld [vmem:[#allocation8 + $0x18] sm:$0xf]
        %v932 = vld [vmem:[#allocation8 + $0x1c] sm:$0xf]
        %v933 = vld [vmem:[#allocation8 + $0x20] sm:$0xf]
        %v934 = vld [vmem:[#allocation8 + $0x24] sm:$0xf]
        %v935 = vld [vmem:[#allocation8 + $0x28] sm:$0xf]
        %v936 = vld [vmem:[#allocation8 + $0x2c] sm:$0xf]
        %v937 = vld [vmem:[#allocation8 + $0x30] sm:$0xf]
        %v938 = vld [vmem:[#allocation8 + $0x34] sm:$0xf]
        %v939 = vld [vmem:[#allocation8 + $0x38] sm:$0xf]
        %v940 = vld [vmem:[#allocation8 + $0x3c] sm:$0xf]
        %v941 = vld [vmem:[%s4] sm:$0x1]
        %v943 = vlaneseq
        %v944 = vshrl.u32 %v943, 7
        %v945 = vsub.s32 0, %v944
        %v946 = vrot.slane %v941, %v945
        %v964 = vunpack.c.l.b16 %v925
        %v965 = vunpack.c.l.b16 %v926
        %v966 = vunpack.c.l.b16 %v927
        %v967 = vunpack.c.l.b16 %v928
        %v968 = vunpack.c.l.b16 %v929
        %v969 = vunpack.c.l.b16 %v930
        %v970 = vunpack.c.l.b16 %v931
        %v971 = vunpack.c.l.b16 %v932
        %v972 = vunpack.c.l.b16 %v933
        %v973 = vunpack.c.l.b16 %v934
        %v974 = vunpack.c.l.b16 %v935
        %v975 = vunpack.c.l.b16 %v936
        %v976 = vunpack.c.l.b16 %v937
        %v977 = vunpack.c.l.b16 %v938
        %v978 = vunpack.c.l.b16 %v939
        %v979 = vunpack.c.l.b16 %v940
        %v980 = vpack.c.b16 %v965, %v964
        %v981 = vpack.c.b16 %v967, %v966
        %v982 = vpack.c.b16 %v969, %v968
        %v983 = vpack.c.b16 %v971, %v970
        %v984 = vpack.c.b16 %v973, %v972
        %v985 = vpack.c.b16 %v975, %v974
        %v986 = vpack.c.b16 %v977, %v976
        %v987 = vpack.c.b16 %v979, %v978
        %996 = vmatprep.subr.bf16.mxu0 0
        %997 = vmatpush1.bf16.msra.mxu0 %v987
        %998 = vmatprep.subr.bf16.mxu0 0
        %999 = vmatpush1.bf16.msra.mxu0 %v986
        %1000 = vmatprep.subr.bf16.mxu0 0
        %1001 = vmatpush1.bf16.msra.mxu0 %v985
        %1002 = vmatprep.subr.bf16.mxu0 0
        %1003 = vmatpush1.bf16.msra.mxu0 %v984
        %1004 = vmatprep.subr.bf16.mxu0 0
        %1005 = vmatpush1.bf16.msra.mxu0 %v983
        %1006 = vmatprep.subr.bf16.mxu0 0
        %1007 = vmatpush1.bf16.msra.mxu0 %v982
        %1008 = vmatprep.subr.bf16.mxu0 0
        %1009 = vmatpush1.bf16.msra.mxu0 %v981
        %1010 = vmatprep.subr.bf16.mxu0 0
        %1011 = vmatpush1.bf16.msra.mxu0 %v980
        %1012 = vmatprep.subr.bf16.mxu0 0
        %1013 = vmatpush2.bf16.msra.mxu0 0
        %1014 = vmatprep.subr.bf16.mxu0 0
        %1015 = vmatpush2.bf16.msra.mxu0 0
        %1016 = vmatprep.subr.bf16.mxu0 0
        %1017 = vmatpush2.bf16.msra.mxu0 0
        %1018 = vmatprep.subr.bf16.mxu0 0
        %1019 = vmatpush2.bf16.msra.mxu0 0
        %1020 = vmatprep.subr.bf16.mxu0 0
        %1021 = vmatpush2.bf16.msra.mxu0 0
        %1022 = vmatprep.subr.bf16.mxu0 0
        %1023 = vmatpush2.bf16.msra.mxu0 0
        %1024 = vmatprep.subr.bf16.mxu0 0
        %1025 = vmatpush2.bf16.msra.mxu0 0
        %1026 = vmatprep.subr.bf16.mxu0 0
        %1027 = vmatpush2.bf16.msra.mxu0 0
        %1028 = vmatprep.mubr.bf16.mxu0 0
        %1029 = vmatmul.mubr.bf16.gmra.mxu0 %v917
        %v1030 = vpop.f32.mrf.mxu0
        %v1031 = vadd.f32 %v946, %v1030
        %v1032 = vpop.f32.mrf.mxu0
        %v1033 = vpop.f32.mrf.mxu0
        %v1034 = vadd.f32 %v946, %v1033
        %v1035 = vpop.f32.mrf.mxu0
        %1036 = vmatprep.mubr.bf16.mxu0 0
        %1037 = vmatmul.mubr.bf16.gmra.mxu0 %v918
        %v1038 = vpop.f32.mrf.mxu0
        %v1039 = vadd.f32 %v946, %v1038
        %v1040 = vpop.f32.mrf.mxu0
        %v1041 = vpop.f32.mrf.mxu0
        %v1042 = vadd.f32 %v946, %v1041
        %v1043 = vpop.f32.mrf.mxu0
        %1044 = vmatprep.mubr.bf16.mxu0 0
        %1045 = vmatmul.mubr.bf16.gmra.mxu0 %v919
        %v1046 = vpop.f32.mrf.mxu0
        %v1047 = vadd.f32 %v946, %v1046
        %v1048 = vpop.f32.mrf.mxu0
        %v1049 = vpop.f32.mrf.mxu0
        %v1050 = vadd.f32 %v946, %v1049
        %v1051 = vpop.f32.mrf.mxu0
        %1052 = vmatprep.mubr.bf16.mxu0 0
        %1053 = vmatmul.mubr.bf16.gmra.mxu0 %v920
        %v1054 = vpop.f32.mrf.mxu0
        %v1055 = vadd.f32 %v946, %v1054
        %v1056 = vpop.f32.mrf.mxu0
        %v1057 = vpop.f32.mrf.mxu0
        %v1058 = vadd.f32 %v946, %v1057
        %v1059 = vpop.f32.mrf.mxu0
        %1060 = vmatprep.mubr.bf16.mxu0 0
        %1061 = vmatmul.mubr.bf16.gmra.mxu0 %v921
        %v1062 = vpop.f32.mrf.mxu0
        %v1063 = vadd.f32 %v946, %v1062
        %v1064 = vpop.f32.mrf.mxu0
        %v1065 = vpop.f32.mrf.mxu0
        %v1066 = vadd.f32 %v946, %v1065
        %v1067 = vpop.f32.mrf.mxu0
        %1068 = vmatprep.mubr.bf16.mxu0 0
        %1069 = vmatmul.mubr.bf16.gmra.mxu0 %v922
        %v1070 = vpop.f32.mrf.mxu0
        %v1071 = vadd.f32 %v946, %v1070
        %v1072 = vpop.f32.mrf.mxu0
        %v1073 = vpop.f32.mrf.mxu0
        %v1074 = vadd.f32 %v946, %v1073
        %v1075 = vpop.f32.mrf.mxu0
        %1076 = vmatprep.mubr.bf16.mxu0 0
        %1077 = vmatmul.mubr.bf16.gmra.mxu0 %v923
        %v1078 = vpop.f32.mrf.mxu0
        %v1079 = vadd.f32 %v946, %v1078
        %v1080 = vpop.f32.mrf.mxu0
        %v1081 = vpop.f32.mrf.mxu0
        %v1082 = vadd.f32 %v946, %v1081
        %v1083 = vpop.f32.mrf.mxu0
        %1084 = vmatprep.mubr.bf16.mxu0 0
        %1085 = vmatmul.mubr.bf16.gmra.mxu0 %v924
        %v1086 = vpop.f32.mrf.mxu0
        %v1087 = vadd.f32 %v946, %v1086
        %v1088 = vpop.f32.mrf.mxu0
        %v1089 = vpop.f32.mrf.mxu0
        %v1090 = vadd.f32 %v946, %v1089
        %v1091 = vpop.f32.mrf.mxu0
        %1092 = vdwg.mxu0
        %v1093 = vmul.f32 %v1031, 0.5
        %v1094 = vmul.f32 %v1034, 0.5
        %v1095 = vmul.f32 %v1039, 0.5
        %v1096 = vmul.f32 %v1042, 0.5
        %v1097 = vmul.f32 %v1047, 0.5
        %v1098 = vmul.f32 %v1050, 0.5
        %v1099 = vmul.f32 %v1055, 0.5
        %v1100 = vmul.f32 %v1058, 0.5
        %v1101 = vmul.f32 %v1063, 0.5
        %v1102 = vmul.f32 %v1066, 0.5
        %v1103 = vmul.f32 %v1071, 0.5
        %v1104 = vmul.f32 %v1074, 0.5
        %v1105 = vmul.f32 %v1079, 0.5
        %v1106 = vmul.f32 %v1082, 0.5
        %v1107 = vmul.f32 %v1087, 0.5
        %v1108 = vmul.f32 %v1090, 0.5
        %v1109 = vmul.f32 %v1031, 0.70710677
        %v1110 = vmul.f32 %v1034, 0.70710677
        %v1111 = vmul.f32 %v1039, 0.70710677
        %v1112 = vmul.f32 %v1042, 0.70710677
        %v1113 = vmul.f32 %v1047, 0.70710677
        %v1114 = vmul.f32 %v1050, 0.70710677
        %v1115 = vmul.f32 %v1055, 0.70710677
        %v1116 = vmul.f32 %v1058, 0.70710677
        %v1117 = vmul.f32 %v1063, 0.70710677
        %v1118 = vmul.f32 %v1066, 0.70710677
        %v1119 = vmul.f32 %v1071, 0.70710677
        %v1120 = vmul.f32 %v1074, 0.70710677
        %v1121 = vmul.f32 %v1079, 0.70710677
        %v1122 = vmul.f32 %v1082, 0.70710677
        %v1123 = vmul.f32 %v1087, 0.70710677
        %v1124 = vmul.f32 %v1090, 0.70710677
        %v1125 = verf.f32.pop %v1109
        %v1126 = verf.f32.pop %v1110
        %v1127 = verf.f32.pop %v1111
        %v1128 = verf.f32.pop %v1112
        %v1129 = verf.f32.pop %v1113
        %v1130 = verf.f32.pop %v1114
        %v1131 = verf.f32.pop %v1115
        %v1132 = verf.f32.pop %v1116
        %v1133 = verf.f32.pop %v1117
        %v1134 = verf.f32.pop %v1118
        %v1135 = verf.f32.pop %v1119
        %v1136 = verf.f32.pop %v1120
        %v1137 = verf.f32.pop %v1121
        %v1138 = verf.f32.pop %v1122
        %v1139 = verf.f32.pop %v1123
        %v1140 = verf.f32.pop %v1124
        %v1141 = vadd.f32 %v1125, 1.0
        %v1142 = vadd.f32 %v1126, 1.0
        %v1143 = vadd.f32 %v1127, 1.0
        %v1144 = vadd.f32 %v1128, 1.0
        %v1145 = vadd.f32 %v1129, 1.0
        %v1146 = vadd.f32 %v1130, 1.0
        %v1147 = vadd.f32 %v1131, 1.0
        %v1148 = vadd.f32 %v1132, 1.0
        %v1149 = vadd.f32 %v1133, 1.0
        %v1150 = vadd.f32 %v1134, 1.0
        %v1151 = vadd.f32 %v1135, 1.0
        %v1152 = vadd.f32 %v1136, 1.0
        %v1153 = vadd.f32 %v1137, 1.0
        %v1154 = vadd.f32 %v1138, 1.0
        %v1155 = vadd.f32 %v1139, 1.0
        %v1156 = vadd.f32 %v1140, 1.0
        %v1157 = vmul.f32 %v1093, %v1141
        %v1158 = vmul.f32 %v1094, %v1142
        %v1159 = vmul.f32 %v1095, %v1143
        %v1160 = vmul.f32 %v1096, %v1144
        %v1161 = vmul.f32 %v1097, %v1145
        %v1162 = vmul.f32 %v1098, %v1146
        %v1163 = vmul.f32 %v1099, %v1147
        %v1164 = vmul.f32 %v1100, %v1148
        %v1165 = vmul.f32 %v1101, %v1149
        %v1166 = vmul.f32 %v1102, %v1150
        %v1167 = vmul.f32 %v1103, %v1151
        %v1168 = vmul.f32 %v1104, %v1152
        %v1169 = vmul.f32 %v1105, %v1153
        %v1170 = vmul.f32 %v1106, %v1154
        %v1171 = vmul.f32 %v1107, %v1155
        %v1172 = vmul.f32 %v1108, %v1156
        %v1173 = vpack.c.bf16 %v1158, %v1157
        %v1174 = vpack.c.bf16 %v1160, %v1159
        %v1175 = vpack.c.bf16 %v1162, %v1161
        %v1176 = vpack.c.bf16 %v1164, %v1163
        %v1177 = vpack.c.bf16 %v1166, %v1165
        %v1178 = vpack.c.bf16 %v1168, %v1167
        %v1179 = vpack.c.bf16 %v1170, %v1169
        %v1180 = vpack.c.bf16 %v1172, %v1171
        %v1181 = vld [vmem:[#allocation10] sm:$0xf]
        %v1182 = vld [vmem:[#allocation10 + $0x4] sm:$0xf]
        %v1183 = vld [vmem:[#allocation10 + $0x8] sm:$0xf]
        %v1184 = vld [vmem:[#allocation10 + $0xc] sm:$0xf]
        %v1185 = vld [vmem:[#allocation10 + $0x10] sm:$0xf]
        %v1186 = vld [vmem:[#allocation10 + $0x14] sm:$0xf]
        %v1187 = vld [vmem:[#allocation10 + $0x18] sm:$0xf]
        %v1188 = vld [vmem:[#allocation10 + $0x1c] sm:$0xf]
        %v1189 = vld [vmem:[#allocation10 + $0x20] sm:$0xf]
        %v1190 = vld [vmem:[#allocation10 + $0x24] sm:$0xf]
        %v1191 = vld [vmem:[#allocation10 + $0x28] sm:$0xf]
        %v1192 = vld [vmem:[#allocation10 + $0x2c] sm:$0xf]
        %v1193 = vld [vmem:[#allocation10 + $0x30] sm:$0xf]
        %v1194 = vld [vmem:[#allocation10 + $0x34] sm:$0xf]
        %v1195 = vld [vmem:[#allocation10 + $0x38] sm:$0xf]
        %v1196 = vld [vmem:[#allocation10 + $0x3c] sm:$0xf]
        %v1197 = vld [vmem:[%s6] sm:$0x1]
        %v1199 = vlaneseq
        %v1200 = vshrl.u32 %v1199, 7
        %v1201 = vsub.s32 0, %v1200
        %v1202 = vrot.slane %v1197, %v1201
        %v1220 = vunpack.c.l.b16 %v1181
        %v1221 = vunpack.c.l.b16 %v1182
        %v1222 = vunpack.c.l.b16 %v1183
        %v1223 = vunpack.c.l.b16 %v1184
        %v1224 = vunpack.c.l.b16 %v1185
        %v1225 = vunpack.c.l.b16 %v1186
        %v1226 = vunpack.c.l.b16 %v1187
        %v1227 = vunpack.c.l.b16 %v1188
        %v1228 = vunpack.c.l.b16 %v1189
        %v1229 = vunpack.c.l.b16 %v1190
        %v1230 = vunpack.c.l.b16 %v1191
        %v1231 = vunpack.c.l.b16 %v1192
        %v1232 = vunpack.c.l.b16 %v1193
        %v1233 = vunpack.c.l.b16 %v1194
        %v1234 = vunpack.c.l.b16 %v1195
        %v1235 = vunpack.c.l.b16 %v1196
        %v1236 = vpack.c.b16 %v1221, %v1220
        %v1237 = vpack.c.b16 %v1223, %v1222
        %v1238 = vpack.c.b16 %v1225, %v1224
        %v1239 = vpack.c.b16 %v1227, %v1226
        %v1240 = vpack.c.b16 %v1229, %v1228
        %v1241 = vpack.c.b16 %v1231, %v1230
        %v1242 = vpack.c.b16 %v1233, %v1232
        %v1243 = vpack.c.b16 %v1235, %v1234
        %1252 = vmatprep.subr.bf16.mxu0 0
        %1253 = vmatpush1.bf16.msra.mxu0 %v1243
        %1254 = vmatprep.subr.bf16.mxu0 0
        %1255 = vmatpush1.bf16.msra.mxu0 %v1242
        %1256 = vmatprep.subr.bf16.mxu0 0
        %1257 = vmatpush1.bf16.msra.mxu0 %v1241
        %1258 = vmatprep.subr.bf16.mxu0 0
        %1259 = vmatpush1.bf16.msra.mxu0 %v1240
        %1260 = vmatprep.subr.bf16.mxu0 0
        %1261 = vmatpush1.bf16.msra.mxu0 %v1239
        %1262 = vmatprep.subr.bf16.mxu0 0
        %1263 = vmatpush1.bf16.msra.mxu0 %v1238
        %1264 = vmatprep.subr.bf16.mxu0 0
        %1265 = vmatpush1.bf16.msra.mxu0 %v1237
        %1266 = vmatprep.subr.bf16.mxu0 0
        %1267 = vmatpush1.bf16.msra.mxu0 %v1236
        %1268 = vmatprep.subr.bf16.mxu0 0
        %1269 = vmatpush2.bf16.msra.mxu0 0
        %1270 = vmatprep.subr.bf16.mxu0 0
        %1271 = vmatpush2.bf16.msra.mxu0 0
        %1272 = vmatprep.subr.bf16.mxu0 0
        %1273 = vmatpush2.bf16.msra.mxu0 0
        %1274 = vmatprep.subr.bf16.mxu0 0
        %1275 = vmatpush2.bf16.msra.mxu0 0
        %1276 = vmatprep.subr.bf16.mxu0 0
        %1277 = vmatpush2.bf16.msra.mxu0 0
        %1278 = vmatprep.subr.bf16.mxu0 0
        %1279 = vmatpush2.bf16.msra.mxu0 0
        %1280 = vmatprep.subr.bf16.mxu0 0
        %1281 = vmatpush2.bf16.msra.mxu0 0
        %1282 = vmatprep.subr.bf16.mxu0 0
        %1283 = vmatpush2.bf16.msra.mxu0 0
        %1284 = vmatprep.mubr.bf16.mxu0 0
        %1285 = vmatmul.mubr.bf16.gmra.mxu0 %v1173
        %v1286 = vpop.f32.mrf.mxu0
        %v1287 = vadd.f32 %v1202, %v1286
        %v1288 = vpop.f32.mrf.mxu0
        %v1289 = vpop.f32.mrf.mxu0
        %v1290 = vadd.f32 %v1202, %v1289
        %v1291 = vpop.f32.mrf.mxu0
        %1292 = vmatprep.mubr.bf16.mxu0 0
        %1293 = vmatmul.mubr.bf16.gmra.mxu0 %v1174
        %v1294 = vpop.f32.mrf.mxu0
        %v1295 = vadd.f32 %v1202, %v1294
        %v1296 = vpop.f32.mrf.mxu0
        %v1297 = vpop.f32.mrf.mxu0
        %v1298 = vadd.f32 %v1202, %v1297
        %v1299 = vpop.f32.mrf.mxu0
        %1300 = vmatprep.mubr.bf16.mxu0 0
        %1301 = vmatmul.mubr.bf16.gmra.mxu0 %v1175
        %v1302 = vpop.f32.mrf.mxu0
        %v1303 = vadd.f32 %v1202, %v1302
        %v1304 = vpop.f32.mrf.mxu0
        %v1305 = vpop.f32.mrf.mxu0
        %v1306 = vadd.f32 %v1202, %v1305
        %v1307 = vpop.f32.mrf.mxu0
        %1308 = vmatprep.mubr.bf16.mxu0 0
        %1309 = vmatmul.mubr.bf16.gmra.mxu0 %v1176
        %v1310 = vpop.f32.mrf.mxu0
        %v1311 = vadd.f32 %v1202, %v1310
        %v1312 = vpop.f32.mrf.mxu0
        %v1313 = vpop.f32.mrf.mxu0
        %v1314 = vadd.f32 %v1202, %v1313
        %v1315 = vpop.f32.mrf.mxu0
        %1316 = vmatprep.mubr.bf16.mxu0 0
        %1317 = vmatmul.mubr.bf16.gmra.mxu0 %v1177
        %v1318 = vpop.f32.mrf.mxu0
        %v1319 = vadd.f32 %v1202, %v1318
        %v1320 = vpop.f32.mrf.mxu0
        %v1321 = vpop.f32.mrf.mxu0
        %v1322 = vadd.f32 %v1202, %v1321
        %v1323 = vpop.f32.mrf.mxu0
        %1324 = vmatprep.mubr.bf16.mxu0 0
        %1325 = vmatmul.mubr.bf16.gmra.mxu0 %v1178
        %v1326 = vpop.f32.mrf.mxu0
        %v1327 = vadd.f32 %v1202, %v1326
        %v1328 = vpop.f32.mrf.mxu0
        %v1329 = vpop.f32.mrf.mxu0
        %v1330 = vadd.f32 %v1202, %v1329
        %v1331 = vpop.f32.mrf.mxu0
        %1332 = vmatprep.mubr.bf16.mxu0 0
        %1333 = vmatmul.mubr.bf16.gmra.mxu0 %v1179
        %v1334 = vpop.f32.mrf.mxu0
        %v1335 = vadd.f32 %v1202, %v1334
        %v1336 = vpop.f32.mrf.mxu0
        %v1337 = vpop.f32.mrf.mxu0
        %v1338 = vadd.f32 %v1202, %v1337
        %v1339 = vpop.f32.mrf.mxu0
        %1340 = vmatprep.mubr.bf16.mxu0 0
        %1341 = vmatmul.mubr.bf16.gmra.mxu0 %v1180
        %v1342 = vpop.f32.mrf.mxu0
        %v1343 = vadd.f32 %v1202, %v1342
        %v1344 = vpop.f32.mrf.mxu0
        %v1345 = vpop.f32.mrf.mxu0
        %v1346 = vadd.f32 %v1202, %v1345
        %v1347 = vpop.f32.mrf.mxu0
        %1348 = vdwg.mxu0
        %v1349 = vmul.f32 %v1287, 0.5
        %v1350 = vmul.f32 %v1290, 0.5
        %v1351 = vmul.f32 %v1295, 0.5
        %v1352 = vmul.f32 %v1298, 0.5
        %v1353 = vmul.f32 %v1303, 0.5
        %v1354 = vmul.f32 %v1306, 0.5
        %v1355 = vmul.f32 %v1311, 0.5
        %v1356 = vmul.f32 %v1314, 0.5
        %v1357 = vmul.f32 %v1319, 0.5
        %v1358 = vmul.f32 %v1322, 0.5
        %v1359 = vmul.f32 %v1327, 0.5
        %v1360 = vmul.f32 %v1330, 0.5
        %v1361 = vmul.f32 %v1335, 0.5
        %v1362 = vmul.f32 %v1338, 0.5
        %v1363 = vmul.f32 %v1343, 0.5
        %v1364 = vmul.f32 %v1346, 0.5
        %v1365 = vmul.f32 %v1287, 0.70710677
        %v1366 = vmul.f32 %v1290, 0.70710677
        %v1367 = vmul.f32 %v1295, 0.70710677
        %v1368 = vmul.f32 %v1298, 0.70710677
        %v1369 = vmul.f32 %v1303, 0.70710677
        %v1370 = vmul.f32 %v1306, 0.70710677
        %v1371 = vmul.f32 %v1311, 0.70710677
        %v1372 = vmul.f32 %v1314, 0.70710677
        %v1373 = vmul.f32 %v1319, 0.70710677
        %v1374 = vmul.f32 %v1322, 0.70710677
        %v1375 = vmul.f32 %v1327, 0.70710677
        %v1376 = vmul.f32 %v1330, 0.70710677
        %v1377 = vmul.f32 %v1335, 0.70710677
        %v1378 = vmul.f32 %v1338, 0.70710677
        %v1379 = vmul.f32 %v1343, 0.70710677
        %v1380 = vmul.f32 %v1346, 0.70710677
        %v1381 = verf.f32.pop %v1365
        %v1382 = verf.f32.pop %v1366
        %v1383 = verf.f32.pop %v1367
        %v1384 = verf.f32.pop %v1368
        %v1385 = verf.f32.pop %v1369
        %v1386 = verf.f32.pop %v1370
        %v1387 = verf.f32.pop %v1371
        %v1388 = verf.f32.pop %v1372
        %v1389 = verf.f32.pop %v1373
        %v1390 = verf.f32.pop %v1374
        %v1391 = verf.f32.pop %v1375
        %v1392 = verf.f32.pop %v1376
        %v1393 = verf.f32.pop %v1377
        %v1394 = verf.f32.pop %v1378
        %v1395 = verf.f32.pop %v1379
        %v1396 = verf.f32.pop %v1380
        %v1397 = vadd.f32 %v1381, 1.0
        %v1398 = vadd.f32 %v1382, 1.0
        %v1399 = vadd.f32 %v1383, 1.0
        %v1400 = vadd.f32 %v1384, 1.0
        %v1401 = vadd.f32 %v1385, 1.0
        %v1402 = vadd.f32 %v1386, 1.0
        %v1403 = vadd.f32 %v1387, 1.0
        %v1404 = vadd.f32 %v1388, 1.0
        %v1405 = vadd.f32 %v1389, 1.0
        %v1406 = vadd.f32 %v1390, 1.0
        %v1407 = vadd.f32 %v1391, 1.0
        %v1408 = vadd.f32 %v1392, 1.0
        %v1409 = vadd.f32 %v1393, 1.0
        %v1410 = vadd.f32 %v1394, 1.0
        %v1411 = vadd.f32 %v1395, 1.0
        %v1412 = vadd.f32 %v1396, 1.0
        %v1413 = vmul.f32 %v1349, %v1397
        %v1414 = vmul.f32 %v1350, %v1398
        %v1415 = vmul.f32 %v1351, %v1399
        %v1416 = vmul.f32 %v1352, %v1400
        %v1417 = vmul.f32 %v1353, %v1401
        %v1418 = vmul.f32 %v1354, %v1402
        %v1419 = vmul.f32 %v1355, %v1403
        %v1420 = vmul.f32 %v1356, %v1404
        %v1421 = vmul.f32 %v1357, %v1405
        %v1422 = vmul.f32 %v1358, %v1406
        %v1423 = vmul.f32 %v1359, %v1407
        %v1424 = vmul.f32 %v1360, %v1408
        %v1425 = vmul.f32 %v1361, %v1409
        %v1426 = vmul.f32 %v1362, %v1410
        %v1427 = vmul.f32 %v1363, %v1411
        %v1428 = vmul.f32 %v1364, %v1412
        %v1429 = vld [vmem:[#allocation11] sm:$0x1]
        %v1431 = vlaneseq
        %v1432 = vshrl.u32 %v1431, 7
        %v1433 = vsub.s32 0, %v1432
        %v1434 = vrot.slane %v1429, %v1433
        %v1436 = vmul.f32 %v1413, %v1434
        %v1437 = vmul.f32 %v1414, %v1434
        %v1438 = vmul.f32 %v1415, %v1434
        %v1439 = vmul.f32 %v1416, %v1434
        %v1440 = vmul.f32 %v1417, %v1434
        %v1441 = vmul.f32 %v1418, %v1434
        %v1442 = vmul.f32 %v1419, %v1434
        %v1443 = vmul.f32 %v1420, %v1434
        %v1444 = vmul.f32 %v1421, %v1434
        %v1445 = vmul.f32 %v1422, %v1434
        %v1446 = vmul.f32 %v1423, %v1434
        %v1447 = vmul.f32 %v1424, %v1434
        %v1448 = vmul.f32 %v1425, %v1434
        %v1449 = vmul.f32 %v1426, %v1434
        %v1450 = vmul.f32 %v1427, %v1434
        %v1451 = vmul.f32 %v1428, %v1434
        %v1452 = vld [vmem:[#allocation13] sm:$0x1]
        %v1454 = vlaneseq
        %v1455 = vshrl.u32 %v1454, 7
        %v1456 = vsub.s32 0, %v1455
        %v1457 = vrot.slane %v1452, %v1456
        %v1459 = vadd.f32 %v1436, %v1457
        %v1460 = vadd.f32 %v1437, %v1457
        %v1461 = vadd.f32 %v1438, %v1457
        %v1462 = vadd.f32 %v1439, %v1457
        %v1463 = vadd.f32 %v1440, %v1457
        %v1464 = vadd.f32 %v1441, %v1457
        %v1465 = vadd.f32 %v1442, %v1457
        %v1466 = vadd.f32 %v1443, %v1457
        %v1467 = vadd.f32 %v1444, %v1457
        %v1468 = vadd.f32 %v1445, %v1457
        %v1469 = vadd.f32 %v1446, %v1457
        %v1470 = vadd.f32 %v1447, %v1457
        %v1471 = vadd.f32 %v1448, %v1457
        %v1472 = vadd.f32 %v1449, %v1457
        %v1473 = vadd.f32 %v1450, %v1457
        %v1474 = vadd.f32 %v1451, %v1457
        %v1475 = vadd.f32 %v1459, %v901
        %v1476 = vadd.f32 %v1460, %v902
        %v1477 = vadd.f32 %v1461, %v903
        %v1478 = vadd.f32 %v1462, %v904
        %v1479 = vadd.f32 %v1463, %v905
        %v1480 = vadd.f32 %v1464, %v906
        %v1481 = vadd.f32 %v1465, %v907
        %v1482 = vadd.f32 %v1466, %v908
        %v1483 = vadd.f32 %v1467, %v909
        %v1484 = vadd.f32 %v1468, %v910
        %v1485 = vadd.f32 %v1469, %v911
        %v1486 = vadd.f32 %v1470, %v912
        %v1487 = vadd.f32 %v1471, %v913
        %v1488 = vadd.f32 %v1472, %v914
        %v1489 = vadd.f32 %v1473, %v915
        %v1490 = vadd.f32 %v1474, %v916
        %v1491 = vpack.c.bf16 %v1476, %v1475
        %v1492 = vpack.c.bf16 %v1478, %v1477
        %v1493 = vpack.c.bf16 %v1480, %v1479
        %v1494 = vpack.c.bf16 %v1482, %v1481
        %v1495 = vpack.c.bf16 %v1484, %v1483
        %v1496 = vpack.c.bf16 %v1486, %v1485
        %v1497 = vpack.c.bf16 %v1488, %v1487
        %v1498 = vpack.c.bf16 %v1490, %v1489
        %s1499 = scalar_lea.vmem [#allocation8], 64
        %v1500 = vld [vmem:[%s1499] sm:$0xf]
        %v1501 = vld [vmem:[%s1499 + $0x4] sm:$0xf]
        %v1502 = vld [vmem:[%s1499 + $0x8] sm:$0xf]
        %v1503 = vld [vmem:[%s1499 + $0xc] sm:$0xf]
        %v1504 = vld [vmem:[%s1499 + $0x10] sm:$0xf]
        %v1505 = vld [vmem:[%s1499 + $0x14] sm:$0xf]
        %v1506 = vld [vmem:[%s1499 + $0x18] sm:$0xf]
        %v1507 = vld [vmem:[%s1499 + $0x1c] sm:$0xf]
        %v1508 = vld [vmem:[%s1499 + $0x20] sm:$0xf]
        %v1509 = vld [vmem:[%s1499 + $0x24] sm:$0xf]
        %v1510 = vld [vmem:[%s1499 + $0x28] sm:$0xf]
        %v1511 = vld [vmem:[%s1499 + $0x2c] sm:$0xf]
        %v1512 = vld [vmem:[%s1499 + $0x30] sm:$0xf]
        %v1513 = vld [vmem:[%s1499 + $0x34] sm:$0xf]
        %v1514 = vld [vmem:[%s1499 + $0x38] sm:$0xf]
        %v1515 = vld [vmem:[%s1499 + $0x3c] sm:$0xf]
        %s1516 = scalar_lea.vmem %s4, 1
        %v1517 = vld [vmem:[%s1516] sm:$0x1]
        %v1519 = vlaneseq
        %v1520 = vshrl.u32 %v1519, 7
        %v1521 = vsub.s32 0, %v1520
        %v1522 = vrot.slane %v1517, %v1521
        %v1540 = vunpack.c.l.b16 %v1500
        %v1541 = vunpack.c.l.b16 %v1501
        %v1542 = vunpack.c.l.b16 %v1502
        %v1543 = vunpack.c.l.b16 %v1503
        %v1544 = vunpack.c.l.b16 %v1504
        %v1545 = vunpack.c.l.b16 %v1505
        %v1546 = vunpack.c.l.b16 %v1506
        %v1547 = vunpack.c.l.b16 %v1507
        %v1548 = vunpack.c.l.b16 %v1508
        %v1549 = vunpack.c.l.b16 %v1509
        %v1550 = vunpack.c.l.b16 %v1510
        %v1551 = vunpack.c.l.b16 %v1511
        %v1552 = vunpack.c.l.b16 %v1512
        %v1553 = vunpack.c.l.b16 %v1513
        %v1554 = vunpack.c.l.b16 %v1514
        %v1555 = vunpack.c.l.b16 %v1515
        %v1556 = vpack.c.b16 %v1541, %v1540
        %v1557 = vpack.c.b16 %v1543, %v1542
        %v1558 = vpack.c.b16 %v1545, %v1544
        %v1559 = vpack.c.b16 %v1547, %v1546
        %v1560 = vpack.c.b16 %v1549, %v1548
        %v1561 = vpack.c.b16 %v1551, %v1550
        %v1562 = vpack.c.b16 %v1553, %v1552
        %v1563 = vpack.c.b16 %v1555, %v1554
        %1572 = vmatprep.subr.bf16.mxu0 0
        %1573 = vmatpush1.bf16.msra.mxu0 %v1563
        %1574 = vmatprep.subr.bf16.mxu0 0
        %1575 = vmatpush1.bf16.msra.mxu0 %v1562
        %1576 = vmatprep.subr.bf16.mxu0 0
        %1577 = vmatpush1.bf16.msra.mxu0 %v1561
        %1578 = vmatprep.subr.bf16.mxu0 0
        %1579 = vmatpush1.bf16.msra.mxu0 %v1560
        %1580 = vmatprep.subr.bf16.mxu0 0
        %1581 = vmatpush1.bf16.msra.mxu0 %v1559
        %1582 = vmatprep.subr.bf16.mxu0 0
        %1583 = vmatpush1.bf16.msra.mxu0 %v1558
        %1584 = vmatprep.subr.bf16.mxu0 0
        %1585 = vmatpush1.bf16.msra.mxu0 %v1557
        %1586 = vmatprep.subr.bf16.mxu0 0
        %1587 = vmatpush1.bf16.msra.mxu0 %v1556
        %1588 = vmatprep.subr.bf16.mxu0 0
        %1589 = vmatpush2.bf16.msra.mxu0 0
        %1590 = vmatprep.subr.bf16.mxu0 0
        %1591 = vmatpush2.bf16.msra.mxu0 0
        %1592 = vmatprep.subr.bf16.mxu0 0
        %1593 = vmatpush2.bf16.msra.mxu0 0
        %1594 = vmatprep.subr.bf16.mxu0 0
        %1595 = vmatpush2.bf16.msra.mxu0 0
        %1596 = vmatprep.subr.bf16.mxu0 0
        %1597 = vmatpush2.bf16.msra.mxu0 0
        %1598 = vmatprep.subr.bf16.mxu0 0
        %1599 = vmatpush2.bf16.msra.mxu0 0
        %1600 = vmatprep.subr.bf16.mxu0 0
        %1601 = vmatpush2.bf16.msra.mxu0 0
        %1602 = vmatprep.subr.bf16.mxu0 0
        %1603 = vmatpush2.bf16.msra.mxu0 0
        %1604 = vmatprep.mubr.bf16.mxu0 0
        %1605 = vmatmul.mubr.bf16.gmra.mxu0 %v1491
        %v1606 = vpop.f32.mrf.mxu0
        %v1607 = vadd.f32 %v1522, %v1606
        %v1608 = vpop.f32.mrf.mxu0
        %v1609 = vpop.f32.mrf.mxu0
        %v1610 = vadd.f32 %v1522, %v1609
        %v1611 = vpop.f32.mrf.mxu0
        %1612 = vmatprep.mubr.bf16.mxu0 0
        %1613 = vmatmul.mubr.bf16.gmra.mxu0 %v1492
        %v1614 = vpop.f32.mrf.mxu0
        %v1615 = vadd.f32 %v1522, %v1614
        %v1616 = vpop.f32.mrf.mxu0
        %v1617 = vpop.f32.mrf.mxu0
        %v1618 = vadd.f32 %v1522, %v1617
        %v1619 = vpop.f32.mrf.mxu0
        %1620 = vmatprep.mubr.bf16.mxu0 0
        %1621 = vmatmul.mubr.bf16.gmra.mxu0 %v1493
        %v1622 = vpop.f32.mrf.mxu0
        %v1623 = vadd.f32 %v1522, %v1622
        %v1624 = vpop.f32.mrf.mxu0
        %v1625 = vpop.f32.mrf.mxu0
        %v1626 = vadd.f32 %v1522, %v1625
        %v1627 = vpop.f32.mrf.mxu0
        %1628 = vmatprep.mubr.bf16.mxu0 0
        %1629 = vmatmul.mubr.bf16.gmra.mxu0 %v1494
        %v1630 = vpop.f32.mrf.mxu0
        %v1631 = vadd.f32 %v1522, %v1630
        %v1632 = vpop.f32.mrf.mxu0
        %v1633 = vpop.f32.mrf.mxu0
        %v1634 = vadd.f32 %v1522, %v1633
        %v1635 = vpop.f32.mrf.mxu0
        %1636 = vmatprep.mubr.bf16.mxu0 0
        %1637 = vmatmul.mubr.bf16.gmra.mxu0 %v1495
        %v1638 = vpop.f32.mrf.mxu0
        %v1639 = vadd.f32 %v1522, %v1638
        %v1640 = vpop.f32.mrf.mxu0
        %v1641 = vpop.f32.mrf.mxu0
        %v1642 = vadd.f32 %v1522, %v1641
        %v1643 = vpop.f32.mrf.mxu0
        %1644 = vmatprep.mubr.bf16.mxu0 0
        %1645 = vmatmul.mubr.bf16.gmra.mxu0 %v1496
        %v1646 = vpop.f32.mrf.mxu0
        %v1647 = vadd.f32 %v1522, %v1646
        %v1648 = vpop.f32.mrf.mxu0
        %v1649 = vpop.f32.mrf.mxu0
        %v1650 = vadd.f32 %v1522, %v1649
        %v1651 = vpop.f32.mrf.mxu0
        %1652 = vmatprep.mubr.bf16.mxu0 0
        %1653 = vmatmul.mubr.bf16.gmra.mxu0 %v1497
        %v1654 = vpop.f32.mrf.mxu0
        %v1655 = vadd.f32 %v1522, %v1654
        %v1656 = vpop.f32.mrf.mxu0
        %v1657 = vpop.f32.mrf.mxu0
        %v1658 = vadd.f32 %v1522, %v1657
        %v1659 = vpop.f32.mrf.mxu0
        %1660 = vmatprep.mubr.bf16.mxu0 0
        %1661 = vmatmul.mubr.bf16.gmra.mxu0 %v1498
        %v1662 = vpop.f32.mrf.mxu0
        %v1663 = vadd.f32 %v1522, %v1662
        %v1664 = vpop.f32.mrf.mxu0
        %v1665 = vpop.f32.mrf.mxu0
        %v1666 = vadd.f32 %v1522, %v1665
        %v1667 = vpop.f32.mrf.mxu0
        %1668 = vdwg.mxu0
        %v1669 = vmul.f32 %v1607, 0.5
        %v1670 = vmul.f32 %v1610, 0.5
        %v1671 = vmul.f32 %v1615, 0.5
        %v1672 = vmul.f32 %v1618, 0.5
        %v1673 = vmul.f32 %v1623, 0.5
        %v1674 = vmul.f32 %v1626, 0.5
        %v1675 = vmul.f32 %v1631, 0.5
        %v1676 = vmul.f32 %v1634, 0.5
        %v1677 = vmul.f32 %v1639, 0.5
        %v1678 = vmul.f32 %v1642, 0.5
        %v1679 = vmul.f32 %v1647, 0.5
        %v1680 = vmul.f32 %v1650, 0.5
        %v1681 = vmul.f32 %v1655, 0.5
        %v1682 = vmul.f32 %v1658, 0.5
        %v1683 = vmul.f32 %v1663, 0.5
        %v1684 = vmul.f32 %v1666, 0.5
        %v1685 = vmul.f32 %v1607, 0.70710677
        %v1686 = vmul.f32 %v1610, 0.70710677
        %v1687 = vmul.f32 %v1615, 0.70710677
        %v1688 = vmul.f32 %v1618, 0.70710677
        %v1689 = vmul.f32 %v1623, 0.70710677
        %v1690 = vmul.f32 %v1626, 0.70710677
        %v1691 = vmul.f32 %v1631, 0.70710677
        %v1692 = vmul.f32 %v1634, 0.70710677
        %v1693 = vmul.f32 %v1639, 0.70710677
        %v1694 = vmul.f32 %v1642, 0.70710677
        %v1695 = vmul.f32 %v1647, 0.70710677
        %v1696 = vmul.f32 %v1650, 0.70710677
        %v1697 = vmul.f32 %v1655, 0.70710677
        %v1698 = vmul.f32 %v1658, 0.70710677
        %v1699 = vmul.f32 %v1663, 0.70710677
        %v1700 = vmul.f32 %v1666, 0.70710677
        %v1701 = verf.f32.pop %v1685
        %v1702 = verf.f32.pop %v1686
        %v1703 = verf.f32.pop %v1687
        %v1704 = verf.f32.pop %v1688
        %v1705 = verf.f32.pop %v1689
        %v1706 = verf.f32.pop %v1690
        %v1707 = verf.f32.pop %v1691
        %v1708 = verf.f32.pop %v1692
        %v1709 = verf.f32.pop %v1693
        %v1710 = verf.f32.pop %v1694
        %v1711 = verf.f32.pop %v1695
        %v1712 = verf.f32.pop %v1696
        %v1713 = verf.f32.pop %v1697
        %v1714 = verf.f32.pop %v1698
        %v1715 = verf.f32.pop %v1699
        %v1716 = verf.f32.pop %v1700
        %v1717 = vadd.f32 %v1701, 1.0
        %v1718 = vadd.f32 %v1702, 1.0
        %v1719 = vadd.f32 %v1703, 1.0
        %v1720 = vadd.f32 %v1704, 1.0
        %v1721 = vadd.f32 %v1705, 1.0
        %v1722 = vadd.f32 %v1706, 1.0
        %v1723 = vadd.f32 %v1707, 1.0
        %v1724 = vadd.f32 %v1708, 1.0
        %v1725 = vadd.f32 %v1709, 1.0
        %v1726 = vadd.f32 %v1710, 1.0
        %v1727 = vadd.f32 %v1711, 1.0
        %v1728 = vadd.f32 %v1712, 1.0
        %v1729 = vadd.f32 %v1713, 1.0
        %v1730 = vadd.f32 %v1714, 1.0
        %v1731 = vadd.f32 %v1715, 1.0
        %v1732 = vadd.f32 %v1716, 1.0
        %v1733 = vmul.f32 %v1669, %v1717
        %v1734 = vmul.f32 %v1670, %v1718
        %v1735 = vmul.f32 %v1671, %v1719
        %v1736 = vmul.f32 %v1672, %v1720
        %v1737 = vmul.f32 %v1673, %v1721
        %v1738 = vmul.f32 %v1674, %v1722
        %v1739 = vmul.f32 %v1675, %v1723
        %v1740 = vmul.f32 %v1676, %v1724
        %v1741 = vmul.f32 %v1677, %v1725
        %v1742 = vmul.f32 %v1678, %v1726
        %v1743 = vmul.f32 %v1679, %v1727
        %v1744 = vmul.f32 %v1680, %v1728
        %v1745 = vmul.f32 %v1681, %v1729
        %v1746 = vmul.f32 %v1682, %v1730
        %v1747 = vmul.f32 %v1683, %v1731
        %v1748 = vmul.f32 %v1684, %v1732
        %v1749 = vpack.c.bf16 %v1734, %v1733
        %v1750 = vpack.c.bf16 %v1736, %v1735
        %v1751 = vpack.c.bf16 %v1738, %v1737
        %v1752 = vpack.c.bf16 %v1740, %v1739
        %v1753 = vpack.c.bf16 %v1742, %v1741
        %v1754 = vpack.c.bf16 %v1744, %v1743
        %v1755 = vpack.c.bf16 %v1746, %v1745
        %v1756 = vpack.c.bf16 %v1748, %v1747
        %s1757 = scalar_lea.vmem [#allocation10], 64
        %v1758 = vld [vmem:[%s1757] sm:$0xf]
        %v1759 = vld [vmem:[%s1757 + $0x4] sm:$0xf]
        %v1760 = vld [vmem:[%s1757 + $0x8] sm:$0xf]
        %v1761 = vld [vmem:[%s1757 + $0xc] sm:$0xf]
        %v1762 = vld [vmem:[%s1757 + $0x10] sm:$0xf]
        %v1763 = vld [vmem:[%s1757 + $0x14] sm:$0xf]
        %v1764 = vld [vmem:[%s1757 + $0x18] sm:$0xf]
        %v1765 = vld [vmem:[%s1757 + $0x1c] sm:$0xf]
        %v1766 = vld [vmem:[%s1757 + $0x20] sm:$0xf]
        %v1767 = vld [vmem:[%s1757 + $0x24] sm:$0xf]
        %v1768 = vld [vmem:[%s1757 + $0x28] sm:$0xf]
        %v1769 = vld [vmem:[%s1757 + $0x2c] sm:$0xf]
        %v1770 = vld [vmem:[%s1757 + $0x30] sm:$0xf]
        %v1771 = vld [vmem:[%s1757 + $0x34] sm:$0xf]
        %v1772 = vld [vmem:[%s1757 + $0x38] sm:$0xf]
        %v1773 = vld [vmem:[%s1757 + $0x3c] sm:$0xf]
        %s1774 = scalar_lea.vmem %s6, 1
        %v1775 = vld [vmem:[%s1774] sm:$0x1]
        %v1777 = vlaneseq
        %v1778 = vshrl.u32 %v1777, 7
        %v1779 = vsub.s32 0, %v1778
        %v1780 = vrot.slane %v1775, %v1779
        %v1798 = vunpack.c.l.b16 %v1758
        %v1799 = vunpack.c.l.b16 %v1759
        %v1800 = vunpack.c.l.b16 %v1760
        %v1801 = vunpack.c.l.b16 %v1761
        %v1802 = vunpack.c.l.b16 %v1762
        %v1803 = vunpack.c.l.b16 %v1763
        %v1804 = vunpack.c.l.b16 %v1764
        %v1805 = vunpack.c.l.b16 %v1765
        %v1806 = vunpack.c.l.b16 %v1766
        %v1807 = vunpack.c.l.b16 %v1767
        %v1808 = vunpack.c.l.b16 %v1768
        %v1809 = vunpack.c.l.b16 %v1769
        %v1810 = vunpack.c.l.b16 %v1770
        %v1811 = vunpack.c.l.b16 %v1771
        %v1812 = vunpack.c.l.b16 %v1772
        %v1813 = vunpack.c.l.b16 %v1773
        %v1814 = vpack.c.b16 %v1799, %v1798
        %v1815 = vpack.c.b16 %v1801, %v1800
        %v1816 = vpack.c.b16 %v1803, %v1802
        %v1817 = vpack.c.b16 %v1805, %v1804
        %v1818 = vpack.c.b16 %v1807, %v1806
        %v1819 = vpack.c.b16 %v1809, %v1808
        %v1820 = vpack.c.b16 %v1811, %v1810
        %v1821 = vpack.c.b16 %v1813, %v1812
        %1830 = vmatprep.subr.bf16.mxu0 0
        %1831 = vmatpush1.bf16.msra.mxu0 %v1821
        %1832 = vmatprep.subr.bf16.mxu0 0
        %1833 = vmatpush1.bf16.msra.mxu0 %v1820
        %1834 = vmatprep.subr.bf16.mxu0 0
        %1835 = vmatpush1.bf16.msra.mxu0 %v1819
        %1836 = vmatprep.subr.bf16.mxu0 0
        %1837 = vmatpush1.bf16.msra.mxu0 %v1818
        %1838 = vmatprep.subr.bf16.mxu0 0
        %1839 = vmatpush1.bf16.msra.mxu0 %v1817
        %1840 = vmatprep.subr.bf16.mxu0 0
        %1841 = vmatpush1.bf16.msra.mxu0 %v1816
        %1842 = vmatprep.subr.bf16.mxu0 0
        %1843 = vmatpush1.bf16.msra.mxu0 %v1815
        %1844 = vmatprep.subr.bf16.mxu0 0
        %1845 = vmatpush1.bf16.msra.mxu0 %v1814
        %1846 = vmatprep.subr.bf16.mxu0 0
        %1847 = vmatpush2.bf16.msra.mxu0 0
        %1848 = vmatprep.subr.bf16.mxu0 0
        %1849 = vmatpush2.bf16.msra.mxu0 0
        %1850 = vmatprep.subr.bf16.mxu0 0
        %1851 = vmatpush2.bf16.msra.mxu0 0
        %1852 = vmatprep.subr.bf16.mxu0 0
        %1853 = vmatpush2.bf16.msra.mxu0 0
        %1854 = vmatprep.subr.bf16.mxu0 0
        %1855 = vmatpush2.bf16.msra.mxu0 0
        %1856 = vmatprep.subr.bf16.mxu0 0
        %1857 = vmatpush2.bf16.msra.mxu0 0
        %1858 = vmatprep.subr.bf16.mxu0 0
        %1859 = vmatpush2.bf16.msra.mxu0 0
        %1860 = vmatprep.subr.bf16.mxu0 0
        %1861 = vmatpush2.bf16.msra.mxu0 0
        %1862 = vmatprep.mubr.bf16.mxu0 0
        %1863 = vmatmul.mubr.bf16.gmra.mxu0 %v1749
        %v1864 = vpop.f32.mrf.mxu0
        %v1865 = vadd.f32 %v1780, %v1864
        %v1866 = vpop.f32.mrf.mxu0
        %v1867 = vpop.f32.mrf.mxu0
        %v1868 = vadd.f32 %v1780, %v1867
        %v1869 = vpop.f32.mrf.mxu0
        %1870 = vmatprep.mubr.bf16.mxu0 0
        %1871 = vmatmul.mubr.bf16.gmra.mxu0 %v1750
        %v1872 = vpop.f32.mrf.mxu0
        %v1873 = vadd.f32 %v1780, %v1872
        %v1874 = vpop.f32.mrf.mxu0
        %v1875 = vpop.f32.mrf.mxu0
        %v1876 = vadd.f32 %v1780, %v1875
        %v1877 = vpop.f32.mrf.mxu0
        %1878 = vmatprep.mubr.bf16.mxu0 0
        %1879 = vmatmul.mubr.bf16.gmra.mxu0 %v1751
        %v1880 = vpop.f32.mrf.mxu0
        %v1881 = vadd.f32 %v1780, %v1880
        %v1882 = vpop.f32.mrf.mxu0
        %v1883 = vpop.f32.mrf.mxu0
        %v1884 = vadd.f32 %v1780, %v1883
        %v1885 = vpop.f32.mrf.mxu0
        %1886 = vmatprep.mubr.bf16.mxu0 0
        %1887 = vmatmul.mubr.bf16.gmra.mxu0 %v1752
        %v1888 = vpop.f32.mrf.mxu0
        %v1889 = vadd.f32 %v1780, %v1888
        %v1890 = vpop.f32.mrf.mxu0
        %v1891 = vpop.f32.mrf.mxu0
        %v1892 = vadd.f32 %v1780, %v1891
        %v1893 = vpop.f32.mrf.mxu0
        %1894 = vmatprep.mubr.bf16.mxu0 0
        %1895 = vmatmul.mubr.bf16.gmra.mxu0 %v1753
        %v1896 = vpop.f32.mrf.mxu0
        %v1897 = vadd.f32 %v1780, %v1896
        %v1898 = vpop.f32.mrf.mxu0
        %v1899 = vpop.f32.mrf.mxu0
        %v1900 = vadd.f32 %v1780, %v1899
        %v1901 = vpop.f32.mrf.mxu0
        %1902 = vmatprep.mubr.bf16.mxu0 0
        %1903 = vmatmul.mubr.bf16.gmra.mxu0 %v1754
        %v1904 = vpop.f32.mrf.mxu0
        %v1905 = vadd.f32 %v1780, %v1904
        %v1906 = vpop.f32.mrf.mxu0
        %v1907 = vpop.f32.mrf.mxu0
        %v1908 = vadd.f32 %v1780, %v1907
        %v1909 = vpop.f32.mrf.mxu0
        %1910 = vmatprep.mubr.bf16.mxu0 0
        %1911 = vmatmul.mubr.bf16.gmra.mxu0 %v1755
        %v1912 = vpop.f32.mrf.mxu0
        %v1913 = vadd.f32 %v1780, %v1912
        %v1914 = vpop.f32.mrf.mxu0
        %v1915 = vpop.f32.mrf.mxu0
        %v1916 = vadd.f32 %v1780, %v1915
        %v1917 = vpop.f32.mrf.mxu0
        %1918 = vmatprep.mubr.bf16.mxu0 0
        %1919 = vmatmul.mubr.bf16.gmra.mxu0 %v1756
        %v1920 = vpop.f32.mrf.mxu0
        %v1921 = vadd.f32 %v1780, %v1920
        %v1922 = vpop.f32.mrf.mxu0
        %v1923 = vpop.f32.mrf.mxu0
        %v1924 = vadd.f32 %v1780, %v1923
        %v1925 = vpop.f32.mrf.mxu0
        %1926 = vdwg.mxu0
        %v1927 = vmul.f32 %v1865, 0.5
        %v1928 = vmul.f32 %v1868, 0.5
        %v1929 = vmul.f32 %v1873, 0.5
        %v1930 = vmul.f32 %v1876, 0.5
        %v1931 = vmul.f32 %v1881, 0.5
        %v1932 = vmul.f32 %v1884, 0.5
        %v1933 = vmul.f32 %v1889, 0.5
        %v1934 = vmul.f32 %v1892, 0.5
        %v1935 = vmul.f32 %v1897, 0.5
        %v1936 = vmul.f32 %v1900, 0.5
        %v1937 = vmul.f32 %v1905, 0.5
        %v1938 = vmul.f32 %v1908, 0.5
        %v1939 = vmul.f32 %v1913, 0.5
        %v1940 = vmul.f32 %v1916, 0.5
        %v1941 = vmul.f32 %v1921, 0.5
        %v1942 = vmul.f32 %v1924, 0.5
        %v1943 = vmul.f32 %v1865, 0.70710677
        %v1944 = vmul.f32 %v1868, 0.70710677
        %v1945 = vmul.f32 %v1873, 0.70710677
        %v1946 = vmul.f32 %v1876, 0.70710677
        %v1947 = vmul.f32 %v1881, 0.70710677
        %v1948 = vmul.f32 %v1884, 0.70710677
        %v1949 = vmul.f32 %v1889, 0.70710677
        %v1950 = vmul.f32 %v1892, 0.70710677
        %v1951 = vmul.f32 %v1897, 0.70710677
        %v1952 = vmul.f32 %v1900, 0.70710677
        %v1953 = vmul.f32 %v1905, 0.70710677
        %v1954 = vmul.f32 %v1908, 0.70710677
        %v1955 = vmul.f32 %v1913, 0.70710677
        %v1956 = vmul.f32 %v1916, 0.70710677
        %v1957 = vmul.f32 %v1921, 0.70710677
        %v1958 = vmul.f32 %v1924, 0.70710677
        %v1959 = verf.f32.pop %v1943
        %v1960 = verf.f32.pop %v1944
        %v1961 = verf.f32.pop %v1945
        %v1962 = verf.f32.pop %v1946
        %v1963 = verf.f32.pop %v1947
        %v1964 = verf.f32.pop %v1948
        %v1965 = verf.f32.pop %v1949
        %v1966 = verf.f32.pop %v1950
        %v1967 = verf.f32.pop %v1951
        %v1968 = verf.f32.pop %v1952
        %v1969 = verf.f32.pop %v1953
        %v1970 = verf.f32.pop %v1954
        %v1971 = verf.f32.pop %v1955
        %v1972 = verf.f32.pop %v1956
        %v1973 = verf.f32.pop %v1957
        %v1974 = verf.f32.pop %v1958
        %v1975 = vadd.f32 %v1959, 1.0
        %v1976 = vadd.f32 %v1960, 1.0
        %v1977 = vadd.f32 %v1961, 1.0
        %v1978 = vadd.f32 %v1962, 1.0
        %v1979 = vadd.f32 %v1963, 1.0
        %v1980 = vadd.f32 %v1964, 1.0
        %v1981 = vadd.f32 %v1965, 1.0
        %v1982 = vadd.f32 %v1966, 1.0
        %v1983 = vadd.f32 %v1967, 1.0
        %v1984 = vadd.f32 %v1968, 1.0
        %v1985 = vadd.f32 %v1969, 1.0
        %v1986 = vadd.f32 %v1970, 1.0
        %v1987 = vadd.f32 %v1971, 1.0
        %v1988 = vadd.f32 %v1972, 1.0
        %v1989 = vadd.f32 %v1973, 1.0
        %v1990 = vadd.f32 %v1974, 1.0
        %v1991 = vmul.f32 %v1927, %v1975
        %v1992 = vmul.f32 %v1928, %v1976
        %v1993 = vmul.f32 %v1929, %v1977
        %v1994 = vmul.f32 %v1930, %v1978
        %v1995 = vmul.f32 %v1931, %v1979
        %v1996 = vmul.f32 %v1932, %v1980
        %v1997 = vmul.f32 %v1933, %v1981
        %v1998 = vmul.f32 %v1934, %v1982
        %v1999 = vmul.f32 %v1935, %v1983
        %v2000 = vmul.f32 %v1936, %v1984
        %v2001 = vmul.f32 %v1937, %v1985
        %v2002 = vmul.f32 %v1938, %v1986
        %v2003 = vmul.f32 %v1939, %v1987
        %v2004 = vmul.f32 %v1940, %v1988
        %v2005 = vmul.f32 %v1941, %v1989
        %v2006 = vmul.f32 %v1942, %v1990
        %s2007 = scalar_lea.vmem [#allocation11], 1
        %v2008 = vld [vmem:[%s2007] sm:$0x1]
        %v2010 = vlaneseq
        %v2011 = vshrl.u32 %v2010, 7
        %v2012 = vsub.s32 0, %v2011
        %v2013 = vrot.slane %v2008, %v2012
        %v2015 = vmul.f32 %v1991, %v2013
        %v2016 = vmul.f32 %v1992, %v2013
        %v2017 = vmul.f32 %v1993, %v2013
        %v2018 = vmul.f32 %v1994, %v2013
        %v2019 = vmul.f32 %v1995, %v2013
        %v2020 = vmul.f32 %v1996, %v2013
        %v2021 = vmul.f32 %v1997, %v2013
        %v2022 = vmul.f32 %v1998, %v2013
        %v2023 = vmul.f32 %v1999, %v2013
        %v2024 = vmul.f32 %v2000, %v2013
        %v2025 = vmul.f32 %v2001, %v2013
        %v2026 = vmul.f32 %v2002, %v2013
        %v2027 = vmul.f32 %v2003, %v2013
        %v2028 = vmul.f32 %v2004, %v2013
        %v2029 = vmul.f32 %v2005, %v2013
        %v2030 = vmul.f32 %v2006, %v2013
        %s2031 = scalar_lea.vmem [#allocation13], 1
        %v2032 = vld [vmem:[%s2031] sm:$0x1]
        %v2034 = vlaneseq
        %v2035 = vshrl.u32 %v2034, 7
        %v2036 = vsub.s32 0, %v2035
        %v2037 = vrot.slane %v2032, %v2036
        %v2039 = vadd.f32 %v2015, %v2037
        %v2040 = vadd.f32 %v2016, %v2037
        %v2041 = vadd.f32 %v2017, %v2037
        %v2042 = vadd.f32 %v2018, %v2037
        %v2043 = vadd.f32 %v2019, %v2037
        %v2044 = vadd.f32 %v2020, %v2037
        %v2045 = vadd.f32 %v2021, %v2037
        %v2046 = vadd.f32 %v2022, %v2037
        %v2047 = vadd.f32 %v2023, %v2037
        %v2048 = vadd.f32 %v2024, %v2037
        %v2049 = vadd.f32 %v2025, %v2037
        %v2050 = vadd.f32 %v2026, %v2037
        %v2051 = vadd.f32 %v2027, %v2037
        %v2052 = vadd.f32 %v2028, %v2037
        %v2053 = vadd.f32 %v2029, %v2037
        %v2054 = vadd.f32 %v2030, %v2037
        %v2055 = vadd.f32 %v2039, %v1475
        %v2056 = vadd.f32 %v2040, %v1476
        %v2057 = vadd.f32 %v2041, %v1477
        %v2058 = vadd.f32 %v2042, %v1478
        %v2059 = vadd.f32 %v2043, %v1479
        %v2060 = vadd.f32 %v2044, %v1480
        %v2061 = vadd.f32 %v2045, %v1481
        %v2062 = vadd.f32 %v2046, %v1482
        %v2063 = vadd.f32 %v2047, %v1483
        %v2064 = vadd.f32 %v2048, %v1484
        %v2065 = vadd.f32 %v2049, %v1485
        %v2066 = vadd.f32 %v2050, %v1486
        %v2067 = vadd.f32 %v2051, %v1487
        %v2068 = vadd.f32 %v2052, %v1488
        %v2069 = vadd.f32 %v2053, %v1489
        %v2070 = vadd.f32 %v2054, %v1490
        %v2071 = vpack.c.bf16 %v2056, %v2055
        %v2072 = vpack.c.bf16 %v2058, %v2057
        %v2073 = vpack.c.bf16 %v2060, %v2059
        %v2074 = vpack.c.bf16 %v2062, %v2061
        %v2075 = vpack.c.bf16 %v2064, %v2063
        %v2076 = vpack.c.bf16 %v2066, %v2065
        %v2077 = vpack.c.bf16 %v2068, %v2067
        %v2078 = vpack.c.bf16 %v2070, %v2069
        %s2079 = scalar_lea.vmem [#allocation8], 128
        %v2080 = vld [vmem:[%s2079] sm:$0xf]
        %v2081 = vld [vmem:[%s2079 + $0x4] sm:$0xf]
        %v2082 = vld [vmem:[%s2079 + $0x8] sm:$0xf]
        %v2083 = vld [vmem:[%s2079 + $0xc] sm:$0xf]
        %v2084 = vld [vmem:[%s2079 + $0x10] sm:$0xf]
        %v2085 = vld [vmem:[%s2079 + $0x14] sm:$0xf]
        %v2086 = vld [vmem:[%s2079 + $0x18] sm:$0xf]
        %v2087 = vld [vmem:[%s2079 + $0x1c] sm:$0xf]
        %v2088 = vld [vmem:[%s2079 + $0x20] sm:$0xf]
        %v2089 = vld [vmem:[%s2079 + $0x24] sm:$0xf]
        %v2090 = vld [vmem:[%s2079 + $0x28] sm:$0xf]
        %v2091 = vld [vmem:[%s2079 + $0x2c] sm:$0xf]
        %v2092 = vld [vmem:[%s2079 + $0x30] sm:$0xf]
        %v2093 = vld [vmem:[%s2079 + $0x34] sm:$0xf]
        %v2094 = vld [vmem:[%s2079 + $0x38] sm:$0xf]
        %v2095 = vld [vmem:[%s2079 + $0x3c] sm:$0xf]
        %s2096 = scalar_lea.vmem %s4, 2
        %v2097 = vld [vmem:[%s2096] sm:$0x1]
        %v2099 = vlaneseq
        %v2100 = vshrl.u32 %v2099, 7
        %v2101 = vsub.s32 0, %v2100
        %v2102 = vrot.slane %v2097, %v2101
        %v2120 = vunpack.c.l.b16 %v2080
        %v2121 = vunpack.c.l.b16 %v2081
        %v2122 = vunpack.c.l.b16 %v2082
        %v2123 = vunpack.c.l.b16 %v2083
        %v2124 = vunpack.c.l.b16 %v2084
        %v2125 = vunpack.c.l.b16 %v2085
        %v2126 = vunpack.c.l.b16 %v2086
        %v2127 = vunpack.c.l.b16 %v2087
        %v2128 = vunpack.c.l.b16 %v2088
        %v2129 = vunpack.c.l.b16 %v2089
        %v2130 = vunpack.c.l.b16 %v2090
        %v2131 = vunpack.c.l.b16 %v2091
        %v2132 = vunpack.c.l.b16 %v2092
        %v2133 = vunpack.c.l.b16 %v2093
        %v2134 = vunpack.c.l.b16 %v2094
        %v2135 = vunpack.c.l.b16 %v2095
        %v2136 = vpack.c.b16 %v2121, %v2120
        %v2137 = vpack.c.b16 %v2123, %v2122
        %v2138 = vpack.c.b16 %v2125, %v2124
        %v2139 = vpack.c.b16 %v2127, %v2126
        %v2140 = vpack.c.b16 %v2129, %v2128
        %v2141 = vpack.c.b16 %v2131, %v2130
        %v2142 = vpack.c.b16 %v2133, %v2132
        %v2143 = vpack.c.b16 %v2135, %v2134
        %2152 = vmatprep.subr.bf16.mxu0 0
        %2153 = vmatpush1.bf16.msra.mxu0 %v2143
        %2154 = vmatprep.subr.bf16.mxu0 0
        %2155 = vmatpush1.bf16.msra.mxu0 %v2142
        %2156 = vmatprep.subr.bf16.mxu0 0
        %2157 = vmatpush1.bf16.msra.mxu0 %v2141
        %2158 = vmatprep.subr.bf16.mxu0 0
        %2159 = vmatpush1.bf16.msra.mxu0 %v2140
        %2160 = vmatprep.subr.bf16.mxu0 0
        %2161 = vmatpush1.bf16.msra.mxu0 %v2139
        %2162 = vmatprep.subr.bf16.mxu0 0
        %2163 = vmatpush1.bf16.msra.mxu0 %v2138
        %2164 = vmatprep.subr.bf16.mxu0 0
        %2165 = vmatpush1.bf16.msra.mxu0 %v2137
        %2166 = vmatprep.subr.bf16.mxu0 0
        %2167 = vmatpush1.bf16.msra.mxu0 %v2136
        %2168 = vmatprep.subr.bf16.mxu0 0
        %2169 = vmatpush2.bf16.msra.mxu0 0
        %2170 = vmatprep.subr.bf16.mxu0 0
        %2171 = vmatpush2.bf16.msra.mxu0 0
        %2172 = vmatprep.subr.bf16.mxu0 0
        %2173 = vmatpush2.bf16.msra.mxu0 0
        %2174 = vmatprep.subr.bf16.mxu0 0
        %2175 = vmatpush2.bf16.msra.mxu0 0
        %2176 = vmatprep.subr.bf16.mxu0 0
        %2177 = vmatpush2.bf16.msra.mxu0 0
        %2178 = vmatprep.subr.bf16.mxu0 0
        %2179 = vmatpush2.bf16.msra.mxu0 0
        %2180 = vmatprep.subr.bf16.mxu0 0
        %2181 = vmatpush2.bf16.msra.mxu0 0
        %2182 = vmatprep.subr.bf16.mxu0 0
        %2183 = vmatpush2.bf16.msra.mxu0 0
        %2184 = vmatprep.mubr.bf16.mxu0 0
        %2185 = vmatmul.mubr.bf16.gmra.mxu0 %v2071
        %v2186 = vpop.f32.mrf.mxu0
        %v2187 = vadd.f32 %v2102, %v2186
        %v2188 = vpop.f32.mrf.mxu0
        %v2189 = vpop.f32.mrf.mxu0
        %v2190 = vadd.f32 %v2102, %v2189
        %v2191 = vpop.f32.mrf.mxu0
        %2192 = vmatprep.mubr.bf16.mxu0 0
        %2193 = vmatmul.mubr.bf16.gmra.mxu0 %v2072
        %v2194 = vpop.f32.mrf.mxu0
        %v2195 = vadd.f32 %v2102, %v2194
        %v2196 = vpop.f32.mrf.mxu0
        %v2197 = vpop.f32.mrf.mxu0
        %v2198 = vadd.f32 %v2102, %v2197
        %v2199 = vpop.f32.mrf.mxu0
        %2200 = vmatprep.mubr.bf16.mxu0 0
        %2201 = vmatmul.mubr.bf16.gmra.mxu0 %v2073
        %v2202 = vpop.f32.mrf.mxu0
        %v2203 = vadd.f32 %v2102, %v2202
        %v2204 = vpop.f32.mrf.mxu0
        %v2205 = vpop.f32.mrf.mxu0
        %v2206 = vadd.f32 %v2102, %v2205
        %v2207 = vpop.f32.mrf.mxu0
        %2208 = vmatprep.mubr.bf16.mxu0 0
        %2209 = vmatmul.mubr.bf16.gmra.mxu0 %v2074
        %v2210 = vpop.f32.mrf.mxu0
        %v2211 = vadd.f32 %v2102, %v2210
        %v2212 = vpop.f32.mrf.mxu0
        %v2213 = vpop.f32.mrf.mxu0
        %v2214 = vadd.f32 %v2102, %v2213
        %v2215 = vpop.f32.mrf.mxu0
        %2216 = vmatprep.mubr.bf16.mxu0 0
        %2217 = vmatmul.mubr.bf16.gmra.mxu0 %v2075
        %v2218 = vpop.f32.mrf.mxu0
        %v2219 = vadd.f32 %v2102, %v2218
        %v2220 = vpop.f32.mrf.mxu0
        %v2221 = vpop.f32.mrf.mxu0
        %v2222 = vadd.f32 %v2102, %v2221
        %v2223 = vpop.f32.mrf.mxu0
        %2224 = vmatprep.mubr.bf16.mxu0 0
        %2225 = vmatmul.mubr.bf16.gmra.mxu0 %v2076
        %v2226 = vpop.f32.mrf.mxu0
        %v2227 = vadd.f32 %v2102, %v2226
        %v2228 = vpop.f32.mrf.mxu0
        %v2229 = vpop.f32.mrf.mxu0
        %v2230 = vadd.f32 %v2102, %v2229
        %v2231 = vpop.f32.mrf.mxu0
        %2232 = vmatprep.mubr.bf16.mxu0 0
        %2233 = vmatmul.mubr.bf16.gmra.mxu0 %v2077
        %v2234 = vpop.f32.mrf.mxu0
        %v2235 = vadd.f32 %v2102, %v2234
        %v2236 = vpop.f32.mrf.mxu0
        %v2237 = vpop.f32.mrf.mxu0
        %v2238 = vadd.f32 %v2102, %v2237
        %v2239 = vpop.f32.mrf.mxu0
        %2240 = vmatprep.mubr.bf16.mxu0 0
        %2241 = vmatmul.mubr.bf16.gmra.mxu0 %v2078
        %v2242 = vpop.f32.mrf.mxu0
        %v2243 = vadd.f32 %v2102, %v2242
        %v2244 = vpop.f32.mrf.mxu0
        %v2245 = vpop.f32.mrf.mxu0
        %v2246 = vadd.f32 %v2102, %v2245
        %v2247 = vpop.f32.mrf.mxu0
        %2248 = vdwg.mxu0
        %v2249 = vmul.f32 %v2187, 0.5
        %v2250 = vmul.f32 %v2190, 0.5
        %v2251 = vmul.f32 %v2195, 0.5
        %v2252 = vmul.f32 %v2198, 0.5
        %v2253 = vmul.f32 %v2203, 0.5
        %v2254 = vmul.f32 %v2206, 0.5
        %v2255 = vmul.f32 %v2211, 0.5
        %v2256 = vmul.f32 %v2214, 0.5
        %v2257 = vmul.f32 %v2219, 0.5
        %v2258 = vmul.f32 %v2222, 0.5
        %v2259 = vmul.f32 %v2227, 0.5
        %v2260 = vmul.f32 %v2230, 0.5
        %v2261 = vmul.f32 %v2235, 0.5
        %v2262 = vmul.f32 %v2238, 0.5
        %v2263 = vmul.f32 %v2243, 0.5
        %v2264 = vmul.f32 %v2246, 0.5
        %v2265 = vmul.f32 %v2187, 0.70710677
        %v2266 = vmul.f32 %v2190, 0.70710677
        %v2267 = vmul.f32 %v2195, 0.70710677
        %v2268 = vmul.f32 %v2198, 0.70710677
        %v2269 = vmul.f32 %v2203, 0.70710677
        %v2270 = vmul.f32 %v2206, 0.70710677
        %v2271 = vmul.f32 %v2211, 0.70710677
        %v2272 = vmul.f32 %v2214, 0.70710677
        %v2273 = vmul.f32 %v2219, 0.70710677
        %v2274 = vmul.f32 %v2222, 0.70710677
        %v2275 = vmul.f32 %v2227, 0.70710677
        %v2276 = vmul.f32 %v2230, 0.70710677
        %v2277 = vmul.f32 %v2235, 0.70710677
        %v2278 = vmul.f32 %v2238, 0.70710677
        %v2279 = vmul.f32 %v2243, 0.70710677
        %v2280 = vmul.f32 %v2246, 0.70710677
        %v2281 = verf.f32.pop %v2265
        %v2282 = verf.f32.pop %v2266
        %v2283 = verf.f32.pop %v2267
        %v2284 = verf.f32.pop %v2268
        %v2285 = verf.f32.pop %v2269
        %v2286 = verf.f32.pop %v2270
        %v2287 = verf.f32.pop %v2271
        %v2288 = verf.f32.pop %v2272
        %v2289 = verf.f32.pop %v2273
        %v2290 = verf.f32.pop %v2274
        %v2291 = verf.f32.pop %v2275
        %v2292 = verf.f32.pop %v2276
        %v2293 = verf.f32.pop %v2277
        %v2294 = verf.f32.pop %v2278
        %v2295 = verf.f32.pop %v2279
        %v2296 = verf.f32.pop %v2280
        %v2297 = vadd.f32 %v2281, 1.0
        %v2298 = vadd.f32 %v2282, 1.0
        %v2299 = vadd.f32 %v2283, 1.0
        %v2300 = vadd.f32 %v2284, 1.0
        %v2301 = vadd.f32 %v2285, 1.0
        %v2302 = vadd.f32 %v2286, 1.0
        %v2303 = vadd.f32 %v2287, 1.0
        %v2304 = vadd.f32 %v2288, 1.0
        %v2305 = vadd.f32 %v2289, 1.0
        %v2306 = vadd.f32 %v2290, 1.0
        %v2307 = vadd.f32 %v2291, 1.0
        %v2308 = vadd.f32 %v2292, 1.0
        %v2309 = vadd.f32 %v2293, 1.0
        %v2310 = vadd.f32 %v2294, 1.0
        %v2311 = vadd.f32 %v2295, 1.0
        %v2312 = vadd.f32 %v2296, 1.0
        %v2313 = vmul.f32 %v2249, %v2297
        %v2314 = vmul.f32 %v2250, %v2298
        %v2315 = vmul.f32 %v2251, %v2299
        %v2316 = vmul.f32 %v2252, %v2300
        %v2317 = vmul.f32 %v2253, %v2301
        %v2318 = vmul.f32 %v2254, %v2302
        %v2319 = vmul.f32 %v2255, %v2303
        %v2320 = vmul.f32 %v2256, %v2304
        %v2321 = vmul.f32 %v2257, %v2305
        %v2322 = vmul.f32 %v2258, %v2306
        %v2323 = vmul.f32 %v2259, %v2307
        %v2324 = vmul.f32 %v2260, %v2308
        %v2325 = vmul.f32 %v2261, %v2309
        %v2326 = vmul.f32 %v2262, %v2310
        %v2327 = vmul.f32 %v2263, %v2311
        %v2328 = vmul.f32 %v2264, %v2312
        %v2329 = vpack.c.bf16 %v2314, %v2313
        %v2330 = vpack.c.bf16 %v2316, %v2315
        %v2331 = vpack.c.bf16 %v2318, %v2317
        %v2332 = vpack.c.bf16 %v2320, %v2319
        %v2333 = vpack.c.bf16 %v2322, %v2321
        %v2334 = vpack.c.bf16 %v2324, %v2323
        %v2335 = vpack.c.bf16 %v2326, %v2325
        %v2336 = vpack.c.bf16 %v2328, %v2327
        %s2337 = scalar_lea.vmem [#allocation10], 128
        %v2338 = vld [vmem:[%s2337] sm:$0xf]
        %v2339 = vld [vmem:[%s2337 + $0x4] sm:$0xf]
        %v2340 = vld [vmem:[%s2337 + $0x8] sm:$0xf]
        %v2341 = vld [vmem:[%s2337 + $0xc] sm:$0xf]
        %v2342 = vld [vmem:[%s2337 + $0x10] sm:$0xf]
        %v2343 = vld [vmem:[%s2337 + $0x14] sm:$0xf]
        %v2344 = vld [vmem:[%s2337 + $0x18] sm:$0xf]
        %v2345 = vld [vmem:[%s2337 + $0x1c] sm:$0xf]
        %v2346 = vld [vmem:[%s2337 + $0x20] sm:$0xf]
        %v2347 = vld [vmem:[%s2337 + $0x24] sm:$0xf]
        %v2348 = vld [vmem:[%s2337 + $0x28] sm:$0xf]
        %v2349 = vld [vmem:[%s2337 + $0x2c] sm:$0xf]
        %v2350 = vld [vmem:[%s2337 + $0x30] sm:$0xf]
        %v2351 = vld [vmem:[%s2337 + $0x34] sm:$0xf]
        %v2352 = vld [vmem:[%s2337 + $0x38] sm:$0xf]
        %v2353 = vld [vmem:[%s2337 + $0x3c] sm:$0xf]
        %s2354 = scalar_lea.vmem %s6, 2
        %v2355 = vld [vmem:[%s2354] sm:$0x1]
        %v2357 = vlaneseq
        %v2358 = vshrl.u32 %v2357, 7
        %v2359 = vsub.s32 0, %v2358
        %v2360 = vrot.slane %v2355, %v2359
        %v2378 = vunpack.c.l.b16 %v2338
        %v2379 = vunpack.c.l.b16 %v2339
        %v2380 = vunpack.c.l.b16 %v2340
        %v2381 = vunpack.c.l.b16 %v2341
        %v2382 = vunpack.c.l.b16 %v2342
        %v2383 = vunpack.c.l.b16 %v2343
        %v2384 = vunpack.c.l.b16 %v2344
        %v2385 = vunpack.c.l.b16 %v2345
        %v2386 = vunpack.c.l.b16 %v2346
        %v2387 = vunpack.c.l.b16 %v2347
        %v2388 = vunpack.c.l.b16 %v2348
        %v2389 = vunpack.c.l.b16 %v2349
        %v2390 = vunpack.c.l.b16 %v2350
        %v2391 = vunpack.c.l.b16 %v2351
        %v2392 = vunpack.c.l.b16 %v2352
        %v2393 = vunpack.c.l.b16 %v2353
        %v2394 = vpack.c.b16 %v2379, %v2378
        %v2395 = vpack.c.b16 %v2381, %v2380
        %v2396 = vpack.c.b16 %v2383, %v2382
        %v2397 = vpack.c.b16 %v2385, %v2384
        %v2398 = vpack.c.b16 %v2387, %v2386
        %v2399 = vpack.c.b16 %v2389, %v2388
        %v2400 = vpack.c.b16 %v2391, %v2390
        %v2401 = vpack.c.b16 %v2393, %v2392
        %2410 = vmatprep.subr.bf16.mxu0 0
        %2411 = vmatpush1.bf16.msra.mxu0 %v2401
        %2412 = vmatprep.subr.bf16.mxu0 0
        %2413 = vmatpush1.bf16.msra.mxu0 %v2400
        %2414 = vmatprep.subr.bf16.mxu0 0
        %2415 = vmatpush1.bf16.msra.mxu0 %v2399
        %2416 = vmatprep.subr.bf16.mxu0 0
        %2417 = vmatpush1.bf16.msra.mxu0 %v2398
        %2418 = vmatprep.subr.bf16.mxu0 0
        %2419 = vmatpush1.bf16.msra.mxu0 %v2397
        %2420 = vmatprep.subr.bf16.mxu0 0
        %2421 = vmatpush1.bf16.msra.mxu0 %v2396
        %2422 = vmatprep.subr.bf16.mxu0 0
        %2423 = vmatpush1.bf16.msra.mxu0 %v2395
        %2424 = vmatprep.subr.bf16.mxu0 0
        %2425 = vmatpush1.bf16.msra.mxu0 %v2394
        %2426 = vmatprep.subr.bf16.mxu0 0
        %2427 = vmatpush2.bf16.msra.mxu0 0
        %2428 = vmatprep.subr.bf16.mxu0 0
        %2429 = vmatpush2.bf16.msra.mxu0 0
        %2430 = vmatprep.subr.bf16.mxu0 0
        %2431 = vmatpush2.bf16.msra.mxu0 0
        %2432 = vmatprep.subr.bf16.mxu0 0
        %2433 = vmatpush2.bf16.msra.mxu0 0
        %2434 = vmatprep.subr.bf16.mxu0 0
        %2435 = vmatpush2.bf16.msra.mxu0 0
        %2436 = vmatprep.subr.bf16.mxu0 0
        %2437 = vmatpush2.bf16.msra.mxu0 0
        %2438 = vmatprep.subr.bf16.mxu0 0
        %2439 = vmatpush2.bf16.msra.mxu0 0
        %2440 = vmatprep.subr.bf16.mxu0 0
        %2441 = vmatpush2.bf16.msra.mxu0 0
        %2442 = vmatprep.mubr.bf16.mxu0 0
        %2443 = vmatmul.mubr.bf16.gmra.mxu0 %v2329
        %v2444 = vpop.f32.mrf.mxu0
        %v2445 = vadd.f32 %v2360, %v2444
        %v2446 = vpop.f32.mrf.mxu0
        %v2447 = vpop.f32.mrf.mxu0
        %v2448 = vadd.f32 %v2360, %v2447
        %v2449 = vpop.f32.mrf.mxu0
        %2450 = vmatprep.mubr.bf16.mxu0 0
        %2451 = vmatmul.mubr.bf16.gmra.mxu0 %v2330
        %v2452 = vpop.f32.mrf.mxu0
        %v2453 = vadd.f32 %v2360, %v2452
        %v2454 = vpop.f32.mrf.mxu0
        %v2455 = vpop.f32.mrf.mxu0
        %v2456 = vadd.f32 %v2360, %v2455
        %v2457 = vpop.f32.mrf.mxu0
        %2458 = vmatprep.mubr.bf16.mxu0 0
        %2459 = vmatmul.mubr.bf16.gmra.mxu0 %v2331
        %v2460 = vpop.f32.mrf.mxu0
        %v2461 = vadd.f32 %v2360, %v2460
        %v2462 = vpop.f32.mrf.mxu0
        %v2463 = vpop.f32.mrf.mxu0
        %v2464 = vadd.f32 %v2360, %v2463
        %v2465 = vpop.f32.mrf.mxu0
        %2466 = vmatprep.mubr.bf16.mxu0 0
        %2467 = vmatmul.mubr.bf16.gmra.mxu0 %v2332
        %v2468 = vpop.f32.mrf.mxu0
        %v2469 = vadd.f32 %v2360, %v2468
        %v2470 = vpop.f32.mrf.mxu0
        %v2471 = vpop.f32.mrf.mxu0
        %v2472 = vadd.f32 %v2360, %v2471
        %v2473 = vpop.f32.mrf.mxu0
        %2474 = vmatprep.mubr.bf16.mxu0 0
        %2475 = vmatmul.mubr.bf16.gmra.mxu0 %v2333
        %v2476 = vpop.f32.mrf.mxu0
        %v2477 = vadd.f32 %v2360, %v2476
        %v2478 = vpop.f32.mrf.mxu0
        %v2479 = vpop.f32.mrf.mxu0
        %v2480 = vadd.f32 %v2360, %v2479
        %v2481 = vpop.f32.mrf.mxu0
        %2482 = vmatprep.mubr.bf16.mxu0 0
        %2483 = vmatmul.mubr.bf16.gmra.mxu0 %v2334
        %v2484 = vpop.f32.mrf.mxu0
        %v2485 = vadd.f32 %v2360, %v2484
        %v2486 = vpop.f32.mrf.mxu0
        %v2487 = vpop.f32.mrf.mxu0
        %v2488 = vadd.f32 %v2360, %v2487
        %v2489 = vpop.f32.mrf.mxu0
        %2490 = vmatprep.mubr.bf16.mxu0 0
        %2491 = vmatmul.mubr.bf16.gmra.mxu0 %v2335
        %v2492 = vpop.f32.mrf.mxu0
        %v2493 = vadd.f32 %v2360, %v2492
        %v2494 = vpop.f32.mrf.mxu0
        %v2495 = vpop.f32.mrf.mxu0
        %v2496 = vadd.f32 %v2360, %v2495
        %v2497 = vpop.f32.mrf.mxu0
        %2498 = vmatprep.mubr.bf16.mxu0 0
        %2499 = vmatmul.mubr.bf16.gmra.mxu0 %v2336
        %v2500 = vpop.f32.mrf.mxu0
        %v2501 = vadd.f32 %v2360, %v2500
        %v2502 = vpop.f32.mrf.mxu0
        %v2503 = vpop.f32.mrf.mxu0
        %v2504 = vadd.f32 %v2360, %v2503
        %v2505 = vpop.f32.mrf.mxu0
        %2506 = vdwg.mxu0
        %v2507 = vmul.f32 %v2445, 0.5
        %v2508 = vmul.f32 %v2448, 0.5
        %v2509 = vmul.f32 %v2453, 0.5
        %v2510 = vmul.f32 %v2456, 0.5
        %v2511 = vmul.f32 %v2461, 0.5
        %v2512 = vmul.f32 %v2464, 0.5
        %v2513 = vmul.f32 %v2469, 0.5
        %v2514 = vmul.f32 %v2472, 0.5
        %v2515 = vmul.f32 %v2477, 0.5
        %v2516 = vmul.f32 %v2480, 0.5
        %v2517 = vmul.f32 %v2485, 0.5
        %v2518 = vmul.f32 %v2488, 0.5
        %v2519 = vmul.f32 %v2493, 0.5
        %v2520 = vmul.f32 %v2496, 0.5
        %v2521 = vmul.f32 %v2501, 0.5
        %v2522 = vmul.f32 %v2504, 0.5
        %v2523 = vmul.f32 %v2445, 0.70710677
        %v2524 = vmul.f32 %v2448, 0.70710677
        %v2525 = vmul.f32 %v2453, 0.70710677
        %v2526 = vmul.f32 %v2456, 0.70710677
        %v2527 = vmul.f32 %v2461, 0.70710677
        %v2528 = vmul.f32 %v2464, 0.70710677
        %v2529 = vmul.f32 %v2469, 0.70710677
        %v2530 = vmul.f32 %v2472, 0.70710677
        %v2531 = vmul.f32 %v2477, 0.70710677
        %v2532 = vmul.f32 %v2480, 0.70710677
        %v2533 = vmul.f32 %v2485, 0.70710677
        %v2534 = vmul.f32 %v2488, 0.70710677
        %v2535 = vmul.f32 %v2493, 0.70710677
        %v2536 = vmul.f32 %v2496, 0.70710677
        %v2537 = vmul.f32 %v2501, 0.70710677
        %v2538 = vmul.f32 %v2504, 0.70710677
        %v2539 = verf.f32.pop %v2523
        %v2540 = verf.f32.pop %v2524
        %v2541 = verf.f32.pop %v2525
        %v2542 = verf.f32.pop %v2526
        %v2543 = verf.f32.pop %v2527
        %v2544 = verf.f32.pop %v2528
        %v2545 = verf.f32.pop %v2529
        %v2546 = verf.f32.pop %v2530
        %v2547 = verf.f32.pop %v2531
        %v2548 = verf.f32.pop %v2532
        %v2549 = verf.f32.pop %v2533
        %v2550 = verf.f32.pop %v2534
        %v2551 = verf.f32.pop %v2535
        %v2552 = verf.f32.pop %v2536
        %v2553 = verf.f32.pop %v2537
        %v2554 = verf.f32.pop %v2538
        %v2555 = vadd.f32 %v2539, 1.0
        %v2556 = vadd.f32 %v2540, 1.0
        %v2557 = vadd.f32 %v2541, 1.0
        %v2558 = vadd.f32 %v2542, 1.0
        %v2559 = vadd.f32 %v2543, 1.0
        %v2560 = vadd.f32 %v2544, 1.0
        %v2561 = vadd.f32 %v2545, 1.0
        %v2562 = vadd.f32 %v2546, 1.0
        %v2563 = vadd.f32 %v2547, 1.0
        %v2564 = vadd.f32 %v2548, 1.0
        %v2565 = vadd.f32 %v2549, 1.0
        %v2566 = vadd.f32 %v2550, 1.0
        %v2567 = vadd.f32 %v2551, 1.0
        %v2568 = vadd.f32 %v2552, 1.0
        %v2569 = vadd.f32 %v2553, 1.0
        %v2570 = vadd.f32 %v2554, 1.0
        %v2571 = vmul.f32 %v2507, %v2555
        %v2572 = vmul.f32 %v2508, %v2556
        %v2573 = vmul.f32 %v2509, %v2557
        %v2574 = vmul.f32 %v2510, %v2558
        %v2575 = vmul.f32 %v2511, %v2559
        %v2576 = vmul.f32 %v2512, %v2560
        %v2577 = vmul.f32 %v2513, %v2561
        %v2578 = vmul.f32 %v2514, %v2562
        %v2579 = vmul.f32 %v2515, %v2563
        %v2580 = vmul.f32 %v2516, %v2564
        %v2581 = vmul.f32 %v2517, %v2565
        %v2582 = vmul.f32 %v2518, %v2566
        %v2583 = vmul.f32 %v2519, %v2567
        %v2584 = vmul.f32 %v2520, %v2568
        %v2585 = vmul.f32 %v2521, %v2569
        %v2586 = vmul.f32 %v2522, %v2570
        %s2587 = scalar_lea.vmem [#allocation11], 2
        %v2588 = vld [vmem:[%s2587] sm:$0x1]
        %v2590 = vlaneseq
        %v2591 = vshrl.u32 %v2590, 7
        %v2592 = vsub.s32 0, %v2591
        %v2593 = vrot.slane %v2588, %v2592
        %v2595 = vmul.f32 %v2571, %v2593
        %v2596 = vmul.f32 %v2572, %v2593
        %v2597 = vmul.f32 %v2573, %v2593
        %v2598 = vmul.f32 %v2574, %v2593
        %v2599 = vmul.f32 %v2575, %v2593
        %v2600 = vmul.f32 %v2576, %v2593
        %v2601 = vmul.f32 %v2577, %v2593
        %v2602 = vmul.f32 %v2578, %v2593
        %v2603 = vmul.f32 %v2579, %v2593
        %v2604 = vmul.f32 %v2580, %v2593
        %v2605 = vmul.f32 %v2581, %v2593
        %v2606 = vmul.f32 %v2582, %v2593
        %v2607 = vmul.f32 %v2583, %v2593
        %v2608 = vmul.f32 %v2584, %v2593
        %v2609 = vmul.f32 %v2585, %v2593
        %v2610 = vmul.f32 %v2586, %v2593
        %s2611 = scalar_lea.vmem [#allocation13], 2
        %v2612 = vld [vmem:[%s2611] sm:$0x1]
        %v2614 = vlaneseq
        %v2615 = vshrl.u32 %v2614, 7
        %v2616 = vsub.s32 0, %v2615
        %v2617 = vrot.slane %v2612, %v2616
        %v2619 = vadd.f32 %v2595, %v2617
        %v2620 = vadd.f32 %v2596, %v2617
        %v2621 = vadd.f32 %v2597, %v2617
        %v2622 = vadd.f32 %v2598, %v2617
        %v2623 = vadd.f32 %v2599, %v2617
        %v2624 = vadd.f32 %v2600, %v2617
        %v2625 = vadd.f32 %v2601, %v2617
        %v2626 = vadd.f32 %v2602, %v2617
        %v2627 = vadd.f32 %v2603, %v2617
        %v2628 = vadd.f32 %v2604, %v2617
        %v2629 = vadd.f32 %v2605, %v2617
        %v2630 = vadd.f32 %v2606, %v2617
        %v2631 = vadd.f32 %v2607, %v2617
        %v2632 = vadd.f32 %v2608, %v2617
        %v2633 = vadd.f32 %v2609, %v2617
        %v2634 = vadd.f32 %v2610, %v2617
        %v2635 = vadd.f32 %v2619, %v2055
        %v2636 = vadd.f32 %v2620, %v2056
        %v2637 = vadd.f32 %v2621, %v2057
        %v2638 = vadd.f32 %v2622, %v2058
        %v2639 = vadd.f32 %v2623, %v2059
        %v2640 = vadd.f32 %v2624, %v2060
        %v2641 = vadd.f32 %v2625, %v2061
        %v2642 = vadd.f32 %v2626, %v2062
        %v2643 = vadd.f32 %v2627, %v2063
        %v2644 = vadd.f32 %v2628, %v2064
        %v2645 = vadd.f32 %v2629, %v2065
        %v2646 = vadd.f32 %v2630, %v2066
        %v2647 = vadd.f32 %v2631, %v2067
        %v2648 = vadd.f32 %v2632, %v2068
        %v2649 = vadd.f32 %v2633, %v2069
        %v2650 = vadd.f32 %v2634, %v2070
        %v2651 = vpack.c.bf16 %v2636, %v2635
        %v2652 = vpack.c.bf16 %v2638, %v2637
        %v2653 = vpack.c.bf16 %v2640, %v2639
        %v2654 = vpack.c.bf16 %v2642, %v2641
        %v2655 = vpack.c.bf16 %v2644, %v2643
        %v2656 = vpack.c.bf16 %v2646, %v2645
        %v2657 = vpack.c.bf16 %v2648, %v2647
        %v2658 = vpack.c.bf16 %v2650, %v2649
        %s2659 = scalar_lea.vmem [#allocation8], 192
        %v2660 = vld [vmem:[%s2659] sm:$0xf]
        %v2661 = vld [vmem:[%s2659 + $0x4] sm:$0xf]
        %v2662 = vld [vmem:[%s2659 + $0x8] sm:$0xf]
        %v2663 = vld [vmem:[%s2659 + $0xc] sm:$0xf]
        %v2664 = vld [vmem:[%s2659 + $0x10] sm:$0xf]
        %v2665 = vld [vmem:[%s2659 + $0x14] sm:$0xf]
        %v2666 = vld [vmem:[%s2659 + $0x18] sm:$0xf]
        %v2667 = vld [vmem:[%s2659 + $0x1c] sm:$0xf]
        %v2668 = vld [vmem:[%s2659 + $0x20] sm:$0xf]
        %v2669 = vld [vmem:[%s2659 + $0x24] sm:$0xf]
        %v2670 = vld [vmem:[%s2659 + $0x28] sm:$0xf]
        %v2671 = vld [vmem:[%s2659 + $0x2c] sm:$0xf]
        %v2672 = vld [vmem:[%s2659 + $0x30] sm:$0xf]
        %v2673 = vld [vmem:[%s2659 + $0x34] sm:$0xf]
        %v2674 = vld [vmem:[%s2659 + $0x38] sm:$0xf]
        %v2675 = vld [vmem:[%s2659 + $0x3c] sm:$0xf]
        %s2676 = scalar_lea.vmem %s4, 3
        %v2677 = vld [vmem:[%s2676] sm:$0x1]
        %v2679 = vlaneseq
        %v2680 = vshrl.u32 %v2679, 7
        %v2681 = vsub.s32 0, %v2680
        %v2682 = vrot.slane %v2677, %v2681
        %v2700 = vunpack.c.l.b16 %v2660
        %v2701 = vunpack.c.l.b16 %v2661
        %v2702 = vunpack.c.l.b16 %v2662
        %v2703 = vunpack.c.l.b16 %v2663
        %v2704 = vunpack.c.l.b16 %v2664
        %v2705 = vunpack.c.l.b16 %v2665
        %v2706 = vunpack.c.l.b16 %v2666
        %v2707 = vunpack.c.l.b16 %v2667
        %v2708 = vunpack.c.l.b16 %v2668
        %v2709 = vunpack.c.l.b16 %v2669
        %v2710 = vunpack.c.l.b16 %v2670
        %v2711 = vunpack.c.l.b16 %v2671
        %v2712 = vunpack.c.l.b16 %v2672
        %v2713 = vunpack.c.l.b16 %v2673
        %v2714 = vunpack.c.l.b16 %v2674
        %v2715 = vunpack.c.l.b16 %v2675
        %v2716 = vpack.c.b16 %v2701, %v2700
        %v2717 = vpack.c.b16 %v2703, %v2702
        %v2718 = vpack.c.b16 %v2705, %v2704
        %v2719 = vpack.c.b16 %v2707, %v2706
        %v2720 = vpack.c.b16 %v2709, %v2708
        %v2721 = vpack.c.b16 %v2711, %v2710
        %v2722 = vpack.c.b16 %v2713, %v2712
        %v2723 = vpack.c.b16 %v2715, %v2714
        %2732 = vmatprep.subr.bf16.mxu0 0
        %2733 = vmatpush1.bf16.msra.mxu0 %v2723
        %2734 = vmatprep.subr.bf16.mxu0 0
        %2735 = vmatpush1.bf16.msra.mxu0 %v2722
        %2736 = vmatprep.subr.bf16.mxu0 0
        %2737 = vmatpush1.bf16.msra.mxu0 %v2721
        %2738 = vmatprep.subr.bf16.mxu0 0
        %2739 = vmatpush1.bf16.msra.mxu0 %v2720
        %2740 = vmatprep.subr.bf16.mxu0 0
        %2741 = vmatpush1.bf16.msra.mxu0 %v2719
        %2742 = vmatprep.subr.bf16.mxu0 0
        %2743 = vmatpush1.bf16.msra.mxu0 %v2718
        %2744 = vmatprep.subr.bf16.mxu0 0
        %2745 = vmatpush1.bf16.msra.mxu0 %v2717
        %2746 = vmatprep.subr.bf16.mxu0 0
        %2747 = vmatpush1.bf16.msra.mxu0 %v2716
        %2748 = vmatprep.subr.bf16.mxu0 0
        %2749 = vmatpush2.bf16.msra.mxu0 0
        %2750 = vmatprep.subr.bf16.mxu0 0
        %2751 = vmatpush2.bf16.msra.mxu0 0
        %2752 = vmatprep.subr.bf16.mxu0 0
        %2753 = vmatpush2.bf16.msra.mxu0 0
        %2754 = vmatprep.subr.bf16.mxu0 0
        %2755 = vmatpush2.bf16.msra.mxu0 0
        %2756 = vmatprep.subr.bf16.mxu0 0
        %2757 = vmatpush2.bf16.msra.mxu0 0
        %2758 = vmatprep.subr.bf16.mxu0 0
        %2759 = vmatpush2.bf16.msra.mxu0 0
        %2760 = vmatprep.subr.bf16.mxu0 0
        %2761 = vmatpush2.bf16.msra.mxu0 0
        %2762 = vmatprep.subr.bf16.mxu0 0
        %2763 = vmatpush2.bf16.msra.mxu0 0
        %2764 = vmatprep.mubr.bf16.mxu0 0
        %2765 = vmatmul.mubr.bf16.gmra.mxu0 %v2651
        %v2766 = vpop.f32.mrf.mxu0
        %v2767 = vadd.f32 %v2682, %v2766
        %v2768 = vpop.f32.mrf.mxu0
        %v2769 = vpop.f32.mrf.mxu0
        %v2770 = vadd.f32 %v2682, %v2769
        %v2771 = vpop.f32.mrf.mxu0
        %2772 = vmatprep.mubr.bf16.mxu0 0
        %2773 = vmatmul.mubr.bf16.gmra.mxu0 %v2652
        %v2774 = vpop.f32.mrf.mxu0
        %v2775 = vadd.f32 %v2682, %v2774
        %v2776 = vpop.f32.mrf.mxu0
        %v2777 = vpop.f32.mrf.mxu0
        %v2778 = vadd.f32 %v2682, %v2777
        %v2779 = vpop.f32.mrf.mxu0
        %2780 = vmatprep.mubr.bf16.mxu0 0
        %2781 = vmatmul.mubr.bf16.gmra.mxu0 %v2653
        %v2782 = vpop.f32.mrf.mxu0
        %v2783 = vadd.f32 %v2682, %v2782
        %v2784 = vpop.f32.mrf.mxu0
        %v2785 = vpop.f32.mrf.mxu0
        %v2786 = vadd.f32 %v2682, %v2785
        %v2787 = vpop.f32.mrf.mxu0
        %2788 = vmatprep.mubr.bf16.mxu0 0
        %2789 = vmatmul.mubr.bf16.gmra.mxu0 %v2654
        %v2790 = vpop.f32.mrf.mxu0
        %v2791 = vadd.f32 %v2682, %v2790
        %v2792 = vpop.f32.mrf.mxu0
        %v2793 = vpop.f32.mrf.mxu0
        %v2794 = vadd.f32 %v2682, %v2793
        %v2795 = vpop.f32.mrf.mxu0
        %2796 = vmatprep.mubr.bf16.mxu0 0
        %2797 = vmatmul.mubr.bf16.gmra.mxu0 %v2655
        %v2798 = vpop.f32.mrf.mxu0
        %v2799 = vadd.f32 %v2682, %v2798
        %v2800 = vpop.f32.mrf.mxu0
        %v2801 = vpop.f32.mrf.mxu0
        %v2802 = vadd.f32 %v2682, %v2801
        %v2803 = vpop.f32.mrf.mxu0
        %2804 = vmatprep.mubr.bf16.mxu0 0
        %2805 = vmatmul.mubr.bf16.gmra.mxu0 %v2656
        %v2806 = vpop.f32.mrf.mxu0
        %v2807 = vadd.f32 %v2682, %v2806
        %v2808 = vpop.f32.mrf.mxu0
        %v2809 = vpop.f32.mrf.mxu0
        %v2810 = vadd.f32 %v2682, %v2809
        %v2811 = vpop.f32.mrf.mxu0
        %2812 = vmatprep.mubr.bf16.mxu0 0
        %2813 = vmatmul.mubr.bf16.gmra.mxu0 %v2657
        %v2814 = vpop.f32.mrf.mxu0
        %v2815 = vadd.f32 %v2682, %v2814
        %v2816 = vpop.f32.mrf.mxu0
        %v2817 = vpop.f32.mrf.mxu0
        %v2818 = vadd.f32 %v2682, %v2817
        %v2819 = vpop.f32.mrf.mxu0
        %2820 = vmatprep.mubr.bf16.mxu0 0
        %2821 = vmatmul.mubr.bf16.gmra.mxu0 %v2658
        %v2822 = vpop.f32.mrf.mxu0
        %v2823 = vadd.f32 %v2682, %v2822
        %v2824 = vpop.f32.mrf.mxu0
        %v2825 = vpop.f32.mrf.mxu0
        %v2826 = vadd.f32 %v2682, %v2825
        %v2827 = vpop.f32.mrf.mxu0
        %2828 = vdwg.mxu0
        %v2829 = vmul.f32 %v2767, 0.5
        %v2830 = vmul.f32 %v2770, 0.5
        %v2831 = vmul.f32 %v2775, 0.5
        %v2832 = vmul.f32 %v2778, 0.5
        %v2833 = vmul.f32 %v2783, 0.5
        %v2834 = vmul.f32 %v2786, 0.5
        %v2835 = vmul.f32 %v2791, 0.5
        %v2836 = vmul.f32 %v2794, 0.5
        %v2837 = vmul.f32 %v2799, 0.5
        %v2838 = vmul.f32 %v2802, 0.5
        %v2839 = vmul.f32 %v2807, 0.5
        %v2840 = vmul.f32 %v2810, 0.5
        %v2841 = vmul.f32 %v2815, 0.5
        %v2842 = vmul.f32 %v2818, 0.5
        %v2843 = vmul.f32 %v2823, 0.5
        %v2844 = vmul.f32 %v2826, 0.5
        %v2845 = vmul.f32 %v2767, 0.70710677
        %v2846 = vmul.f32 %v2770, 0.70710677
        %v2847 = vmul.f32 %v2775, 0.70710677
        %v2848 = vmul.f32 %v2778, 0.70710677
        %v2849 = vmul.f32 %v2783, 0.70710677
        %v2850 = vmul.f32 %v2786, 0.70710677
        %v2851 = vmul.f32 %v2791, 0.70710677
        %v2852 = vmul.f32 %v2794, 0.70710677
        %v2853 = vmul.f32 %v2799, 0.70710677
        %v2854 = vmul.f32 %v2802, 0.70710677
        %v2855 = vmul.f32 %v2807, 0.70710677
        %v2856 = vmul.f32 %v2810, 0.70710677
        %v2857 = vmul.f32 %v2815, 0.70710677
        %v2858 = vmul.f32 %v2818, 0.70710677
        %v2859 = vmul.f32 %v2823, 0.70710677
        %v2860 = vmul.f32 %v2826, 0.70710677
        %v2861 = verf.f32.pop %v2845
        %v2862 = verf.f32.pop %v2846
        %v2863 = verf.f32.pop %v2847
        %v2864 = verf.f32.pop %v2848
        %v2865 = verf.f32.pop %v2849
        %v2866 = verf.f32.pop %v2850
        %v2867 = verf.f32.pop %v2851
        %v2868 = verf.f32.pop %v2852
        %v2869 = verf.f32.pop %v2853
        %v2870 = verf.f32.pop %v2854
        %v2871 = verf.f32.pop %v2855
        %v2872 = verf.f32.pop %v2856
        %v2873 = verf.f32.pop %v2857
        %v2874 = verf.f32.pop %v2858
        %v2875 = verf.f32.pop %v2859
        %v2876 = verf.f32.pop %v2860
        %v2877 = vadd.f32 %v2861, 1.0
        %v2878 = vadd.f32 %v2862, 1.0
        %v2879 = vadd.f32 %v2863, 1.0
        %v2880 = vadd.f32 %v2864, 1.0
        %v2881 = vadd.f32 %v2865, 1.0
        %v2882 = vadd.f32 %v2866, 1.0
        %v2883 = vadd.f32 %v2867, 1.0
        %v2884 = vadd.f32 %v2868, 1.0
        %v2885 = vadd.f32 %v2869, 1.0
        %v2886 = vadd.f32 %v2870, 1.0
        %v2887 = vadd.f32 %v2871, 1.0
        %v2888 = vadd.f32 %v2872, 1.0
        %v2889 = vadd.f32 %v2873, 1.0
        %v2890 = vadd.f32 %v2874, 1.0
        %v2891 = vadd.f32 %v2875, 1.0
        %v2892 = vadd.f32 %v2876, 1.0
        %v2893 = vmul.f32 %v2829, %v2877
        %v2894 = vmul.f32 %v2830, %v2878
        %v2895 = vmul.f32 %v2831, %v2879
        %v2896 = vmul.f32 %v2832, %v2880
        %v2897 = vmul.f32 %v2833, %v2881
        %v2898 = vmul.f32 %v2834, %v2882
        %v2899 = vmul.f32 %v2835, %v2883
        %v2900 = vmul.f32 %v2836, %v2884
        %v2901 = vmul.f32 %v2837, %v2885
        %v2902 = vmul.f32 %v2838, %v2886
        %v2903 = vmul.f32 %v2839, %v2887
        %v2904 = vmul.f32 %v2840, %v2888
        %v2905 = vmul.f32 %v2841, %v2889
        %v2906 = vmul.f32 %v2842, %v2890
        %v2907 = vmul.f32 %v2843, %v2891
        %v2908 = vmul.f32 %v2844, %v2892
        %v2909 = vpack.c.bf16 %v2894, %v2893
        %v2910 = vpack.c.bf16 %v2896, %v2895
        %v2911 = vpack.c.bf16 %v2898, %v2897
        %v2912 = vpack.c.bf16 %v2900, %v2899
        %v2913 = vpack.c.bf16 %v2902, %v2901
        %v2914 = vpack.c.bf16 %v2904, %v2903
        %v2915 = vpack.c.bf16 %v2906, %v2905
        %v2916 = vpack.c.bf16 %v2908, %v2907
        %s2917 = scalar_lea.vmem [#allocation10], 192
        %v2918 = vld [vmem:[%s2917] sm:$0xf]
        %v2919 = vld [vmem:[%s2917 + $0x4] sm:$0xf]
        %v2920 = vld [vmem:[%s2917 + $0x8] sm:$0xf]
        %v2921 = vld [vmem:[%s2917 + $0xc] sm:$0xf]
        %v2922 = vld [vmem:[%s2917 + $0x10] sm:$0xf]
        %v2923 = vld [vmem:[%s2917 + $0x14] sm:$0xf]
        %v2924 = vld [vmem:[%s2917 + $0x18] sm:$0xf]
        %v2925 = vld [vmem:[%s2917 + $0x1c] sm:$0xf]
        %v2926 = vld [vmem:[%s2917 + $0x20] sm:$0xf]
        %v2927 = vld [vmem:[%s2917 + $0x24] sm:$0xf]
        %v2928 = vld [vmem:[%s2917 + $0x28] sm:$0xf]
        %v2929 = vld [vmem:[%s2917 + $0x2c] sm:$0xf]
        %v2930 = vld [vmem:[%s2917 + $0x30] sm:$0xf]
        %v2931 = vld [vmem:[%s2917 + $0x34] sm:$0xf]
        %v2932 = vld [vmem:[%s2917 + $0x38] sm:$0xf]
        %v2933 = vld [vmem:[%s2917 + $0x3c] sm:$0xf]
        %s2934 = scalar_lea.vmem %s6, 3
        %v2935 = vld [vmem:[%s2934] sm:$0x1]
        %v2937 = vlaneseq
        %v2938 = vshrl.u32 %v2937, 7
        %v2939 = vsub.s32 0, %v2938
        %v2940 = vrot.slane %v2935, %v2939
        %v2958 = vunpack.c.l.b16 %v2918
        %v2959 = vunpack.c.l.b16 %v2919
        %v2960 = vunpack.c.l.b16 %v2920
        %v2961 = vunpack.c.l.b16 %v2921
        %v2962 = vunpack.c.l.b16 %v2922
        %v2963 = vunpack.c.l.b16 %v2923
        %v2964 = vunpack.c.l.b16 %v2924
        %v2965 = vunpack.c.l.b16 %v2925
        %v2966 = vunpack.c.l.b16 %v2926
        %v2967 = vunpack.c.l.b16 %v2927
        %v2968 = vunpack.c.l.b16 %v2928
        %v2969 = vunpack.c.l.b16 %v2929
        %v2970 = vunpack.c.l.b16 %v2930
        %v2971 = vunpack.c.l.b16 %v2931
        %v2972 = vunpack.c.l.b16 %v2932
        %v2973 = vunpack.c.l.b16 %v2933
        %v2974 = vpack.c.b16 %v2959, %v2958
        %v2975 = vpack.c.b16 %v2961, %v2960
        %v2976 = vpack.c.b16 %v2963, %v2962
        %v2977 = vpack.c.b16 %v2965, %v2964
        %v2978 = vpack.c.b16 %v2967, %v2966
        %v2979 = vpack.c.b16 %v2969, %v2968
        %v2980 = vpack.c.b16 %v2971, %v2970
        %v2981 = vpack.c.b16 %v2973, %v2972
        %2990 = vmatprep.subr.bf16.mxu0 0
        %2991 = vmatpush1.bf16.msra.mxu0 %v2981
        %2992 = vmatprep.subr.bf16.mxu0 0
        %2993 = vmatpush1.bf16.msra.mxu0 %v2980
        %2994 = vmatprep.subr.bf16.mxu0 0
        %2995 = vmatpush1.bf16.msra.mxu0 %v2979
        %2996 = vmatprep.subr.bf16.mxu0 0
        %2997 = vmatpush1.bf16.msra.mxu0 %v2978
        %2998 = vmatprep.subr.bf16.mxu0 0
        %2999 = vmatpush1.bf16.msra.mxu0 %v2977
        %3000 = vmatprep.subr.bf16.mxu0 0
        %3001 = vmatpush1.bf16.msra.mxu0 %v2976
        %3002 = vmatprep.subr.bf16.mxu0 0
        %3003 = vmatpush1.bf16.msra.mxu0 %v2975
        %3004 = vmatprep.subr.bf16.mxu0 0
        %3005 = vmatpush1.bf16.msra.mxu0 %v2974
        %3006 = vmatprep.subr.bf16.mxu0 0
        %3007 = vmatpush2.bf16.msra.mxu0 0
        %3008 = vmatprep.subr.bf16.mxu0 0
        %3009 = vmatpush2.bf16.msra.mxu0 0
        %3010 = vmatprep.subr.bf16.mxu0 0
        %3011 = vmatpush2.bf16.msra.mxu0 0
        %3012 = vmatprep.subr.bf16.mxu0 0
        %3013 = vmatpush2.bf16.msra.mxu0 0
        %3014 = vmatprep.subr.bf16.mxu0 0
        %3015 = vmatpush2.bf16.msra.mxu0 0
        %3016 = vmatprep.subr.bf16.mxu0 0
        %3017 = vmatpush2.bf16.msra.mxu0 0
        %3018 = vmatprep.subr.bf16.mxu0 0
        %3019 = vmatpush2.bf16.msra.mxu0 0
        %3020 = vmatprep.subr.bf16.mxu0 0
        %3021 = vmatpush2.bf16.msra.mxu0 0
        %3022 = vmatprep.mubr.bf16.mxu0 0
        %3023 = vmatmul.mubr.bf16.gmra.mxu0 %v2909
        %v3024 = vpop.f32.mrf.mxu0
        %v3025 = vadd.f32 %v2940, %v3024
        %v3026 = vpop.f32.mrf.mxu0
        %v3027 = vpop.f32.mrf.mxu0
        %v3028 = vadd.f32 %v2940, %v3027
        %v3029 = vpop.f32.mrf.mxu0
        %3030 = vmatprep.mubr.bf16.mxu0 0
        %3031 = vmatmul.mubr.bf16.gmra.mxu0 %v2910
        %v3032 = vpop.f32.mrf.mxu0
        %v3033 = vadd.f32 %v2940, %v3032
        %v3034 = vpop.f32.mrf.mxu0
        %v3035 = vpop.f32.mrf.mxu0
        %v3036 = vadd.f32 %v2940, %v3035
        %v3037 = vpop.f32.mrf.mxu0
        %3038 = vmatprep.mubr.bf16.mxu0 0
        %3039 = vmatmul.mubr.bf16.gmra.mxu0 %v2911
        %v3040 = vpop.f32.mrf.mxu0
        %v3041 = vadd.f32 %v2940, %v3040
        %v3042 = vpop.f32.mrf.mxu0
        %v3043 = vpop.f32.mrf.mxu0
        %v3044 = vadd.f32 %v2940, %v3043
        %v3045 = vpop.f32.mrf.mxu0
        %3046 = vmatprep.mubr.bf16.mxu0 0
        %3047 = vmatmul.mubr.bf16.gmra.mxu0 %v2912
        %v3048 = vpop.f32.mrf.mxu0
        %v3049 = vadd.f32 %v2940, %v3048
        %v3050 = vpop.f32.mrf.mxu0
        %v3051 = vpop.f32.mrf.mxu0
        %v3052 = vadd.f32 %v2940, %v3051
        %v3053 = vpop.f32.mrf.mxu0
        %3054 = vmatprep.mubr.bf16.mxu0 0
        %3055 = vmatmul.mubr.bf16.gmra.mxu0 %v2913
        %v3056 = vpop.f32.mrf.mxu0
        %v3057 = vadd.f32 %v2940, %v3056
        %v3058 = vpop.f32.mrf.mxu0
        %v3059 = vpop.f32.mrf.mxu0
        %v3060 = vadd.f32 %v2940, %v3059
        %v3061 = vpop.f32.mrf.mxu0
        %3062 = vmatprep.mubr.bf16.mxu0 0
        %3063 = vmatmul.mubr.bf16.gmra.mxu0 %v2914
        %v3064 = vpop.f32.mrf.mxu0
        %v3065 = vadd.f32 %v2940, %v3064
        %v3066 = vpop.f32.mrf.mxu0
        %v3067 = vpop.f32.mrf.mxu0
        %v3068 = vadd.f32 %v2940, %v3067
        %v3069 = vpop.f32.mrf.mxu0
        %3070 = vmatprep.mubr.bf16.mxu0 0
        %3071 = vmatmul.mubr.bf16.gmra.mxu0 %v2915
        %v3072 = vpop.f32.mrf.mxu0
        %v3073 = vadd.f32 %v2940, %v3072
        %v3074 = vpop.f32.mrf.mxu0
        %v3075 = vpop.f32.mrf.mxu0
        %v3076 = vadd.f32 %v2940, %v3075
        %v3077 = vpop.f32.mrf.mxu0
        %3078 = vmatprep.mubr.bf16.mxu0 0
        %3079 = vmatmul.mubr.bf16.gmra.mxu0 %v2916
        %v3080 = vpop.f32.mrf.mxu0
        %v3081 = vadd.f32 %v2940, %v3080
        %v3082 = vpop.f32.mrf.mxu0
        %v3083 = vpop.f32.mrf.mxu0
        %v3084 = vadd.f32 %v2940, %v3083
        %v3085 = vpop.f32.mrf.mxu0
        %3086 = vdwg.mxu0
        %v3087 = vmul.f32 %v3025, 0.5
        %v3088 = vmul.f32 %v3028, 0.5
        %v3089 = vmul.f32 %v3033, 0.5
        %v3090 = vmul.f32 %v3036, 0.5
        %v3091 = vmul.f32 %v3041, 0.5
        %v3092 = vmul.f32 %v3044, 0.5
        %v3093 = vmul.f32 %v3049, 0.5
        %v3094 = vmul.f32 %v3052, 0.5
        %v3095 = vmul.f32 %v3057, 0.5
        %v3096 = vmul.f32 %v3060, 0.5
        %v3097 = vmul.f32 %v3065, 0.5
        %v3098 = vmul.f32 %v3068, 0.5
        %v3099 = vmul.f32 %v3073, 0.5
        %v3100 = vmul.f32 %v3076, 0.5
        %v3101 = vmul.f32 %v3081, 0.5
        %v3102 = vmul.f32 %v3084, 0.5
        %v3103 = vmul.f32 %v3025, 0.70710677
        %v3104 = vmul.f32 %v3028, 0.70710677
        %v3105 = vmul.f32 %v3033, 0.70710677
        %v3106 = vmul.f32 %v3036, 0.70710677
        %v3107 = vmul.f32 %v3041, 0.70710677
        %v3108 = vmul.f32 %v3044, 0.70710677
        %v3109 = vmul.f32 %v3049, 0.70710677
        %v3110 = vmul.f32 %v3052, 0.70710677
        %v3111 = vmul.f32 %v3057, 0.70710677
        %v3112 = vmul.f32 %v3060, 0.70710677
        %v3113 = vmul.f32 %v3065, 0.70710677
        %v3114 = vmul.f32 %v3068, 0.70710677
        %v3115 = vmul.f32 %v3073, 0.70710677
        %v3116 = vmul.f32 %v3076, 0.70710677
        %v3117 = vmul.f32 %v3081, 0.70710677
        %v3118 = vmul.f32 %v3084, 0.70710677
        %v3119 = verf.f32.pop %v3103
        %v3120 = verf.f32.pop %v3104
        %v3121 = verf.f32.pop %v3105
        %v3122 = verf.f32.pop %v3106
        %v3123 = verf.f32.pop %v3107
        %v3124 = verf.f32.pop %v3108
        %v3125 = verf.f32.pop %v3109
        %v3126 = verf.f32.pop %v3110
        %v3127 = verf.f32.pop %v3111
        %v3128 = verf.f32.pop %v3112
        %v3129 = verf.f32.pop %v3113
        %v3130 = verf.f32.pop %v3114
        %v3131 = verf.f32.pop %v3115
        %v3132 = verf.f32.pop %v3116
        %v3133 = verf.f32.pop %v3117
        %v3134 = verf.f32.pop %v3118
        %v3135 = vadd.f32 %v3119, 1.0
        %v3136 = vadd.f32 %v3120, 1.0
        %v3137 = vadd.f32 %v3121, 1.0
        %v3138 = vadd.f32 %v3122, 1.0
        %v3139 = vadd.f32 %v3123, 1.0
        %v3140 = vadd.f32 %v3124, 1.0
        %v3141 = vadd.f32 %v3125, 1.0
        %v3142 = vadd.f32 %v3126, 1.0
        %v3143 = vadd.f32 %v3127, 1.0
        %v3144 = vadd.f32 %v3128, 1.0
        %v3145 = vadd.f32 %v3129, 1.0
        %v3146 = vadd.f32 %v3130, 1.0
        %v3147 = vadd.f32 %v3131, 1.0
        %v3148 = vadd.f32 %v3132, 1.0
        %v3149 = vadd.f32 %v3133, 1.0
        %v3150 = vadd.f32 %v3134, 1.0
        %v3151 = vmul.f32 %v3087, %v3135
        %v3152 = vmul.f32 %v3088, %v3136
        %v3153 = vmul.f32 %v3089, %v3137
        %v3154 = vmul.f32 %v3090, %v3138
        %v3155 = vmul.f32 %v3091, %v3139
        %v3156 = vmul.f32 %v3092, %v3140
        %v3157 = vmul.f32 %v3093, %v3141
        %v3158 = vmul.f32 %v3094, %v3142
        %v3159 = vmul.f32 %v3095, %v3143
        %v3160 = vmul.f32 %v3096, %v3144
        %v3161 = vmul.f32 %v3097, %v3145
        %v3162 = vmul.f32 %v3098, %v3146
        %v3163 = vmul.f32 %v3099, %v3147
        %v3164 = vmul.f32 %v3100, %v3148
        %v3165 = vmul.f32 %v3101, %v3149
        %v3166 = vmul.f32 %v3102, %v3150
        %s3167 = scalar_lea.vmem [#allocation11], 3
        %v3168 = vld [vmem:[%s3167] sm:$0x1]
        %v3170 = vlaneseq
        %v3171 = vshrl.u32 %v3170, 7
        %v3172 = vsub.s32 0, %v3171
        %v3173 = vrot.slane %v3168, %v3172
        %v3175 = vmul.f32 %v3151, %v3173
        %v3176 = vmul.f32 %v3152, %v3173
        %v3177 = vmul.f32 %v3153, %v3173
        %v3178 = vmul.f32 %v3154, %v3173
        %v3179 = vmul.f32 %v3155, %v3173
        %v3180 = vmul.f32 %v3156, %v3173
        %v3181 = vmul.f32 %v3157, %v3173
        %v3182 = vmul.f32 %v3158, %v3173
        %v3183 = vmul.f32 %v3159, %v3173
        %v3184 = vmul.f32 %v3160, %v3173
        %v3185 = vmul.f32 %v3161, %v3173
        %v3186 = vmul.f32 %v3162, %v3173
        %v3187 = vmul.f32 %v3163, %v3173
        %v3188 = vmul.f32 %v3164, %v3173
        %v3189 = vmul.f32 %v3165, %v3173
        %v3190 = vmul.f32 %v3166, %v3173
        %s3191 = scalar_lea.vmem [#allocation13], 3
        %v3192 = vld [vmem:[%s3191] sm:$0x1]
        %v3194 = vlaneseq
        %v3195 = vshrl.u32 %v3194, 7
        %v3196 = vsub.s32 0, %v3195
        %v3197 = vrot.slane %v3192, %v3196
        %v3199 = vadd.f32 %v3175, %v3197
        %v3200 = vadd.f32 %v3176, %v3197
        %v3201 = vadd.f32 %v3177, %v3197
        %v3202 = vadd.f32 %v3178, %v3197
        %v3203 = vadd.f32 %v3179, %v3197
        %v3204 = vadd.f32 %v3180, %v3197
        %v3205 = vadd.f32 %v3181, %v3197
        %v3206 = vadd.f32 %v3182, %v3197
        %v3207 = vadd.f32 %v3183, %v3197
        %v3208 = vadd.f32 %v3184, %v3197
        %v3209 = vadd.f32 %v3185, %v3197
        %v3210 = vadd.f32 %v3186, %v3197
        %v3211 = vadd.f32 %v3187, %v3197
        %v3212 = vadd.f32 %v3188, %v3197
        %v3213 = vadd.f32 %v3189, %v3197
        %v3214 = vadd.f32 %v3190, %v3197
        %v3215 = vadd.f32 %v3199, %v2635
        %v3216 = vadd.f32 %v3200, %v2636
        %v3217 = vadd.f32 %v3201, %v2637
        %v3218 = vadd.f32 %v3202, %v2638
        %v3219 = vadd.f32 %v3203, %v2639
        %v3220 = vadd.f32 %v3204, %v2640
        %v3221 = vadd.f32 %v3205, %v2641
        %v3222 = vadd.f32 %v3206, %v2642
        %v3223 = vadd.f32 %v3207, %v2643
        %v3224 = vadd.f32 %v3208, %v2644
        %v3225 = vadd.f32 %v3209, %v2645
        %v3226 = vadd.f32 %v3210, %v2646
        %v3227 = vadd.f32 %v3211, %v2647
        %v3228 = vadd.f32 %v3212, %v2648
        %v3229 = vadd.f32 %v3213, %v2649
        %v3230 = vadd.f32 %v3214, %v2650
        %v3231 = vpack.c.bf16 %v3216, %v3215
        %v3232 = vpack.c.bf16 %v3218, %v3217
        %v3233 = vpack.c.bf16 %v3220, %v3219
        %v3234 = vpack.c.bf16 %v3222, %v3221
        %v3235 = vpack.c.bf16 %v3224, %v3223
        %v3236 = vpack.c.bf16 %v3226, %v3225
        %v3237 = vpack.c.bf16 %v3228, %v3227
        %v3238 = vpack.c.bf16 %v3230, %v3229
        %s3239 = scalar_lea.vmem [#allocation8], 256
        %v3240 = vld [vmem:[%s3239] sm:$0xf]
        %v3241 = vld [vmem:[%s3239 + $0x4] sm:$0xf]
        %v3242 = vld [vmem:[%s3239 + $0x8] sm:$0xf]
        %v3243 = vld [vmem:[%s3239 + $0xc] sm:$0xf]
        %v3244 = vld [vmem:[%s3239 + $0x10] sm:$0xf]
        %v3245 = vld [vmem:[%s3239 + $0x14] sm:$0xf]
        %v3246 = vld [vmem:[%s3239 + $0x18] sm:$0xf]
        %v3247 = vld [vmem:[%s3239 + $0x1c] sm:$0xf]
        %v3248 = vld [vmem:[%s3239 + $0x20] sm:$0xf]
        %v3249 = vld [vmem:[%s3239 + $0x24] sm:$0xf]
        %v3250 = vld [vmem:[%s3239 + $0x28] sm:$0xf]
        %v3251 = vld [vmem:[%s3239 + $0x2c] sm:$0xf]
        %v3252 = vld [vmem:[%s3239 + $0x30] sm:$0xf]
        %v3253 = vld [vmem:[%s3239 + $0x34] sm:$0xf]
        %v3254 = vld [vmem:[%s3239 + $0x38] sm:$0xf]
        %v3255 = vld [vmem:[%s3239 + $0x3c] sm:$0xf]
        %s3256 = scalar_lea.vmem %s4, 4
        %v3257 = vld [vmem:[%s3256] sm:$0x1]
        %v3259 = vlaneseq
        %v3260 = vshrl.u32 %v3259, 7
        %v3261 = vsub.s32 0, %v3260
        %v3262 = vrot.slane %v3257, %v3261
        %v3280 = vunpack.c.l.b16 %v3240
        %v3281 = vunpack.c.l.b16 %v3241
        %v3282 = vunpack.c.l.b16 %v3242
        %v3283 = vunpack.c.l.b16 %v3243
        %v3284 = vunpack.c.l.b16 %v3244
        %v3285 = vunpack.c.l.b16 %v3245
        %v3286 = vunpack.c.l.b16 %v3246
        %v3287 = vunpack.c.l.b16 %v3247
        %v3288 = vunpack.c.l.b16 %v3248
        %v3289 = vunpack.c.l.b16 %v3249
        %v3290 = vunpack.c.l.b16 %v3250
        %v3291 = vunpack.c.l.b16 %v3251
        %v3292 = vunpack.c.l.b16 %v3252
        %v3293 = vunpack.c.l.b16 %v3253
        %v3294 = vunpack.c.l.b16 %v3254
        %v3295 = vunpack.c.l.b16 %v3255
        %v3296 = vpack.c.b16 %v3281, %v3280
        %v3297 = vpack.c.b16 %v3283, %v3282
        %v3298 = vpack.c.b16 %v3285, %v3284
        %v3299 = vpack.c.b16 %v3287, %v3286
        %v3300 = vpack.c.b16 %v3289, %v3288
        %v3301 = vpack.c.b16 %v3291, %v3290
        %v3302 = vpack.c.b16 %v3293, %v3292
        %v3303 = vpack.c.b16 %v3295, %v3294
        %3312 = vmatprep.subr.bf16.mxu0 0
        %3313 = vmatpush1.bf16.msra.mxu0 %v3303
        %3314 = vmatprep.subr.bf16.mxu0 0
        %3315 = vmatpush1.bf16.msra.mxu0 %v3302
        %3316 = vmatprep.subr.bf16.mxu0 0
        %3317 = vmatpush1.bf16.msra.mxu0 %v3301
        %3318 = vmatprep.subr.bf16.mxu0 0
        %3319 = vmatpush1.bf16.msra.mxu0 %v3300
        %3320 = vmatprep.subr.bf16.mxu0 0
        %3321 = vmatpush1.bf16.msra.mxu0 %v3299
        %3322 = vmatprep.subr.bf16.mxu0 0
        %3323 = vmatpush1.bf16.msra.mxu0 %v3298
        %3324 = vmatprep.subr.bf16.mxu0 0
        %3325 = vmatpush1.bf16.msra.mxu0 %v3297
        %3326 = vmatprep.subr.bf16.mxu0 0
        %3327 = vmatpush1.bf16.msra.mxu0 %v3296
        %3328 = vmatprep.subr.bf16.mxu0 0
        %3329 = vmatpush2.bf16.msra.mxu0 0
        %3330 = vmatprep.subr.bf16.mxu0 0
        %3331 = vmatpush2.bf16.msra.mxu0 0
        %3332 = vmatprep.subr.bf16.mxu0 0
        %3333 = vmatpush2.bf16.msra.mxu0 0
        %3334 = vmatprep.subr.bf16.mxu0 0
        %3335 = vmatpush2.bf16.msra.mxu0 0
        %3336 = vmatprep.subr.bf16.mxu0 0
        %3337 = vmatpush2.bf16.msra.mxu0 0
        %3338 = vmatprep.subr.bf16.mxu0 0
        %3339 = vmatpush2.bf16.msra.mxu0 0
        %3340 = vmatprep.subr.bf16.mxu0 0
        %3341 = vmatpush2.bf16.msra.mxu0 0
        %3342 = vmatprep.subr.bf16.mxu0 0
        %3343 = vmatpush2.bf16.msra.mxu0 0
        %3344 = vmatprep.mubr.bf16.mxu0 0
        %3345 = vmatmul.mubr.bf16.gmra.mxu0 %v3231
        %v3346 = vpop.f32.mrf.mxu0
        %v3347 = vadd.f32 %v3262, %v3346
        %v3348 = vpop.f32.mrf.mxu0
        %v3349 = vpop.f32.mrf.mxu0
        %v3350 = vadd.f32 %v3262, %v3349
        %v3351 = vpop.f32.mrf.mxu0
        %3352 = vmatprep.mubr.bf16.mxu0 0
        %3353 = vmatmul.mubr.bf16.gmra.mxu0 %v3232
        %v3354 = vpop.f32.mrf.mxu0
        %v3355 = vadd.f32 %v3262, %v3354
        %v3356 = vpop.f32.mrf.mxu0
        %v3357 = vpop.f32.mrf.mxu0
        %v3358 = vadd.f32 %v3262, %v3357
        %v3359 = vpop.f32.mrf.mxu0
        %3360 = vmatprep.mubr.bf16.mxu0 0
        %3361 = vmatmul.mubr.bf16.gmra.mxu0 %v3233
        %v3362 = vpop.f32.mrf.mxu0
        %v3363 = vadd.f32 %v3262, %v3362
        %v3364 = vpop.f32.mrf.mxu0
        %v3365 = vpop.f32.mrf.mxu0
        %v3366 = vadd.f32 %v3262, %v3365
        %v3367 = vpop.f32.mrf.mxu0
        %3368 = vmatprep.mubr.bf16.mxu0 0
        %3369 = vmatmul.mubr.bf16.gmra.mxu0 %v3234
        %v3370 = vpop.f32.mrf.mxu0
        %v3371 = vadd.f32 %v3262, %v3370
        %v3372 = vpop.f32.mrf.mxu0
        %v3373 = vpop.f32.mrf.mxu0
        %v3374 = vadd.f32 %v3262, %v3373
        %v3375 = vpop.f32.mrf.mxu0
        %3376 = vmatprep.mubr.bf16.mxu0 0
        %3377 = vmatmul.mubr.bf16.gmra.mxu0 %v3235
        %v3378 = vpop.f32.mrf.mxu0
        %v3379 = vadd.f32 %v3262, %v3378
        %v3380 = vpop.f32.mrf.mxu0
        %v3381 = vpop.f32.mrf.mxu0
        %v3382 = vadd.f32 %v3262, %v3381
        %v3383 = vpop.f32.mrf.mxu0
        %3384 = vmatprep.mubr.bf16.mxu0 0
        %3385 = vmatmul.mubr.bf16.gmra.mxu0 %v3236
        %v3386 = vpop.f32.mrf.mxu0
        %v3387 = vadd.f32 %v3262, %v3386
        %v3388 = vpop.f32.mrf.mxu0
        %v3389 = vpop.f32.mrf.mxu0
        %v3390 = vadd.f32 %v3262, %v3389
        %v3391 = vpop.f32.mrf.mxu0
        %3392 = vmatprep.mubr.bf16.mxu0 0
        %3393 = vmatmul.mubr.bf16.gmra.mxu0 %v3237
        %v3394 = vpop.f32.mrf.mxu0
        %v3395 = vadd.f32 %v3262, %v3394
        %v3396 = vpop.f32.mrf.mxu0
        %v3397 = vpop.f32.mrf.mxu0
        %v3398 = vadd.f32 %v3262, %v3397
        %v3399 = vpop.f32.mrf.mxu0
        %3400 = vmatprep.mubr.bf16.mxu0 0
        %3401 = vmatmul.mubr.bf16.gmra.mxu0 %v3238
        %v3402 = vpop.f32.mrf.mxu0
        %v3403 = vadd.f32 %v3262, %v3402
        %v3404 = vpop.f32.mrf.mxu0
        %v3405 = vpop.f32.mrf.mxu0
        %v3406 = vadd.f32 %v3262, %v3405
        %v3407 = vpop.f32.mrf.mxu0
        %3408 = vdwg.mxu0
        %v3409 = vmul.f32 %v3347, 0.5
        %v3410 = vmul.f32 %v3350, 0.5
        %v3411 = vmul.f32 %v3355, 0.5
        %v3412 = vmul.f32 %v3358, 0.5
        %v3413 = vmul.f32 %v3363, 0.5
        %v3414 = vmul.f32 %v3366, 0.5
        %v3415 = vmul.f32 %v3371, 0.5
        %v3416 = vmul.f32 %v3374, 0.5
        %v3417 = vmul.f32 %v3379, 0.5
        %v3418 = vmul.f32 %v3382, 0.5
        %v3419 = vmul.f32 %v3387, 0.5
        %v3420 = vmul.f32 %v3390, 0.5
        %v3421 = vmul.f32 %v3395, 0.5
        %v3422 = vmul.f32 %v3398, 0.5
        %v3423 = vmul.f32 %v3403, 0.5
        %v3424 = vmul.f32 %v3406, 0.5
        %v3425 = vmul.f32 %v3347, 0.70710677
        %v3426 = vmul.f32 %v3350, 0.70710677
        %v3427 = vmul.f32 %v3355, 0.70710677
        %v3428 = vmul.f32 %v3358, 0.70710677
        %v3429 = vmul.f32 %v3363, 0.70710677
        %v3430 = vmul.f32 %v3366, 0.70710677
        %v3431 = vmul.f32 %v3371, 0.70710677
        %v3432 = vmul.f32 %v3374, 0.70710677
        %v3433 = vmul.f32 %v3379, 0.70710677
        %v3434 = vmul.f32 %v3382, 0.70710677
        %v3435 = vmul.f32 %v3387, 0.70710677
        %v3436 = vmul.f32 %v3390, 0.70710677
        %v3437 = vmul.f32 %v3395, 0.70710677
        %v3438 = vmul.f32 %v3398, 0.70710677
        %v3439 = vmul.f32 %v3403, 0.70710677
        %v3440 = vmul.f32 %v3406, 0.70710677
        %v3441 = verf.f32.pop %v3425
        %v3442 = verf.f32.pop %v3426
        %v3443 = verf.f32.pop %v3427
        %v3444 = verf.f32.pop %v3428
        %v3445 = verf.f32.pop %v3429
        %v3446 = verf.f32.pop %v3430
        %v3447 = verf.f32.pop %v3431
        %v3448 = verf.f32.pop %v3432
        %v3449 = verf.f32.pop %v3433
        %v3450 = verf.f32.pop %v3434
        %v3451 = verf.f32.pop %v3435
        %v3452 = verf.f32.pop %v3436
        %v3453 = verf.f32.pop %v3437
        %v3454 = verf.f32.pop %v3438
        %v3455 = verf.f32.pop %v3439
        %v3456 = verf.f32.pop %v3440
        %v3457 = vadd.f32 %v3441, 1.0
        %v3458 = vadd.f32 %v3442, 1.0
        %v3459 = vadd.f32 %v3443, 1.0
        %v3460 = vadd.f32 %v3444, 1.0
        %v3461 = vadd.f32 %v3445, 1.0
        %v3462 = vadd.f32 %v3446, 1.0
        %v3463 = vadd.f32 %v3447, 1.0
        %v3464 = vadd.f32 %v3448, 1.0
        %v3465 = vadd.f32 %v3449, 1.0
        %v3466 = vadd.f32 %v3450, 1.0
        %v3467 = vadd.f32 %v3451, 1.0
        %v3468 = vadd.f32 %v3452, 1.0
        %v3469 = vadd.f32 %v3453, 1.0
        %v3470 = vadd.f32 %v3454, 1.0
        %v3471 = vadd.f32 %v3455, 1.0
        %v3472 = vadd.f32 %v3456, 1.0
        %v3473 = vmul.f32 %v3409, %v3457
        %v3474 = vmul.f32 %v3410, %v3458
        %v3475 = vmul.f32 %v3411, %v3459
        %v3476 = vmul.f32 %v3412, %v3460
        %v3477 = vmul.f32 %v3413, %v3461
        %v3478 = vmul.f32 %v3414, %v3462
        %v3479 = vmul.f32 %v3415, %v3463
        %v3480 = vmul.f32 %v3416, %v3464
        %v3481 = vmul.f32 %v3417, %v3465
        %v3482 = vmul.f32 %v3418, %v3466
        %v3483 = vmul.f32 %v3419, %v3467
        %v3484 = vmul.f32 %v3420, %v3468
        %v3485 = vmul.f32 %v3421, %v3469
        %v3486 = vmul.f32 %v3422, %v3470
        %v3487 = vmul.f32 %v3423, %v3471
        %v3488 = vmul.f32 %v3424, %v3472
        %v3489 = vpack.c.bf16 %v3474, %v3473
        %v3490 = vpack.c.bf16 %v3476, %v3475
        %v3491 = vpack.c.bf16 %v3478, %v3477
        %v3492 = vpack.c.bf16 %v3480, %v3479
        %v3493 = vpack.c.bf16 %v3482, %v3481
        %v3494 = vpack.c.bf16 %v3484, %v3483
        %v3495 = vpack.c.bf16 %v3486, %v3485
        %v3496 = vpack.c.bf16 %v3488, %v3487
        %s3497 = scalar_lea.vmem [#allocation10], 256
        %v3498 = vld [vmem:[%s3497] sm:$0xf]
        %v3499 = vld [vmem:[%s3497 + $0x4] sm:$0xf]
        %v3500 = vld [vmem:[%s3497 + $0x8] sm:$0xf]
        %v3501 = vld [vmem:[%s3497 + $0xc] sm:$0xf]
        %v3502 = vld [vmem:[%s3497 + $0x10] sm:$0xf]
        %v3503 = vld [vmem:[%s3497 + $0x14] sm:$0xf]
        %v3504 = vld [vmem:[%s3497 + $0x18] sm:$0xf]
        %v3505 = vld [vmem:[%s3497 + $0x1c] sm:$0xf]
        %v3506 = vld [vmem:[%s3497 + $0x20] sm:$0xf]
        %v3507 = vld [vmem:[%s3497 + $0x24] sm:$0xf]
        %v3508 = vld [vmem:[%s3497 + $0x28] sm:$0xf]
        %v3509 = vld [vmem:[%s3497 + $0x2c] sm:$0xf]
        %v3510 = vld [vmem:[%s3497 + $0x30] sm:$0xf]
        %v3511 = vld [vmem:[%s3497 + $0x34] sm:$0xf]
        %v3512 = vld [vmem:[%s3497 + $0x38] sm:$0xf]
        %v3513 = vld [vmem:[%s3497 + $0x3c] sm:$0xf]
        %s3514 = scalar_lea.vmem %s6, 4
        %v3515 = vld [vmem:[%s3514] sm:$0x1]
        %v3517 = vlaneseq
        %v3518 = vshrl.u32 %v3517, 7
        %v3519 = vsub.s32 0, %v3518
        %v3520 = vrot.slane %v3515, %v3519
        %v3538 = vunpack.c.l.b16 %v3498
        %v3539 = vunpack.c.l.b16 %v3499
        %v3540 = vunpack.c.l.b16 %v3500
        %v3541 = vunpack.c.l.b16 %v3501
        %v3542 = vunpack.c.l.b16 %v3502
        %v3543 = vunpack.c.l.b16 %v3503
        %v3544 = vunpack.c.l.b16 %v3504
        %v3545 = vunpack.c.l.b16 %v3505
        %v3546 = vunpack.c.l.b16 %v3506
        %v3547 = vunpack.c.l.b16 %v3507
        %v3548 = vunpack.c.l.b16 %v3508
        %v3549 = vunpack.c.l.b16 %v3509
        %v3550 = vunpack.c.l.b16 %v3510
        %v3551 = vunpack.c.l.b16 %v3511
        %v3552 = vunpack.c.l.b16 %v3512
        %v3553 = vunpack.c.l.b16 %v3513
        %v3554 = vpack.c.b16 %v3539, %v3538
        %v3555 = vpack.c.b16 %v3541, %v3540
        %v3556 = vpack.c.b16 %v3543, %v3542
        %v3557 = vpack.c.b16 %v3545, %v3544
        %v3558 = vpack.c.b16 %v3547, %v3546
        %v3559 = vpack.c.b16 %v3549, %v3548
        %v3560 = vpack.c.b16 %v3551, %v3550
        %v3561 = vpack.c.b16 %v3553, %v3552
        %3570 = vmatprep.subr.bf16.mxu0 0
        %3571 = vmatpush1.bf16.msra.mxu0 %v3561
        %3572 = vmatprep.subr.bf16.mxu0 0
        %3573 = vmatpush1.bf16.msra.mxu0 %v3560
        %3574 = vmatprep.subr.bf16.mxu0 0
        %3575 = vmatpush1.bf16.msra.mxu0 %v3559
        %3576 = vmatprep.subr.bf16.mxu0 0
        %3577 = vmatpush1.bf16.msra.mxu0 %v3558
        %3578 = vmatprep.subr.bf16.mxu0 0
        %3579 = vmatpush1.bf16.msra.mxu0 %v3557
        %3580 = vmatprep.subr.bf16.mxu0 0
        %3581 = vmatpush1.bf16.msra.mxu0 %v3556
        %3582 = vmatprep.subr.bf16.mxu0 0
        %3583 = vmatpush1.bf16.msra.mxu0 %v3555
        %3584 = vmatprep.subr.bf16.mxu0 0
        %3585 = vmatpush1.bf16.msra.mxu0 %v3554
        %3586 = vmatprep.subr.bf16.mxu0 0
        %3587 = vmatpush2.bf16.msra.mxu0 0
        %3588 = vmatprep.subr.bf16.mxu0 0
        %3589 = vmatpush2.bf16.msra.mxu0 0
        %3590 = vmatprep.subr.bf16.mxu0 0
        %3591 = vmatpush2.bf16.msra.mxu0 0
        %3592 = vmatprep.subr.bf16.mxu0 0
        %3593 = vmatpush2.bf16.msra.mxu0 0
        %3594 = vmatprep.subr.bf16.mxu0 0
        %3595 = vmatpush2.bf16.msra.mxu0 0
        %3596 = vmatprep.subr.bf16.mxu0 0
        %3597 = vmatpush2.bf16.msra.mxu0 0
        %3598 = vmatprep.subr.bf16.mxu0 0
        %3599 = vmatpush2.bf16.msra.mxu0 0
        %3600 = vmatprep.subr.bf16.mxu0 0
        %3601 = vmatpush2.bf16.msra.mxu0 0
        %3602 = vmatprep.mubr.bf16.mxu0 0
        %3603 = vmatmul.mubr.bf16.gmra.mxu0 %v3489
        %v3604 = vpop.f32.mrf.mxu0
        %v3605 = vadd.f32 %v3520, %v3604
        %v3606 = vpop.f32.mrf.mxu0
        %v3607 = vpop.f32.mrf.mxu0
        %v3608 = vadd.f32 %v3520, %v3607
        %v3609 = vpop.f32.mrf.mxu0
        %3610 = vmatprep.mubr.bf16.mxu0 0
        %3611 = vmatmul.mubr.bf16.gmra.mxu0 %v3490
        %v3612 = vpop.f32.mrf.mxu0
        %v3613 = vadd.f32 %v3520, %v3612
        %v3614 = vpop.f32.mrf.mxu0
        %v3615 = vpop.f32.mrf.mxu0
        %v3616 = vadd.f32 %v3520, %v3615
        %v3617 = vpop.f32.mrf.mxu0
        %3618 = vmatprep.mubr.bf16.mxu0 0
        %3619 = vmatmul.mubr.bf16.gmra.mxu0 %v3491
        %v3620 = vpop.f32.mrf.mxu0
        %v3621 = vadd.f32 %v3520, %v3620
        %v3622 = vpop.f32.mrf.mxu0
        %v3623 = vpop.f32.mrf.mxu0
        %v3624 = vadd.f32 %v3520, %v3623
        %v3625 = vpop.f32.mrf.mxu0
        %3626 = vmatprep.mubr.bf16.mxu0 0
        %3627 = vmatmul.mubr.bf16.gmra.mxu0 %v3492
        %v3628 = vpop.f32.mrf.mxu0
        %v3629 = vadd.f32 %v3520, %v3628
        %v3630 = vpop.f32.mrf.mxu0
        %v3631 = vpop.f32.mrf.mxu0
        %v3632 = vadd.f32 %v3520, %v3631
        %v3633 = vpop.f32.mrf.mxu0
        %3634 = vmatprep.mubr.bf16.mxu0 0
        %3635 = vmatmul.mubr.bf16.gmra.mxu0 %v3493
        %v3636 = vpop.f32.mrf.mxu0
        %v3637 = vadd.f32 %v3520, %v3636
        %v3638 = vpop.f32.mrf.mxu0
        %v3639 = vpop.f32.mrf.mxu0
        %v3640 = vadd.f32 %v3520, %v3639
        %v3641 = vpop.f32.mrf.mxu0
        %3642 = vmatprep.mubr.bf16.mxu0 0
        %3643 = vmatmul.mubr.bf16.gmra.mxu0 %v3494
        %v3644 = vpop.f32.mrf.mxu0
        %v3645 = vadd.f32 %v3520, %v3644
        %v3646 = vpop.f32.mrf.mxu0
        %v3647 = vpop.f32.mrf.mxu0
        %v3648 = vadd.f32 %v3520, %v3647
        %v3649 = vpop.f32.mrf.mxu0
        %3650 = vmatprep.mubr.bf16.mxu0 0
        %3651 = vmatmul.mubr.bf16.gmra.mxu0 %v3495
        %v3652 = vpop.f32.mrf.mxu0
        %v3653 = vadd.f32 %v3520, %v3652
        %v3654 = vpop.f32.mrf.mxu0
        %v3655 = vpop.f32.mrf.mxu0
        %v3656 = vadd.f32 %v3520, %v3655
        %v3657 = vpop.f32.mrf.mxu0
        %3658 = vmatprep.mubr.bf16.mxu0 0
        %3659 = vmatmul.mubr.bf16.gmra.mxu0 %v3496
        %v3660 = vpop.f32.mrf.mxu0
        %v3661 = vadd.f32 %v3520, %v3660
        %v3662 = vpop.f32.mrf.mxu0
        %v3663 = vpop.f32.mrf.mxu0
        %v3664 = vadd.f32 %v3520, %v3663
        %v3665 = vpop.f32.mrf.mxu0
        %3666 = vdwg.mxu0
        %v3667 = vmul.f32 %v3605, 0.5
        %v3668 = vmul.f32 %v3608, 0.5
        %v3669 = vmul.f32 %v3613, 0.5
        %v3670 = vmul.f32 %v3616, 0.5
        %v3671 = vmul.f32 %v3621, 0.5
        %v3672 = vmul.f32 %v3624, 0.5
        %v3673 = vmul.f32 %v3629, 0.5
        %v3674 = vmul.f32 %v3632, 0.5
        %v3675 = vmul.f32 %v3637, 0.5
        %v3676 = vmul.f32 %v3640, 0.5
        %v3677 = vmul.f32 %v3645, 0.5
        %v3678 = vmul.f32 %v3648, 0.5
        %v3679 = vmul.f32 %v3653, 0.5
        %v3680 = vmul.f32 %v3656, 0.5
        %v3681 = vmul.f32 %v3661, 0.5
        %v3682 = vmul.f32 %v3664, 0.5
        %v3683 = vmul.f32 %v3605, 0.70710677
        %v3684 = vmul.f32 %v3608, 0.70710677
        %v3685 = vmul.f32 %v3613, 0.70710677
        %v3686 = vmul.f32 %v3616, 0.70710677
        %v3687 = vmul.f32 %v3621, 0.70710677
        %v3688 = vmul.f32 %v3624, 0.70710677
        %v3689 = vmul.f32 %v3629, 0.70710677
        %v3690 = vmul.f32 %v3632, 0.70710677
        %v3691 = vmul.f32 %v3637, 0.70710677
        %v3692 = vmul.f32 %v3640, 0.70710677
        %v3693 = vmul.f32 %v3645, 0.70710677
        %v3694 = vmul.f32 %v3648, 0.70710677
        %v3695 = vmul.f32 %v3653, 0.70710677
        %v3696 = vmul.f32 %v3656, 0.70710677
        %v3697 = vmul.f32 %v3661, 0.70710677
        %v3698 = vmul.f32 %v3664, 0.70710677
        %v3699 = verf.f32.pop %v3683
        %v3700 = verf.f32.pop %v3684
        %v3701 = verf.f32.pop %v3685
        %v3702 = verf.f32.pop %v3686
        %v3703 = verf.f32.pop %v3687
        %v3704 = verf.f32.pop %v3688
        %v3705 = verf.f32.pop %v3689
        %v3706 = verf.f32.pop %v3690
        %v3707 = verf.f32.pop %v3691
        %v3708 = verf.f32.pop %v3692
        %v3709 = verf.f32.pop %v3693
        %v3710 = verf.f32.pop %v3694
        %v3711 = verf.f32.pop %v3695
        %v3712 = verf.f32.pop %v3696
        %v3713 = verf.f32.pop %v3697
        %v3714 = verf.f32.pop %v3698
        %v3715 = vadd.f32 %v3699, 1.0
        %v3716 = vadd.f32 %v3700, 1.0
        %v3717 = vadd.f32 %v3701, 1.0
        %v3718 = vadd.f32 %v3702, 1.0
        %v3719 = vadd.f32 %v3703, 1.0
        %v3720 = vadd.f32 %v3704, 1.0
        %v3721 = vadd.f32 %v3705, 1.0
        %v3722 = vadd.f32 %v3706, 1.0
        %v3723 = vadd.f32 %v3707, 1.0
        %v3724 = vadd.f32 %v3708, 1.0
        %v3725 = vadd.f32 %v3709, 1.0
        %v3726 = vadd.f32 %v3710, 1.0
        %v3727 = vadd.f32 %v3711, 1.0
        %v3728 = vadd.f32 %v3712, 1.0
        %v3729 = vadd.f32 %v3713, 1.0
        %v3730 = vadd.f32 %v3714, 1.0
        %v3731 = vmul.f32 %v3667, %v3715
        %v3732 = vmul.f32 %v3668, %v3716
        %v3733 = vmul.f32 %v3669, %v3717
        %v3734 = vmul.f32 %v3670, %v3718
        %v3735 = vmul.f32 %v3671, %v3719
        %v3736 = vmul.f32 %v3672, %v3720
        %v3737 = vmul.f32 %v3673, %v3721
        %v3738 = vmul.f32 %v3674, %v3722
        %v3739 = vmul.f32 %v3675, %v3723
        %v3740 = vmul.f32 %v3676, %v3724
        %v3741 = vmul.f32 %v3677, %v3725
        %v3742 = vmul.f32 %v3678, %v3726
        %v3743 = vmul.f32 %v3679, %v3727
        %v3744 = vmul.f32 %v3680, %v3728
        %v3745 = vmul.f32 %v3681, %v3729
        %v3746 = vmul.f32 %v3682, %v3730
        %s3747 = scalar_lea.vmem [#allocation11], 4
        %v3748 = vld [vmem:[%s3747] sm:$0x1]
        %v3750 = vlaneseq
        %v3751 = vshrl.u32 %v3750, 7
        %v3752 = vsub.s32 0, %v3751
        %v3753 = vrot.slane %v3748, %v3752
        %v3755 = vmul.f32 %v3731, %v3753
        %v3756 = vmul.f32 %v3732, %v3753
        %v3757 = vmul.f32 %v3733, %v3753
        %v3758 = vmul.f32 %v3734, %v3753
        %v3759 = vmul.f32 %v3735, %v3753
        %v3760 = vmul.f32 %v3736, %v3753
        %v3761 = vmul.f32 %v3737, %v3753
        %v3762 = vmul.f32 %v3738, %v3753
        %v3763 = vmul.f32 %v3739, %v3753
        %v3764 = vmul.f32 %v3740, %v3753
        %v3765 = vmul.f32 %v3741, %v3753
        %v3766 = vmul.f32 %v3742, %v3753
        %v3767 = vmul.f32 %v3743, %v3753
        %v3768 = vmul.f32 %v3744, %v3753
        %v3769 = vmul.f32 %v3745, %v3753
        %v3770 = vmul.f32 %v3746, %v3753
        %s3771 = scalar_lea.vmem [#allocation13], 4
        %v3772 = vld [vmem:[%s3771] sm:$0x1]
        %v3774 = vlaneseq
        %v3775 = vshrl.u32 %v3774, 7
        %v3776 = vsub.s32 0, %v3775
        %v3777 = vrot.slane %v3772, %v3776
        %v3779 = vadd.f32 %v3755, %v3777
        %v3780 = vadd.f32 %v3756, %v3777
        %v3781 = vadd.f32 %v3757, %v3777
        %v3782 = vadd.f32 %v3758, %v3777
        %v3783 = vadd.f32 %v3759, %v3777
        %v3784 = vadd.f32 %v3760, %v3777
        %v3785 = vadd.f32 %v3761, %v3777
        %v3786 = vadd.f32 %v3762, %v3777
        %v3787 = vadd.f32 %v3763, %v3777
        %v3788 = vadd.f32 %v3764, %v3777
        %v3789 = vadd.f32 %v3765, %v3777
        %v3790 = vadd.f32 %v3766, %v3777
        %v3791 = vadd.f32 %v3767, %v3777
        %v3792 = vadd.f32 %v3768, %v3777
        %v3793 = vadd.f32 %v3769, %v3777
        %v3794 = vadd.f32 %v3770, %v3777
        %v3795 = vadd.f32 %v3779, %v3215
        %v3796 = vadd.f32 %v3780, %v3216
        %v3797 = vadd.f32 %v3781, %v3217
        %v3798 = vadd.f32 %v3782, %v3218
        %v3799 = vadd.f32 %v3783, %v3219
        %v3800 = vadd.f32 %v3784, %v3220
        %v3801 = vadd.f32 %v3785, %v3221
        %v3802 = vadd.f32 %v3786, %v3222
        %v3803 = vadd.f32 %v3787, %v3223
        %v3804 = vadd.f32 %v3788, %v3224
        %v3805 = vadd.f32 %v3789, %v3225
        %v3806 = vadd.f32 %v3790, %v3226
        %v3807 = vadd.f32 %v3791, %v3227
        %v3808 = vadd.f32 %v3792, %v3228
        %v3809 = vadd.f32 %v3793, %v3229
        %v3810 = vadd.f32 %v3794, %v3230
        %v3811 = vpack.c.bf16 %v3796, %v3795
        %v3812 = vpack.c.bf16 %v3798, %v3797
        %v3813 = vpack.c.bf16 %v3800, %v3799
        %v3814 = vpack.c.bf16 %v3802, %v3801
        %v3815 = vpack.c.bf16 %v3804, %v3803
        %v3816 = vpack.c.bf16 %v3806, %v3805
        %v3817 = vpack.c.bf16 %v3808, %v3807
        %v3818 = vpack.c.bf16 %v3810, %v3809
        %v3819 = vld [vmem:[#allocation14] sm:$0xf]
        %v3820 = vld [vmem:[#allocation14 + $0x4] sm:$0xf]
        %v3821 = vld [vmem:[#allocation14 + $0x8] sm:$0xf]
        %v3822 = vld [vmem:[#allocation14 + $0xc] sm:$0xf]
        %v3823 = vld [vmem:[#allocation14 + $0x10] sm:$0xf]
        %v3824 = vld [vmem:[#allocation14 + $0x14] sm:$0xf]
        %v3825 = vld [vmem:[#allocation14 + $0x18] sm:$0xf]
        %v3826 = vld [vmem:[#allocation14 + $0x1c] sm:$0xf]
        %v3827 = vld [vmem:[#allocation14 + $0x20] sm:$0xf]
        %v3828 = vld [vmem:[#allocation14 + $0x24] sm:$0xf]
        %v3829 = vld [vmem:[#allocation14 + $0x28] sm:$0xf]
        %v3830 = vld [vmem:[#allocation14 + $0x2c] sm:$0xf]
        %v3831 = vld [vmem:[#allocation14 + $0x30] sm:$0xf]
        %v3832 = vld [vmem:[#allocation14 + $0x34] sm:$0xf]
        %v3833 = vld [vmem:[#allocation14 + $0x38] sm:$0xf]
        %v3834 = vld [vmem:[#allocation14 + $0x3c] sm:$0xf]
        %v3835 = vld [vmem:[%s10] sm:$0x1]
        %v3837 = vlaneseq
        %v3838 = vshrl.u32 %v3837, 7
        %v3839 = vsub.s32 0, %v3838
        %v3840 = vrot.slane %v3835, %v3839
        %v3858 = vunpack.c.l.b16 %v3819
        %v3859 = vunpack.c.l.b16 %v3820
        %v3860 = vunpack.c.l.b16 %v3821
        %v3861 = vunpack.c.l.b16 %v3822
        %v3862 = vunpack.c.l.b16 %v3823
        %v3863 = vunpack.c.l.b16 %v3824
        %v3864 = vunpack.c.l.b16 %v3825
        %v3865 = vunpack.c.l.b16 %v3826
        %v3866 = vunpack.c.l.b16 %v3827
        %v3867 = vunpack.c.l.b16 %v3828
        %v3868 = vunpack.c.l.b16 %v3829
        %v3869 = vunpack.c.l.b16 %v3830
        %v3870 = vunpack.c.l.b16 %v3831
        %v3871 = vunpack.c.l.b16 %v3832
        %v3872 = vunpack.c.l.b16 %v3833
        %v3873 = vunpack.c.l.b16 %v3834
        %v3874 = vpack.c.b16 %v3859, %v3858
        %v3875 = vpack.c.b16 %v3861, %v3860
        %v3876 = vpack.c.b16 %v3863, %v3862
        %v3877 = vpack.c.b16 %v3865, %v3864
        %v3878 = vpack.c.b16 %v3867, %v3866
        %v3879 = vpack.c.b16 %v3869, %v3868
        %v3880 = vpack.c.b16 %v3871, %v3870
        %v3881 = vpack.c.b16 %v3873, %v3872
        %3890 = vmatprep.subr.bf16.mxu0 0
        %3891 = vmatpush1.bf16.msra.mxu0 %v3881
        %3892 = vmatprep.subr.bf16.mxu0 0
        %3893 = vmatpush1.bf16.msra.mxu0 %v3880
        %3894 = vmatprep.subr.bf16.mxu0 0
        %3895 = vmatpush1.bf16.msra.mxu0 %v3879
        %3896 = vmatprep.subr.bf16.mxu0 0
        %3897 = vmatpush1.bf16.msra.mxu0 %v3878
        %3898 = vmatprep.subr.bf16.mxu0 0
        %3899 = vmatpush1.bf16.msra.mxu0 %v3877
        %3900 = vmatprep.subr.bf16.mxu0 0
        %3901 = vmatpush1.bf16.msra.mxu0 %v3876
        %3902 = vmatprep.subr.bf16.mxu0 0
        %3903 = vmatpush1.bf16.msra.mxu0 %v3875
        %3904 = vmatprep.subr.bf16.mxu0 0
        %3905 = vmatpush1.bf16.msra.mxu0 %v3874
        %3906 = vmatprep.subr.bf16.mxu0 0
        %3907 = vmatpush2.bf16.msra.mxu0 0
        %3908 = vmatprep.subr.bf16.mxu0 0
        %3909 = vmatpush2.bf16.msra.mxu0 0
        %3910 = vmatprep.subr.bf16.mxu0 0
        %3911 = vmatpush2.bf16.msra.mxu0 0
        %3912 = vmatprep.subr.bf16.mxu0 0
        %3913 = vmatpush2.bf16.msra.mxu0 0
        %3914 = vmatprep.subr.bf16.mxu0 0
        %3915 = vmatpush2.bf16.msra.mxu0 0
        %3916 = vmatprep.subr.bf16.mxu0 0
        %3917 = vmatpush2.bf16.msra.mxu0 0
        %3918 = vmatprep.subr.bf16.mxu0 0
        %3919 = vmatpush2.bf16.msra.mxu0 0
        %3920 = vmatprep.subr.bf16.mxu0 0
        %3921 = vmatpush2.bf16.msra.mxu0 0
        %3922 = vmatprep.mubr.bf16.mxu0 0
        %3923 = vmatmul.mubr.bf16.gmra.mxu0 %v3811
        %v3924 = vpop.f32.mrf.mxu0
        %v3925 = vadd.f32 %v3840, %v3924
        %v3926 = vpop.f32.mrf.mxu0
        %v3927 = vpop.f32.mrf.mxu0
        %v3928 = vadd.f32 %v3840, %v3927
        %v3929 = vpop.f32.mrf.mxu0
        %3930 = vmatprep.mubr.bf16.mxu0 0
        %3931 = vmatmul.mubr.bf16.gmra.mxu0 %v3812
        %v3932 = vpop.f32.mrf.mxu0
        %v3933 = vadd.f32 %v3840, %v3932
        %v3934 = vpop.f32.mrf.mxu0
        %v3935 = vpop.f32.mrf.mxu0
        %v3936 = vadd.f32 %v3840, %v3935
        %v3937 = vpop.f32.mrf.mxu0
        %3938 = vmatprep.mubr.bf16.mxu0 0
        %3939 = vmatmul.mubr.bf16.gmra.mxu0 %v3813
        %v3940 = vpop.f32.mrf.mxu0
        %v3941 = vadd.f32 %v3840, %v3940
        %v3942 = vpop.f32.mrf.mxu0
        %v3943 = vpop.f32.mrf.mxu0
        %v3944 = vadd.f32 %v3840, %v3943
        %v3945 = vpop.f32.mrf.mxu0
        %3946 = vmatprep.mubr.bf16.mxu0 0
        %3947 = vmatmul.mubr.bf16.gmra.mxu0 %v3814
        %v3948 = vpop.f32.mrf.mxu0
        %v3949 = vadd.f32 %v3840, %v3948
        %v3950 = vpop.f32.mrf.mxu0
        %v3951 = vpop.f32.mrf.mxu0
        %v3952 = vadd.f32 %v3840, %v3951
        %v3953 = vpop.f32.mrf.mxu0
        %3954 = vmatprep.mubr.bf16.mxu0 0
        %3955 = vmatmul.mubr.bf16.gmra.mxu0 %v3815
        %v3956 = vpop.f32.mrf.mxu0
        %v3957 = vadd.f32 %v3840, %v3956
        %v3958 = vpop.f32.mrf.mxu0
        %v3959 = vpop.f32.mrf.mxu0
        %v3960 = vadd.f32 %v3840, %v3959
        %v3961 = vpop.f32.mrf.mxu0
        %3962 = vmatprep.mubr.bf16.mxu0 0
        %3963 = vmatmul.mubr.bf16.gmra.mxu0 %v3816
        %v3964 = vpop.f32.mrf.mxu0
        %v3965 = vadd.f32 %v3840, %v3964
        %v3966 = vpop.f32.mrf.mxu0
        %v3967 = vpop.f32.mrf.mxu0
        %v3968 = vadd.f32 %v3840, %v3967
        %v3969 = vpop.f32.mrf.mxu0
        %3970 = vmatprep.mubr.bf16.mxu0 0
        %3971 = vmatmul.mubr.bf16.gmra.mxu0 %v3817
        %v3972 = vpop.f32.mrf.mxu0
        %v3973 = vadd.f32 %v3840, %v3972
        %v3974 = vpop.f32.mrf.mxu0
        %v3975 = vpop.f32.mrf.mxu0
        %v3976 = vadd.f32 %v3840, %v3975
        %v3977 = vpop.f32.mrf.mxu0
        %3978 = vmatprep.mubr.bf16.mxu0 0
        %3979 = vmatmul.mubr.bf16.gmra.mxu0 %v3818
        %v3980 = vpop.f32.mrf.mxu0
        %v3981 = vadd.f32 %v3840, %v3980
        %v3982 = vpop.f32.mrf.mxu0
        %v3983 = vpop.f32.mrf.mxu0
        %v3984 = vadd.f32 %v3840, %v3983
        %v3985 = vpop.f32.mrf.mxu0
        %3986 = vdwg.mxu0
        %3987 = vst [vmem:[%s505] sm:$0xff] %v3925
        %3988 = vst [vmem:[%s505 + $0x8] sm:$0xff] %v3928
        %3989 = vst [vmem:[%s505 + $0x10] sm:$0xff] %v3933
        %3990 = vst [vmem:[%s505 + $0x18] sm:$0xff] %v3936
        %3991 = vst [vmem:[%s505 + $0x20] sm:$0xff] %v3941
        %3992 = vst [vmem:[%s505 + $0x28] sm:$0xff] %v3944
        %3993 = vst [vmem:[%s505 + $0x30] sm:$0xff] %v3949
        %3994 = vst [vmem:[%s505 + $0x38] sm:$0xff] %v3952
        %3995 = vst [vmem:[%s505 + $0x40] sm:$0xff] %v3957
        %3996 = vst [vmem:[%s505 + $0x48] sm:$0xff] %v3960
        %3997 = vst [vmem:[%s505 + $0x50] sm:$0xff] %v3965
        %3998 = vst [vmem:[%s505 + $0x58] sm:$0xff] %v3968
        %3999 = vst [vmem:[%s505 + $0x60] sm:$0xff] %v3973
        %4000 = vst [vmem:[%s505 + $0x68] sm:$0xff] %v3976
        %4001 = vst [vmem:[%s505 + $0x70] sm:$0xff] %v3981
        %4002 = vst [vmem:[%s505 + $0x78] sm:$0xff] %v3984
        %s4003 = sand.u32 %s276, 1
        %s4004 = scalar_lea.sflag [#allocation4], %s4003
        %s4005 = sand.u32 %s276, 1
        %s4006 = smul.addr %s4005, 128
        %s4007 = scalar_lea.vmem [#allocation16], %s4006
        // Predicated region
        $region97: #{tpu_custom_call.1} parent=63 // pred_check
          %p4008 = pneg %p286
        $region98: #{tpu_custom_call.1} parent=63 // pred_check_branch
          %4010 = sbr.rel (%p4008) target = $region100
        $region99: #{tpu_custom_call.1} parent=63 // pred_region
          %s4011 = smul.u32 16, %s32
          %s4013 = ssub.s32 2048, 2048
          %4014 = vsyncadd %s4004, %s4013
          %s4015 = smul.addr %s4011, 128
          %s4016 = scalar_lea.hbm %s11, %s4015
          %s4017 = sshll.u32 %s4007, 4
          %s4018 = int_to_ptr.vmem [resolvable:$true] %s4017
          %4023 = dma.vmem_to_hbm [thread:$0]  %s4018, 2048, %s4016, %s4004, 128, 128, 8
        $region100: #{tpu_custom_call.1} parent=63 // pred_fallthru
          _
      $region64: #{tpu_custom_call.1} parent=5 // pred_fallthru
        _
      %p4024 = scmp.le.s32.totalorder 2, %s27
      // Predicated region
      $region101: #{tpu_custom_call.1} parent=5 // pred_check
        %p4025 = pneg %p4024
      $region102: #{tpu_custom_call.1} parent=5 // pred_check_branch
        %4027 = sbr.rel (%p4025) target = $region104
      $region103: #{tpu_custom_call.1} parent=5 // pred_region
        %s4028 = ssub.s32 %s27, 2
        // Predicated region
        $region105: #{tpu_custom_call.1} parent=103 // pred_check
          %p4029 = pneg %p292
        $region106: #{tpu_custom_call.1} parent=103 // pred_check_branch
          %4031 = sbr.rel (%p4029) target = $region108
        $region107: #{tpu_custom_call.1} parent=103 // pred_region
          %s4032 = sand.u32 %s277, 1
          %s4033 = scalar_lea.sflag [#allocation4], %s4032
          %s4034 = sand.u32 %s277, 1
          %s4035 = smul.addr %s4034, 128
          %s4036 = scalar_lea.vmem [#allocation16], %s4035
          %4037 = dma.done %s4033, 2048
        $region108: #{tpu_custom_call.1} parent=103 // pred_fallthru
          _
      $region104: #{tpu_custom_call.1} parent=5 // pred_fallthru
        _
    $region6: #{tpu_custom_call.1} parent=1 // loop_footer
      %s31 = sadd.s32 1, %s27
    $region7: #{tpu_custom_call.1} parent=1 // loop_footer_branch
      %26 = sbr.rel target = $region3
    $region8: #{tpu_custom_call.1} parent=1 // loop_exit
      _
    %4038 = vsyncpa [#allocation3], 1
    %s4039 = scalar_lea.sflag [#allocation3], 1
    %4040 = vsyncpa %s4039, 1
    %4041 = vsyncpa [#allocation6], 1
    %4042 = vsyncpa [#allocation9], 1
    %4043 = vsyncpa [#allocation12], 1
    %4044 = vsyncpa [#allocation15], 1
    %4045 = vsyncpa [#allocation4], 1
    %s4046 = scalar_lea.sflag [#allocation4], 1
    %4047 = vsyncpa %s4046, 1

// kernel: tpu_custom_call.1
$region0: #{tpu_custom_call.1}
  #allocation0 [shape = 'u32[]', space=smem, size = 0x4, offset = 0x4, fixed_abs, tag = 'smem constant byte address 0x4 - core index']
  #allocation1 [shape = 'u32[144,128]{1,0:T(1,128)}', space=vmem, size = 0x12000, scoped, tag = 'internal scratch']
  %s0 = inlined_call_operand.hbm [shape: bf16[256,256], index: 0, kind: input, shape index: {}]
  %s1 = inlined_call_operand.hbm [shape: bf16[256,128], index: 1, kind: input, shape index: {}]
  %s2 = inlined_call_operand.hbm [shape: f32[1,128], index: 2, kind: input, shape index: {}]
  %s3 = inlined_call_operand.hbm [shape: bf16[5,128,128], index: 3, kind: input, shape index: {}]
  %s4 = inlined_call_operand.vmem [shape: f32[5,1,128], index: 4, kind: input, shape index: {}]
  %s5 = inlined_call_operand.hbm [shape: bf16[5,128,128], index: 5, kind: input, shape index: {}]
  %s6 = inlined_call_operand.vmem [shape: f32[5,1,128], index: 6, kind: input, shape index: {}]
  %s7 = inlined_call_operand.hbm [shape: f32[5,1,128], index: 7, kind: input, shape index: {}]
  %s8 = inlined_call_operand.hbm [shape: f32[5,1,128], index: 8, kind: input, shape index: {}]
  %s9 = inlined_call_operand.hbm [shape: bf16[128,128], index: 9, kind: input, shape index: {}]
  %s10 = inlined_call_operand.vmem [shape: f32[1,128], index: 10, kind: input, shape index: {}]
  %s11 = inlined_call_operand.hbm [shape: f32[256,128], index: 11, kind: output, shape index: {}]
  %s12 = sld [smem:[#allocation0]]
  $region109: #{tpu_custom_call.1} parent=0
    _
  %s14 = ssub.s32 1, %s12
  %s15 = scalar_select 0, %s14, %s12
  $region1: #{tpu_custom_call.1} parent=0
    #allocation2 [shape = 'u8[131072]{0}', space=vmem, size = 0x20000, scoped, tag = 'input window, operand 0']
    #allocation3 [shape = 's32[2]{0}', space=sflag, size = 0x8, scoped, tag = 'scoped memory for tpu_custom_call.1']
    #allocation4 [shape = 's32[2]{0}', space=sflag, size = 0x8, scoped, tag = 'scoped memory for tpu_custom_call.1']
    #allocation5 [shape = 'u8[65536]{0}', space=vmem, size = 0x10000, scoped, tag = 'input window, operand 1, single buffered']
    #allocation6 [shape = 's32[1]{0}', space=sflag, size = 0x4, scoped, tag = 'scoped memory for tpu_custom_call.1']
    #allocation7 [shape = 'u8[512]{0}', space=vmem, size = 0x400, scoped, tag = 'input window, operand 2, single buffered']
    #allocation8 [shape = 'u8[163840]{0}', space=vmem, size = 0x28000, scoped, tag = 'input window, operand 3, single buffered']
    #allocation9 [shape = 's32[1]{0}', space=sflag, size = 0x4, scoped, tag = 'scoped memory for tpu_custom_call.1']
    #allocation10 [shape = 'u8[163840]{0}', space=vmem, size = 0x28000, scoped, tag = 'input window, operand 5, single buffered']
    #allocation11 [shape = 'u8[2560]{0}', space=vmem, size = 0xc00, scoped, tag = 'input window, operand 7, single buffered']
    #allocation12 [shape = 's32[1]{0}', space=sflag, size = 0x4, scoped, tag = 'scoped memory for tpu_custom_call.1']
    #allocation13 [shape = 'u8[2560]{0}', space=vmem, size = 0xc00, scoped, tag = 'input window, operand 8, single buffered']
    #allocation14 [shape = 'u8[32768]{0}', space=vmem, size = 0x8000, scoped, tag = 'input window, operand 9, single buffered']
    #allocation15 [shape = 's32[1]{0}', space=sflag, size = 0x4, scoped, tag = 'scoped memory for tpu_custom_call.1']
    #allocation16 [shape = 'u8[131072]{0}', space=vmem, size = 0x20000, scoped, tag = 'output window, operand 0']
    %16 = vsyncpa [#allocation3], 0
    %s17 = scalar_lea.sflag [#allocation3], 1
    %18 = vsyncpa %s17, 0
    %19 = vsyncpa [#allocation6], 0
    %20 = vsyncpa [#allocation9], 0
    %21 = vsyncpa [#allocation12], 0
    %22 = vsyncpa [#allocation15], 0
    %23 = vsyncpa [#allocation4], 0
    %s24 = scalar_lea.sflag [#allocation4], 1
    %25 = vsyncpa %s24, 0
    loop: start=0, step=1, limit=4
    $region2: #{tpu_custom_call.1} parent=1 // loop_pre_header
      _
    $region3: #{tpu_custom_call.1} parent=1 // loop_header
      %s27 = sphi 0, %s31
      %p28 = scmp.ge.s32.totalorder %s27, 4
      %s37 = sphi 0, %s39
      %s40 = sphi 0, %s37
      %s41 = sphi 0, %s40
      %s57 = sphi 0, %s41
      %s61 = sphi 0, %s61
      %s63 = sphi 0, %s61
      %s64 = sphi 0, %s63
      %s78 = sphi 0, %s64
      %s82 = sphi 0, %s82
      %s84 = sphi 0, %s82
      %s85 = sphi 0, %s84
      %s99 = sphi 0, %s85
      %s103 = sphi 0, %s103
      %s105 = sphi 0, %s103
      %s106 = sphi 0, %s105
      %s120 = sphi 0, %s106
      %s124 = sphi 0, %s124
      %s126 = sphi 0, %s124
      %s127 = sphi 0, %s126
      %s141 = sphi 0, %s127
      %s145 = sphi 0, %s145
      %s147 = sphi 0, %s145
      %s148 = sphi 0, %s147
      %s162 = sphi 0, %s148
      %s166 = sphi 0, %s166
      %s168 = sphi 0, %s166
      %s169 = sphi 0, %s168
      %s183 = sphi 0, %s169
      %s187 = sphi 0, %s187
      %s189 = sphi 0, %s187
      %s190 = sphi 0, %s189
      %s204 = sphi 0, %s190
      %s208 = sphi 0, %s208
      %s210 = sphi 0, %s208
      %s211 = sphi 0, %s210
      %s225 = sphi 0, %s211
      %s229 = sphi 0, %s229
      %s231 = sphi 0, %s229
      %s232 = sphi 0, %s231
      %s246 = sphi 0, %s232
      %s250 = sphi 0, %s250
      %s252 = sphi 0, %s250
      %s253 = sphi 0, %s252
      %s267 = sphi 0, %s253
      %s273 = sphi 0, %s275
      %s276 = sphi 0, %s273
      %s277 = sphi 0, %s276
      %s293 = sphi 0, %s277
    $region4: #{tpu_custom_call.1} parent=1 // loop_header_branch
      %30 = sbr.rel (%p28) target = $region8
    $region5: #{tpu_custom_call.1} parent=1 // loop_body
      %s32 = ssub.s32 %s27, 1
      %s33 = ssub.s32 %s27, 2
      %s34 = sadd.s32 %s27, 1
      %s35 = ssub.s32 %s27, %s34
      %p36 = scmp.eq.s32.totalorder %s35, 0
      %s38 = sadd.s32 %s37, 1
      %s39 = scalar_select %p36, %s37, %s38
      %p42 = pneg %p36
      %p43 = scmp.eq.s32.totalorder %s27, 1
      %p44 = por %p42, %p43
      %p45 = scmp.ne.s32.totalorder %s37, %s40
      %p46 = scmp.eq.s32.totalorder %s27, 0
      %p47 = por %p45, %p46
      %p48 = scmp.ne.s32.totalorder %s37, %s40
      %p49 = scmp.eq.s32.totalorder %s32, 1
      %p50 = por %p48, %p49
      %p51 = scmp.ne.s32.totalorder %s40, %s41
      %p52 = scmp.eq.s32.totalorder %s32, 0
      %p53 = por %p51, %p52
      %p54 = scmp.ne.s32.totalorder %s40, %s41
      %p55 = scmp.eq.s32.totalorder %s33, 1
      %p56 = por %p54, %p55
      %p58 = scmp.ne.s32.totalorder %s41, %s57
      %p59 = scmp.eq.s32.totalorder %s33, 0
      %p60 = por %p58, %p59
      %s62 = sadd.s32 %s61, 1
      %p65 = scmp.eq.s32.totalorder %s27, 1
      %p66 = scmp.ne.s32.totalorder %s61, %s63
      %p67 = scmp.eq.s32.totalorder %s27, 0
      %p68 = por %p66, %p67
      %p69 = scmp.ne.s32.totalorder %s61, %s63
      %p70 = scmp.eq.s32.totalorder %s32, 1
      %p71 = por %p69, %p70
      %p72 = scmp.ne.s32.totalorder %s63, %s64
      %p73 = scmp.eq.s32.totalorder %s32, 0
      %p74 = por %p72, %p73
      %p75 = scmp.ne.s32.totalorder %s63, %s64
      %p76 = scmp.eq.s32.totalorder %s33, 1
      %p77 = por %p75, %p76
      %p79 = scmp.ne.s32.totalorder %s64, %s78
      %p80 = scmp.eq.s32.totalorder %s33, 0
      %p81 = por %p79, %p80
      %s83 = sadd.s32 %s82, 1
      %p86 = scmp.eq.s32.totalorder %s27, 1
      %p87 = scmp.ne.s32.totalorder %s82, %s84
      %p88 = scmp.eq.s32.totalorder %s27, 0
      %p89 = por %p87, %p88
      %p90 = scmp.ne.s32.totalorder %s82, %s84
      %p91 = scmp.eq.s32.totalorder %s32, 1
      %p92 = por %p90, %p91
      %p93 = scmp.ne.s32.totalorder %s84, %s85
      %p94 = scmp.eq.s32.totalorder %s32, 0
      %p95 = por %p93, %p94
      %p96 = scmp.ne.s32.totalorder %s84, %s85
      %p97 = scmp.eq.s32.totalorder %s33, 1
      %p98 = por %p96, %p97
      %p100 = scmp.ne.s32.totalorder %s85, %s99
      %p101 = scmp.eq.s32.totalorder %s33, 0
      %p102 = por %p100, %p101
      %s104 = sadd.s32 %s103, 1
      %p107 = scmp.eq.s32.totalorder %s27, 1
      %p108 = scmp.ne.s32.totalorder %s103, %s105
      %p109 = scmp.eq.s32.totalorder %s27, 0
      %p110 = por %p108, %p109
      %p111 = scmp.ne.s32.totalorder %s103, %s105
      %p112 = scmp.eq.s32.totalorder %s32, 1
      %p113 = por %p111, %p112
      %p114 = scmp.ne.s32.totalorder %s105, %s106
      %p115 = scmp.eq.s32.totalorder %s32, 0
      %p116 = por %p114, %p115
      %p117 = scmp.ne.s32.totalorder %s105, %s106
      %p118 = scmp.eq.s32.totalorder %s33, 1
      %p119 = por %p117, %p118
      %p121 = scmp.ne.s32.totalorder %s106, %s120
      %p122 = scmp.eq.s32.totalorder %s33, 0
      %p123 = por %p121, %p122
      %s125 = sadd.s32 %s124, 1
      %p128 = scmp.eq.s32.totalorder %s27, 1
      %p129 = scmp.ne.s32.totalorder %s124, %s126
      %p130 = scmp.eq.s32.totalorder %s27, 0
      %p131 = por %p129, %p130
      %p132 = scmp.ne.s32.totalorder %s124, %s126
      %p133 = scmp.eq.s32.totalorder %s32, 1
      %p134 = por %p132, %p133
      %p135 = scmp.ne.s32.totalorder %s126, %s127
      %p136 = scmp.eq.s32.totalorder %s32, 0
      %p137 = por %p135, %p136
      %p138 = scmp.ne.s32.totalorder %s126, %s127
      %p139 = scmp.eq.s32.totalorder %s33, 1
      %p140 = por %p138, %p139
      %p142 = scmp.ne.s32.totalorder %s127, %s141
      %p143 = scmp.eq.s32.totalorder %s33, 0
      %p144 = por %p142, %p143
      %s146 = sadd.s32 %s145, 1
      %p149 = scmp.eq.s32.totalorder %s27, 1
      %p150 = scmp.ne.s32.totalorder %s145, %s147
      %p151 = scmp.eq.s32.totalorder %s27, 0
      %p152 = por %p150, %p151
      %p153 = scmp.ne.s32.totalorder %s145, %s147
      %p154 = scmp.eq.s32.totalorder %s32, 1
      %p155 = por %p153, %p154
      %p156 = scmp.ne.s32.totalorder %s147, %s148
      %p157 = scmp.eq.s32.totalorder %s32, 0
      %p158 = por %p156, %p157
      %p159 = scmp.ne.s32.totalorder %s147, %s148
      %p160 = scmp.eq.s32.totalorder %s33, 1
      %p161 = por %p159, %p160
      %p163 = scmp.ne.s32.totalorder %s148, %s162
      %p164 = scmp.eq.s32.totalorder %s33, 0
      %p165 = por %p163, %p164
      %s167 = sadd.s32 %s166, 1
      %p170 = scmp.eq.s32.totalorder %s27, 1
      %p171 = scmp.ne.s32.totalorder %s166, %s168
      %p172 = scmp.eq.s32.totalorder %s27, 0
      %p173 = por %p171, %p172
      %p174 = scmp.ne.s32.totalorder %s166, %s168
      %p175 = scmp.eq.s32.totalorder %s32, 1
      %p176 = por %p174, %p175
      %p177 = scmp.ne.s32.totalorder %s168, %s169
      %p178 = scmp.eq.s32.totalorder %s32, 0
      %p179 = por %p177, %p178
      %p180 = scmp.ne.s32.totalorder %s168, %s169
      %p181 = scmp.eq.s32.totalorder %s33, 1
      %p182 = por %p180, %p181
      %p184 = scmp.ne.s32.totalorder %s169, %s183
      %p185 = scmp.eq.s32.totalorder %s33, 0
      %p186 = por %p184, %p185
      %s188 = sadd.s32 %s187, 1
      %p191 = scmp.eq.s32.totalorder %s27, 1
      %p192 = scmp.ne.s32.totalorder %s187, %s189
      %p193 = scmp.eq.s32.totalorder %s27, 0
      %p194 = por %p192, %p193
      %p195 = scmp.ne.s32.totalorder %s187, %s189
      %p196 = scmp.eq.s32.totalorder %s32, 1
      %p197 = por %p195, %p196
      %p198 = scmp.ne.s32.totalorder %s189, %s190
      %p199 = scmp.eq.s32.totalorder %s32, 0
      %p200 = por %p198, %p199
      %p201 = scmp.ne.s32.totalorder %s189, %s190
      %p202 = scmp.eq.s32.totalorder %s33, 1
      %p203 = por %p201, %p202
      %p205 = scmp.ne.s32.totalorder %s190, %s204
      %p206 = scmp.eq.s32.totalorder %s33, 0
      %p207 = por %p205, %p206
      %s209 = sadd.s32 %s208, 1
      %p212 = scmp.eq.s32.totalorder %s27, 1
      %p213 = scmp.ne.s32.totalorder %s208, %s210
      %p214 = scmp.eq.s32.totalorder %s27, 0
      %p215 = por %p213, %p214
      %p216 = scmp.ne.s32.totalorder %s208, %s210
      %p217 = scmp.eq.s32.totalorder %s32, 1
      %p218 = por %p216, %p217
      %p219 = scmp.ne.s32.totalorder %s210, %s211
      %p220 = scmp.eq.s32.totalorder %s32, 0
      %p221 = por %p219, %p220
      %p222 = scmp.ne.s32.totalorder %s210, %s211
      %p223 = scmp.eq.s32.totalorder %s33, 1
      %p224 = por %p222, %p223
      %p226 = scmp.ne.s32.totalorder %s211, %s225
      %p227 = scmp.eq.s32.totalorder %s33, 0
      %p228 = por %p226, %p227
      %s230 = sadd.s32 %s229, 1
      %p233 = scmp.eq.s32.totalorder %s27, 1
      %p234 = scmp.ne.s32.totalorder %s229, %s231
      %p235 = scmp.eq.s32.totalorder %s27, 0
      %p236 = por %p234, %p235
      %p237 = scmp.ne.s32.totalorder %s229, %s231
      %p238 = scmp.eq.s32.totalorder %s32, 1
      %p239 = por %p237, %p238
      %p240 = scmp.ne.s32.totalorder %s231, %s232
      %p241 = scmp.eq.s32.totalorder %s32, 0
      %p242 = por %p240, %p241
      %p243 = scmp.ne.s32.totalorder %s231, %s232
      %p244 = scmp.eq.s32.totalorder %s33, 1
      %p245 = por %p243, %p244
      %p247 = scmp.ne.s32.totalorder %s232, %s246
      %p248 = scmp.eq.s32.totalorder %s33, 0
      %p249 = por %p247, %p248
      %s251 = sadd.s32 %s250, 1
      %p254 = scmp.eq.s32.totalorder %s27, 1
      %p255 = scmp.ne.s32.totalorder %s250, %s252
      %p256 = scmp.eq.s32.totalorder %s27, 0
      %p257 = por %p255, %p256
      %p258 = scmp.ne.s32.totalorder %s250, %s252
      %p259 = scmp.eq.s32.totalorder %s32, 1
      %p260 = por %p258, %p259
      %p261 = scmp.ne.s32.totalorder %s252, %s253
      %p262 = scmp.eq.s32.totalorder %s32, 0
      %p263 = por %p261, %p262
      %p264 = scmp.ne.s32.totalorder %s252, %s253
      %p265 = scmp.eq.s32.totalorder %s33, 1
      %p266 = por %p264, %p265
      %p268 = scmp.ne.s32.totalorder %s253, %s267
      %p269 = scmp.eq.s32.totalorder %s33, 0
      %p270 = por %p268, %p269
      %s271 = ssub.s32 %s27, %s34
      %p272 = scmp.eq.s32.totalorder %s271, 0
      %s274 = sadd.s32 %s273, 1
      %s275 = scalar_select %p272, %s273, %s274
      %p278 = pneg %p272
      %p279 = scmp.eq.s32.totalorder %s27, 1
      %p280 = por %p278, %p279
      %p281 = scmp.ne.s32.totalorder %s273, %s276
      %p282 = scmp.eq.s32.totalorder %s27, 0
      %p283 = por %p281, %p282
      %p284 = scmp.ne.s32.totalorder %s273, %s276
      %p285 = scmp.eq.s32.totalorder %s32, 1
      %p286 = por %p284, %p285
      %p287 = scmp.ne.s32.totalorder %s276, %s277
      %p288 = scmp.eq.s32.totalorder %s32, 0
      %p289 = por %p287, %p288
      %p290 = scmp.ne.s32.totalorder %s276, %s277
      %p291 = scmp.eq.s32.totalorder %s33, 1
      %p292 = por %p290, %p291
      %p294 = scmp.ne.s32.totalorder %s277, %s293
      %p295 = scmp.eq.s32.totalorder %s33, 0
      %p296 = por %p294, %p295
      %p297 = scmp.le.s32.totalorder 1, %s27
      %p298 = scmp.lt.s32.totalorder %s27, 3
      %p299 = pnand %p297, %p298
      %p300 = pneg %p299
      // Predicated region
      $region9: #{tpu_custom_call.1} parent=5 // pred_check
        _
      $region10: #{tpu_custom_call.1} parent=5 // pred_check_branch
        %302 = sbr.rel (%p299) target = $region12
      $region11: #{tpu_custom_call.1} parent=5 // pred_region
        %s303 = ssub.s32 %s27, 1
        // Predicated region
        $region13: #{tpu_custom_call.1} parent=11 // pred_check
          %p304 = pneg %p74
        $region14: #{tpu_custom_call.1} parent=11 // pred_check_branch
          %306 = sbr.rel (%p304) target = $region16
        $region15: #{tpu_custom_call.1} parent=11 // pred_region
          %s308 = ssub.s32 2048, 2048
          %309 = vsyncadd [#allocation6], %s308
          %s310 = sshll.u32 [#allocation5], 4
          %s311 = int_to_ptr.vmem [resolvable:$true] %s310
          %316 = dma.hbm_to_vmem [thread:$0]  %s1, 2048, %s311, [#allocation6], 64, 64, 4
        $region16: #{tpu_custom_call.1} parent=11 // pred_fallthru
          _
        // Predicated region
        $region17: #{tpu_custom_call.1} parent=11 // pred_check
          %p317 = pneg %p95
        $region18: #{tpu_custom_call.1} parent=11 // pred_check_branch
          %319 = sbr.rel (%p317) target = $region20
        $region19: #{tpu_custom_call.1} parent=11 // pred_region
          %s321 = ssub.s32 16, 16
          %322 = vsyncadd [#allocation6], %s321
          %s324 = sshll.u32 [#allocation7], 4
          %s325 = int_to_ptr.vmem [resolvable:$true] %s324
          %327 = dma.hbm_to_vmem [thread:$0]  %s2, 16, %s325, [#allocation6]
        $region20: #{tpu_custom_call.1} parent=11 // pred_fallthru
          _
        // Predicated region
        $region21: #{tpu_custom_call.1} parent=11 // pred_check
          %p328 = pneg %p116
        $region22: #{tpu_custom_call.1} parent=11 // pred_check_branch
          %330 = sbr.rel (%p328) target = $region24
        $region23: #{tpu_custom_call.1} parent=11 // pred_region
          %s332 = ssub.s32 5120, 5120
          %333 = vsyncadd [#allocation9], %s332
          %s334 = sshll.u32 [#allocation8], 4
          %s335 = int_to_ptr.vmem [resolvable:$true] %s334
          %340 = dma.hbm_to_vmem [thread:$0]  %s3, 5120, %s335, [#allocation9], 64, 64, 4
        $region24: #{tpu_custom_call.1} parent=11 // pred_fallthru
          _
        // Predicated region
        $region25: #{tpu_custom_call.1} parent=11 // pred_check
          %p341 = pneg %p137
        $region26: #{tpu_custom_call.1} parent=11 // pred_check_branch
          %343 = sbr.rel (%p341) target = $region28
        $region27: #{tpu_custom_call.1} parent=11 // pred_region
          _
        $region28: #{tpu_custom_call.1} parent=11 // pred_fallthru
          _
        // Predicated region
        $region29: #{tpu_custom_call.1} parent=11 // pred_check
          %p344 = pneg %p158
        $region30: #{tpu_custom_call.1} parent=11 // pred_check_branch
          %346 = sbr.rel (%p344) target = $region32
        $region31: #{tpu_custom_call.1} parent=11 // pred_region
          %s348 = ssub.s32 5120, 5120
          %349 = vsyncadd [#allocation9], %s348
          %s350 = sshll.u32 [#allocation10], 4
          %s351 = int_to_ptr.vmem [resolvable:$true] %s350
          %356 = dma.hbm_to_vmem [thread:$0]  %s5, 5120, %s351, [#allocation9], 64, 64, 4
        $region32: #{tpu_custom_call.1} parent=11 // pred_fallthru
          _
        // Predicated region
        $region33: #{tpu_custom_call.1} parent=11 // pred_check
          %p357 = pneg %p179
        $region34: #{tpu_custom_call.1} parent=11 // pred_check_branch
          %359 = sbr.rel (%p357) target = $region36
        $region35: #{tpu_custom_call.1} parent=11 // pred_region
          _
        $region36: #{tpu_custom_call.1} parent=11 // pred_fallthru
          _
        // Predicated region
        $region37: #{tpu_custom_call.1} parent=11 // pred_check
          %p360 = pneg %p200
        $region38: #{tpu_custom_call.1} parent=11 // pred_check_branch
          %362 = sbr.rel (%p360) target = $region40
        $region39: #{tpu_custom_call.1} parent=11 // pred_region
          %s364 = ssub.s32 80, 80
          %365 = vsyncadd [#allocation12], %s364
          %s366 = sshll.u32 [#allocation11], 4
          %s367 = int_to_ptr.vmem [resolvable:$true] %s366
          %372 = dma.hbm_to_vmem [thread:$0]  %s7, 80, %s367, [#allocation12], 16, 16, 1
        $region40: #{tpu_custom_call.1} parent=11 // pred_fallthru
          _
        // Predicated region
        $region41: #{tpu_custom_call.1} parent=11 // pred_check
          %p373 = pneg %p221
        $region42: #{tpu_custom_call.1} parent=11 // pred_check_branch
          %375 = sbr.rel (%p373) target = $region44
        $region43: #{tpu_custom_call.1} parent=11 // pred_region
          %s377 = ssub.s32 80, 80
          %378 = vsyncadd [#allocation12], %s377
          %s379 = sshll.u32 [#allocation13], 4
          %s380 = int_to_ptr.vmem [resolvable:$true] %s379
          %385 = dma.hbm_to_vmem [thread:$0]  %s8, 80, %s380, [#allocation12], 16, 16, 1
        $region44: #{tpu_custom_call.1} parent=11 // pred_fallthru
          _
        // Predicated region
        $region45: #{tpu_custom_call.1} parent=11 // pred_check
          %p386 = pneg %p242
        $region46: #{tpu_custom_call.1} parent=11 // pred_check_branch
          %388 = sbr.rel (%p386) target = $region48
        $region47: #{tpu_custom_call.1} parent=11 // pred_region
          %s390 = ssub.s32 1024, 1024
          %391 = vsyncadd [#allocation15], %s390
          %s392 = sshll.u32 [#allocation14], 4
          %s393 = int_to_ptr.vmem [resolvable:$true] %s392
          %398 = dma.hbm_to_vmem [thread:$0]  %s9, 1024, %s393, [#allocation15], 64, 64, 4
        $region48: #{tpu_custom_call.1} parent=11 // pred_fallthru
          _
        // Predicated region
        $region49: #{tpu_custom_call.1} parent=11 // pred_check
          %p399 = pneg %p263
        $region50: #{tpu_custom_call.1} parent=11 // pred_check_branch
          %401 = sbr.rel (%p399) target = $region52
        $region51: #{tpu_custom_call.1} parent=11 // pred_region
          _
        $region52: #{tpu_custom_call.1} parent=11 // pred_fallthru
          _
      $region12: #{tpu_custom_call.1} parent=5 // pred_fallthru
        _
      %p402 = scmp.lt.s32.totalorder %s27, 2
      // Predicated region
      $region53: #{tpu_custom_call.1} parent=5 // pred_check
        %p403 = pneg %p402
      $region54: #{tpu_custom_call.1} parent=5 // pred_check_branch
        %405 = sbr.rel (%p403) target = $region56
      $region55: #{tpu_custom_call.1} parent=5 // pred_region
        // Predicated region
        $region57: #{tpu_custom_call.1} parent=55 // pred_check
          %p406 = pneg %p47
        $region58: #{tpu_custom_call.1} parent=55 // pred_check_branch
          %408 = sbr.rel (%p406) target = $region60
        $region59: #{tpu_custom_call.1} parent=55 // pred_region
          %s409 = sand.u32 %s37, 1
          %s410 = scalar_lea.sflag [#allocation3], %s409
          %s411 = sand.u32 %s37, 1
          %s412 = smul.addr %s411, 128
          %s413 = scalar_lea.vmem [#allocation2], %s412
          %s414 = smul.u32 16, %s27
          %s416 = ssub.s32 2048, 2048
          %417 = vsyncadd %s410, %s416
          %s418 = smul.addr %s414, 2
          %s419 = smul.addr %s418, 64
          %s420 = scalar_lea.hbm %s0, %s419
          %s421 = sshll.u32 %s413, 4
          %s422 = int_to_ptr.vmem [resolvable:$true] %s421
          %427 = dma.hbm_to_vmem [thread:$0]  %s420, 2048, %s422, %s410, 128, 128, 8
        $region60: #{tpu_custom_call.1} parent=55 // pred_fallthru
          _
      $region56: #{tpu_custom_call.1} parent=5 // pred_fallthru
        _
      %p428 = scmp.le.s32.totalorder 1, %s27
      %p429 = scmp.lt.s32.totalorder %s27, 3
      %p430 = pnand %p428, %p429
      %p431 = pneg %p430
      // Predicated region
      $region61: #{tpu_custom_call.1} parent=5 // pred_check
        _
      $region62: #{tpu_custom_call.1} parent=5 // pred_check_branch
        %433 = sbr.rel (%p430) target = $region64
      $region63: #{tpu_custom_call.1} parent=5 // pred_region
        %s434 = ssub.s32 %s27, 1
        %s435 = sand.u32 %s40, 1
        %s436 = scalar_lea.sflag [#allocation3], %s435
        %s437 = sand.u32 %s40, 1
        %s438 = smul.addr %s437, 128
        %s439 = scalar_lea.vmem [#allocation2], %s438
        // Predicated region
        $region65: #{tpu_custom_call.1} parent=63 // pred_check
          %p440 = pneg %p53
        $region66: #{tpu_custom_call.1} parent=63 // pred_check_branch
          %442 = sbr.rel (%p440) target = $region68
        $region67: #{tpu_custom_call.1} parent=63 // pred_region
          %443 = dma.done %s436, 2048
        $region68: #{tpu_custom_call.1} parent=63 // pred_fallthru
          _
        // Predicated region
        $region69: #{tpu_custom_call.1} parent=63 // pred_check
          %p444 = pneg %p74
        $region70: #{tpu_custom_call.1} parent=63 // pred_check_branch
          %446 = sbr.rel (%p444) target = $region72
        $region71: #{tpu_custom_call.1} parent=63 // pred_region
          %447 = dma.done [#allocation6], 2048
        $region72: #{tpu_custom_call.1} parent=63 // pred_fallthru
          _
        // Predicated region
        $region73: #{tpu_custom_call.1} parent=63 // pred_check
          %p448 = pneg %p95
        $region74: #{tpu_custom_call.1} parent=63 // pred_check_branch
          %450 = sbr.rel (%p448) target = $region76
        $region75: #{tpu_custom_call.1} parent=63 // pred_region
          %451 = dma.done [#allocation6], 16
        $region76: #{tpu_custom_call.1} parent=63 // pred_fallthru
          _
        // Predicated region
        $region77: #{tpu_custom_call.1} parent=63 // pred_check
          %p452 = pneg %p116
        $region78: #{tpu_custom_call.1} parent=63 // pred_check_branch
          %454 = sbr.rel (%p452) target = $region80
        $region79: #{tpu_custom_call.1} parent=63 // pred_region
          %455 = dma.done [#allocation9], 5120
        $region80: #{tpu_custom_call.1} parent=63 // pred_fallthru
          _
        // Predicated region
        $region81: #{tpu_custom_call.1} parent=63 // pred_check
          %p456 = pneg %p158
        $region82: #{tpu_custom_call.1} parent=63 // pred_check_branch
          %458 = sbr.rel (%p456) target = $region84
        $region83: #{tpu_custom_call.1} parent=63 // pred_region
          %459 = dma.done [#allocation9], 5120
        $region84: #{tpu_custom_call.1} parent=63 // pred_fallthru
          _
        // Predicated region
        $region85: #{tpu_custom_call.1} parent=63 // pred_check
          %p460 = pneg %p200
        $region86: #{tpu_custom_call.1} parent=63 // pred_check_branch
          %462 = sbr.rel (%p460) target = $region88
        $region87: #{tpu_custom_call.1} parent=63 // pred_region
          %463 = dma.done [#allocation12], 80
        $region88: #{tpu_custom_call.1} parent=63 // pred_fallthru
          _
        // Predicated region
        $region89: #{tpu_custom_call.1} parent=63 // pred_check
          %p464 = pneg %p221
        $region90: #{tpu_custom_call.1} parent=63 // pred_check_branch
          %466 = sbr.rel (%p464) target = $region92
        $region91: #{tpu_custom_call.1} parent=63 // pred_region
          %467 = dma.done [#allocation12], 80
        $region92: #{tpu_custom_call.1} parent=63 // pred_fallthru
          _
        // Predicated region
        $region93: #{tpu_custom_call.1} parent=63 // pred_check
          %p468 = pneg %p242
        $region94: #{tpu_custom_call.1} parent=63 // pred_check_branch
          %470 = sbr.rel (%p468) target = $region96
        $region95: #{tpu_custom_call.1} parent=63 // pred_region
          %471 = dma.done [#allocation15], 1024
        $region96: #{tpu_custom_call.1} parent=63 // pred_fallthru
          _
        %s472 = sand.u32 %s40, 1
        %s473 = scalar_lea.sflag [#allocation3], %s472
        %s474 = sand.u32 %s40, 1
        %s475 = smul.addr %s474, 128
        %s476 = scalar_lea.vmem [#allocation2], %s475
        %p477 = pneg %p53
        %p478 = pneg %p50
        %p479 = pneg %p74
        %p480 = pneg %p71
        %p481 = pneg %p95
        %p482 = pneg %p92
        %p483 = pneg %p116
        %p484 = pneg %p113
        %p485 = pneg %p137
        %p486 = pneg %p134
        %p487 = pneg %p158
        %p488 = pneg %p155
        %p489 = pneg %p179
        %p490 = pneg %p176
        %p491 = pneg %p200
        %p492 = pneg %p197
        %p493 = pneg %p221
        %p494 = pneg %p218
        %p495 = pneg %p242
        %p496 = pneg %p239
        %p497 = pneg %p263
        %p498 = pneg %p260
        %p499 = pneg %p289
        %p500 = pneg %p286
        %s501 = sand.u32 %s276, 1
        %s502 = scalar_lea.sflag [#allocation4], %s501
        %s503 = sand.u32 %s276, 1
        %s504 = smul.addr %s503, 128
        %s505 = scalar_lea.vmem [#allocation16], %s504
        %s506 = smul.u32 16, %s32
        %s507 = smul.u32 16, %s32
        %v509 = vld [vmem:[%s439] sm:$0xff]
        %v510 = vld [vmem:[%s439 + $0x8] sm:$0xff]
        %v511 = vld [vmem:[%s439 + $0x10] sm:$0xff]
        %v512 = vld [vmem:[%s439 + $0x18] sm:$0xff]
        %v513 = vld [vmem:[%s439 + $0x20] sm:$0xff]
        %v514 = vld [vmem:[%s439 + $0x28] sm:$0xff]
        %v515 = vld [vmem:[%s439 + $0x30] sm:$0xff]
        %v516 = vld [vmem:[%s439 + $0x38] sm:$0xff]
        %v517 = vld [vmem:[%s439 + $0x40] sm:$0xff]
        %v518 = vld [vmem:[%s439 + $0x48] sm:$0xff]
        %v519 = vld [vmem:[%s439 + $0x50] sm:$0xff]
        %v520 = vld [vmem:[%s439 + $0x58] sm:$0xff]
        %v521 = vld [vmem:[%s439 + $0x60] sm:$0xff]
        %v522 = vld [vmem:[%s439 + $0x68] sm:$0xff]
        %v523 = vld [vmem:[%s439 + $0x70] sm:$0xff]
        %v524 = vld [vmem:[%s439 + $0x78] sm:$0xff]
        %v525 = vld [vmem:[#allocation5] sm:$0xf]
        %v526 = vld [vmem:[#allocation5 + $0x4] sm:$0xf]
        %v527 = vld [vmem:[#allocation5 + $0x8] sm:$0xf]
        %v528 = vld [vmem:[#allocation5 + $0xc] sm:$0xf]
        %v529 = vld [vmem:[#allocation5 + $0x10] sm:$0xf]
        %v530 = vld [vmem:[#allocation5 + $0x14] sm:$0xf]
        %v531 = vld [vmem:[#allocation5 + $0x18] sm:$0xf]
        %v532 = vld [vmem:[#allocation5 + $0x1c] sm:$0xf]
        %v533 = vld [vmem:[#allocation5 + $0x20] sm:$0xf]
        %v534 = vld [vmem:[#allocation5 + $0x24] sm:$0xf]
        %v535 = vld [vmem:[#allocation5 + $0x28] sm:$0xf]
        %v536 = vld [vmem:[#allocation5 + $0x2c] sm:$0xf]
        %v537 = vld [vmem:[#allocation5 + $0x30] sm:$0xf]
        %v538 = vld [vmem:[#allocation5 + $0x34] sm:$0xf]
        %v539 = vld [vmem:[#allocation5 + $0x38] sm:$0xf]
        %v540 = vld [vmem:[#allocation5 + $0x3c] sm:$0xf]
        %v541 = vld [vmem:[#allocation5 + $0x40] sm:$0xf]
        %v542 = vld [vmem:[#allocation5 + $0x44] sm:$0xf]
        %v543 = vld [vmem:[#allocation5 + $0x48] sm:$0xf]
        %v544 = vld [vmem:[#allocation5 + $0x4c] sm:$0xf]
        %v545 = vld [vmem:[#allocation5 + $0x50] sm:$0xf]
        %v546 = vld [vmem:[#allocation5 + $0x54] sm:$0xf]
        %v547 = vld [vmem:[#allocation5 + $0x58] sm:$0xf]
        %v548 = vld [vmem:[#allocation5 + $0x5c] sm:$0xf]
        %v549 = vld [vmem:[#allocation5 + $0x60] sm:$0xf]
        %v550 = vld [vmem:[#allocation5 + $0x64] sm:$0xf]
        %v551 = vld [vmem:[#allocation5 + $0x68] sm:$0xf]
        %v552 = vld [vmem:[#allocation5 + $0x6c] sm:$0xf]
        %v553 = vld [vmem:[#allocation5 + $0x70] sm:$0xf]
        %v554 = vld [vmem:[#allocation5 + $0x74] sm:$0xf]
        %v555 = vld [vmem:[#allocation5 + $0x78] sm:$0xf]
        %v556 = vld [vmem:[#allocation5 + $0x7c] sm:$0xf]
        %v557 = vld [vmem:[#allocation7] sm:$0x1]
        %v559 = vlaneseq
        %v560 = vshrl.u32 %v559, 7
        %v561 = vsub.s32 0, %v560
        %v562 = vrot.slane %v557, %v561
        %v580 = vunpack.c.l.b16 %v509
        %v581 = vunpack.c.h.b16 %v509
        %v582 = vunpack.c.l.b16 %v510
        %v583 = vunpack.c.h.b16 %v510
        %v584 = vunpack.c.l.b16 %v511
        %v585 = vunpack.c.h.b16 %v511
        %v586 = vunpack.c.l.b16 %v512
        %v587 = vunpack.c.h.b16 %v512
        %v588 = vunpack.c.l.b16 %v513
        %v589 = vunpack.c.h.b16 %v513
        %v590 = vunpack.c.l.b16 %v514
        %v591 = vunpack.c.h.b16 %v514
        %v592 = vunpack.c.l.b16 %v515
        %v593 = vunpack.c.h.b16 %v515
        %v594 = vunpack.c.l.b16 %v516
        %v595 = vunpack.c.h.b16 %v516
        %v596 = vunpack.c.l.b16 %v517
        %v597 = vunpack.c.h.b16 %v517
        %v598 = vunpack.c.l.b16 %v518
        %v599 = vunpack.c.h.b16 %v518
        %v600 = vunpack.c.l.b16 %v519
        %v601 = vunpack.c.h.b16 %v519
        %v602 = vunpack.c.l.b16 %v520
        %v603 = vunpack.c.h.b16 %v520
        %v604 = vunpack.c.l.b16 %v521
        %v605 = vunpack.c.h.b16 %v521
        %v606 = vunpack.c.l.b16 %v522
        %v607 = vunpack.c.h.b16 %v522
        %v608 = vunpack.c.l.b16 %v523
        %v609 = vunpack.c.h.b16 %v523
        %v610 = vunpack.c.l.b16 %v524
        %v611 = vunpack.c.h.b16 %v524
        %v612 = vpack.c.b16 %v582, %v580
        %v613 = vpack.c.b16 %v583, %v581
        %v614 = vpack.c.b16 %v586, %v584
        %v615 = vpack.c.b16 %v587, %v585
        %v616 = vpack.c.b16 %v590, %v588
        %v617 = vpack.c.b16 %v591, %v589
        %v618 = vpack.c.b16 %v594, %v592
        %v619 = vpack.c.b16 %v595, %v593
        %v620 = vpack.c.b16 %v598, %v596
        %v621 = vpack.c.b16 %v599, %v597
        %v622 = vpack.c.b16 %v602, %v600
        %v623 = vpack.c.b16 %v603, %v601
        %v624 = vpack.c.b16 %v606, %v604
        %v625 = vpack.c.b16 %v607, %v605
        %v626 = vpack.c.b16 %v610, %v608
        %v627 = vpack.c.b16 %v611, %v609
        %v676 = vunpack.c.l.b16 %v525
        %v677 = vunpack.c.l.b16 %v526
        %v678 = vunpack.c.l.b16 %v527
        %v679 = vunpack.c.l.b16 %v528
        %v680 = vunpack.c.l.b16 %v529
        %v681 = vunpack.c.l.b16 %v530
        %v682 = vunpack.c.l.b16 %v531
        %v683 = vunpack.c.l.b16 %v532
        %v684 = vunpack.c.l.b16 %v533
        %v685 = vunpack.c.l.b16 %v534
        %v686 = vunpack.c.l.b16 %v535
        %v687 = vunpack.c.l.b16 %v536
        %v688 = vunpack.c.l.b16 %v537
        %v689 = vunpack.c.l.b16 %v538
        %v690 = vunpack.c.l.b16 %v539
        %v691 = vunpack.c.l.b16 %v540
        %v692 = vunpack.c.l.b16 %v541
        %v693 = vunpack.c.l.b16 %v542
        %v694 = vunpack.c.l.b16 %v543
        %v695 = vunpack.c.l.b16 %v544
        %v696 = vunpack.c.l.b16 %v545
        %v697 = vunpack.c.l.b16 %v546
        %v698 = vunpack.c.l.b16 %v547
        %v699 = vunpack.c.l.b16 %v548
        %v700 = vunpack.c.l.b16 %v549
        %v701 = vunpack.c.l.b16 %v550
        %v702 = vunpack.c.l.b16 %v551
        %v703 = vunpack.c.l.b16 %v552
        %v704 = vunpack.c.l.b16 %v553
        %v705 = vunpack.c.l.b16 %v554
        %v706 = vunpack.c.l.b16 %v555
        %v707 = vunpack.c.l.b16 %v556
        %v708 = vpack.c.b16 %v677, %v676
        %v709 = vpack.c.b16 %v679, %v678
        %v710 = vpack.c.b16 %v681, %v680
        %v711 = vpack.c.b16 %v683, %v682
        %v712 = vpack.c.b16 %v685, %v684
        %v713 = vpack.c.b16 %v687, %v686
        %v714 = vpack.c.b16 %v689, %v688
        %v715 = vpack.c.b16 %v691, %v690
        %v716 = vpack.c.b16 %v693, %v692
        %v717 = vpack.c.b16 %v695, %v694
        %v718 = vpack.c.b16 %v697, %v696
        %v719 = vpack.c.b16 %v699, %v698
        %v720 = vpack.c.b16 %v701, %v700
        %v721 = vpack.c.b16 %v703, %v702
        %v722 = vpack.c.b16 %v705, %v704
        %v723 = vpack.c.b16 %v707, %v706
        %740 = vmatprep.subr.bf16.mxu0 0
        %741 = vmatpush1.bf16.msra.mxu0 %v715
        %742 = vmatprep.subr.bf16.mxu0 0
        %743 = vmatpush1.bf16.msra.mxu0 %v714
        %744 = vmatprep.subr.bf16.mxu0 0
        %745 = vmatpush1.bf16.msra.mxu0 %v713
        %746 = vmatprep.subr.bf16.mxu0 0
        %747 = vmatpush1.bf16.msra.mxu0 %v712
        %748 = vmatprep.subr.bf16.mxu0 0
        %749 = vmatpush1.bf16.msra.mxu0 %v711
        %750 = vmatprep.subr.bf16.mxu0 0
        %751 = vmatpush1.bf16.msra.mxu0 %v710
        %752 = vmatprep.subr.bf16.mxu0 0
        %753 = vmatpush1.bf16.msra.mxu0 %v709
        %754 = vmatprep.subr.bf16.mxu0 0
        %755 = vmatpush1.bf16.msra.mxu0 %v708
        %756 = vmatprep.subr.bf16.mxu0 0
        %757 = vmatpush2.bf16.msra.mxu0 %v723
        %758 = vmatprep.subr.bf16.mxu0 0
        %759 = vmatpush2.bf16.msra.mxu0 %v722
        %760 = vmatprep.subr.bf16.mxu0 0
        %761 = vmatpush2.bf16.msra.mxu0 %v721
        %762 = vmatprep.subr.bf16.mxu0 0
        %763 = vmatpush2.bf16.msra.mxu0 %v720
        %764 = vmatprep.subr.bf16.mxu0 0
        %765 = vmatpush2.bf16.msra.mxu0 %v719
        %766 = vmatprep.subr.bf16.mxu0 0
        %767 = vmatpush2.bf16.msra.mxu0 %v718
        %768 = vmatprep.subr.bf16.mxu0 0
        %769 = vmatpush2.bf16.msra.mxu0 %v717
        %770 = vmatprep.subr.bf16.mxu0 0
        %771 = vmatpush2.bf16.msra.mxu0 %v716
        %772 = vmatprep.mubr.bf16.mxu0 %v613
        %773 = vmatmul.mubr.bf16.gmra.mxu0 %v612
        %v774 = vpop.f32.mrf.mxu0
        %v775 = vadd.f32 %v562, %v774
        %v776 = vpop.f32.mrf.mxu0
        %v777 = vpop.f32.mrf.mxu0
        %v778 = vadd.f32 %v562, %v777
        %v779 = vpop.f32.mrf.mxu0
        %780 = vmatprep.mubr.bf16.mxu0 %v615
        %781 = vmatmul.mubr.bf16.gmra.mxu0 %v614
        %v782 = vpop.f32.mrf.mxu0
        %v783 = vadd.f32 %v562, %v782
        %v784 = vpop.f32.mrf.mxu0
        %v785 = vpop.f32.mrf.mxu0
        %v786 = vadd.f32 %v562, %v785
        %v787 = vpop.f32.mrf.mxu0
        %788 = vmatprep.mubr.bf16.mxu0 %v617
        %789 = vmatmul.mubr.bf16.gmra.mxu0 %v616
        %v790 = vpop.f32.mrf.mxu0
        %v791 = vadd.f32 %v562, %v790
        %v792 = vpop.f32.mrf.mxu0
        %v793 = vpop.f32.mrf.mxu0
        %v794 = vadd.f32 %v562, %v793
        %v795 = vpop.f32.mrf.mxu0
        %796 = vmatprep.mubr.bf16.mxu0 %v619
        %797 = vmatmul.mubr.bf16.gmra.mxu0 %v618
        %v798 = vpop.f32.mrf.mxu0
        %v799 = vadd.f32 %v562, %v798
        %v800 = vpop.f32.mrf.mxu0
        %v801 = vpop.f32.mrf.mxu0
        %v802 = vadd.f32 %v562, %v801
        %v803 = vpop.f32.mrf.mxu0
        %804 = vmatprep.mubr.bf16.mxu0 %v621
        %805 = vmatmul.mubr.bf16.gmra.mxu0 %v620
        %v806 = vpop.f32.mrf.mxu0
        %v807 = vadd.f32 %v562, %v806
        %v808 = vpop.f32.mrf.mxu0
        %v809 = vpop.f32.mrf.mxu0
        %v810 = vadd.f32 %v562, %v809
        %v811 = vpop.f32.mrf.mxu0
        %812 = vmatprep.mubr.bf16.mxu0 %v623
        %813 = vmatmul.mubr.bf16.gmra.mxu0 %v622
        %v814 = vpop.f32.mrf.mxu0
        %v815 = vadd.f32 %v562, %v814
        %v816 = vpop.f32.mrf.mxu0
        %v817 = vpop.f32.mrf.mxu0
        %v818 = vadd.f32 %v562, %v817
        %v819 = vpop.f32.mrf.mxu0
        %820 = vmatprep.mubr.bf16.mxu0 %v625
        %821 = vmatmul.mubr.bf16.gmra.mxu0 %v624
        %v822 = vpop.f32.mrf.mxu0
        %v823 = vadd.f32 %v562, %v822
        %v824 = vpop.f32.mrf.mxu0
        %v825 = vpop.f32.mrf.mxu0
        %v826 = vadd.f32 %v562, %v825
        %v827 = vpop.f32.mrf.mxu0
        %828 = vmatprep.mubr.bf16.mxu0 %v627
        %829 = vmatmul.mubr.bf16.gmra.mxu0 %v626
        %v830 = vpop.f32.mrf.mxu0
        %v831 = vadd.f32 %v562, %v830
        %v832 = vpop.f32.mrf.mxu0
        %v833 = vpop.f32.mrf.mxu0
        %v834 = vadd.f32 %v562, %v833
        %v835 = vpop.f32.mrf.mxu0
        %836 = vdwg.mxu0
        %v837 = vmul.f32 %v775, 0.5
        %v838 = vmul.f32 %v778, 0.5
        %v839 = vmul.f32 %v783, 0.5
        %v840 = vmul.f32 %v786, 0.5
        %v841 = vmul.f32 %v791, 0.5
        %v842 = vmul.f32 %v794, 0.5
        %v843 = vmul.f32 %v799, 0.5
        %v844 = vmul.f32 %v802, 0.5
        %v845 = vmul.f32 %v807, 0.5
        %v846 = vmul.f32 %v810, 0.5
        %v847 = vmul.f32 %v815, 0.5
        %v848 = vmul.f32 %v818, 0.5
        %v849 = vmul.f32 %v823, 0.5
        %v850 = vmul.f32 %v826, 0.5
        %v851 = vmul.f32 %v831, 0.5
        %v852 = vmul.f32 %v834, 0.5
        %v853 = vmul.f32 %v775, 0.70710677
        %v854 = vmul.f32 %v778, 0.70710677
        %v855 = vmul.f32 %v783, 0.70710677
        %v856 = vmul.f32 %v786, 0.70710677
        %v857 = vmul.f32 %v791, 0.70710677
        %v858 = vmul.f32 %v794, 0.70710677
        %v859 = vmul.f32 %v799, 0.70710677
        %v860 = vmul.f32 %v802, 0.70710677
        %v861 = vmul.f32 %v807, 0.70710677
        %v862 = vmul.f32 %v810, 0.70710677
        %v863 = vmul.f32 %v815, 0.70710677
        %v864 = vmul.f32 %v818, 0.70710677
        %v865 = vmul.f32 %v823, 0.70710677
        %v866 = vmul.f32 %v826, 0.70710677
        %v867 = vmul.f32 %v831, 0.70710677
        %v868 = vmul.f32 %v834, 0.70710677
        %v869 = verf.f32.pop %v853
        %v870 = verf.f32.pop %v854
        %v871 = verf.f32.pop %v855
        %v872 = verf.f32.pop %v856
        %v873 = verf.f32.pop %v857
        %v874 = verf.f32.pop %v858
        %v875 = verf.f32.pop %v859
        %v876 = verf.f32.pop %v860
        %v877 = verf.f32.pop %v861
        %v878 = verf.f32.pop %v862
        %v879 = verf.f32.pop %v863
        %v880 = verf.f32.pop %v864
        %v881 = verf.f32.pop %v865
        %v882 = verf.f32.pop %v866
        %v883 = verf.f32.pop %v867
        %v884 = verf.f32.pop %v868
        %v885 = vadd.f32 %v869, 1.0
        %v886 = vadd.f32 %v870, 1.0
        %v887 = vadd.f32 %v871, 1.0
        %v888 = vadd.f32 %v872, 1.0
        %v889 = vadd.f32 %v873, 1.0
        %v890 = vadd.f32 %v874, 1.0
        %v891 = vadd.f32 %v875, 1.0
        %v892 = vadd.f32 %v876, 1.0
        %v893 = vadd.f32 %v877, 1.0
        %v894 = vadd.f32 %v878, 1.0
        %v895 = vadd.f32 %v879, 1.0
        %v896 = vadd.f32 %v880, 1.0
        %v897 = vadd.f32 %v881, 1.0
        %v898 = vadd.f32 %v882, 1.0
        %v899 = vadd.f32 %v883, 1.0
        %v900 = vadd.f32 %v884, 1.0
        %v901 = vmul.f32 %v837, %v885
        %v902 = vmul.f32 %v838, %v886
        %v903 = vmul.f32 %v839, %v887
        %v904 = vmul.f32 %v840, %v888
        %v905 = vmul.f32 %v841, %v889
        %v906 = vmul.f32 %v842, %v890
        %v907 = vmul.f32 %v843, %v891
        %v908 = vmul.f32 %v844, %v892
        %v909 = vmul.f32 %v845, %v893
        %v910 = vmul.f32 %v846, %v894
        %v911 = vmul.f32 %v847, %v895
        %v912 = vmul.f32 %v848, %v896
        %v913 = vmul.f32 %v849, %v897
        %v914 = vmul.f32 %v850, %v898
        %v915 = vmul.f32 %v851, %v899
        %v916 = vmul.f32 %v852, %v900
        %v917 = vpack.c.bf16 %v902, %v901
        %v918 = vpack.c.bf16 %v904, %v903
        %v919 = vpack.c.bf16 %v906, %v905
        %v920 = vpack.c.bf16 %v908, %v907
        %v921 = vpack.c.bf16 %v910, %v909
        %v922 = vpack.c.bf16 %v912, %v911
        %v923 = vpack.c.bf16 %v914, %v913
        %v924 = vpack.c.bf16 %v916, %v915
        %v925 = vld [vmem:[#allocation8] sm:$0xf]
        %v926 = vld [vmem:[#allocation8 + $0x4] sm:$0xf]
        %v927 = vld [vmem:[#allocation8 + $0x8] sm:$0xf]
        %v928 = vld [vmem:[#allocation8 + $0xc] sm:$0xf]
        %v929 = vld [vmem:[#allocation8 + $0x10] sm:$0xf]
        %v930 = vld [vmem:[#allocation8 + $0x14] sm:$0xf]
        %v931 = vld [vmem:[#allocation8 + $0x18] sm:$0xf]
        %v932 = vld [vmem:[#allocation8 + $0x1c] sm:$0xf]
        %v933 = vld [vmem:[#allocation8 + $0x20] sm:$0xf]
        %v934 = vld [vmem:[#allocation8 + $0x24] sm:$0xf]
        %v935 = vld [vmem:[#allocation8 + $0x28] sm:$0xf]
        %v936 = vld [vmem:[#allocation8 + $0x2c] sm:$0xf]
        %v937 = vld [vmem:[#allocation8 + $0x30] sm:$0xf]
        %v938 = vld [vmem:[#allocation8 + $0x34] sm:$0xf]
        %v939 = vld [vmem:[#allocation8 + $0x38] sm:$0xf]
        %v940 = vld [vmem:[#allocation8 + $0x3c] sm:$0xf]
        %v941 = vld [vmem:[%s4] sm:$0x1]
        %v943 = vlaneseq
        %v944 = vshrl.u32 %v943, 7
        %v945 = vsub.s32 0, %v944
        %v946 = vrot.slane %v941, %v945
        %v964 = vunpack.c.l.b16 %v925
        %v965 = vunpack.c.l.b16 %v926
        %v966 = vunpack.c.l.b16 %v927
        %v967 = vunpack.c.l.b16 %v928
        %v968 = vunpack.c.l.b16 %v929
        %v969 = vunpack.c.l.b16 %v930
        %v970 = vunpack.c.l.b16 %v931
        %v971 = vunpack.c.l.b16 %v932
        %v972 = vunpack.c.l.b16 %v933
        %v973 = vunpack.c.l.b16 %v934
        %v974 = vunpack.c.l.b16 %v935
        %v975 = vunpack.c.l.b16 %v936
        %v976 = vunpack.c.l.b16 %v937
        %v977 = vunpack.c.l.b16 %v938
        %v978 = vunpack.c.l.b16 %v939
        %v979 = vunpack.c.l.b16 %v940
        %v980 = vpack.c.b16 %v965, %v964
        %v981 = vpack.c.b16 %v967, %v966
        %v982 = vpack.c.b16 %v969, %v968
        %v983 = vpack.c.b16 %v971, %v970
        %v984 = vpack.c.b16 %v973, %v972
        %v985 = vpack.c.b16 %v975, %v974
        %v986 = vpack.c.b16 %v977, %v976
        %v987 = vpack.c.b16 %v979, %v978
        %996 = vmatprep.subr.bf16.mxu0 0
        %997 = vmatpush1.bf16.msra.mxu0 %v987
        %998 = vmatprep.subr.bf16.mxu0 0
        %999 = vmatpush1.bf16.msra.mxu0 %v986
        %1000 = vmatprep.subr.bf16.mxu0 0
        %1001 = vmatpush1.bf16.msra.mxu0 %v985
        %1002 = vmatprep.subr.bf16.mxu0 0
        %1003 = vmatpush1.bf16.msra.mxu0 %v984
        %1004 = vmatprep.subr.bf16.mxu0 0
        %1005 = vmatpush1.bf16.msra.mxu0 %v983
        %1006 = vmatprep.subr.bf16.mxu0 0
        %1007 = vmatpush1.bf16.msra.mxu0 %v982
        %1008 = vmatprep.subr.bf16.mxu0 0
        %1009 = vmatpush1.bf16.msra.mxu0 %v981
        %1010 = vmatprep.subr.bf16.mxu0 0
        %1011 = vmatpush1.bf16.msra.mxu0 %v980
        %1012 = vmatprep.subr.bf16.mxu0 0
        %1013 = vmatpush2.bf16.msra.mxu0 0
        %1014 = vmatprep.subr.bf16.mxu0 0
        %1015 = vmatpush2.bf16.msra.mxu0 0
        %1016 = vmatprep.subr.bf16.mxu0 0
        %1017 = vmatpush2.bf16.msra.mxu0 0
        %1018 = vmatprep.subr.bf16.mxu0 0
        %1019 = vmatpush2.bf16.msra.mxu0 0
        %1020 = vmatprep.subr.bf16.mxu0 0
        %1021 = vmatpush2.bf16.msra.mxu0 0
        %1022 = vmatprep.subr.bf16.mxu0 0
        %1023 = vmatpush2.bf16.msra.mxu0 0
        %1024 = vmatprep.subr.bf16.mxu0 0
        %1025 = vmatpush2.bf16.msra.mxu0 0
        %1026 = vmatprep.subr.bf16.mxu0 0
        %1027 = vmatpush2.bf16.msra.mxu0 0
        %1028 = vmatprep.mubr.bf16.mxu0 0
        %1029 = vmatmul.mubr.bf16.gmra.mxu0 %v917
        %v1030 = vpop.f32.mrf.mxu0
        %v1031 = vadd.f32 %v946, %v1030
        %v1032 = vpop.f32.mrf.mxu0
        %v1033 = vpop.f32.mrf.mxu0
        %v1034 = vadd.f32 %v946, %v1033
        %v1035 = vpop.f32.mrf.mxu0
        %1036 = vmatprep.mubr.bf16.mxu0 0
        %1037 = vmatmul.mubr.bf16.gmra.mxu0 %v918
        %v1038 = vpop.f32.mrf.mxu0
        %v1039 = vadd.f32 %v946, %v1038
        %v1040 = vpop.f32.mrf.mxu0
        %v1041 = vpop.f32.mrf.mxu0
        %v1042 = vadd.f32 %v946, %v1041
        %v1043 = vpop.f32.mrf.mxu0
        %1044 = vmatprep.mubr.bf16.mxu0 0
        %1045 = vmatmul.mubr.bf16.gmra.mxu0 %v919
        %v1046 = vpop.f32.mrf.mxu0
        %v1047 = vadd.f32 %v946, %v1046
        %v1048 = vpop.f32.mrf.mxu0
        %v1049 = vpop.f32.mrf.mxu0
        %v1050 = vadd.f32 %v946, %v1049
        %v1051 = vpop.f32.mrf.mxu0
        %1052 = vmatprep.mubr.bf16.mxu0 0
        %1053 = vmatmul.mubr.bf16.gmra.mxu0 %v920
        %v1054 = vpop.f32.mrf.mxu0
        %v1055 = vadd.f32 %v946, %v1054
        %v1056 = vpop.f32.mrf.mxu0
        %v1057 = vpop.f32.mrf.mxu0
        %v1058 = vadd.f32 %v946, %v1057
        %v1059 = vpop.f32.mrf.mxu0
        %1060 = vmatprep.mubr.bf16.mxu0 0
        %1061 = vmatmul.mubr.bf16.gmra.mxu0 %v921
        %v1062 = vpop.f32.mrf.mxu0
        %v1063 = vadd.f32 %v946, %v1062
        %v1064 = vpop.f32.mrf.mxu0
        %v1065 = vpop.f32.mrf.mxu0
        %v1066 = vadd.f32 %v946, %v1065
        %v1067 = vpop.f32.mrf.mxu0
        %1068 = vmatprep.mubr.bf16.mxu0 0
        %1069 = vmatmul.mubr.bf16.gmra.mxu0 %v922
        %v1070 = vpop.f32.mrf.mxu0
        %v1071 = vadd.f32 %v946, %v1070
        %v1072 = vpop.f32.mrf.mxu0
        %v1073 = vpop.f32.mrf.mxu0
        %v1074 = vadd.f32 %v946, %v1073
        %v1075 = vpop.f32.mrf.mxu0
        %1076 = vmatprep.mubr.bf16.mxu0 0
        %1077 = vmatmul.mubr.bf16.gmra.mxu0 %v923
        %v1078 = vpop.f32.mrf.mxu0
        %v1079 = vadd.f32 %v946, %v1078
        %v1080 = vpop.f32.mrf.mxu0
        %v1081 = vpop.f32.mrf.mxu0
        %v1082 = vadd.f32 %v946, %v1081
        %v1083 = vpop.f32.mrf.mxu0
        %1084 = vmatprep.mubr.bf16.mxu0 0
        %1085 = vmatmul.mubr.bf16.gmra.mxu0 %v924
        %v1086 = vpop.f32.mrf.mxu0
        %v1087 = vadd.f32 %v946, %v1086
        %v1088 = vpop.f32.mrf.mxu0
        %v1089 = vpop.f32.mrf.mxu0
        %v1090 = vadd.f32 %v946, %v1089
        %v1091 = vpop.f32.mrf.mxu0
        %1092 = vdwg.mxu0
        %v1093 = vmul.f32 %v1031, 0.5
        %v1094 = vmul.f32 %v1034, 0.5
        %v1095 = vmul.f32 %v1039, 0.5
        %v1096 = vmul.f32 %v1042, 0.5
        %v1097 = vmul.f32 %v1047, 0.5
        %v1098 = vmul.f32 %v1050, 0.5
        %v1099 = vmul.f32 %v1055, 0.5
        %v1100 = vmul.f32 %v1058, 0.5
        %v1101 = vmul.f32 %v1063, 0.5
        %v1102 = vmul.f32 %v1066, 0.5
        %v1103 = vmul.f32 %v1071, 0.5
        %v1104 = vmul.f32 %v1074, 0.5
        %v1105 = vmul.f32 %v1079, 0.5
        %v1106 = vmul.f32 %v1082, 0.5
        %v1107 = vmul.f32 %v1087, 0.5
        %v1108 = vmul.f32 %v1090, 0.5
        %v1109 = vmul.f32 %v1031, 0.70710677
        %v1110 = vmul.f32 %v1034, 0.70710677
        %v1111 = vmul.f32 %v1039, 0.70710677
        %v1112 = vmul.f32 %v1042, 0.70710677
        %v1113 = vmul.f32 %v1047, 0.70710677
        %v1114 = vmul.f32 %v1050, 0.70710677
        %v1115 = vmul.f32 %v1055, 0.70710677
        %v1116 = vmul.f32 %v1058, 0.70710677
        %v1117 = vmul.f32 %v1063, 0.70710677
        %v1118 = vmul.f32 %v1066, 0.70710677
        %v1119 = vmul.f32 %v1071, 0.70710677
        %v1120 = vmul.f32 %v1074, 0.70710677
        %v1121 = vmul.f32 %v1079, 0.70710677
        %v1122 = vmul.f32 %v1082, 0.70710677
        %v1123 = vmul.f32 %v1087, 0.70710677
        %v1124 = vmul.f32 %v1090, 0.70710677
        %v1125 = verf.f32.pop %v1109
        %v1126 = verf.f32.pop %v1110
        %v1127 = verf.f32.pop %v1111
        %v1128 = verf.f32.pop %v1112
        %v1129 = verf.f32.pop %v1113
        %v1130 = verf.f32.pop %v1114
        %v1131 = verf.f32.pop %v1115
        %v1132 = verf.f32.pop %v1116
        %v1133 = verf.f32.pop %v1117
        %v1134 = verf.f32.pop %v1118
        %v1135 = verf.f32.pop %v1119
        %v1136 = verf.f32.pop %v1120
        %v1137 = verf.f32.pop %v1121
        %v1138 = verf.f32.pop %v1122
        %v1139 = verf.f32.pop %v1123
        %v1140 = verf.f32.pop %v1124
        %v1141 = vadd.f32 %v1125, 1.0
        %v1142 = vadd.f32 %v1126, 1.0
        %v1143 = vadd.f32 %v1127, 1.0
        %v1144 = vadd.f32 %v1128, 1.0
        %v1145 = vadd.f32 %v1129, 1.0
        %v1146 = vadd.f32 %v1130, 1.0
        %v1147 = vadd.f32 %v1131, 1.0
        %v1148 = vadd.f32 %v1132, 1.0
        %v1149 = vadd.f32 %v1133, 1.0
        %v1150 = vadd.f32 %v1134, 1.0
        %v1151 = vadd.f32 %v1135, 1.0
        %v1152 = vadd.f32 %v1136, 1.0
        %v1153 = vadd.f32 %v1137, 1.0
        %v1154 = vadd.f32 %v1138, 1.0
        %v1155 = vadd.f32 %v1139, 1.0
        %v1156 = vadd.f32 %v1140, 1.0
        %v1157 = vmul.f32 %v1093, %v1141
        %v1158 = vmul.f32 %v1094, %v1142
        %v1159 = vmul.f32 %v1095, %v1143
        %v1160 = vmul.f32 %v1096, %v1144
        %v1161 = vmul.f32 %v1097, %v1145
        %v1162 = vmul.f32 %v1098, %v1146
        %v1163 = vmul.f32 %v1099, %v1147
        %v1164 = vmul.f32 %v1100, %v1148
        %v1165 = vmul.f32 %v1101, %v1149
        %v1166 = vmul.f32 %v1102, %v1150
        %v1167 = vmul.f32 %v1103, %v1151
        %v1168 = vmul.f32 %v1104, %v1152
        %v1169 = vmul.f32 %v1105, %v1153
        %v1170 = vmul.f32 %v1106, %v1154
        %v1171 = vmul.f32 %v1107, %v1155
        %v1172 = vmul.f32 %v1108, %v1156
        %v1173 = vpack.c.bf16 %v1158, %v1157
        %v1174 = vpack.c.bf16 %v1160, %v1159
        %v1175 = vpack.c.bf16 %v1162, %v1161
        %v1176 = vpack.c.bf16 %v1164, %v1163
        %v1177 = vpack.c.bf16 %v1166, %v1165
        %v1178 = vpack.c.bf16 %v1168, %v1167
        %v1179 = vpack.c.bf16 %v1170, %v1169
        %v1180 = vpack.c.bf16 %v1172, %v1171
        %v1181 = vld [vmem:[#allocation10] sm:$0xf]
        %v1182 = vld [vmem:[#allocation10 + $0x4] sm:$0xf]
        %v1183 = vld [vmem:[#allocation10 + $0x8] sm:$0xf]
        %v1184 = vld [vmem:[#allocation10 + $0xc] sm:$0xf]
        %v1185 = vld [vmem:[#allocation10 + $0x10] sm:$0xf]
        %v1186 = vld [vmem:[#allocation10 + $0x14] sm:$0xf]
        %v1187 = vld [vmem:[#allocation10 + $0x18] sm:$0xf]
        %v1188 = vld [vmem:[#allocation10 + $0x1c] sm:$0xf]
        %v1189 = vld [vmem:[#allocation10 + $0x20] sm:$0xf]
        %v1190 = vld [vmem:[#allocation10 + $0x24] sm:$0xf]
        %v1191 = vld [vmem:[#allocation10 + $0x28] sm:$0xf]
        %v1192 = vld [vmem:[#allocation10 + $0x2c] sm:$0xf]
        %v1193 = vld [vmem:[#allocation10 + $0x30] sm:$0xf]
        %v1194 = vld [vmem:[#allocation10 + $0x34] sm:$0xf]
        %v1195 = vld [vmem:[#allocation10 + $0x38] sm:$0xf]
        %v1196 = vld [vmem:[#allocation10 + $0x3c] sm:$0xf]
        %v1197 = vld [vmem:[%s6] sm:$0x1]
        %v1199 = vlaneseq
        %v1200 = vshrl.u32 %v1199, 7
        %v1201 = vsub.s32 0, %v1200
        %v1202 = vrot.slane %v1197, %v1201
        %v1220 = vunpack.c.l.b16 %v1181
        %v1221 = vunpack.c.l.b16 %v1182
        %v1222 = vunpack.c.l.b16 %v1183
        %v1223 = vunpack.c.l.b16 %v1184
        %v1224 = vunpack.c.l.b16 %v1185
        %v1225 = vunpack.c.l.b16 %v1186
        %v1226 = vunpack.c.l.b16 %v1187
        %v1227 = vunpack.c.l.b16 %v1188
        %v1228 = vunpack.c.l.b16 %v1189
        %v1229 = vunpack.c.l.b16 %v1190
        %v1230 = vunpack.c.l.b16 %v1191
        %v1231 = vunpack.c.l.b16 %v1192
        %v1232 = vunpack.c.l.b16 %v1193
        %v1233 = vunpack.c.l.b16 %v1194
        %v1234 = vunpack.c.l.b16 %v1195
        %v1235 = vunpack.c.l.b16 %v1196
        %v1236 = vpack.c.b16 %v1221, %v1220
        %v1237 = vpack.c.b16 %v1223, %v1222
        %v1238 = vpack.c.b16 %v1225, %v1224
        %v1239 = vpack.c.b16 %v1227, %v1226
        %v1240 = vpack.c.b16 %v1229, %v1228
        %v1241 = vpack.c.b16 %v1231, %v1230
        %v1242 = vpack.c.b16 %v1233, %v1232
        %v1243 = vpack.c.b16 %v1235, %v1234
        %1252 = vmatprep.subr.bf16.mxu0 0
        %1253 = vmatpush1.bf16.msra.mxu0 %v1243
        %1254 = vmatprep.subr.bf16.mxu0 0
        %1255 = vmatpush1.bf16.msra.mxu0 %v1242
        %1256 = vmatprep.subr.bf16.mxu0 0
        %1257 = vmatpush1.bf16.msra.mxu0 %v1241
        %1258 = vmatprep.subr.bf16.mxu0 0
        %1259 = vmatpush1.bf16.msra.mxu0 %v1240
        %1260 = vmatprep.subr.bf16.mxu0 0
        %1261 = vmatpush1.bf16.msra.mxu0 %v1239
        %1262 = vmatprep.subr.bf16.mxu0 0
        %1263 = vmatpush1.bf16.msra.mxu0 %v1238
        %1264 = vmatprep.subr.bf16.mxu0 0
        %1265 = vmatpush1.bf16.msra.mxu0 %v1237
        %1266 = vmatprep.subr.bf16.mxu0 0
        %1267 = vmatpush1.bf16.msra.mxu0 %v1236
        %1268 = vmatprep.subr.bf16.mxu0 0
        %1269 = vmatpush2.bf16.msra.mxu0 0
        %1270 = vmatprep.subr.bf16.mxu0 0
        %1271 = vmatpush2.bf16.msra.mxu0 0
        %1272 = vmatprep.subr.bf16.mxu0 0
        %1273 = vmatpush2.bf16.msra.mxu0 0
        %1274 = vmatprep.subr.bf16.mxu0 0
        %1275 = vmatpush2.bf16.msra.mxu0 0
        %1276 = vmatprep.subr.bf16.mxu0 0
        %1277 = vmatpush2.bf16.msra.mxu0 0
        %1278 = vmatprep.subr.bf16.mxu0 0
        %1279 = vmatpush2.bf16.msra.mxu0 0
        %1280 = vmatprep.subr.bf16.mxu0 0
        %1281 = vmatpush2.bf16.msra.mxu0 0
        %1282 = vmatprep.subr.bf16.mxu0 0
        %1283 = vmatpush2.bf16.msra.mxu0 0
        %1284 = vmatprep.mubr.bf16.mxu0 0
        %1285 = vmatmul.mubr.bf16.gmra.mxu0 %v1173
        %v1286 = vpop.f32.mrf.mxu0
        %v1287 = vadd.f32 %v1202, %v1286
        %v1288 = vpop.f32.mrf.mxu0
        %v1289 = vpop.f32.mrf.mxu0
        %v1290 = vadd.f32 %v1202, %v1289
        %v1291 = vpop.f32.mrf.mxu0
        %1292 = vmatprep.mubr.bf16.mxu0 0
        %1293 = vmatmul.mubr.bf16.gmra.mxu0 %v1174
        %v1294 = vpop.f32.mrf.mxu0
        %v1295 = vadd.f32 %v1202, %v1294
        %v1296 = vpop.f32.mrf.mxu0
        %v1297 = vpop.f32.mrf.mxu0
        %v1298 = vadd.f32 %v1202, %v1297
        %v1299 = vpop.f32.mrf.mxu0
        %1300 = vmatprep.mubr.bf16.mxu0 0
        %1301 = vmatmul.mubr.bf16.gmra.mxu0 %v1175
        %v1302 = vpop.f32.mrf.mxu0
        %v1303 = vadd.f32 %v1202, %v1302
        %v1304 = vpop.f32.mrf.mxu0
        %v1305 = vpop.f32.mrf.mxu0
        %v1306 = vadd.f32 %v1202, %v1305
        %v1307 = vpop.f32.mrf.mxu0
        %1308 = vmatprep.mubr.bf16.mxu0 0
        %1309 = vmatmul.mubr.bf16.gmra.mxu0 %v1176
        %v1310 = vpop.f32.mrf.mxu0
        %v1311 = vadd.f32 %v1202, %v1310
        %v1312 = vpop.f32.mrf.mxu0
        %v1313 = vpop.f32.mrf.mxu0
        %v1314 = vadd.f32 %v1202, %v1313
        %v1315 = vpop.f32.mrf.mxu0
        %1316 = vmatprep.mubr.bf16.mxu0 0
        %1317 = vmatmul.mubr.bf16.gmra.mxu0 %v1177
        %v1318 = vpop.f32.mrf.mxu0
        %v1319 = vadd.f32 %v1202, %v1318
        %v1320 = vpop.f32.mrf.mxu0
        %v1321 = vpop.f32.mrf.mxu0
        %v1322 = vadd.f32 %v1202, %v1321
        %v1323 = vpop.f32.mrf.mxu0
        %1324 = vmatprep.mubr.bf16.mxu0 0
        %1325 = vmatmul.mubr.bf16.gmra.mxu0 %v1178
        %v1326 = vpop.f32.mrf.mxu0
        %v1327 = vadd.f32 %v1202, %v1326
        %v1328 = vpop.f32.mrf.mxu0
        %v1329 = vpop.f32.mrf.mxu0
        %v1330 = vadd.f32 %v1202, %v1329
        %v1331 = vpop.f32.mrf.mxu0
        %1332 = vmatprep.mubr.bf16.mxu0 0
        %1333 = vmatmul.mubr.bf16.gmra.mxu0 %v1179
        %v1334 = vpop.f32.mrf.mxu0
        %v1335 = vadd.f32 %v1202, %v1334
        %v1336 = vpop.f32.mrf.mxu0
        %v1337 = vpop.f32.mrf.mxu0
        %v1338 = vadd.f32 %v1202, %v1337
        %v1339 = vpop.f32.mrf.mxu0
        %1340 = vmatprep.mubr.bf16.mxu0 0
        %1341 = vmatmul.mubr.bf16.gmra.mxu0 %v1180
        %v1342 = vpop.f32.mrf.mxu0
        %v1343 = vadd.f32 %v1202, %v1342
        %v1344 = vpop.f32.mrf.mxu0
        %v1345 = vpop.f32.mrf.mxu0
        %v1346 = vadd.f32 %v1202, %v1345
        %v1347 = vpop.f32.mrf.mxu0
        %1348 = vdwg.mxu0
        %v1349 = vmul.f32 %v1287, 0.5
        %v1350 = vmul.f32 %v1290, 0.5
        %v1351 = vmul.f32 %v1295, 0.5
        %v1352 = vmul.f32 %v1298, 0.5
        %v1353 = vmul.f32 %v1303, 0.5
        %v1354 = vmul.f32 %v1306, 0.5
        %v1355 = vmul.f32 %v1311, 0.5
        %v1356 = vmul.f32 %v1314, 0.5
        %v1357 = vmul.f32 %v1319, 0.5
        %v1358 = vmul.f32 %v1322, 0.5
        %v1359 = vmul.f32 %v1327, 0.5
        %v1360 = vmul.f32 %v1330, 0.5
        %v1361 = vmul.f32 %v1335, 0.5
        %v1362 = vmul.f32 %v1338, 0.5
        %v1363 = vmul.f32 %v1343, 0.5
        %v1364 = vmul.f32 %v1346, 0.5
        %v1365 = vmul.f32 %v1287, 0.70710677
        %v1366 = vmul.f32 %v1290, 0.70710677
        %v1367 = vmul.f32 %v1295, 0.70710677
        %v1368 = vmul.f32 %v1298, 0.70710677
        %v1369 = vmul.f32 %v1303, 0.70710677
        %v1370 = vmul.f32 %v1306, 0.70710677
        %v1371 = vmul.f32 %v1311, 0.70710677
        %v1372 = vmul.f32 %v1314, 0.70710677
        %v1373 = vmul.f32 %v1319, 0.70710677
        %v1374 = vmul.f32 %v1322, 0.70710677
        %v1375 = vmul.f32 %v1327, 0.70710677
        %v1376 = vmul.f32 %v1330, 0.70710677
        %v1377 = vmul.f32 %v1335, 0.70710677
        %v1378 = vmul.f32 %v1338, 0.70710677
        %v1379 = vmul.f32 %v1343, 0.70710677
        %v1380 = vmul.f32 %v1346, 0.70710677
        %v1381 = verf.f32.pop %v1365
        %v1382 = verf.f32.pop %v1366
        %v1383 = verf.f32.pop %v1367
        %v1384 = verf.f32.pop %v1368
        %v1385 = verf.f32.pop %v1369
        %v1386 = verf.f32.pop %v1370
        %v1387 = verf.f32.pop %v1371
        %v1388 = verf.f32.pop %v1372
        %v1389 = verf.f32.pop %v1373
        %v1390 = verf.f32.pop %v1374
        %v1391 = verf.f32.pop %v1375
        %v1392 = verf.f32.pop %v1376
        %v1393 = verf.f32.pop %v1377
        %v1394 = verf.f32.pop %v1378
        %v1395 = verf.f32.pop %v1379
        %v1396 = verf.f32.pop %v1380
        %v1397 = vadd.f32 %v1381, 1.0
        %v1398 = vadd.f32 %v1382, 1.0
        %v1399 = vadd.f32 %v1383, 1.0
        %v1400 = vadd.f32 %v1384, 1.0
        %v1401 = vadd.f32 %v1385, 1.0
        %v1402 = vadd.f32 %v1386, 1.0
        %v1403 = vadd.f32 %v1387, 1.0
        %v1404 = vadd.f32 %v1388, 1.0
        %v1405 = vadd.f32 %v1389, 1.0
        %v1406 = vadd.f32 %v1390, 1.0
        %v1407 = vadd.f32 %v1391, 1.0
        %v1408 = vadd.f32 %v1392, 1.0
        %v1409 = vadd.f32 %v1393, 1.0
        %v1410 = vadd.f32 %v1394, 1.0
        %v1411 = vadd.f32 %v1395, 1.0
        %v1412 = vadd.f32 %v1396, 1.0
        %v1413 = vmul.f32 %v1349, %v1397
        %v1414 = vmul.f32 %v1350, %v1398
        %v1415 = vmul.f32 %v1351, %v1399
        %v1416 = vmul.f32 %v1352, %v1400
        %v1417 = vmul.f32 %v1353, %v1401
        %v1418 = vmul.f32 %v1354, %v1402
        %v1419 = vmul.f32 %v1355, %v1403
        %v1420 = vmul.f32 %v1356, %v1404
        %v1421 = vmul.f32 %v1357, %v1405
        %v1422 = vmul.f32 %v1358, %v1406
        %v1423 = vmul.f32 %v1359, %v1407
        %v1424 = vmul.f32 %v1360, %v1408
        %v1425 = vmul.f32 %v1361, %v1409
        %v1426 = vmul.f32 %v1362, %v1410
        %v1427 = vmul.f32 %v1363, %v1411
        %v1428 = vmul.f32 %v1364, %v1412
        %v1429 = vld [vmem:[#allocation11] sm:$0x1]
        %v1431 = vlaneseq
        %v1432 = vshrl.u32 %v1431, 7
        %v1433 = vsub.s32 0, %v1432
        %v1434 = vrot.slane %v1429, %v1433
        %v1436 = vmul.f32 %v1413, %v1434
        %v1437 = vmul.f32 %v1414, %v1434
        %v1438 = vmul.f32 %v1415, %v1434
        %v1439 = vmul.f32 %v1416, %v1434
        %v1440 = vmul.f32 %v1417, %v1434
        %v1441 = vmul.f32 %v1418, %v1434
        %v1442 = vmul.f32 %v1419, %v1434
        %v1443 = vmul.f32 %v1420, %v1434
        %v1444 = vmul.f32 %v1421, %v1434
        %v1445 = vmul.f32 %v1422, %v1434
        %v1446 = vmul.f32 %v1423, %v1434
        %v1447 = vmul.f32 %v1424, %v1434
        %v1448 = vmul.f32 %v1425, %v1434
        %v1449 = vmul.f32 %v1426, %v1434
        %v1450 = vmul.f32 %v1427, %v1434
        %v1451 = vmul.f32 %v1428, %v1434
        %v1452 = vld [vmem:[#allocation13] sm:$0x1]
        %v1454 = vlaneseq
        %v1455 = vshrl.u32 %v1454, 7
        %v1456 = vsub.s32 0, %v1455
        %v1457 = vrot.slane %v1452, %v1456
        %v1459 = vadd.f32 %v1436, %v1457
        %v1460 = vadd.f32 %v1437, %v1457
        %v1461 = vadd.f32 %v1438, %v1457
        %v1462 = vadd.f32 %v1439, %v1457
        %v1463 = vadd.f32 %v1440, %v1457
        %v1464 = vadd.f32 %v1441, %v1457
        %v1465 = vadd.f32 %v1442, %v1457
        %v1466 = vadd.f32 %v1443, %v1457
        %v1467 = vadd.f32 %v1444, %v1457
        %v1468 = vadd.f32 %v1445, %v1457
        %v1469 = vadd.f32 %v1446, %v1457
        %v1470 = vadd.f32 %v1447, %v1457
        %v1471 = vadd.f32 %v1448, %v1457
        %v1472 = vadd.f32 %v1449, %v1457
        %v1473 = vadd.f32 %v1450, %v1457
        %v1474 = vadd.f32 %v1451, %v1457
        %v1475 = vadd.f32 %v1459, %v901
        %v1476 = vadd.f32 %v1460, %v902
        %v1477 = vadd.f32 %v1461, %v903
        %v1478 = vadd.f32 %v1462, %v904
        %v1479 = vadd.f32 %v1463, %v905
        %v1480 = vadd.f32 %v1464, %v906
        %v1481 = vadd.f32 %v1465, %v907
        %v1482 = vadd.f32 %v1466, %v908
        %v1483 = vadd.f32 %v1467, %v909
        %v1484 = vadd.f32 %v1468, %v910
        %v1485 = vadd.f32 %v1469, %v911
        %v1486 = vadd.f32 %v1470, %v912
        %v1487 = vadd.f32 %v1471, %v913
        %v1488 = vadd.f32 %v1472, %v914
        %v1489 = vadd.f32 %v1473, %v915
        %v1490 = vadd.f32 %v1474, %v916
        %v1491 = vpack.c.bf16 %v1476, %v1475
        %v1492 = vpack.c.bf16 %v1478, %v1477
        %v1493 = vpack.c.bf16 %v1480, %v1479
        %v1494 = vpack.c.bf16 %v1482, %v1481
        %v1495 = vpack.c.bf16 %v1484, %v1483
        %v1496 = vpack.c.bf16 %v1486, %v1485
        %v1497 = vpack.c.bf16 %v1488, %v1487
        %v1498 = vpack.c.bf16 %v1490, %v1489
        %s1499 = scalar_lea.vmem [#allocation8], 64
        %v1500 = vld [vmem:[%s1499] sm:$0xf]
        %v1501 = vld [vmem:[%s1499 + $0x4] sm:$0xf]
        %v1502 = vld [vmem:[%s1499 + $0x8] sm:$0xf]
        %v1503 = vld [vmem:[%s1499 + $0xc] sm:$0xf]
        %v1504 = vld [vmem:[%s1499 + $0x10] sm:$0xf]
        %v1505 = vld [vmem:[%s1499 + $0x14] sm:$0xf]
        %v1506 = vld [vmem:[%s1499 + $0x18] sm:$0xf]
        %v1507 = vld [vmem:[%s1499 + $0x1c] sm:$0xf]
        %v1508 = vld [vmem:[%s1499 + $0x20] sm:$0xf]
        %v1509 = vld [vmem:[%s1499 + $0x24] sm:$0xf]
        %v1510 = vld [vmem:[%s1499 + $0x28] sm:$0xf]
        %v1511 = vld [vmem:[%s1499 + $0x2c] sm:$0xf]
        %v1512 = vld [vmem:[%s1499 + $0x30] sm:$0xf]
        %v1513 = vld [vmem:[%s1499 + $0x34] sm:$0xf]
        %v1514 = vld [vmem:[%s1499 + $0x38] sm:$0xf]
        %v1515 = vld [vmem:[%s1499 + $0x3c] sm:$0xf]
        %s1516 = scalar_lea.vmem %s4, 1
        %v1517 = vld [vmem:[%s1516] sm:$0x1]
        %v1519 = vlaneseq
        %v1520 = vshrl.u32 %v1519, 7
        %v1521 = vsub.s32 0, %v1520
        %v1522 = vrot.slane %v1517, %v1521
        %v1540 = vunpack.c.l.b16 %v1500
        %v1541 = vunpack.c.l.b16 %v1501
        %v1542 = vunpack.c.l.b16 %v1502
        %v1543 = vunpack.c.l.b16 %v1503
        %v1544 = vunpack.c.l.b16 %v1504
        %v1545 = vunpack.c.l.b16 %v1505
        %v1546 = vunpack.c.l.b16 %v1506
        %v1547 = vunpack.c.l.b16 %v1507
        %v1548 = vunpack.c.l.b16 %v1508
        %v1549 = vunpack.c.l.b16 %v1509
        %v1550 = vunpack.c.l.b16 %v1510
        %v1551 = vunpack.c.l.b16 %v1511
        %v1552 = vunpack.c.l.b16 %v1512
        %v1553 = vunpack.c.l.b16 %v1513
        %v1554 = vunpack.c.l.b16 %v1514
        %v1555 = vunpack.c.l.b16 %v1515
        %v1556 = vpack.c.b16 %v1541, %v1540
        %v1557 = vpack.c.b16 %v1543, %v1542
        %v1558 = vpack.c.b16 %v1545, %v1544
        %v1559 = vpack.c.b16 %v1547, %v1546
        %v1560 = vpack.c.b16 %v1549, %v1548
        %v1561 = vpack.c.b16 %v1551, %v1550
        %v1562 = vpack.c.b16 %v1553, %v1552
        %v1563 = vpack.c.b16 %v1555, %v1554
        %1572 = vmatprep.subr.bf16.mxu0 0
        %1573 = vmatpush1.bf16.msra.mxu0 %v1563
        %1574 = vmatprep.subr.bf16.mxu0 0
        %1575 = vmatpush1.bf16.msra.mxu0 %v1562
        %1576 = vmatprep.subr.bf16.mxu0 0
        %1577 = vmatpush1.bf16.msra.mxu0 %v1561
        %1578 = vmatprep.subr.bf16.mxu0 0
        %1579 = vmatpush1.bf16.msra.mxu0 %v1560
        %1580 = vmatprep.subr.bf16.mxu0 0
        %1581 = vmatpush1.bf16.msra.mxu0 %v1559
        %1582 = vmatprep.subr.bf16.mxu0 0
        %1583 = vmatpush1.bf16.msra.mxu0 %v1558
        %1584 = vmatprep.subr.bf16.mxu0 0
        %1585 = vmatpush1.bf16.msra.mxu0 %v1557
        %1586 = vmatprep.subr.bf16.mxu0 0
        %1587 = vmatpush1.bf16.msra.mxu0 %v1556
        %1588 = vmatprep.subr.bf16.mxu0 0
        %1589 = vmatpush2.bf16.msra.mxu0 0
        %1590 = vmatprep.subr.bf16.mxu0 0
        %1591 = vmatpush2.bf16.msra.mxu0 0
        %1592 = vmatprep.subr.bf16.mxu0 0
        %1593 = vmatpush2.bf16.msra.mxu0 0
        %1594 = vmatprep.subr.bf16.mxu0 0
        %1595 = vmatpush2.bf16.msra.mxu0 0
        %1596 = vmatprep.subr.bf16.mxu0 0
        %1597 = vmatpush2.bf16.msra.mxu0 0
        %1598 = vmatprep.subr.bf16.mxu0 0
        %1599 = vmatpush2.bf16.msra.mxu0 0
        %1600 = vmatprep.subr.bf16.mxu0 0
        %1601 = vmatpush2.bf16.msra.mxu0 0
        %1602 = vmatprep.subr.bf16.mxu0 0
        %1603 = vmatpush2.bf16.msra.mxu0 0
        %1604 = vmatprep.mubr.bf16.mxu0 0
        %1605 = vmatmul.mubr.bf16.gmra.mxu0 %v1491
        %v1606 = vpop.f32.mrf.mxu0
        %v1607 = vadd.f32 %v1522, %v1606
        %v1608 = vpop.f32.mrf.mxu0
        %v1609 = vpop.f32.mrf.mxu0
        %v1610 = vadd.f32 %v1522, %v1609
        %v1611 = vpop.f32.mrf.mxu0
        %1612 = vmatprep.mubr.bf16.mxu0 0
        %1613 = vmatmul.mubr.bf16.gmra.mxu0 %v1492
        %v1614 = vpop.f32.mrf.mxu0
        %v1615 = vadd.f32 %v1522, %v1614
        %v1616 = vpop.f32.mrf.mxu0
        %v1617 = vpop.f32.mrf.mxu0
        %v1618 = vadd.f32 %v1522, %v1617
        %v1619 = vpop.f32.mrf.mxu0
        %1620 = vmatprep.mubr.bf16.mxu0 0
        %1621 = vmatmul.mubr.bf16.gmra.mxu0 %v1493
        %v1622 = vpop.f32.mrf.mxu0
        %v1623 = vadd.f32 %v1522, %v1622
        %v1624 = vpop.f32.mrf.mxu0
        %v1625 = vpop.f32.mrf.mxu0
        %v1626 = vadd.f32 %v1522, %v1625
        %v1627 = vpop.f32.mrf.mxu0
        %1628 = vmatprep.mubr.bf16.mxu0 0
        %1629 = vmatmul.mubr.bf16.gmra.mxu0 %v1494
        %v1630 = vpop.f32.mrf.mxu0
        %v1631 = vadd.f32 %v1522, %v1630
        %v1632 = vpop.f32.mrf.mxu0
        %v1633 = vpop.f32.mrf.mxu0
        %v1634 = vadd.f32 %v1522, %v1633
        %v1635 = vpop.f32.mrf.mxu0
        %1636 = vmatprep.mubr.bf16.mxu0 0
        %1637 = vmatmul.mubr.bf16.gmra.mxu0 %v1495
        %v1638 = vpop.f32.mrf.mxu0
        %v1639 = vadd.f32 %v1522, %v1638
        %v1640 = vpop.f32.mrf.mxu0
        %v1641 = vpop.f32.mrf.mxu0
        %v1642 = vadd.f32 %v1522, %v1641
        %v1643 = vpop.f32.mrf.mxu0
        %1644 = vmatprep.mubr.bf16.mxu0 0
        %1645 = vmatmul.mubr.bf16.gmra.mxu0 %v1496
        %v1646 = vpop.f32.mrf.mxu0
        %v1647 = vadd.f32 %v1522, %v1646
        %v1648 = vpop.f32.mrf.mxu0
        %v1649 = vpop.f32.mrf.mxu0
        %v1650 = vadd.f32 %v1522, %v1649
        %v1651 = vpop.f32.mrf.mxu0
        %1652 = vmatprep.mubr.bf16.mxu0 0
        %1653 = vmatmul.mubr.bf16.gmra.mxu0 %v1497
        %v1654 = vpop.f32.mrf.mxu0
        %v1655 = vadd.f32 %v1522, %v1654
        %v1656 = vpop.f32.mrf.mxu0
        %v1657 = vpop.f32.mrf.mxu0
        %v1658 = vadd.f32 %v1522, %v1657
        %v1659 = vpop.f32.mrf.mxu0
        %1660 = vmatprep.mubr.bf16.mxu0 0
        %1661 = vmatmul.mubr.bf16.gmra.mxu0 %v1498
        %v1662 = vpop.f32.mrf.mxu0
        %v1663 = vadd.f32 %v1522, %v1662
        %v1664 = vpop.f32.mrf.mxu0
        %v1665 = vpop.f32.mrf.mxu0
        %v1666 = vadd.f32 %v1522, %v1665
        %v1667 = vpop.f32.mrf.mxu0
        %1668 = vdwg.mxu0
        %v1669 = vmul.f32 %v1607, 0.5
        %v1670 = vmul.f32 %v1610, 0.5
        %v1671 = vmul.f32 %v1615, 0.5
        %v1672 = vmul.f32 %v1618, 0.5
        %v1673 = vmul.f32 %v1623, 0.5
        %v1674 = vmul.f32 %v1626, 0.5
        %v1675 = vmul.f32 %v1631, 0.5
        %v1676 = vmul.f32 %v1634, 0.5
        %v1677 = vmul.f32 %v1639, 0.5
        %v1678 = vmul.f32 %v1642, 0.5
        %v1679 = vmul.f32 %v1647, 0.5
        %v1680 = vmul.f32 %v1650, 0.5
        %v1681 = vmul.f32 %v1655, 0.5
        %v1682 = vmul.f32 %v1658, 0.5
        %v1683 = vmul.f32 %v1663, 0.5
        %v1684 = vmul.f32 %v1666, 0.5
        %v1685 = vmul.f32 %v1607, 0.70710677
        %v1686 = vmul.f32 %v1610, 0.70710677
        %v1687 = vmul.f32 %v1615, 0.70710677
        %v1688 = vmul.f32 %v1618, 0.70710677
        %v1689 = vmul.f32 %v1623, 0.70710677
        %v1690 = vmul.f32 %v1626, 0.70710677
        %v1691 = vmul.f32 %v1631, 0.70710677
        %v1692 = vmul.f32 %v1634, 0.70710677
        %v1693 = vmul.f32 %v1639, 0.70710677
        %v1694 = vmul.f32 %v1642, 0.70710677
        %v1695 = vmul.f32 %v1647, 0.70710677
        %v1696 = vmul.f32 %v1650, 0.70710677
        %v1697 = vmul.f32 %v1655, 0.70710677
        %v1698 = vmul.f32 %v1658, 0.70710677
        %v1699 = vmul.f32 %v1663, 0.70710677
        %v1700 = vmul.f32 %v1666, 0.70710677
        %v1701 = verf.f32.pop %v1685
        %v1702 = verf.f32.pop %v1686
        %v1703 = verf.f32.pop %v1687
        %v1704 = verf.f32.pop %v1688
        %v1705 = verf.f32.pop %v1689
        %v1706 = verf.f32.pop %v1690
        %v1707 = verf.f32.pop %v1691
        %v1708 = verf.f32.pop %v1692
        %v1709 = verf.f32.pop %v1693
        %v1710 = verf.f32.pop %v1694
        %v1711 = verf.f32.pop %v1695
        %v1712 = verf.f32.pop %v1696
        %v1713 = verf.f32.pop %v1697
        %v1714 = verf.f32.pop %v1698
        %v1715 = verf.f32.pop %v1699
        %v1716 = verf.f32.pop %v1700
        %v1717 = vadd.f32 %v1701, 1.0
        %v1718 = vadd.f32 %v1702, 1.0
        %v1719 = vadd.f32 %v1703, 1.0
        %v1720 = vadd.f32 %v1704, 1.0
        %v1721 = vadd.f32 %v1705, 1.0
        %v1722 = vadd.f32 %v1706, 1.0
        %v1723 = vadd.f32 %v1707, 1.0
        %v1724 = vadd.f32 %v1708, 1.0
        %v1725 = vadd.f32 %v1709, 1.0
        %v1726 = vadd.f32 %v1710, 1.0
        %v1727 = vadd.f32 %v1711, 1.0
        %v1728 = vadd.f32 %v1712, 1.0
        %v1729 = vadd.f32 %v1713, 1.0
        %v1730 = vadd.f32 %v1714, 1.0
        %v1731 = vadd.f32 %v1715, 1.0
        %v1732 = vadd.f32 %v1716, 1.0
        %v1733 = vmul.f32 %v1669, %v1717
        %v1734 = vmul.f32 %v1670, %v1718
        %v1735 = vmul.f32 %v1671, %v1719
        %v1736 = vmul.f32 %v1672, %v1720
        %v1737 = vmul.f32 %v1673, %v1721
        %v1738 = vmul.f32 %v1674, %v1722
        %v1739 = vmul.f32 %v1675, %v1723
        %v1740 = vmul.f32 %v1676, %v1724
        %v1741 = vmul.f32 %v1677, %v1725
        %v1742 = vmul.f32 %v1678, %v1726
        %v1743 = vmul.f32 %v1679, %v1727
        %v1744 = vmul.f32 %v1680, %v1728
        %v1745 = vmul.f32 %v1681, %v1729
        %v1746 = vmul.f32 %v1682, %v1730
        %v1747 = vmul.f32 %v1683, %v1731
        %v1748 = vmul.f32 %v1684, %v1732
        %v1749 = vpack.c.bf16 %v1734, %v1733
        %v1750 = vpack.c.bf16 %v1736, %v1735
        %v1751 = vpack.c.bf16 %v1738, %v1737
        %v1752 = vpack.c.bf16 %v1740, %v1739
        %v1753 = vpack.c.bf16 %v1742, %v1741
        %v1754 = vpack.c.bf16 %v1744, %v1743
        %v1755 = vpack.c.bf16 %v1746, %v1745
        %v1756 = vpack.c.bf16 %v1748, %v1747
        %s1757 = scalar_lea.vmem [#allocation10], 64
        %v1758 = vld [vmem:[%s1757] sm:$0xf]
        %v1759 = vld [vmem:[%s1757 + $0x4] sm:$0xf]
        %v1760 = vld [vmem:[%s1757 + $0x8] sm:$0xf]
        %v1761 = vld [vmem:[%s1757 + $0xc] sm:$0xf]
        %v1762 = vld [vmem:[%s1757 + $0x10] sm:$0xf]
        %v1763 = vld [vmem:[%s1757 + $0x14] sm:$0xf]
        %v1764 = vld [vmem:[%s1757 + $0x18] sm:$0xf]
        %v1765 = vld [vmem:[%s1757 + $0x1c] sm:$0xf]
        %v1766 = vld [vmem:[%s1757 + $0x20] sm:$0xf]
        %v1767 = vld [vmem:[%s1757 + $0x24] sm:$0xf]
        %v1768 = vld [vmem:[%s1757 + $0x28] sm:$0xf]
        %v1769 = vld [vmem:[%s1757 + $0x2c] sm:$0xf]
        %v1770 = vld [vmem:[%s1757 + $0x30] sm:$0xf]
        %v1771 = vld [vmem:[%s1757 + $0x34] sm:$0xf]
        %v1772 = vld [vmem:[%s1757 + $0x38] sm:$0xf]
        %v1773 = vld [vmem:[%s1757 + $0x3c] sm:$0xf]
        %s1774 = scalar_lea.vmem %s6, 1
        %v1775 = vld [vmem:[%s1774] sm:$0x1]
        %v1777 = vlaneseq
        %v1778 = vshrl.u32 %v1777, 7
        %v1779 = vsub.s32 0, %v1778
        %v1780 = vrot.slane %v1775, %v1779
        %v1798 = vunpack.c.l.b16 %v1758
        %v1799 = vunpack.c.l.b16 %v1759
        %v1800 = vunpack.c.l.b16 %v1760
        %v1801 = vunpack.c.l.b16 %v1761
        %v1802 = vunpack.c.l.b16 %v1762
        %v1803 = vunpack.c.l.b16 %v1763
        %v1804 = vunpack.c.l.b16 %v1764
        %v1805 = vunpack.c.l.b16 %v1765
        %v1806 = vunpack.c.l.b16 %v1766
        %v1807 = vunpack.c.l.b16 %v1767
        %v1808 = vunpack.c.l.b16 %v1768
        %v1809 = vunpack.c.l.b16 %v1769
        %v1810 = vunpack.c.l.b16 %v1770
        %v1811 = vunpack.c.l.b16 %v1771
        %v1812 = vunpack.c.l.b16 %v1772
        %v1813 = vunpack.c.l.b16 %v1773
        %v1814 = vpack.c.b16 %v1799, %v1798
        %v1815 = vpack.c.b16 %v1801, %v1800
        %v1816 = vpack.c.b16 %v1803, %v1802
        %v1817 = vpack.c.b16 %v1805, %v1804
        %v1818 = vpack.c.b16 %v1807, %v1806
        %v1819 = vpack.c.b16 %v1809, %v1808
        %v1820 = vpack.c.b16 %v1811, %v1810
        %v1821 = vpack.c.b16 %v1813, %v1812
        %1830 = vmatprep.subr.bf16.mxu0 0
        %1831 = vmatpush1.bf16.msra.mxu0 %v1821
        %1832 = vmatprep.subr.bf16.mxu0 0
        %1833 = vmatpush1.bf16.msra.mxu0 %v1820
        %1834 = vmatprep.subr.bf16.mxu0 0
        %1835 = vmatpush1.bf16.msra.mxu0 %v1819
        %1836 = vmatprep.subr.bf16.mxu0 0
        %1837 = vmatpush1.bf16.msra.mxu0 %v1818
        %1838 = vmatprep.subr.bf16.mxu0 0
        %1839 = vmatpush1.bf16.msra.mxu0 %v1817
        %1840 = vmatprep.subr.bf16.mxu0 0
        %1841 = vmatpush1.bf16.msra.mxu0 %v1816
        %1842 = vmatprep.subr.bf16.mxu0 0
        %1843 = vmatpush1.bf16.msra.mxu0 %v1815
        %1844 = vmatprep.subr.bf16.mxu0 0
        %1845 = vmatpush1.bf16.msra.mxu0 %v1814
        %1846 = vmatprep.subr.bf16.mxu0 0
        %1847 = vmatpush2.bf16.msra.mxu0 0
        %1848 = vmatprep.subr.bf16.mxu0 0
        %1849 = vmatpush2.bf16.msra.mxu0 0
        %1850 = vmatprep.subr.bf16.mxu0 0
        %1851 = vmatpush2.bf16.msra.mxu0 0
        %1852 = vmatprep.subr.bf16.mxu0 0
        %1853 = vmatpush2.bf16.msra.mxu0 0
        %1854 = vmatprep.subr.bf16.mxu0 0
        %1855 = vmatpush2.bf16.msra.mxu0 0
        %1856 = vmatprep.subr.bf16.mxu0 0
        %1857 = vmatpush2.bf16.msra.mxu0 0
        %1858 = vmatprep.subr.bf16.mxu0 0
        %1859 = vmatpush2.bf16.msra.mxu0 0
        %1860 = vmatprep.subr.bf16.mxu0 0
        %1861 = vmatpush2.bf16.msra.mxu0 0
        %1862 = vmatprep.mubr.bf16.mxu0 0
        %1863 = vmatmul.mubr.bf16.gmra.mxu0 %v1749
        %v1864 = vpop.f32.mrf.mxu0
        %v1865 = vadd.f32 %v1780, %v1864
        %v1866 = vpop.f32.mrf.mxu0
        %v1867 = vpop.f32.mrf.mxu0
        %v1868 = vadd.f32 %v1780, %v1867
        %v1869 = vpop.f32.mrf.mxu0
        %1870 = vmatprep.mubr.bf16.mxu0 0
        %1871 = vmatmul.mubr.bf16.gmra.mxu0 %v1750
        %v1872 = vpop.f32.mrf.mxu0
        %v1873 = vadd.f32 %v1780, %v1872
        %v1874 = vpop.f32.mrf.mxu0
        %v1875 = vpop.f32.mrf.mxu0
        %v1876 = vadd.f32 %v1780, %v1875
        %v1877 = vpop.f32.mrf.mxu0
        %1878 = vmatprep.mubr.bf16.mxu0 0
        %1879 = vmatmul.mubr.bf16.gmra.mxu0 %v1751
        %v1880 = vpop.f32.mrf.mxu0
        %v1881 = vadd.f32 %v1780, %v1880
        %v1882 = vpop.f32.mrf.mxu0
        %v1883 = vpop.f32.mrf.mxu0
        %v1884 = vadd.f32 %v1780, %v1883
        %v1885 = vpop.f32.mrf.mxu0
        %1886 = vmatprep.mubr.bf16.mxu0 0
        %1887 = vmatmul.mubr.bf16.gmra.mxu0 %v1752
        %v1888 = vpop.f32.mrf.mxu0
        %v1889 = vadd.f32 %v1780, %v1888
        %v1890 = vpop.f32.mrf.mxu0
        %v1891 = vpop.f32.mrf.mxu0
        %v1892 = vadd.f32 %v1780, %v1891
        %v1893 = vpop.f32.mrf.mxu0
        %1894 = vmatprep.mubr.bf16.mxu0 0
        %1895 = vmatmul.mubr.bf16.gmra.mxu0 %v1753
        %v1896 = vpop.f32.mrf.mxu0
        %v1897 = vadd.f32 %v1780, %v1896
        %v1898 = vpop.f32.mrf.mxu0
        %v1899 = vpop.f32.mrf.mxu0
        %v1900 = vadd.f32 %v1780, %v1899
        %v1901 = vpop.f32.mrf.mxu0
        %1902 = vmatprep.mubr.bf16.mxu0 0
        %1903 = vmatmul.mubr.bf16.gmra.mxu0 %v1754
        %v1904 = vpop.f32.mrf.mxu0
        %v1905 = vadd.f32 %v1780, %v1904
        %v1906 = vpop.f32.mrf.mxu0
        %v1907 = vpop.f32.mrf.mxu0
        %v1908 = vadd.f32 %v1780, %v1907
        %v1909 = vpop.f32.mrf.mxu0
        %1910 = vmatprep.mubr.bf16.mxu0 0
        %1911 = vmatmul.mubr.bf16.gmra.mxu0 %v1755
        %v1912 = vpop.f32.mrf.mxu0
        %v1913 = vadd.f32 %v1780, %v1912
        %v1914 = vpop.f32.mrf.mxu0
        %v1915 = vpop.f32.mrf.mxu0
        %v1916 = vadd.f32 %v1780, %v1915
        %v1917 = vpop.f32.mrf.mxu0
        %1918 = vmatprep.mubr.bf16.mxu0 0
        %1919 = vmatmul.mubr.bf16.gmra.mxu0 %v1756
        %v1920 = vpop.f32.mrf.mxu0
        %v1921 = vadd.f32 %v1780, %v1920
        %v1922 = vpop.f32.mrf.mxu0
        %v1923 = vpop.f32.mrf.mxu0
        %v1924 = vadd.f32 %v1780, %v1923
        %v1925 = vpop.f32.mrf.mxu0
        %1926 = vdwg.mxu0
        %v1927 = vmul.f32 %v1865, 0.5
        %v1928 = vmul.f32 %v1868, 0.5
        %v1929 = vmul.f32 %v1873, 0.5
        %v1930 = vmul.f32 %v1876, 0.5
        %v1931 = vmul.f32 %v1881, 0.5
        %v1932 = vmul.f32 %v1884, 0.5
        %v1933 = vmul.f32 %v1889, 0.5
        %v1934 = vmul.f32 %v1892, 0.5
        %v1935 = vmul.f32 %v1897, 0.5
        %v1936 = vmul.f32 %v1900, 0.5
        %v1937 = vmul.f32 %v1905, 0.5
        %v1938 = vmul.f32 %v1908, 0.5
        %v1939 = vmul.f32 %v1913, 0.5
        %v1940 = vmul.f32 %v1916, 0.5
        %v1941 = vmul.f32 %v1921, 0.5
        %v1942 = vmul.f32 %v1924, 0.5
        %v1943 = vmul.f32 %v1865, 0.70710677
        %v1944 = vmul.f32 %v1868, 0.70710677
        %v1945 = vmul.f32 %v1873, 0.70710677
        %v1946 = vmul.f32 %v1876, 0.70710677
        %v1947 = vmul.f32 %v1881, 0.70710677
        %v1948 = vmul.f32 %v1884, 0.70710677
        %v1949 = vmul.f32 %v1889, 0.70710677
        %v1950 = vmul.f32 %v1892, 0.70710677
        %v1951 = vmul.f32 %v1897, 0.70710677
        %v1952 = vmul.f32 %v1900, 0.70710677
        %v1953 = vmul.f32 %v1905, 0.70710677
        %v1954 = vmul.f32 %v1908, 0.70710677
        %v1955 = vmul.f32 %v1913, 0.70710677
        %v1956 = vmul.f32 %v1916, 0.70710677
        %v1957 = vmul.f32 %v1921, 0.70710677
        %v1958 = vmul.f32 %v1924, 0.70710677
        %v1959 = verf.f32.pop %v1943
        %v1960 = verf.f32.pop %v1944
        %v1961 = verf.f32.pop %v1945
        %v1962 = verf.f32.pop %v1946
        %v1963 = verf.f32.pop %v1947
        %v1964 = verf.f32.pop %v1948
        %v1965 = verf.f32.pop %v1949
        %v1966 = verf.f32.pop %v1950
        %v1967 = verf.f32.pop %v1951
        %v1968 = verf.f32.pop %v1952
        %v1969 = verf.f32.pop %v1953
        %v1970 = verf.f32.pop %v1954
        %v1971 = verf.f32.pop %v1955
        %v1972 = verf.f32.pop %v1956
        %v1973 = verf.f32.pop %v1957
        %v1974 = verf.f32.pop %v1958
        %v1975 = vadd.f32 %v1959, 1.0
        %v1976 = vadd.f32 %v1960, 1.0
        %v1977 = vadd.f32 %v1961, 1.0
        %v1978 = vadd.f32 %v1962, 1.0
        %v1979 = vadd.f32 %v1963, 1.0
        %v1980 = vadd.f32 %v1964, 1.0
        %v1981 = vadd.f32 %v1965, 1.0
        %v1982 = vadd.f32 %v1966, 1.0
        %v1983 = vadd.f32 %v1967, 1.0
        %v1984 = vadd.f32 %v1968, 1.0
        %v1985 = vadd.f32 %v1969, 1.0
        %v1986 = vadd.f32 %v1970, 1.0
        %v1987 = vadd.f32 %v1971, 1.0
        %v1988 = vadd.f32 %v1972, 1.0
        %v1989 = vadd.f32 %v1973, 1.0
        %v1990 = vadd.f32 %v1974, 1.0
        %v1991 = vmul.f32 %v1927, %v1975
        %v1992 = vmul.f32 %v1928, %v1976
        %v1993 = vmul.f32 %v1929, %v1977
        %v1994 = vmul.f32 %v1930, %v1978
        %v1995 = vmul.f32 %v1931, %v1979
        %v1996 = vmul.f32 %v1932, %v1980
        %v1997 = vmul.f32 %v1933, %v1981
        %v1998 = vmul.f32 %v1934, %v1982
        %v1999 = vmul.f32 %v1935, %v1983
        %v2000 = vmul.f32 %v1936, %v1984
        %v2001 = vmul.f32 %v1937, %v1985
        %v2002 = vmul.f32 %v1938, %v1986
        %v2003 = vmul.f32 %v1939, %v1987
        %v2004 = vmul.f32 %v1940, %v1988
        %v2005 = vmul.f32 %v1941, %v1989
        %v2006 = vmul.f32 %v1942, %v1990
        %s2007 = scalar_lea.vmem [#allocation11], 1
        %v2008 = vld [vmem:[%s2007] sm:$0x1]
        %v2010 = vlaneseq
        %v2011 = vshrl.u32 %v2010, 7
        %v2012 = vsub.s32 0, %v2011
        %v2013 = vrot.slane %v2008, %v2012
        %v2015 = vmul.f32 %v1991, %v2013
        %v2016 = vmul.f32 %v1992, %v2013
        %v2017 = vmul.f32 %v1993, %v2013
        %v2018 = vmul.f32 %v1994, %v2013
        %v2019 = vmul.f32 %v1995, %v2013
        %v2020 = vmul.f32 %v1996, %v2013
        %v2021 = vmul.f32 %v1997, %v2013
        %v2022 = vmul.f32 %v1998, %v2013
        %v2023 = vmul.f32 %v1999, %v2013
        %v2024 = vmul.f32 %v2000, %v2013
        %v2025 = vmul.f32 %v2001, %v2013
        %v2026 = vmul.f32 %v2002, %v2013
        %v2027 = vmul.f32 %v2003, %v2013
        %v2028 = vmul.f32 %v2004, %v2013
        %v2029 = vmul.f32 %v2005, %v2013
        %v2030 = vmul.f32 %v2006, %v2013
        %s2031 = scalar_lea.vmem [#allocation13], 1
        %v2032 = vld [vmem:[%s2031] sm:$0x1]
        %v2034 = vlaneseq
        %v2035 = vshrl.u32 %v2034, 7
        %v2036 = vsub.s32 0, %v2035
        %v2037 = vrot.slane %v2032, %v2036
        %v2039 = vadd.f32 %v2015, %v2037
        %v2040 = vadd.f32 %v2016, %v2037
        %v2041 = vadd.f32 %v2017, %v2037
        %v2042 = vadd.f32 %v2018, %v2037
        %v2043 = vadd.f32 %v2019, %v2037
        %v2044 = vadd.f32 %v2020, %v2037
        %v2045 = vadd.f32 %v2021, %v2037
        %v2046 = vadd.f32 %v2022, %v2037
        %v2047 = vadd.f32 %v2023, %v2037
        %v2048 = vadd.f32 %v2024, %v2037
        %v2049 = vadd.f32 %v2025, %v2037
        %v2050 = vadd.f32 %v2026, %v2037
        %v2051 = vadd.f32 %v2027, %v2037
        %v2052 = vadd.f32 %v2028, %v2037
        %v2053 = vadd.f32 %v2029, %v2037
        %v2054 = vadd.f32 %v2030, %v2037
        %v2055 = vadd.f32 %v2039, %v1475
        %v2056 = vadd.f32 %v2040, %v1476
        %v2057 = vadd.f32 %v2041, %v1477
        %v2058 = vadd.f32 %v2042, %v1478
        %v2059 = vadd.f32 %v2043, %v1479
        %v2060 = vadd.f32 %v2044, %v1480
        %v2061 = vadd.f32 %v2045, %v1481
        %v2062 = vadd.f32 %v2046, %v1482
        %v2063 = vadd.f32 %v2047, %v1483
        %v2064 = vadd.f32 %v2048, %v1484
        %v2065 = vadd.f32 %v2049, %v1485
        %v2066 = vadd.f32 %v2050, %v1486
        %v2067 = vadd.f32 %v2051, %v1487
        %v2068 = vadd.f32 %v2052, %v1488
        %v2069 = vadd.f32 %v2053, %v1489
        %v2070 = vadd.f32 %v2054, %v1490
        %v2071 = vpack.c.bf16 %v2056, %v2055
        %v2072 = vpack.c.bf16 %v2058, %v2057
        %v2073 = vpack.c.bf16 %v2060, %v2059
        %v2074 = vpack.c.bf16 %v2062, %v2061
        %v2075 = vpack.c.bf16 %v2064, %v2063
        %v2076 = vpack.c.bf16 %v2066, %v2065
        %v2077 = vpack.c.bf16 %v2068, %v2067
        %v2078 = vpack.c.bf16 %v2070, %v2069
        %s2079 = scalar_lea.vmem [#allocation8], 128
        %v2080 = vld [vmem:[%s2079] sm:$0xf]
        %v2081 = vld [vmem:[%s2079 + $0x4] sm:$0xf]
        %v2082 = vld [vmem:[%s2079 + $0x8] sm:$0xf]
        %v2083 = vld [vmem:[%s2079 + $0xc] sm:$0xf]
        %v2084 = vld [vmem:[%s2079 + $0x10] sm:$0xf]
        %v2085 = vld [vmem:[%s2079 + $0x14] sm:$0xf]
        %v2086 = vld [vmem:[%s2079 + $0x18] sm:$0xf]
        %v2087 = vld [vmem:[%s2079 + $0x1c] sm:$0xf]
        %v2088 = vld [vmem:[%s2079 + $0x20] sm:$0xf]
        %v2089 = vld [vmem:[%s2079 + $0x24] sm:$0xf]
        %v2090 = vld [vmem:[%s2079 + $0x28] sm:$0xf]
        %v2091 = vld [vmem:[%s2079 + $0x2c] sm:$0xf]
        %v2092 = vld [vmem:[%s2079 + $0x30] sm:$0xf]
        %v2093 = vld [vmem:[%s2079 + $0x34] sm:$0xf]
        %v2094 = vld [vmem:[%s2079 + $0x38] sm:$0xf]
        %v2095 = vld [vmem:[%s2079 + $0x3c] sm:$0xf]
        %s2096 = scalar_lea.vmem %s4, 2
        %v2097 = vld [vmem:[%s2096] sm:$0x1]
        %v2099 = vlaneseq
        %v2100 = vshrl.u32 %v2099, 7
        %v2101 = vsub.s32 0, %v2100
        %v2102 = vrot.slane %v2097, %v2101
        %v2120 = vunpack.c.l.b16 %v2080
        %v2121 = vunpack.c.l.b16 %v2081
        %v2122 = vunpack.c.l.b16 %v2082
        %v2123 = vunpack.c.l.b16 %v2083
        %v2124 = vunpack.c.l.b16 %v2084
        %v2125 = vunpack.c.l.b16 %v2085
        %v2126 = vunpack.c.l.b16 %v2086
        %v2127 = vunpack.c.l.b16 %v2087
        %v2128 = vunpack.c.l.b16 %v2088
        %v2129 = vunpack.c.l.b16 %v2089
        %v2130 = vunpack.c.l.b16 %v2090
        %v2131 = vunpack.c.l.b16 %v2091
        %v2132 = vunpack.c.l.b16 %v2092
        %v2133 = vunpack.c.l.b16 %v2093
        %v2134 = vunpack.c.l.b16 %v2094
        %v2135 = vunpack.c.l.b16 %v2095
        %v2136 = vpack.c.b16 %v2121, %v2120
        %v2137 = vpack.c.b16 %v2123, %v2122
        %v2138 = vpack.c.b16 %v2125, %v2124
        %v2139 = vpack.c.b16 %v2127, %v2126
        %v2140 = vpack.c.b16 %v2129, %v2128
        %v2141 = vpack.c.b16 %v2131, %v2130
        %v2142 = vpack.c.b16 %v2133, %v2132
        %v2143 = vpack.c.b16 %v2135, %v2134
        %2152 = vmatprep.subr.bf16.mxu0 0
        %2153 = vmatpush1.bf16.msra.mxu0 %v2143
        %2154 = vmatprep.subr.bf16.mxu0 0
        %2155 = vmatpush1.bf16.msra.mxu0 %v2142
        %2156 = vmatprep.subr.bf16.mxu0 0
        %2157 = vmatpush1.bf16.msra.mxu0 %v2141
        %2158 = vmatprep.subr.bf16.mxu0 0
        %2159 = vmatpush1.bf16.msra.mxu0 %v2140
        %2160 = vmatprep.subr.bf16.mxu0 0
        %2161 = vmatpush1.bf16.msra.mxu0 %v2139
        %2162 = vmatprep.subr.bf16.mxu0 0
        %2163 = vmatpush1.bf16.msra.mxu0 %v2138
        %2164 = vmatprep.subr.bf16.mxu0 0
        %2165 = vmatpush1.bf16.msra.mxu0 %v2137
        %2166 = vmatprep.subr.bf16.mxu0 0
        %2167 = vmatpush1.bf16.msra.mxu0 %v2136
        %2168 = vmatprep.subr.bf16.mxu0 0
        %2169 = vmatpush2.bf16.msra.mxu0 0
        %2170 = vmatprep.subr.bf16.mxu0 0
        %2171 = vmatpush2.bf16.msra.mxu0 0
        %2172 = vmatprep.subr.bf16.mxu0 0
        %2173 = vmatpush2.bf16.msra.mxu0 0
        %2174 = vmatprep.subr.bf16.mxu0 0
        %2175 = vmatpush2.bf16.msra.mxu0 0
        %2176 = vmatprep.subr.bf16.mxu0 0
        %2177 = vmatpush2.bf16.msra.mxu0 0
        %2178 = vmatprep.subr.bf16.mxu0 0
        %2179 = vmatpush2.bf16.msra.mxu0 0
        %2180 = vmatprep.subr.bf16.mxu0 0
        %2181 = vmatpush2.bf16.msra.mxu0 0
        %2182 = vmatprep.subr.bf16.mxu0 0
        %2183 = vmatpush2.bf16.msra.mxu0 0
        %2184 = vmatprep.mubr.bf16.mxu0 0
        %2185 = vmatmul.mubr.bf16.gmra.mxu0 %v2071
        %v2186 = vpop.f32.mrf.mxu0
        %v2187 = vadd.f32 %v2102, %v2186
        %v2188 = vpop.f32.mrf.mxu0
        %v2189 = vpop.f32.mrf.mxu0
        %v2190 = vadd.f32 %v2102, %v2189
        %v2191 = vpop.f32.mrf.mxu0
        %2192 = vmatprep.mubr.bf16.mxu0 0
        %2193 = vmatmul.mubr.bf16.gmra.mxu0 %v2072
        %v2194 = vpop.f32.mrf.mxu0
        %v2195 = vadd.f32 %v2102, %v2194
        %v2196 = vpop.f32.mrf.mxu0
        %v2197 = vpop.f32.mrf.mxu0
        %v2198 = vadd.f32 %v2102, %v2197
        %v2199 = vpop.f32.mrf.mxu0
        %2200 = vmatprep.mubr.bf16.mxu0 0
        %2201 = vmatmul.mubr.bf16.gmra.mxu0 %v2073
        %v2202 = vpop.f32.mrf.mxu0
        %v2203 = vadd.f32 %v2102, %v2202
        %v2204 = vpop.f32.mrf.mxu0
        %v2205 = vpop.f32.mrf.mxu0
        %v2206 = vadd.f32 %v2102, %v2205
        %v2207 = vpop.f32.mrf.mxu0
        %2208 = vmatprep.mubr.bf16.mxu0 0
        %2209 = vmatmul.mubr.bf16.gmra.mxu0 %v2074
        %v2210 = vpop.f32.mrf.mxu0
        %v2211 = vadd.f32 %v2102, %v2210
        %v2212 = vpop.f32.mrf.mxu0
        %v2213 = vpop.f32.mrf.mxu0
        %v2214 = vadd.f32 %v2102, %v2213
        %v2215 = vpop.f32.mrf.mxu0
        %2216 = vmatprep.mubr.bf16.mxu0 0
        %2217 = vmatmul.mubr.bf16.gmra.mxu0 %v2075
        %v2218 = vpop.f32.mrf.mxu0
        %v2219 = vadd.f32 %v2102, %v2218
        %v2220 = vpop.f32.mrf.mxu0
        %v2221 = vpop.f32.mrf.mxu0
        %v2222 = vadd.f32 %v2102, %v2221
        %v2223 = vpop.f32.mrf.mxu0
        %2224 = vmatprep.mubr.bf16.mxu0 0
        %2225 = vmatmul.mubr.bf16.gmra.mxu0 %v2076
        %v2226 = vpop.f32.mrf.mxu0
        %v2227 = vadd.f32 %v2102, %v2226
        %v2228 = vpop.f32.mrf.mxu0
        %v2229 = vpop.f32.mrf.mxu0
        %v2230 = vadd.f32 %v2102, %v2229
        %v2231 = vpop.f32.mrf.mxu0
        %2232 = vmatprep.mubr.bf16.mxu0 0
        %2233 = vmatmul.mubr.bf16.gmra.mxu0 %v2077
        %v2234 = vpop.f32.mrf.mxu0
        %v2235 = vadd.f32 %v2102, %v2234
        %v2236 = vpop.f32.mrf.mxu0
        %v2237 = vpop.f32.mrf.mxu0
        %v2238 = vadd.f32 %v2102, %v2237
        %v2239 = vpop.f32.mrf.mxu0
        %2240 = vmatprep.mubr.bf16.mxu0 0
        %2241 = vmatmul.mubr.bf16.gmra.mxu0 %v2078
        %v2242 = vpop.f32.mrf.mxu0
        %v2243 = vadd.f32 %v2102, %v2242
        %v2244 = vpop.f32.mrf.mxu0
        %v2245 = vpop.f32.mrf.mxu0
        %v2246 = vadd.f32 %v2102, %v2245
        %v2247 = vpop.f32.mrf.mxu0
        %2248 = vdwg.mxu0
        %v2249 = vmul.f32 %v2187, 0.5
        %v2250 = vmul.f32 %v2190, 0.5
        %v2251 = vmul.f32 %v2195, 0.5
        %v2252 = vmul.f32 %v2198, 0.5
        %v2253 = vmul.f32 %v2203, 0.5
        %v2254 = vmul.f32 %v2206, 0.5
        %v2255 = vmul.f32 %v2211, 0.5
        %v2256 = vmul.f32 %v2214, 0.5
        %v2257 = vmul.f32 %v2219, 0.5
        %v2258 = vmul.f32 %v2222, 0.5
        %v2259 = vmul.f32 %v2227, 0.5
        %v2260 = vmul.f32 %v2230, 0.5
        %v2261 = vmul.f32 %v2235, 0.5
        %v2262 = vmul.f32 %v2238, 0.5
        %v2263 = vmul.f32 %v2243, 0.5
        %v2264 = vmul.f32 %v2246, 0.5
        %v2265 = vmul.f32 %v2187, 0.70710677
        %v2266 = vmul.f32 %v2190, 0.70710677
        %v2267 = vmul.f32 %v2195, 0.70710677
        %v2268 = vmul.f32 %v2198, 0.70710677
        %v2269 = vmul.f32 %v2203, 0.70710677
        %v2270 = vmul.f32 %v2206, 0.70710677
        %v2271 = vmul.f32 %v2211, 0.70710677
        %v2272 = vmul.f32 %v2214, 0.70710677
        %v2273 = vmul.f32 %v2219, 0.70710677
        %v2274 = vmul.f32 %v2222, 0.70710677
        %v2275 = vmul.f32 %v2227, 0.70710677
        %v2276 = vmul.f32 %v2230, 0.70710677
        %v2277 = vmul.f32 %v2235, 0.70710677
        %v2278 = vmul.f32 %v2238, 0.70710677
        %v2279 = vmul.f32 %v2243, 0.70710677
        %v2280 = vmul.f32 %v2246, 0.70710677
        %v2281 = verf.f32.pop %v2265
        %v2282 = verf.f32.pop %v2266
        %v2283 = verf.f32.pop %v2267
        %v2284 = verf.f32.pop %v2268
        %v2285 = verf.f32.pop %v2269
        %v2286 = verf.f32.pop %v2270
        %v2287 = verf.f32.pop %v2271
        %v2288 = verf.f32.pop %v2272
        %v2289 = verf.f32.pop %v2273
        %v2290 = verf.f32.pop %v2274
        %v2291 = verf.f32.pop %v2275
        %v2292 = verf.f32.pop %v2276
        %v2293 = verf.f32.pop %v2277
        %v2294 = verf.f32.pop %v2278
        %v2295 = verf.f32.pop %v2279
        %v2296 = verf.f32.pop %v2280
        %v2297 = vadd.f32 %v2281, 1.0
        %v2298 = vadd.f32 %v2282, 1.0
        %v2299 = vadd.f32 %v2283, 1.0
        %v2300 = vadd.f32 %v2284, 1.0
        %v2301 = vadd.f32 %v2285, 1.0
        %v2302 = vadd.f32 %v2286, 1.0
        %v2303 = vadd.f32 %v2287, 1.0
        %v2304 = vadd.f32 %v2288, 1.0
        %v2305 = vadd.f32 %v2289, 1.0
        %v2306 = vadd.f32 %v2290, 1.0
        %v2307 = vadd.f32 %v2291, 1.0
        %v2308 = vadd.f32 %v2292, 1.0
        %v2309 = vadd.f32 %v2293, 1.0
        %v2310 = vadd.f32 %v2294, 1.0
        %v2311 = vadd.f32 %v2295, 1.0
        %v2312 = vadd.f32 %v2296, 1.0
        %v2313 = vmul.f32 %v2249, %v2297
        %v2314 = vmul.f32 %v2250, %v2298
        %v2315 = vmul.f32 %v2251, %v2299
        %v2316 = vmul.f32 %v2252, %v2300
        %v2317 = vmul.f32 %v2253, %v2301
        %v2318 = vmul.f32 %v2254, %v2302
        %v2319 = vmul.f32 %v2255, %v2303
        %v2320 = vmul.f32 %v2256, %v2304
        %v2321 = vmul.f32 %v2257, %v2305
        %v2322 = vmul.f32 %v2258, %v2306
        %v2323 = vmul.f32 %v2259, %v2307
        %v2324 = vmul.f32 %v2260, %v2308
        %v2325 = vmul.f32 %v2261, %v2309
        %v2326 = vmul.f32 %v2262, %v2310
        %v2327 = vmul.f32 %v2263, %v2311
        %v2328 = vmul.f32 %v2264, %v2312
        %v2329 = vpack.c.bf16 %v2314, %v2313
        %v2330 = vpack.c.bf16 %v2316, %v2315
        %v2331 = vpack.c.bf16 %v2318, %v2317
        %v2332 = vpack.c.bf16 %v2320, %v2319
        %v2333 = vpack.c.bf16 %v2322, %v2321
        %v2334 = vpack.c.bf16 %v2324, %v2323
        %v2335 = vpack.c.bf16 %v2326, %v2325
        %v2336 = vpack.c.bf16 %v2328, %v2327
        %s2337 = scalar_lea.vmem [#allocation10], 128
        %v2338 = vld [vmem:[%s2337] sm:$0xf]
        %v2339 = vld [vmem:[%s2337 + $0x4] sm:$0xf]
        %v2340 = vld [vmem:[%s2337 + $0x8] sm:$0xf]
        %v2341 = vld [vmem:[%s2337 + $0xc] sm:$0xf]
        %v2342 = vld [vmem:[%s2337 + $0x10] sm:$0xf]
        %v2343 = vld [vmem:[%s2337 + $0x14] sm:$0xf]
        %v2344 = vld [vmem:[%s2337 + $0x18] sm:$0xf]
        %v2345 = vld [vmem:[%s2337 + $0x1c] sm:$0xf]
        %v2346 = vld [vmem:[%s2337 + $0x20] sm:$0xf]
        %v2347 = vld [vmem:[%s2337 + $0x24] sm:$0xf]
        %v2348 = vld [vmem:[%s2337 + $0x28] sm:$0xf]
        %v2349 = vld [vmem:[%s2337 + $0x2c] sm:$0xf]
        %v2350 = vld [vmem:[%s2337 + $0x30] sm:$0xf]
        %v2351 = vld [vmem:[%s2337 + $0x34] sm:$0xf]
        %v2352 = vld [vmem:[%s2337 + $0x38] sm:$0xf]
        %v2353 = vld [vmem:[%s2337 + $0x3c] sm:$0xf]
        %s2354 = scalar_lea.vmem %s6, 2
        %v2355 = vld [vmem:[%s2354] sm:$0x1]
        %v2357 = vlaneseq
        %v2358 = vshrl.u32 %v2357, 7
        %v2359 = vsub.s32 0, %v2358
        %v2360 = vrot.slane %v2355, %v2359
        %v2378 = vunpack.c.l.b16 %v2338
        %v2379 = vunpack.c.l.b16 %v2339
        %v2380 = vunpack.c.l.b16 %v2340
        %v2381 = vunpack.c.l.b16 %v2341
        %v2382 = vunpack.c.l.b16 %v2342
        %v2383 = vunpack.c.l.b16 %v2343
        %v2384 = vunpack.c.l.b16 %v2344
        %v2385 = vunpack.c.l.b16 %v2345
        %v2386 = vunpack.c.l.b16 %v2346
        %v2387 = vunpack.c.l.b16 %v2347
        %v2388 = vunpack.c.l.b16 %v2348
        %v2389 = vunpack.c.l.b16 %v2349
        %v2390 = vunpack.c.l.b16 %v2350
        %v2391 = vunpack.c.l.b16 %v2351
        %v2392 = vunpack.c.l.b16 %v2352
        %v2393 = vunpack.c.l.b16 %v2353
        %v2394 = vpack.c.b16 %v2379, %v2378
        %v2395 = vpack.c.b16 %v2381, %v2380
        %v2396 = vpack.c.b16 %v2383, %v2382
        %v2397 = vpack.c.b16 %v2385, %v2384
        %v2398 = vpack.c.b16 %v2387, %v2386
        %v2399 = vpack.c.b16 %v2389, %v2388
        %v2400 = vpack.c.b16 %v2391, %v2390
        %v2401 = vpack.c.b16 %v2393, %v2392
        %2410 = vmatprep.subr.bf16.mxu0 0
        %2411 = vmatpush1.bf16.msra.mxu0 %v2401
        %2412 = vmatprep.subr.bf16.mxu0 0
        %2413 = vmatpush1.bf16.msra.mxu0 %v2400
        %2414 = vmatprep.subr.bf16.mxu0 0
        %2415 = vmatpush1.bf16.msra.mxu0 %v2399
        %2416 = vmatprep.subr.bf16.mxu0 0
        %2417 = vmatpush1.bf16.msra.mxu0 %v2398
        %2418 = vmatprep.subr.bf16.mxu0 0
        %2419 = vmatpush1.bf16.msra.mxu0 %v2397
        %2420 = vmatprep.subr.bf16.mxu0 0
        %2421 = vmatpush1.bf16.msra.mxu0 %v2396
        %2422 = vmatprep.subr.bf16.mxu0 0
        %2423 = vmatpush1.bf16.msra.mxu0 %v2395
        %2424 = vmatprep.subr.bf16.mxu0 0
        %2425 = vmatpush1.bf16.msra.mxu0 %v2394
        %2426 = vmatprep.subr.bf16.mxu0 0
        %2427 = vmatpush2.bf16.msra.mxu0 0
        %2428 = vmatprep.subr.bf16.mxu0 0
        %2429 = vmatpush2.bf16.msra.mxu0 0
        %2430 = vmatprep.subr.bf16.mxu0 0
        %2431 = vmatpush2.bf16.msra.mxu0 0
        %2432 = vmatprep.subr.bf16.mxu0 0
        %2433 = vmatpush2.bf16.msra.mxu0 0
        %2434 = vmatprep.subr.bf16.mxu0 0
        %2435 = vmatpush2.bf16.msra.mxu0 0
        %2436 = vmatprep.subr.bf16.mxu0 0
        %2437 = vmatpush2.bf16.msra.mxu0 0
        %2438 = vmatprep.subr.bf16.mxu0 0
        %2439 = vmatpush2.bf16.msra.mxu0 0
        %2440 = vmatprep.subr.bf16.mxu0 0
        %2441 = vmatpush2.bf16.msra.mxu0 0
        %2442 = vmatprep.mubr.bf16.mxu0 0
        %2443 = vmatmul.mubr.bf16.gmra.mxu0 %v2329
        %v2444 = vpop.f32.mrf.mxu0
        %v2445 = vadd.f32 %v2360, %v2444
        %v2446 = vpop.f32.mrf.mxu0
        %v2447 = vpop.f32.mrf.mxu0
        %v2448 = vadd.f32 %v2360, %v2447
        %v2449 = vpop.f32.mrf.mxu0
        %2450 = vmatprep.mubr.bf16.mxu0 0
        %2451 = vmatmul.mubr.bf16.gmra.mxu0 %v2330
        %v2452 = vpop.f32.mrf.mxu0
        %v2453 = vadd.f32 %v2360, %v2452
        %v2454 = vpop.f32.mrf.mxu0
        %v2455 = vpop.f32.mrf.mxu0
        %v2456 = vadd.f32 %v2360, %v2455
        %v2457 = vpop.f32.mrf.mxu0
        %2458 = vmatprep.mubr.bf16.mxu0 0
        %2459 = vmatmul.mubr.bf16.gmra.mxu0 %v2331
        %v2460 = vpop.f32.mrf.mxu0
        %v2461 = vadd.f32 %v2360, %v2460
        %v2462 = vpop.f32.mrf.mxu0
        %v2463 = vpop.f32.mrf.mxu0
        %v2464 = vadd.f32 %v2360, %v2463
        %v2465 = vpop.f32.mrf.mxu0
        %2466 = vmatprep.mubr.bf16.mxu0 0
        %2467 = vmatmul.mubr.bf16.gmra.mxu0 %v2332
        %v2468 = vpop.f32.mrf.mxu0
        %v2469 = vadd.f32 %v2360, %v2468
        %v2470 = vpop.f32.mrf.mxu0
        %v2471 = vpop.f32.mrf.mxu0
        %v2472 = vadd.f32 %v2360, %v2471
        %v2473 = vpop.f32.mrf.mxu0
        %2474 = vmatprep.mubr.bf16.mxu0 0
        %2475 = vmatmul.mubr.bf16.gmra.mxu0 %v2333
        %v2476 = vpop.f32.mrf.mxu0
        %v2477 = vadd.f32 %v2360, %v2476
        %v2478 = vpop.f32.mrf.mxu0
        %v2479 = vpop.f32.mrf.mxu0
        %v2480 = vadd.f32 %v2360, %v2479
        %v2481 = vpop.f32.mrf.mxu0
        %2482 = vmatprep.mubr.bf16.mxu0 0
        %2483 = vmatmul.mubr.bf16.gmra.mxu0 %v2334
        %v2484 = vpop.f32.mrf.mxu0
        %v2485 = vadd.f32 %v2360, %v2484
        %v2486 = vpop.f32.mrf.mxu0
        %v2487 = vpop.f32.mrf.mxu0
        %v2488 = vadd.f32 %v2360, %v2487
        %v2489 = vpop.f32.mrf.mxu0
        %2490 = vmatprep.mubr.bf16.mxu0 0
        %2491 = vmatmul.mubr.bf16.gmra.mxu0 %v2335
        %v2492 = vpop.f32.mrf.mxu0
        %v2493 = vadd.f32 %v2360, %v2492
        %v2494 = vpop.f32.mrf.mxu0
        %v2495 = vpop.f32.mrf.mxu0
        %v2496 = vadd.f32 %v2360, %v2495
        %v2497 = vpop.f32.mrf.mxu0
        %2498 = vmatprep.mubr.bf16.mxu0 0
        %2499 = vmatmul.mubr.bf16.gmra.mxu0 %v2336
        %v2500 = vpop.f32.mrf.mxu0
        %v2501 = vadd.f32 %v2360, %v2500
        %v2502 = vpop.f32.mrf.mxu0
        %v2503 = vpop.f32.mrf.mxu0
        %v2504 = vadd.f32 %v2360, %v2503
        %v2505 = vpop.f32.mrf.mxu0
        %2506 = vdwg.mxu0
        %v2507 = vmul.f32 %v2445, 0.5
        %v2508 = vmul.f32 %v2448, 0.5
        %v2509 = vmul.f32 %v2453, 0.5
        %v2510 = vmul.f32 %v2456, 0.5
        %v2511 = vmul.f32 %v2461, 0.5
        %v2512 = vmul.f32 %v2464, 0.5
        %v2513 = vmul.f32 %v2469, 0.5
        %v2514 = vmul.f32 %v2472, 0.5
        %v2515 = vmul.f32 %v2477, 0.5
        %v2516 = vmul.f32 %v2480, 0.5
        %v2517 = vmul.f32 %v2485, 0.5
        %v2518 = vmul.f32 %v2488, 0.5
        %v2519 = vmul.f32 %v2493, 0.5
        %v2520 = vmul.f32 %v2496, 0.5
        %v2521 = vmul.f32 %v2501, 0.5
        %v2522 = vmul.f32 %v2504, 0.5
        %v2523 = vmul.f32 %v2445, 0.70710677
        %v2524 = vmul.f32 %v2448, 0.70710677
        %v2525 = vmul.f32 %v2453, 0.70710677
        %v2526 = vmul.f32 %v2456, 0.70710677
        %v2527 = vmul.f32 %v2461, 0.70710677
        %v2528 = vmul.f32 %v2464, 0.70710677
        %v2529 = vmul.f32 %v2469, 0.70710677
        %v2530 = vmul.f32 %v2472, 0.70710677
        %v2531 = vmul.f32 %v2477, 0.70710677
        %v2532 = vmul.f32 %v2480, 0.70710677
        %v2533 = vmul.f32 %v2485, 0.70710677
        %v2534 = vmul.f32 %v2488, 0.70710677
        %v2535 = vmul.f32 %v2493, 0.70710677
        %v2536 = vmul.f32 %v2496, 0.70710677
        %v2537 = vmul.f32 %v2501, 0.70710677
        %v2538 = vmul.f32 %v2504, 0.70710677
        %v2539 = verf.f32.pop %v2523
        %v2540 = verf.f32.pop %v2524
        %v2541 = verf.f32.pop %v2525
        %v2542 = verf.f32.pop %v2526
        %v2543 = verf.f32.pop %v2527
        %v2544 = verf.f32.pop %v2528
        %v2545 = verf.f32.pop %v2529
        %v2546 = verf.f32.pop %v2530
        %v2547 = verf.f32.pop %v2531
        %v2548 = verf.f32.pop %v2532
        %v2549 = verf.f32.pop %v2533
        %v2550 = verf.f32.pop %v2534
        %v2551 = verf.f32.pop %v2535
        %v2552 = verf.f32.pop %v2536
        %v2553 = verf.f32.pop %v2537
        %v2554 = verf.f32.pop %v2538
        %v2555 = vadd.f32 %v2539, 1.0
        %v2556 = vadd.f32 %v2540, 1.0
        %v2557 = vadd.f32 %v2541, 1.0
        %v2558 = vadd.f32 %v2542, 1.0
        %v2559 = vadd.f32 %v2543, 1.0
        %v2560 = vadd.f32 %v2544, 1.0
        %v2561 = vadd.f32 %v2545, 1.0
        %v2562 = vadd.f32 %v2546, 1.0
        %v2563 = vadd.f32 %v2547, 1.0
        %v2564 = vadd.f32 %v2548, 1.0
        %v2565 = vadd.f32 %v2549, 1.0
        %v2566 = vadd.f32 %v2550, 1.0
        %v2567 = vadd.f32 %v2551, 1.0
        %v2568 = vadd.f32 %v2552, 1.0
        %v2569 = vadd.f32 %v2553, 1.0
        %v2570 = vadd.f32 %v2554, 1.0
        %v2571 = vmul.f32 %v2507, %v2555
        %v2572 = vmul.f32 %v2508, %v2556
        %v2573 = vmul.f32 %v2509, %v2557
        %v2574 = vmul.f32 %v2510, %v2558
        %v2575 = vmul.f32 %v2511, %v2559
        %v2576 = vmul.f32 %v2512, %v2560
        %v2577 = vmul.f32 %v2513, %v2561
        %v2578 = vmul.f32 %v2514, %v2562
        %v2579 = vmul.f32 %v2515, %v2563
        %v2580 = vmul.f32 %v2516, %v2564
        %v2581 = vmul.f32 %v2517, %v2565
        %v2582 = vmul.f32 %v2518, %v2566
        %v2583 = vmul.f32 %v2519, %v2567
        %v2584 = vmul.f32 %v2520, %v2568
        %v2585 = vmul.f32 %v2521, %v2569
        %v2586 = vmul.f32 %v2522, %v2570
        %s2587 = scalar_lea.vmem [#allocation11], 2
        %v2588 = vld [vmem:[%s2587] sm:$0x1]
        %v2590 = vlaneseq
        %v2591 = vshrl.u32 %v2590, 7
        %v2592 = vsub.s32 0, %v2591
        %v2593 = vrot.slane %v2588, %v2592
        %v2595 = vmul.f32 %v2571, %v2593
        %v2596 = vmul.f32 %v2572, %v2593
        %v2597 = vmul.f32 %v2573, %v2593
        %v2598 = vmul.f32 %v2574, %v2593
        %v2599 = vmul.f32 %v2575, %v2593
        %v2600 = vmul.f32 %v2576, %v2593
        %v2601 = vmul.f32 %v2577, %v2593
        %v2602 = vmul.f32 %v2578, %v2593
        %v2603 = vmul.f32 %v2579, %v2593
        %v2604 = vmul.f32 %v2580, %v2593
        %v2605 = vmul.f32 %v2581, %v2593
        %v2606 = vmul.f32 %v2582, %v2593
        %v2607 = vmul.f32 %v2583, %v2593
        %v2608 = vmul.f32 %v2584, %v2593
        %v2609 = vmul.f32 %v2585, %v2593
        %v2610 = vmul.f32 %v2586, %v2593
        %s2611 = scalar_lea.vmem [#allocation13], 2
        %v2612 = vld [vmem:[%s2611] sm:$0x1]
        %v2614 = vlaneseq
        %v2615 = vshrl.u32 %v2614, 7
        %v2616 = vsub.s32 0, %v2615
        %v2617 = vrot.slane %v2612, %v2616
        %v2619 = vadd.f32 %v2595, %v2617
        %v2620 = vadd.f32 %v2596, %v2617
        %v2621 = vadd.f32 %v2597, %v2617
        %v2622 = vadd.f32 %v2598, %v2617
        %v2623 = vadd.f32 %v2599, %v2617
        %v2624 = vadd.f32 %v2600, %v2617
        %v2625 = vadd.f32 %v2601, %v2617
        %v2626 = vadd.f32 %v2602, %v2617
        %v2627 = vadd.f32 %v2603, %v2617
        %v2628 = vadd.f32 %v2604, %v2617
        %v2629 = vadd.f32 %v2605, %v2617
        %v2630 = vadd.f32 %v2606, %v2617
        %v2631 = vadd.f32 %v2607, %v2617
        %v2632 = vadd.f32 %v2608, %v2617
        %v2633 = vadd.f32 %v2609, %v2617
        %v2634 = vadd.f32 %v2610, %v2617
        %v2635 = vadd.f32 %v2619, %v2055
        %v2636 = vadd.f32 %v2620, %v2056
        %v2637 = vadd.f32 %v2621, %v2057
        %v2638 = vadd.f32 %v2622, %v2058
        %v2639 = vadd.f32 %v2623, %v2059
        %v2640 = vadd.f32 %v2624, %v2060
        %v2641 = vadd.f32 %v2625, %v2061
        %v2642 = vadd.f32 %v2626, %v2062
        %v2643 = vadd.f32 %v2627, %v2063
        %v2644 = vadd.f32 %v2628, %v2064
        %v2645 = vadd.f32 %v2629, %v2065
        %v2646 = vadd.f32 %v2630, %v2066
        %v2647 = vadd.f32 %v2631, %v2067
        %v2648 = vadd.f32 %v2632, %v2068
        %v2649 = vadd.f32 %v2633, %v2069
        %v2650 = vadd.f32 %v2634, %v2070
        %v2651 = vpack.c.bf16 %v2636, %v2635
        %v2652 = vpack.c.bf16 %v2638, %v2637
        %v2653 = vpack.c.bf16 %v2640, %v2639
        %v2654 = vpack.c.bf16 %v2642, %v2641
        %v2655 = vpack.c.bf16 %v2644, %v2643
        %v2656 = vpack.c.bf16 %v2646, %v2645
        %v2657 = vpack.c.bf16 %v2648, %v2647
        %v2658 = vpack.c.bf16 %v2650, %v2649
        %s2659 = scalar_lea.vmem [#allocation8], 192
        %v2660 = vld [vmem:[%s2659] sm:$0xf]
        %v2661 = vld [vmem:[%s2659 + $0x4] sm:$0xf]
        %v2662 = vld [vmem:[%s2659 + $0x8] sm:$0xf]
        %v2663 = vld [vmem:[%s2659 + $0xc] sm:$0xf]
        %v2664 = vld [vmem:[%s2659 + $0x10] sm:$0xf]
        %v2665 = vld [vmem:[%s2659 + $0x14] sm:$0xf]
        %v2666 = vld [vmem:[%s2659 + $0x18] sm:$0xf]
        %v2667 = vld [vmem:[%s2659 + $0x1c] sm:$0xf]
        %v2668 = vld [vmem:[%s2659 + $0x20] sm:$0xf]
        %v2669 = vld [vmem:[%s2659 + $0x24] sm:$0xf]
        %v2670 = vld [vmem:[%s2659 + $0x28] sm:$0xf]
        %v2671 = vld [vmem:[%s2659 + $0x2c] sm:$0xf]
        %v2672 = vld [vmem:[%s2659 + $0x30] sm:$0xf]
        %v2673 = vld [vmem:[%s2659 + $0x34] sm:$0xf]
        %v2674 = vld [vmem:[%s2659 + $0x38] sm:$0xf]
        %v2675 = vld [vmem:[%s2659 + $0x3c] sm:$0xf]
        %s2676 = scalar_lea.vmem %s4, 3
        %v2677 = vld [vmem:[%s2676] sm:$0x1]
        %v2679 = vlaneseq
        %v2680 = vshrl.u32 %v2679, 7
        %v2681 = vsub.s32 0, %v2680
        %v2682 = vrot.slane %v2677, %v2681
        %v2700 = vunpack.c.l.b16 %v2660
        %v2701 = vunpack.c.l.b16 %v2661
        %v2702 = vunpack.c.l.b16 %v2662
        %v2703 = vunpack.c.l.b16 %v2663
        %v2704 = vunpack.c.l.b16 %v2664
        %v2705 = vunpack.c.l.b16 %v2665
        %v2706 = vunpack.c.l.b16 %v2666
        %v2707 = vunpack.c.l.b16 %v2667
        %v2708 = vunpack.c.l.b16 %v2668
        %v2709 = vunpack.c.l.b16 %v2669
        %v2710 = vunpack.c.l.b16 %v2670
        %v2711 = vunpack.c.l.b16 %v2671
        %v2712 = vunpack.c.l.b16 %v2672
        %v2713 = vunpack.c.l.b16 %v2673
        %v2714 = vunpack.c.l.b16 %v2674
        %v2715 = vunpack.c.l.b16 %v2675
        %v2716 = vpack.c.b16 %v2701, %v2700
        %v2717 = vpack.c.b16 %v2703, %v2702
        %v2718 = vpack.c.b16 %v2705, %v2704
        %v2719 = vpack.c.b16 %v2707, %v2706
        %v2720 = vpack.c.b16 %v2709, %v2708
        %v2721 = vpack.c.b16 %v2711, %v2710
        %v2722 = vpack.c.b16 %v2713, %v2712
        %v2723 = vpack.c.b16 %v2715, %v2714
        %2732 = vmatprep.subr.bf16.mxu0 0
        %2733 = vmatpush1.bf16.msra.mxu0 %v2723
        %2734 = vmatprep.subr.bf16.mxu0 0
        %2735 = vmatpush1.bf16.msra.mxu0 %v2722
        %2736 = vmatprep.subr.bf16.mxu0 0
        %2737 = vmatpush1.bf16.msra.mxu0 %v2721
        %2738 = vmatprep.subr.bf16.mxu0 0
        %2739 = vmatpush1.bf16.msra.mxu0 %v2720
        %2740 = vmatprep.subr.bf16.mxu0 0
        %2741 = vmatpush1.bf16.msra.mxu0 %v2719
        %2742 = vmatprep.subr.bf16.mxu0 0
        %2743 = vmatpush1.bf16.msra.mxu0 %v2718
        %2744 = vmatprep.subr.bf16.mxu0 0
        %2745 = vmatpush1.bf16.msra.mxu0 %v2717
        %2746 = vmatprep.subr.bf16.mxu0 0
        %2747 = vmatpush1.bf16.msra.mxu0 %v2716
        %2748 = vmatprep.subr.bf16.mxu0 0
        %2749 = vmatpush2.bf16.msra.mxu0 0
        %2750 = vmatprep.subr.bf16.mxu0 0
        %2751 = vmatpush2.bf16.msra.mxu0 0
        %2752 = vmatprep.subr.bf16.mxu0 0
        %2753 = vmatpush2.bf16.msra.mxu0 0
        %2754 = vmatprep.subr.bf16.mxu0 0
        %2755 = vmatpush2.bf16.msra.mxu0 0
        %2756 = vmatprep.subr.bf16.mxu0 0
        %2757 = vmatpush2.bf16.msra.mxu0 0
        %2758 = vmatprep.subr.bf16.mxu0 0
        %2759 = vmatpush2.bf16.msra.mxu0 0
        %2760 = vmatprep.subr.bf16.mxu0 0
        %2761 = vmatpush2.bf16.msra.mxu0 0
        %2762 = vmatprep.subr.bf16.mxu0 0
        %2763 = vmatpush2.bf16.msra.mxu0 0
        %2764 = vmatprep.mubr.bf16.mxu0 0
        %2765 = vmatmul.mubr.bf16.gmra.mxu0 %v2651
        %v2766 = vpop.f32.mrf.mxu0
        %v2767 = vadd.f32 %v2682, %v2766
        %v2768 = vpop.f32.mrf.mxu0
        %v2769 = vpop.f32.mrf.mxu0
        %v2770 = vadd.f32 %v2682, %v2769
        %v2771 = vpop.f32.mrf.mxu0
        %2772 = vmatprep.mubr.bf16.mxu0 0
        %2773 = vmatmul.mubr.bf16.gmra.mxu0 %v2652
        %v2774 = vpop.f32.mrf.mxu0
        %v2775 = vadd.f32 %v2682, %v2774
        %v2776 = vpop.f32.mrf.mxu0
        %v2777 = vpop.f32.mrf.mxu0
        %v2778 = vadd.f32 %v2682, %v2777
        %v2779 = vpop.f32.mrf.mxu0
        %2780 = vmatprep.mubr.bf16.mxu0 0
        %2781 = vmatmul.mubr.bf16.gmra.mxu0 %v2653
        %v2782 = vpop.f32.mrf.mxu0
        %v2783 = vadd.f32 %v2682, %v2782
        %v2784 = vpop.f32.mrf.mxu0
        %v2785 = vpop.f32.mrf.mxu0
        %v2786 = vadd.f32 %v2682, %v2785
        %v2787 = vpop.f32.mrf.mxu0
        %2788 = vmatprep.mubr.bf16.mxu0 0
        %2789 = vmatmul.mubr.bf16.gmra.mxu0 %v2654
        %v2790 = vpop.f32.mrf.mxu0
        %v2791 = vadd.f32 %v2682, %v2790
        %v2792 = vpop.f32.mrf.mxu0
        %v2793 = vpop.f32.mrf.mxu0
        %v2794 = vadd.f32 %v2682, %v2793
        %v2795 = vpop.f32.mrf.mxu0
        %2796 = vmatprep.mubr.bf16.mxu0 0
        %2797 = vmatmul.mubr.bf16.gmra.mxu0 %v2655
        %v2798 = vpop.f32.mrf.mxu0
        %v2799 = vadd.f32 %v2682, %v2798
        %v2800 = vpop.f32.mrf.mxu0
        %v2801 = vpop.f32.mrf.mxu0
        %v2802 = vadd.f32 %v2682, %v2801
        %v2803 = vpop.f32.mrf.mxu0
        %2804 = vmatprep.mubr.bf16.mxu0 0
        %2805 = vmatmul.mubr.bf16.gmra.mxu0 %v2656
        %v2806 = vpop.f32.mrf.mxu0
        %v2807 = vadd.f32 %v2682, %v2806
        %v2808 = vpop.f32.mrf.mxu0
        %v2809 = vpop.f32.mrf.mxu0
        %v2810 = vadd.f32 %v2682, %v2809
        %v2811 = vpop.f32.mrf.mxu0
        %2812 = vmatprep.mubr.bf16.mxu0 0
        %2813 = vmatmul.mubr.bf16.gmra.mxu0 %v2657
        %v2814 = vpop.f32.mrf.mxu0
        %v2815 = vadd.f32 %v2682, %v2814
        %v2816 = vpop.f32.mrf.mxu0
        %v2817 = vpop.f32.mrf.mxu0
        %v2818 = vadd.f32 %v2682, %v2817
        %v2819 = vpop.f32.mrf.mxu0
        %2820 = vmatprep.mubr.bf16.mxu0 0
        %2821 = vmatmul.mubr.bf16.gmra.mxu0 %v2658
        %v2822 = vpop.f32.mrf.mxu0
        %v2823 = vadd.f32 %v2682, %v2822
        %v2824 = vpop.f32.mrf.mxu0
        %v2825 = vpop.f32.mrf.mxu0
        %v2826 = vadd.f32 %v2682, %v2825
        %v2827 = vpop.f32.mrf.mxu0
        %2828 = vdwg.mxu0
        %v2829 = vmul.f32 %v2767, 0.5
        %v2830 = vmul.f32 %v2770, 0.5
        %v2831 = vmul.f32 %v2775, 0.5
        %v2832 = vmul.f32 %v2778, 0.5
        %v2833 = vmul.f32 %v2783, 0.5
        %v2834 = vmul.f32 %v2786, 0.5
        %v2835 = vmul.f32 %v2791, 0.5
        %v2836 = vmul.f32 %v2794, 0.5
        %v2837 = vmul.f32 %v2799, 0.5
        %v2838 = vmul.f32 %v2802, 0.5
        %v2839 = vmul.f32 %v2807, 0.5
        %v2840 = vmul.f32 %v2810, 0.5
        %v2841 = vmul.f32 %v2815, 0.5
        %v2842 = vmul.f32 %v2818, 0.5
        %v2843 = vmul.f32 %v2823, 0.5
        %v2844 = vmul.f32 %v2826, 0.5
        %v2845 = vmul.f32 %v2767, 0.70710677
        %v2846 = vmul.f32 %v2770, 0.70710677
        %v2847 = vmul.f32 %v2775, 0.70710677
        %v2848 = vmul.f32 %v2778, 0.70710677
        %v2849 = vmul.f32 %v2783, 0.70710677
        %v2850 = vmul.f32 %v2786, 0.70710677
        %v2851 = vmul.f32 %v2791, 0.70710677
        %v2852 = vmul.f32 %v2794, 0.70710677
        %v2853 = vmul.f32 %v2799, 0.70710677
        %v2854 = vmul.f32 %v2802, 0.70710677
        %v2855 = vmul.f32 %v2807, 0.70710677
        %v2856 = vmul.f32 %v2810, 0.70710677
        %v2857 = vmul.f32 %v2815, 0.70710677
        %v2858 = vmul.f32 %v2818, 0.70710677
        %v2859 = vmul.f32 %v2823, 0.70710677
        %v2860 = vmul.f32 %v2826, 0.70710677
        %v2861 = verf.f32.pop %v2845
        %v2862 = verf.f32.pop %v2846
        %v2863 = verf.f32.pop %v2847
        %v2864 = verf.f32.pop %v2848
        %v2865 = verf.f32.pop %v2849
        %v2866 = verf.f32.pop %v2850
        %v2867 = verf.f32.pop %v2851
        %v2868 = verf.f32.pop %v2852
        %v2869 = verf.f32.pop %v2853
        %v2870 = verf.f32.pop %v2854
        %v2871 = verf.f32.pop %v2855
        %v2872 = verf.f32.pop %v2856
        %v2873 = verf.f32.pop %v2857
        %v2874 = verf.f32.pop %v2858
        %v2875 = verf.f32.pop %v2859
        %v2876 = verf.f32.pop %v2860
        %v2877 = vadd.f32 %v2861, 1.0
        %v2878 = vadd.f32 %v2862, 1.0
        %v2879 = vadd.f32 %v2863, 1.0
        %v2880 = vadd.f32 %v2864, 1.0
        %v2881 = vadd.f32 %v2865, 1.0
        %v2882 = vadd.f32 %v2866, 1.0
        %v2883 = vadd.f32 %v2867, 1.0
        %v2884 = vadd.f32 %v2868, 1.0
        %v2885 = vadd.f32 %v2869, 1.0
        %v2886 = vadd.f32 %v2870, 1.0
        %v2887 = vadd.f32 %v2871, 1.0
        %v2888 = vadd.f32 %v2872, 1.0
        %v2889 = vadd.f32 %v2873, 1.0
        %v2890 = vadd.f32 %v2874, 1.0
        %v2891 = vadd.f32 %v2875, 1.0
        %v2892 = vadd.f32 %v2876, 1.0
        %v2893 = vmul.f32 %v2829, %v2877
        %v2894 = vmul.f32 %v2830, %v2878
        %v2895 = vmul.f32 %v2831, %v2879
        %v2896 = vmul.f32 %v2832, %v2880
        %v2897 = vmul.f32 %v2833, %v2881
        %v2898 = vmul.f32 %v2834, %v2882
        %v2899 = vmul.f32 %v2835, %v2883
        %v2900 = vmul.f32 %v2836, %v2884
        %v2901 = vmul.f32 %v2837, %v2885
        %v2902 = vmul.f32 %v2838, %v2886
        %v2903 = vmul.f32 %v2839, %v2887
        %v2904 = vmul.f32 %v2840, %v2888
        %v2905 = vmul.f32 %v2841, %v2889
        %v2906 = vmul.f32 %v2842, %v2890
        %v2907 = vmul.f32 %v2843, %v2891
        %v2908 = vmul.f32 %v2844, %v2892
        %v2909 = vpack.c.bf16 %v2894, %v2893
        %v2910 = vpack.c.bf16 %v2896, %v2895
        %v2911 = vpack.c.bf16 %v2898, %v2897
        %v2912 = vpack.c.bf16 %v2900, %v2899
        %v2913 = vpack.c.bf16 %v2902, %v2901
        %v2914 = vpack.c.bf16 %v2904, %v2903
        %v2915 = vpack.c.bf16 %v2906, %v2905
        %v2916 = vpack.c.bf16 %v2908, %v2907
        %s2917 = scalar_lea.vmem [#allocation10], 192
        %v2918 = vld [vmem:[%s2917] sm:$0xf]
        %v2919 = vld [vmem:[%s2917 + $0x4] sm:$0xf]
        %v2920 = vld [vmem:[%s2917 + $0x8] sm:$0xf]
        %v2921 = vld [vmem:[%s2917 + $0xc] sm:$0xf]
        %v2922 = vld [vmem:[%s2917 + $0x10] sm:$0xf]
        %v2923 = vld [vmem:[%s2917 + $0x14] sm:$0xf]
        %v2924 = vld [vmem:[%s2917 + $0x18] sm:$0xf]
        %v2925 = vld [vmem:[%s2917 + $0x1c] sm:$0xf]
        %v2926 = vld [vmem:[%s2917 + $0x20] sm:$0xf]
        %v2927 = vld [vmem:[%s2917 + $0x24] sm:$0xf]
        %v2928 = vld [vmem:[%s2917 + $0x28] sm:$0xf]
        %v2929 = vld [vmem:[%s2917 + $0x2c] sm:$0xf]
        %v2930 = vld [vmem:[%s2917 + $0x30] sm:$0xf]
        %v2931 = vld [vmem:[%s2917 + $0x34] sm:$0xf]
        %v2932 = vld [vmem:[%s2917 + $0x38] sm:$0xf]
        %v2933 = vld [vmem:[%s2917 + $0x3c] sm:$0xf]
        %s2934 = scalar_lea.vmem %s6, 3
        %v2935 = vld [vmem:[%s2934] sm:$0x1]
        %v2937 = vlaneseq
        %v2938 = vshrl.u32 %v2937, 7
        %v2939 = vsub.s32 0, %v2938
        %v2940 = vrot.slane %v2935, %v2939
        %v2958 = vunpack.c.l.b16 %v2918
        %v2959 = vunpack.c.l.b16 %v2919
        %v2960 = vunpack.c.l.b16 %v2920
        %v2961 = vunpack.c.l.b16 %v2921
        %v2962 = vunpack.c.l.b16 %v2922
        %v2963 = vunpack.c.l.b16 %v2923
        %v2964 = vunpack.c.l.b16 %v2924
        %v2965 = vunpack.c.l.b16 %v2925
        %v2966 = vunpack.c.l.b16 %v2926
        %v2967 = vunpack.c.l.b16 %v2927
        %v2968 = vunpack.c.l.b16 %v2928
        %v2969 = vunpack.c.l.b16 %v2929
        %v2970 = vunpack.c.l.b16 %v2930
        %v2971 = vunpack.c.l.b16 %v2931
        %v2972 = vunpack.c.l.b16 %v2932
        %v2973 = vunpack.c.l.b16 %v2933
        %v2974 = vpack.c.b16 %v2959, %v2958
        %v2975 = vpack.c.b16 %v2961, %v2960
        %v2976 = vpack.c.b16 %v2963, %v2962
        %v2977 = vpack.c.b16 %v2965, %v2964
        %v2978 = vpack.c.b16 %v2967, %v2966
        %v2979 = vpack.c.b16 %v2969, %v2968
        %v2980 = vpack.c.b16 %v2971, %v2970
        %v2981 = vpack.c.b16 %v2973, %v2972
        %2990 = vmatprep.subr.bf16.mxu0 0
        %2991 = vmatpush1.bf16.msra.mxu0 %v2981
        %2992 = vmatprep.subr.bf16.mxu0 0
        %2993 = vmatpush1.bf16.msra.mxu0 %v2980
        %2994 = vmatprep.subr.bf16.mxu0 0
        %2995 = vmatpush1.bf16.msra.mxu0 %v2979
        %2996 = vmatprep.subr.bf16.mxu0 0
        %2997 = vmatpush1.bf16.msra.mxu0 %v2978
        %2998 = vmatprep.subr.bf16.mxu0 0
        %2999 = vmatpush1.bf16.msra.mxu0 %v2977
        %3000 = vmatprep.subr.bf16.mxu0 0
        %3001 = vmatpush1.bf16.msra.mxu0 %v2976
        %3002 = vmatprep.subr.bf16.mxu0 0
        %3003 = vmatpush1.bf16.msra.mxu0 %v2975
        %3004 = vmatprep.subr.bf16.mxu0 0
        %3005 = vmatpush1.bf16.msra.mxu0 %v2974
        %3006 = vmatprep.subr.bf16.mxu0 0
        %3007 = vmatpush2.bf16.msra.mxu0 0
        %3008 = vmatprep.subr.bf16.mxu0 0
        %3009 = vmatpush2.bf16.msra.mxu0 0
        %3010 = vmatprep.subr.bf16.mxu0 0
        %3011 = vmatpush2.bf16.msra.mxu0 0
        %3012 = vmatprep.subr.bf16.mxu0 0
        %3013 = vmatpush2.bf16.msra.mxu0 0
        %3014 = vmatprep.subr.bf16.mxu0 0
        %3015 = vmatpush2.bf16.msra.mxu0 0
        %3016 = vmatprep.subr.bf16.mxu0 0
        %3017 = vmatpush2.bf16.msra.mxu0 0
        %3018 = vmatprep.subr.bf16.mxu0 0
        %3019 = vmatpush2.bf16.msra.mxu0 0
        %3020 = vmatprep.subr.bf16.mxu0 0
        %3021 = vmatpush2.bf16.msra.mxu0 0
        %3022 = vmatprep.mubr.bf16.mxu0 0
        %3023 = vmatmul.mubr.bf16.gmra.mxu0 %v2909
        %v3024 = vpop.f32.mrf.mxu0
        %v3025 = vadd.f32 %v2940, %v3024
        %v3026 = vpop.f32.mrf.mxu0
        %v3027 = vpop.f32.mrf.mxu0
        %v3028 = vadd.f32 %v2940, %v3027
        %v3029 = vpop.f32.mrf.mxu0
        %3030 = vmatprep.mubr.bf16.mxu0 0
        %3031 = vmatmul.mubr.bf16.gmra.mxu0 %v2910
        %v3032 = vpop.f32.mrf.mxu0
        %v3033 = vadd.f32 %v2940, %v3032
        %v3034 = vpop.f32.mrf.mxu0
        %v3035 = vpop.f32.mrf.mxu0
        %v3036 = vadd.f32 %v2940, %v3035
        %v3037 = vpop.f32.mrf.mxu0
        %3038 = vmatprep.mubr.bf16.mxu0 0
        %3039 = vmatmul.mubr.bf16.gmra.mxu0 %v2911
        %v3040 = vpop.f32.mrf.mxu0
        %v3041 = vadd.f32 %v2940, %v3040
        %v3042 = vpop.f32.mrf.mxu0
        %v3043 = vpop.f32.mrf.mxu0
        %v3044 = vadd.f32 %v2940, %v3043
        %v3045 = vpop.f32.mrf.mxu0
        %3046 = vmatprep.mubr.bf16.mxu0 0
        %3047 = vmatmul.mubr.bf16.gmra.mxu0 %v2912
        %v3048 = vpop.f32.mrf.mxu0
        %v3049 = vadd.f32 %v2940, %v3048
        %v3050 = vpop.f32.mrf.mxu0
        %v3051 = vpop.f32.mrf.mxu0
        %v3052 = vadd.f32 %v2940, %v3051
        %v3053 = vpop.f32.mrf.mxu0
        %3054 = vmatprep.mubr.bf16.mxu0 0
        %3055 = vmatmul.mubr.bf16.gmra.mxu0 %v2913
        %v3056 = vpop.f32.mrf.mxu0
        %v3057 = vadd.f32 %v2940, %v3056
        %v3058 = vpop.f32.mrf.mxu0
        %v3059 = vpop.f32.mrf.mxu0
        %v3060 = vadd.f32 %v2940, %v3059
        %v3061 = vpop.f32.mrf.mxu0
        %3062 = vmatprep.mubr.bf16.mxu0 0
        %3063 = vmatmul.mubr.bf16.gmra.mxu0 %v2914
        %v3064 = vpop.f32.mrf.mxu0
        %v3065 = vadd.f32 %v2940, %v3064
        %v3066 = vpop.f32.mrf.mxu0
        %v3067 = vpop.f32.mrf.mxu0
        %v3068 = vadd.f32 %v2940, %v3067
        %v3069 = vpop.f32.mrf.mxu0
        %3070 = vmatprep.mubr.bf16.mxu0 0
        %3071 = vmatmul.mubr.bf16.gmra.mxu0 %v2915
        %v3072 = vpop.f32.mrf.mxu0
        %v3073 = vadd.f32 %v2940, %v3072
        %v3074 = vpop.f32.mrf.mxu0
        %v3075 = vpop.f32.mrf.mxu0
        %v3076 = vadd.f32 %v2940, %v3075
        %v3077 = vpop.f32.mrf.mxu0
        %3078 = vmatprep.mubr.bf16.mxu0 0
        %3079 = vmatmul.mubr.bf16.gmra.mxu0 %v2916
        %v3080 = vpop.f32.mrf.mxu0
        %v3081 = vadd.f32 %v2940, %v3080
        %v3082 = vpop.f32.mrf.mxu0
        %v3083 = vpop.f32.mrf.mxu0
        %v3084 = vadd.f32 %v2940, %v3083
        %v3085 = vpop.f32.mrf.mxu0
        %3086 = vdwg.mxu0
        %v3087 = vmul.f32 %v3025, 0.5
        %v3088 = vmul.f32 %v3028, 0.5
        %v3089 = vmul.f32 %v3033, 0.5
        %v3090 = vmul.f32 %v3036, 0.5
        %v3091 = vmul.f32 %v3041, 0.5
        %v3092 = vmul.f32 %v3044, 0.5
        %v3093 = vmul.f32 %v3049, 0.5
        %v3094 = vmul.f32 %v3052, 0.5
        %v3095 = vmul.f32 %v3057, 0.5
        %v3096 = vmul.f32 %v3060, 0.5
        %v3097 = vmul.f32 %v3065, 0.5
        %v3098 = vmul.f32 %v3068, 0.5
        %v3099 = vmul.f32 %v3073, 0.5
        %v3100 = vmul.f32 %v3076, 0.5
        %v3101 = vmul.f32 %v3081, 0.5
        %v3102 = vmul.f32 %v3084, 0.5
        %v3103 = vmul.f32 %v3025, 0.70710677
        %v3104 = vmul.f32 %v3028, 0.70710677
        %v3105 = vmul.f32 %v3033, 0.70710677
        %v3106 = vmul.f32 %v3036, 0.70710677
        %v3107 = vmul.f32 %v3041, 0.70710677
        %v3108 = vmul.f32 %v3044, 0.70710677
        %v3109 = vmul.f32 %v3049, 0.70710677
        %v3110 = vmul.f32 %v3052, 0.70710677
        %v3111 = vmul.f32 %v3057, 0.70710677
        %v3112 = vmul.f32 %v3060, 0.70710677
        %v3113 = vmul.f32 %v3065, 0.70710677
        %v3114 = vmul.f32 %v3068, 0.70710677
        %v3115 = vmul.f32 %v3073, 0.70710677
        %v3116 = vmul.f32 %v3076, 0.70710677
        %v3117 = vmul.f32 %v3081, 0.70710677
        %v3118 = vmul.f32 %v3084, 0.70710677
        %v3119 = verf.f32.pop %v3103
        %v3120 = verf.f32.pop %v3104
        %v3121 = verf.f32.pop %v3105
        %v3122 = verf.f32.pop %v3106
        %v3123 = verf.f32.pop %v3107
        %v3124 = verf.f32.pop %v3108
        %v3125 = verf.f32.pop %v3109
        %v3126 = verf.f32.pop %v3110
        %v3127 = verf.f32.pop %v3111
        %v3128 = verf.f32.pop %v3112
        %v3129 = verf.f32.pop %v3113
        %v3130 = verf.f32.pop %v3114
        %v3131 = verf.f32.pop %v3115
        %v3132 = verf.f32.pop %v3116
        %v3133 = verf.f32.pop %v3117
        %v3134 = verf.f32.pop %v3118
        %v3135 = vadd.f32 %v3119, 1.0
        %v3136 = vadd.f32 %v3120, 1.0
        %v3137 = vadd.f32 %v3121, 1.0
        %v3138 = vadd.f32 %v3122, 1.0
        %v3139 = vadd.f32 %v3123, 1.0
        %v3140 = vadd.f32 %v3124, 1.0
        %v3141 = vadd.f32 %v3125, 1.0
        %v3142 = vadd.f32 %v3126, 1.0
        %v3143 = vadd.f32 %v3127, 1.0
        %v3144 = vadd.f32 %v3128, 1.0
        %v3145 = vadd.f32 %v3129, 1.0
        %v3146 = vadd.f32 %v3130, 1.0
        %v3147 = vadd.f32 %v3131, 1.0
        %v3148 = vadd.f32 %v3132, 1.0
        %v3149 = vadd.f32 %v3133, 1.0
        %v3150 = vadd.f32 %v3134, 1.0
        %v3151 = vmul.f32 %v3087, %v3135
        %v3152 = vmul.f32 %v3088, %v3136
        %v3153 = vmul.f32 %v3089, %v3137
        %v3154 = vmul.f32 %v3090, %v3138
        %v3155 = vmul.f32 %v3091, %v3139
        %v3156 = vmul.f32 %v3092, %v3140
        %v3157 = vmul.f32 %v3093, %v3141
        %v3158 = vmul.f32 %v3094, %v3142
        %v3159 = vmul.f32 %v3095, %v3143
        %v3160 = vmul.f32 %v3096, %v3144
        %v3161 = vmul.f32 %v3097, %v3145
        %v3162 = vmul.f32 %v3098, %v3146
        %v3163 = vmul.f32 %v3099, %v3147
        %v3164 = vmul.f32 %v3100, %v3148
        %v3165 = vmul.f32 %v3101, %v3149
        %v3166 = vmul.f32 %v3102, %v3150
        %s3167 = scalar_lea.vmem [#allocation11], 3
        %v3168 = vld [vmem:[%s3167] sm:$0x1]
        %v3170 = vlaneseq
        %v3171 = vshrl.u32 %v3170, 7
        %v3172 = vsub.s32 0, %v3171
        %v3173 = vrot.slane %v3168, %v3172
        %v3175 = vmul.f32 %v3151, %v3173
        %v3176 = vmul.f32 %v3152, %v3173
        %v3177 = vmul.f32 %v3153, %v3173
        %v3178 = vmul.f32 %v3154, %v3173
        %v3179 = vmul.f32 %v3155, %v3173
        %v3180 = vmul.f32 %v3156, %v3173
        %v3181 = vmul.f32 %v3157, %v3173
        %v3182 = vmul.f32 %v3158, %v3173
        %v3183 = vmul.f32 %v3159, %v3173
        %v3184 = vmul.f32 %v3160, %v3173
        %v3185 = vmul.f32 %v3161, %v3173
        %v3186 = vmul.f32 %v3162, %v3173
        %v3187 = vmul.f32 %v3163, %v3173
        %v3188 = vmul.f32 %v3164, %v3173
        %v3189 = vmul.f32 %v3165, %v3173
        %v3190 = vmul.f32 %v3166, %v3173
        %s3191 = scalar_lea.vmem [#allocation13], 3
        %v3192 = vld [vmem:[%s3191] sm:$0x1]
        %v3194 = vlaneseq
        %v3195 = vshrl.u32 %v3194, 7
        %v3196 = vsub.s32 0, %v3195
        %v3197 = vrot.slane %v3192, %v3196
        %v3199 = vadd.f32 %v3175, %v3197
        %v3200 = vadd.f32 %v3176, %v3197
        %v3201 = vadd.f32 %v3177, %v3197
        %v3202 = vadd.f32 %v3178, %v3197
        %v3203 = vadd.f32 %v3179, %v3197
        %v3204 = vadd.f32 %v3180, %v3197
        %v3205 = vadd.f32 %v3181, %v3197
        %v3206 = vadd.f32 %v3182, %v3197
        %v3207 = vadd.f32 %v3183, %v3197
        %v3208 = vadd.f32 %v3184, %v3197
        %v3209 = vadd.f32 %v3185, %v3197
        %v3210 = vadd.f32 %v3186, %v3197
        %v3211 = vadd.f32 %v3187, %v3197
        %v3212 = vadd.f32 %v3188, %v3197
        %v3213 = vadd.f32 %v3189, %v3197
        %v3214 = vadd.f32 %v3190, %v3197
        %v3215 = vadd.f32 %v3199, %v2635
        %v3216 = vadd.f32 %v3200, %v2636
        %v3217 = vadd.f32 %v3201, %v2637
        %v3218 = vadd.f32 %v3202, %v2638
        %v3219 = vadd.f32 %v3203, %v2639
        %v3220 = vadd.f32 %v3204, %v2640
        %v3221 = vadd.f32 %v3205, %v2641
        %v3222 = vadd.f32 %v3206, %v2642
        %v3223 = vadd.f32 %v3207, %v2643
        %v3224 = vadd.f32 %v3208, %v2644
        %v3225 = vadd.f32 %v3209, %v2645
        %v3226 = vadd.f32 %v3210, %v2646
        %v3227 = vadd.f32 %v3211, %v2647
        %v3228 = vadd.f32 %v3212, %v2648
        %v3229 = vadd.f32 %v3213, %v2649
        %v3230 = vadd.f32 %v3214, %v2650
        %v3231 = vpack.c.bf16 %v3216, %v3215
        %v3232 = vpack.c.bf16 %v3218, %v3217
        %v3233 = vpack.c.bf16 %v3220, %v3219
        %v3234 = vpack.c.bf16 %v3222, %v3221
        %v3235 = vpack.c.bf16 %v3224, %v3223
        %v3236 = vpack.c.bf16 %v3226, %v3225
        %v3237 = vpack.c.bf16 %v3228, %v3227
        %v3238 = vpack.c.bf16 %v3230, %v3229
        %s3239 = scalar_lea.vmem [#allocation8], 256
        %v3240 = vld [vmem:[%s3239] sm:$0xf]
        %v3241 = vld [vmem:[%s3239 + $0x4] sm:$0xf]
        %v3242 = vld [vmem:[%s3239 + $0x8] sm:$0xf]
        %v3243 = vld [vmem:[%s3239 + $0xc] sm:$0xf]
        %v3244 = vld [vmem:[%s3239 + $0x10] sm:$0xf]
        %v3245 = vld [vmem:[%s3239 + $0x14] sm:$0xf]
        %v3246 = vld [vmem:[%s3239 + $0x18] sm:$0xf]
        %v3247 = vld [vmem:[%s3239 + $0x1c] sm:$0xf]
        %v3248 = vld [vmem:[%s3239 + $0x20] sm:$0xf]
        %v3249 = vld [vmem:[%s3239 + $0x24] sm:$0xf]
        %v3250 = vld [vmem:[%s3239 + $0x28] sm:$0xf]
        %v3251 = vld [vmem:[%s3239 + $0x2c] sm:$0xf]
        %v3252 = vld [vmem:[%s3239 + $0x30] sm:$0xf]
        %v3253 = vld [vmem:[%s3239 + $0x34] sm:$0xf]
        %v3254 = vld [vmem:[%s3239 + $0x38] sm:$0xf]
        %v3255 = vld [vmem:[%s3239 + $0x3c] sm:$0xf]
        %s3256 = scalar_lea.vmem %s4, 4
        %v3257 = vld [vmem:[%s3256] sm:$0x1]
        %v3259 = vlaneseq
        %v3260 = vshrl.u32 %v3259, 7
        %v3261 = vsub.s32 0, %v3260
        %v3262 = vrot.slane %v3257, %v3261
        %v3280 = vunpack.c.l.b16 %v3240
        %v3281 = vunpack.c.l.b16 %v3241
        %v3282 = vunpack.c.l.b16 %v3242
        %v3283 = vunpack.c.l.b16 %v3243
        %v3284 = vunpack.c.l.b16 %v3244
        %v3285 = vunpack.c.l.b16 %v3245
        %v3286 = vunpack.c.l.b16 %v3246
        %v3287 = vunpack.c.l.b16 %v3247
        %v3288 = vunpack.c.l.b16 %v3248
        %v3289 = vunpack.c.l.b16 %v3249
        %v3290 = vunpack.c.l.b16 %v3250
        %v3291 = vunpack.c.l.b16 %v3251
        %v3292 = vunpack.c.l.b16 %v3252
        %v3293 = vunpack.c.l.b16 %v3253
        %v3294 = vunpack.c.l.b16 %v3254
        %v3295 = vunpack.c.l.b16 %v3255
        %v3296 = vpack.c.b16 %v3281, %v3280
        %v3297 = vpack.c.b16 %v3283, %v3282
        %v3298 = vpack.c.b16 %v3285, %v3284
        %v3299 = vpack.c.b16 %v3287, %v3286
        %v3300 = vpack.c.b16 %v3289, %v3288
        %v3301 = vpack.c.b16 %v3291, %v3290
        %v3302 = vpack.c.b16 %v3293, %v3292
        %v3303 = vpack.c.b16 %v3295, %v3294
        %3312 = vmatprep.subr.bf16.mxu0 0
        %3313 = vmatpush1.bf16.msra.mxu0 %v3303
        %3314 = vmatprep.subr.bf16.mxu0 0
        %3315 = vmatpush1.bf16.msra.mxu0 %v3302
        %3316 = vmatprep.subr.bf16.mxu0 0
        %3317 = vmatpush1.bf16.msra.mxu0 %v3301
        %3318 = vmatprep.subr.bf16.mxu0 0
        %3319 = vmatpush1.bf16.msra.mxu0 %v3300
        %3320 = vmatprep.subr.bf16.mxu0 0
        %3321 = vmatpush1.bf16.msra.mxu0 %v3299
        %3322 = vmatprep.subr.bf16.mxu0 0
        %3323 = vmatpush1.bf16.msra.mxu0 %v3298
        %3324 = vmatprep.subr.bf16.mxu0 0
        %3325 = vmatpush1.bf16.msra.mxu0 %v3297
        %3326 = vmatprep.subr.bf16.mxu0 0
        %3327 = vmatpush1.bf16.msra.mxu0 %v3296
        %3328 = vmatprep.subr.bf16.mxu0 0
        %3329 = vmatpush2.bf16.msra.mxu0 0
        %3330 = vmatprep.subr.bf16.mxu0 0
        %3331 = vmatpush2.bf16.msra.mxu0 0
        %3332 = vmatprep.subr.bf16.mxu0 0
        %3333 = vmatpush2.bf16.msra.mxu0 0
        %3334 = vmatprep.subr.bf16.mxu0 0
        %3335 = vmatpush2.bf16.msra.mxu0 0
        %3336 = vmatprep.subr.bf16.mxu0 0
        %3337 = vmatpush2.bf16.msra.mxu0 0
        %3338 = vmatprep.subr.bf16.mxu0 0
        %3339 = vmatpush2.bf16.msra.mxu0 0
        %3340 = vmatprep.subr.bf16.mxu0 0
        %3341 = vmatpush2.bf16.msra.mxu0 0
        %3342 = vmatprep.subr.bf16.mxu0 0
        %3343 = vmatpush2.bf16.msra.mxu0 0
        %3344 = vmatprep.mubr.bf16.mxu0 0
        %3345 = vmatmul.mubr.bf16.gmra.mxu0 %v3231
        %v3346 = vpop.f32.mrf.mxu0
        %v3347 = vadd.f32 %v3262, %v3346
        %v3348 = vpop.f32.mrf.mxu0
        %v3349 = vpop.f32.mrf.mxu0
        %v3350 = vadd.f32 %v3262, %v3349
        %v3351 = vpop.f32.mrf.mxu0
        %3352 = vmatprep.mubr.bf16.mxu0 0
        %3353 = vmatmul.mubr.bf16.gmra.mxu0 %v3232
        %v3354 = vpop.f32.mrf.mxu0
        %v3355 = vadd.f32 %v3262, %v3354
        %v3356 = vpop.f32.mrf.mxu0
        %v3357 = vpop.f32.mrf.mxu0
        %v3358 = vadd.f32 %v3262, %v3357
        %v3359 = vpop.f32.mrf.mxu0
        %3360 = vmatprep.mubr.bf16.mxu0 0
        %3361 = vmatmul.mubr.bf16.gmra.mxu0 %v3233
        %v3362 = vpop.f32.mrf.mxu0
        %v3363 = vadd.f32 %v3262, %v3362
        %v3364 = vpop.f32.mrf.mxu0
        %v3365 = vpop.f32.mrf.mxu0
        %v3366 = vadd.f32 %v3262, %v3365
        %v3367 = vpop.f32.mrf.mxu0
        %3368 = vmatprep.mubr.bf16.mxu0 0
        %3369 = vmatmul.mubr.bf16.gmra.mxu0 %v3234
        %v3370 = vpop.f32.mrf.mxu0
        %v3371 = vadd.f32 %v3262, %v3370
        %v3372 = vpop.f32.mrf.mxu0
        %v3373 = vpop.f32.mrf.mxu0
        %v3374 = vadd.f32 %v3262, %v3373
        %v3375 = vpop.f32.mrf.mxu0
        %3376 = vmatprep.mubr.bf16.mxu0 0
        %3377 = vmatmul.mubr.bf16.gmra.mxu0 %v3235
        %v3378 = vpop.f32.mrf.mxu0
        %v3379 = vadd.f32 %v3262, %v3378
        %v3380 = vpop.f32.mrf.mxu0
        %v3381 = vpop.f32.mrf.mxu0
        %v3382 = vadd.f32 %v3262, %v3381
        %v3383 = vpop.f32.mrf.mxu0
        %3384 = vmatprep.mubr.bf16.mxu0 0
        %3385 = vmatmul.mubr.bf16.gmra.mxu0 %v3236
        %v3386 = vpop.f32.mrf.mxu0
        %v3387 = vadd.f32 %v3262, %v3386
        %v3388 = vpop.f32.mrf.mxu0
        %v3389 = vpop.f32.mrf.mxu0
        %v3390 = vadd.f32 %v3262, %v3389
        %v3391 = vpop.f32.mrf.mxu0
        %3392 = vmatprep.mubr.bf16.mxu0 0
        %3393 = vmatmul.mubr.bf16.gmra.mxu0 %v3237
        %v3394 = vpop.f32.mrf.mxu0
        %v3395 = vadd.f32 %v3262, %v3394
        %v3396 = vpop.f32.mrf.mxu0
        %v3397 = vpop.f32.mrf.mxu0
        %v3398 = vadd.f32 %v3262, %v3397
        %v3399 = vpop.f32.mrf.mxu0
        %3400 = vmatprep.mubr.bf16.mxu0 0
        %3401 = vmatmul.mubr.bf16.gmra.mxu0 %v3238
        %v3402 = vpop.f32.mrf.mxu0
        %v3403 = vadd.f32 %v3262, %v3402
        %v3404 = vpop.f32.mrf.mxu0
        %v3405 = vpop.f32.mrf.mxu0
        %v3406 = vadd.f32 %v3262, %v3405
        %v3407 = vpop.f32.mrf.mxu0
        %3408 = vdwg.mxu0
        %v3409 = vmul.f32 %v3347, 0.5
        %v3410 = vmul.f32 %v3350, 0.5
        %v3411 = vmul.f32 %v3355, 0.5
        %v3412 = vmul.f32 %v3358, 0.5
        %v3413 = vmul.f32 %v3363, 0.5
        %v3414 = vmul.f32 %v3366, 0.5
        %v3415 = vmul.f32 %v3371, 0.5
        %v3416 = vmul.f32 %v3374, 0.5
        %v3417 = vmul.f32 %v3379, 0.5
        %v3418 = vmul.f32 %v3382, 0.5
        %v3419 = vmul.f32 %v3387, 0.5
        %v3420 = vmul.f32 %v3390, 0.5
        %v3421 = vmul.f32 %v3395, 0.5
        %v3422 = vmul.f32 %v3398, 0.5
        %v3423 = vmul.f32 %v3403, 0.5
        %v3424 = vmul.f32 %v3406, 0.5
        %v3425 = vmul.f32 %v3347, 0.70710677
        %v3426 = vmul.f32 %v3350, 0.70710677
        %v3427 = vmul.f32 %v3355, 0.70710677
        %v3428 = vmul.f32 %v3358, 0.70710677
        %v3429 = vmul.f32 %v3363, 0.70710677
        %v3430 = vmul.f32 %v3366, 0.70710677
        %v3431 = vmul.f32 %v3371, 0.70710677
        %v3432 = vmul.f32 %v3374, 0.70710677
        %v3433 = vmul.f32 %v3379, 0.70710677
        %v3434 = vmul.f32 %v3382, 0.70710677
        %v3435 = vmul.f32 %v3387, 0.70710677
        %v3436 = vmul.f32 %v3390, 0.70710677
        %v3437 = vmul.f32 %v3395, 0.70710677
        %v3438 = vmul.f32 %v3398, 0.70710677
        %v3439 = vmul.f32 %v3403, 0.70710677
        %v3440 = vmul.f32 %v3406, 0.70710677
        %v3441 = verf.f32.pop %v3425
        %v3442 = verf.f32.pop %v3426
        %v3443 = verf.f32.pop %v3427
        %v3444 = verf.f32.pop %v3428
        %v3445 = verf.f32.pop %v3429
        %v3446 = verf.f32.pop %v3430
        %v3447 = verf.f32.pop %v3431
        %v3448 = verf.f32.pop %v3432
        %v3449 = verf.f32.pop %v3433
        %v3450 = verf.f32.pop %v3434
        %v3451 = verf.f32.pop %v3435
        %v3452 = verf.f32.pop %v3436
        %v3453 = verf.f32.pop %v3437
        %v3454 = verf.f32.pop %v3438
        %v3455 = verf.f32.pop %v3439
        %v3456 = verf.f32.pop %v3440
        %v3457 = vadd.f32 %v3441, 1.0
        %v3458 = vadd.f32 %v3442, 1.0
        %v3459 = vadd.f32 %v3443, 1.0
        %v3460 = vadd.f32 %v3444, 1.0
        %v3461 = vadd.f32 %v3445, 1.0
        %v3462 = vadd.f32 %v3446, 1.0
        %v3463 = vadd.f32 %v3447, 1.0
        %v3464 = vadd.f32 %v3448, 1.0
        %v3465 = vadd.f32 %v3449, 1.0
        %v3466 = vadd.f32 %v3450, 1.0
        %v3467 = vadd.f32 %v3451, 1.0
        %v3468 = vadd.f32 %v3452, 1.0
        %v3469 = vadd.f32 %v3453, 1.0
        %v3470 = vadd.f32 %v3454, 1.0
        %v3471 = vadd.f32 %v3455, 1.0
        %v3472 = vadd.f32 %v3456, 1.0
        %v3473 = vmul.f32 %v3409, %v3457
        %v3474 = vmul.f32 %v3410, %v3458
        %v3475 = vmul.f32 %v3411, %v3459
        %v3476 = vmul.f32 %v3412, %v3460
        %v3477 = vmul.f32 %v3413, %v3461
        %v3478 = vmul.f32 %v3414, %v3462
        %v3479 = vmul.f32 %v3415, %v3463
        %v3480 = vmul.f32 %v3416, %v3464
        %v3481 = vmul.f32 %v3417, %v3465
        %v3482 = vmul.f32 %v3418, %v3466
        %v3483 = vmul.f32 %v3419, %v3467
        %v3484 = vmul.f32 %v3420, %v3468
        %v3485 = vmul.f32 %v3421, %v3469
        %v3486 = vmul.f32 %v3422, %v3470
        %v3487 = vmul.f32 %v3423, %v3471
        %v3488 = vmul.f32 %v3424, %v3472
        %v3489 = vpack.c.bf16 %v3474, %v3473
        %v3490 = vpack.c.bf16 %v3476, %v3475
        %v3491 = vpack.c.bf16 %v3478, %v3477
        %v3492 = vpack.c.bf16 %v3480, %v3479
        %v3493 = vpack.c.bf16 %v3482, %v3481
        %v3494 = vpack.c.bf16 %v3484, %v3483
        %v3495 = vpack.c.bf16 %v3486, %v3485
        %v3496 = vpack.c.bf16 %v3488, %v3487
        %s3497 = scalar_lea.vmem [#allocation10], 256
        %v3498 = vld [vmem:[%s3497] sm:$0xf]
        %v3499 = vld [vmem:[%s3497 + $0x4] sm:$0xf]
        %v3500 = vld [vmem:[%s3497 + $0x8] sm:$0xf]
        %v3501 = vld [vmem:[%s3497 + $0xc] sm:$0xf]
        %v3502 = vld [vmem:[%s3497 + $0x10] sm:$0xf]
        %v3503 = vld [vmem:[%s3497 + $0x14] sm:$0xf]
        %v3504 = vld [vmem:[%s3497 + $0x18] sm:$0xf]
        %v3505 = vld [vmem:[%s3497 + $0x1c] sm:$0xf]
        %v3506 = vld [vmem:[%s3497 + $0x20] sm:$0xf]
        %v3507 = vld [vmem:[%s3497 + $0x24] sm:$0xf]
        %v3508 = vld [vmem:[%s3497 + $0x28] sm:$0xf]
        %v3509 = vld [vmem:[%s3497 + $0x2c] sm:$0xf]
        %v3510 = vld [vmem:[%s3497 + $0x30] sm:$0xf]
        %v3511 = vld [vmem:[%s3497 + $0x34] sm:$0xf]
        %v3512 = vld [vmem:[%s3497 + $0x38] sm:$0xf]
        %v3513 = vld [vmem:[%s3497 + $0x3c] sm:$0xf]
        %s3514 = scalar_lea.vmem %s6, 4
        %v3515 = vld [vmem:[%s3514] sm:$0x1]
        %v3517 = vlaneseq
        %v3518 = vshrl.u32 %v3517, 7
        %v3519 = vsub.s32 0, %v3518
        %v3520 = vrot.slane %v3515, %v3519
        %v3538 = vunpack.c.l.b16 %v3498
        %v3539 = vunpack.c.l.b16 %v3499
        %v3540 = vunpack.c.l.b16 %v3500
        %v3541 = vunpack.c.l.b16 %v3501
        %v3542 = vunpack.c.l.b16 %v3502
        %v3543 = vunpack.c.l.b16 %v3503
        %v3544 = vunpack.c.l.b16 %v3504
        %v3545 = vunpack.c.l.b16 %v3505
        %v3546 = vunpack.c.l.b16 %v3506
        %v3547 = vunpack.c.l.b16 %v3507
        %v3548 = vunpack.c.l.b16 %v3508
        %v3549 = vunpack.c.l.b16 %v3509
        %v3550 = vunpack.c.l.b16 %v3510
        %v3551 = vunpack.c.l.b16 %v3511
        %v3552 = vunpack.c.l.b16 %v3512
        %v3553 = vunpack.c.l.b16 %v3513
        %v3554 = vpack.c.b16 %v3539, %v3538
        %v3555 = vpack.c.b16 %v3541, %v3540
        %v3556 = vpack.c.b16 %v3543, %v3542
        %v3557 = vpack.c.b16 %v3545, %v3544
        %v3558 = vpack.c.b16 %v3547, %v3546
        %v3559 = vpack.c.b16 %v3549, %v3548
        %v3560 = vpack.c.b16 %v3551, %v3550
        %v3561 = vpack.c.b16 %v3553, %v3552
        %3570 = vmatprep.subr.bf16.mxu0 0
        %3571 = vmatpush1.bf16.msra.mxu0 %v3561
        %3572 = vmatprep.subr.bf16.mxu0 0
        %3573 = vmatpush1.bf16.msra.mxu0 %v3560
        %3574 = vmatprep.subr.bf16.mxu0 0
        %3575 = vmatpush1.bf16.msra.mxu0 %v3559
        %3576 = vmatprep.subr.bf16.mxu0 0
        %3577 = vmatpush1.bf16.msra.mxu0 %v3558
        %3578 = vmatprep.subr.bf16.mxu0 0
        %3579 = vmatpush1.bf16.msra.mxu0 %v3557
        %3580 = vmatprep.subr.bf16.mxu0 0
        %3581 = vmatpush1.bf16.msra.mxu0 %v3556
        %3582 = vmatprep.subr.bf16.mxu0 0
        %3583 = vmatpush1.bf16.msra.mxu0 %v3555
        %3584 = vmatprep.subr.bf16.mxu0 0
        %3585 = vmatpush1.bf16.msra.mxu0 %v3554
        %3586 = vmatprep.subr.bf16.mxu0 0
        %3587 = vmatpush2.bf16.msra.mxu0 0
        %3588 = vmatprep.subr.bf16.mxu0 0
        %3589 = vmatpush2.bf16.msra.mxu0 0
        %3590 = vmatprep.subr.bf16.mxu0 0
        %3591 = vmatpush2.bf16.msra.mxu0 0
        %3592 = vmatprep.subr.bf16.mxu0 0
        %3593 = vmatpush2.bf16.msra.mxu0 0
        %3594 = vmatprep.subr.bf16.mxu0 0
        %3595 = vmatpush2.bf16.msra.mxu0 0
        %3596 = vmatprep.subr.bf16.mxu0 0
        %3597 = vmatpush2.bf16.msra.mxu0 0
        %3598 = vmatprep.subr.bf16.mxu0 0
        %3599 = vmatpush2.bf16.msra.mxu0 0
        %3600 = vmatprep.subr.bf16.mxu0 0
        %3601 = vmatpush2.bf16.msra.mxu0 0
        %3602 = vmatprep.mubr.bf16.mxu0 0
        %3603 = vmatmul.mubr.bf16.gmra.mxu0 %v3489
        %v3604 = vpop.f32.mrf.mxu0
        %v3605 = vadd.f32 %v3520, %v3604
        %v3606 = vpop.f32.mrf.mxu0
        %v3607 = vpop.f32.mrf.mxu0
        %v3608 = vadd.f32 %v3520, %v3607
        %v3609 = vpop.f32.mrf.mxu0
        %3610 = vmatprep.mubr.bf16.mxu0 0
        %3611 = vmatmul.mubr.bf16.gmra.mxu0 %v3490
        %v3612 = vpop.f32.mrf.mxu0
        %v3613 = vadd.f32 %v3520, %v3612
        %v3614 = vpop.f32.mrf.mxu0
        %v3615 = vpop.f32.mrf.mxu0
        %v3616 = vadd.f32 %v3520, %v3615
        %v3617 = vpop.f32.mrf.mxu0
        %3618 = vmatprep.mubr.bf16.mxu0 0
        %3619 = vmatmul.mubr.bf16.gmra.mxu0 %v3491
        %v3620 = vpop.f32.mrf.mxu0
        %v3621 = vadd.f32 %v3520, %v3620
        %v3622 = vpop.f32.mrf.mxu0
        %v3623 = vpop.f32.mrf.mxu0
        %v3624 = vadd.f32 %v3520, %v3623
        %v3625 = vpop.f32.mrf.mxu0
        %3626 = vmatprep.mubr.bf16.mxu0 0
        %3627 = vmatmul.mubr.bf16.gmra.mxu0 %v3492
        %v3628 = vpop.f32.mrf.mxu0
        %v3629 = vadd.f32 %v3520, %v3628
        %v3630 = vpop.f32.mrf.mxu0
        %v3631 = vpop.f32.mrf.mxu0
        %v3632 = vadd.f32 %v3520, %v3631
        %v3633 = vpop.f32.mrf.mxu0
        %3634 = vmatprep.mubr.bf16.mxu0 0
        %3635 = vmatmul.mubr.bf16.gmra.mxu0 %v3493
        %v3636 = vpop.f32.mrf.mxu0
        %v3637 = vadd.f32 %v3520, %v3636
        %v3638 = vpop.f32.mrf.mxu0
        %v3639 = vpop.f32.mrf.mxu0
        %v3640 = vadd.f32 %v3520, %v3639
        %v3641 = vpop.f32.mrf.mxu0
        %3642 = vmatprep.mubr.bf16.mxu0 0
        %3643 = vmatmul.mubr.bf16.gmra.mxu0 %v3494
        %v3644 = vpop.f32.mrf.mxu0
        %v3645 = vadd.f32 %v3520, %v3644
        %v3646 = vpop.f32.mrf.mxu0
        %v3647 = vpop.f32.mrf.mxu0
        %v3648 = vadd.f32 %v3520, %v3647
        %v3649 = vpop.f32.mrf.mxu0
        %3650 = vmatprep.mubr.bf16.mxu0 0
        %3651 = vmatmul.mubr.bf16.gmra.mxu0 %v3495
        %v3652 = vpop.f32.mrf.mxu0
        %v3653 = vadd.f32 %v3520, %v3652
        %v3654 = vpop.f32.mrf.mxu0
        %v3655 = vpop.f32.mrf.mxu0
        %v3656 = vadd.f32 %v3520, %v3655
        %v3657 = vpop.f32.mrf.mxu0
        %3658 = vmatprep.mubr.bf16.mxu0 0
        %3659 = vmatmul.mubr.bf16.gmra.mxu0 %v3496
        %v3660 = vpop.f32.mrf.mxu0
        %v3661 = vadd.f32 %v3520, %v3660
        %v3662 = vpop.f32.mrf.mxu0
        %v3663 = vpop.f32.mrf.mxu0
        %v3664 = vadd.f32 %v3520, %v3663
        %v3665 = vpop.f32.mrf.mxu0
        %3666 = vdwg.mxu0
        %v3667 = vmul.f32 %v3605, 0.5
        %v3668 = vmul.f32 %v3608, 0.5
        %v3669 = vmul.f32 %v3613, 0.5
        %v3670 = vmul.f32 %v3616, 0.5
        %v3671 = vmul.f32 %v3621, 0.5
        %v3672 = vmul.f32 %v3624, 0.5
        %v3673 = vmul.f32 %v3629, 0.5
        %v3674 = vmul.f32 %v3632, 0.5
        %v3675 = vmul.f32 %v3637, 0.5
        %v3676 = vmul.f32 %v3640, 0.5
        %v3677 = vmul.f32 %v3645, 0.5
        %v3678 = vmul.f32 %v3648, 0.5
        %v3679 = vmul.f32 %v3653, 0.5
        %v3680 = vmul.f32 %v3656, 0.5
        %v3681 = vmul.f32 %v3661, 0.5
        %v3682 = vmul.f32 %v3664, 0.5
        %v3683 = vmul.f32 %v3605, 0.70710677
        %v3684 = vmul.f32 %v3608, 0.70710677
        %v3685 = vmul.f32 %v3613, 0.70710677
        %v3686 = vmul.f32 %v3616, 0.70710677
        %v3687 = vmul.f32 %v3621, 0.70710677
        %v3688 = vmul.f32 %v3624, 0.70710677
        %v3689 = vmul.f32 %v3629, 0.70710677
        %v3690 = vmul.f32 %v3632, 0.70710677
        %v3691 = vmul.f32 %v3637, 0.70710677
        %v3692 = vmul.f32 %v3640, 0.70710677
        %v3693 = vmul.f32 %v3645, 0.70710677
        %v3694 = vmul.f32 %v3648, 0.70710677
        %v3695 = vmul.f32 %v3653, 0.70710677
        %v3696 = vmul.f32 %v3656, 0.70710677
        %v3697 = vmul.f32 %v3661, 0.70710677
        %v3698 = vmul.f32 %v3664, 0.70710677
        %v3699 = verf.f32.pop %v3683
        %v3700 = verf.f32.pop %v3684
        %v3701 = verf.f32.pop %v3685
        %v3702 = verf.f32.pop %v3686
        %v3703 = verf.f32.pop %v3687
        %v3704 = verf.f32.pop %v3688
        %v3705 = verf.f32.pop %v3689
        %v3706 = verf.f32.pop %v3690
        %v3707 = verf.f32.pop %v3691
        %v3708 = verf.f32.pop %v3692
        %v3709 = verf.f32.pop %v3693
        %v3710 = verf.f32.pop %v3694
        %v3711 = verf.f32.pop %v3695
        %v3712 = verf.f32.pop %v3696
        %v3713 = verf.f32.pop %v3697
        %v3714 = verf.f32.pop %v3698
        %v3715 = vadd.f32 %v3699, 1.0
        %v3716 = vadd.f32 %v3700, 1.0
        %v3717 = vadd.f32 %v3701, 1.0
        %v3718 = vadd.f32 %v3702, 1.0
        %v3719 = vadd.f32 %v3703, 1.0
        %v3720 = vadd.f32 %v3704, 1.0
        %v3721 = vadd.f32 %v3705, 1.0
        %v3722 = vadd.f32 %v3706, 1.0
        %v3723 = vadd.f32 %v3707, 1.0
        %v3724 = vadd.f32 %v3708, 1.0
        %v3725 = vadd.f32 %v3709, 1.0
        %v3726 = vadd.f32 %v3710, 1.0
        %v3727 = vadd.f32 %v3711, 1.0
        %v3728 = vadd.f32 %v3712, 1.0
        %v3729 = vadd.f32 %v3713, 1.0
        %v3730 = vadd.f32 %v3714, 1.0
        %v3731 = vmul.f32 %v3667, %v3715
        %v3732 = vmul.f32 %v3668, %v3716
        %v3733 = vmul.f32 %v3669, %v3717
        %v3734 = vmul.f32 %v3670, %v3718
        %v3735 = vmul.f32 %v3671, %v3719
        %v3736 = vmul.f32 %v3672, %v3720
        %v3737 = vmul.f32 %v3673, %v3721
        %v3738 = vmul.f32 %v3674, %v3722
        %v3739 = vmul.f32 %v3675, %v3723
        %v3740 = vmul.f32 %v3676, %v3724
        %v3741 = vmul.f32 %v3677, %v3725
        %v3742 = vmul.f32 %v3678, %v3726
        %v3743 = vmul.f32 %v3679, %v3727
        %v3744 = vmul.f32 %v3680, %v3728
        %v3745 = vmul.f32 %v3681, %v3729
        %v3746 = vmul.f32 %v3682, %v3730
        %s3747 = scalar_lea.vmem [#allocation11], 4
        %v3748 = vld [vmem:[%s3747] sm:$0x1]
        %v3750 = vlaneseq
        %v3751 = vshrl.u32 %v3750, 7
        %v3752 = vsub.s32 0, %v3751
        %v3753 = vrot.slane %v3748, %v3752
        %v3755 = vmul.f32 %v3731, %v3753
        %v3756 = vmul.f32 %v3732, %v3753
        %v3757 = vmul.f32 %v3733, %v3753
        %v3758 = vmul.f32 %v3734, %v3753
        %v3759 = vmul.f32 %v3735, %v3753
        %v3760 = vmul.f32 %v3736, %v3753
        %v3761 = vmul.f32 %v3737, %v3753
        %v3762 = vmul.f32 %v3738, %v3753
        %v3763 = vmul.f32 %v3739, %v3753
        %v3764 = vmul.f32 %v3740, %v3753
        %v3765 = vmul.f32 %v3741, %v3753
        %v3766 = vmul.f32 %v3742, %v3753
        %v3767 = vmul.f32 %v3743, %v3753
        %v3768 = vmul.f32 %v3744, %v3753
        %v3769 = vmul.f32 %v3745, %v3753
        %v3770 = vmul.f32 %v3746, %v3753
        %s3771 = scalar_lea.vmem [#allocation13], 4
        %v3772 = vld [vmem:[%s3771] sm:$0x1]
        %v3774 = vlaneseq
        %v3775 = vshrl.u32 %v3774, 7
        %v3776 = vsub.s32 0, %v3775
        %v3777 = vrot.slane %v3772, %v3776
        %v3779 = vadd.f32 %v3755, %v3777
        %v3780 = vadd.f32 %v3756, %v3777
        %v3781 = vadd.f32 %v3757, %v3777
        %v3782 = vadd.f32 %v3758, %v3777
        %v3783 = vadd.f32 %v3759, %v3777
        %v3784 = vadd.f32 %v3760, %v3777
        %v3785 = vadd.f32 %v3761, %v3777
        %v3786 = vadd.f32 %v3762, %v3777
        %v3787 = vadd.f32 %v3763, %v3777
        %v3788 = vadd.f32 %v3764, %v3777
        %v3789 = vadd.f32 %v3765, %v3777
        %v3790 = vadd.f32 %v3766, %v3777
        %v3791 = vadd.f32 %v3767, %v3777
        %v3792 = vadd.f32 %v3768, %v3777
        %v3793 = vadd.f32 %v3769, %v3777
        %v3794 = vadd.f32 %v3770, %v3777
        %v3795 = vadd.f32 %v3779, %v3215
        %v3796 = vadd.f32 %v3780, %v3216
        %v3797 = vadd.f32 %v3781, %v3217
        %v3798 = vadd.f32 %v3782, %v3218
        %v3799 = vadd.f32 %v3783, %v3219
        %v3800 = vadd.f32 %v3784, %v3220
        %v3801 = vadd.f32 %v3785, %v3221
        %v3802 = vadd.f32 %v3786, %v3222
        %v3803 = vadd.f32 %v3787, %v3223
        %v3804 = vadd.f32 %v3788, %v3224
        %v3805 = vadd.f32 %v3789, %v3225
        %v3806 = vadd.f32 %v3790, %v3226
        %v3807 = vadd.f32 %v3791, %v3227
        %v3808 = vadd.f32 %v3792, %v3228
        %v3809 = vadd.f32 %v3793, %v3229
        %v3810 = vadd.f32 %v3794, %v3230
        %v3811 = vpack.c.bf16 %v3796, %v3795
        %v3812 = vpack.c.bf16 %v3798, %v3797
        %v3813 = vpack.c.bf16 %v3800, %v3799
        %v3814 = vpack.c.bf16 %v3802, %v3801
        %v3815 = vpack.c.bf16 %v3804, %v3803
        %v3816 = vpack.c.bf16 %v3806, %v3805
        %v3817 = vpack.c.bf16 %v3808, %v3807
        %v3818 = vpack.c.bf16 %v3810, %v3809
        %v3819 = vld [vmem:[#allocation14] sm:$0xf]
        %v3820 = vld [vmem:[#allocation14 + $0x4] sm:$0xf]
        %v3821 = vld [vmem:[#allocation14 + $0x8] sm:$0xf]
        %v3822 = vld [vmem:[#allocation14 + $0xc] sm:$0xf]
        %v3823 = vld [vmem:[#allocation14 + $0x10] sm:$0xf]
        %v3824 = vld [vmem:[#allocation14 + $0x14] sm:$0xf]
        %v3825 = vld [vmem:[#allocation14 + $0x18] sm:$0xf]
        %v3826 = vld [vmem:[#allocation14 + $0x1c] sm:$0xf]
        %v3827 = vld [vmem:[#allocation14 + $0x20] sm:$0xf]
        %v3828 = vld [vmem:[#allocation14 + $0x24] sm:$0xf]
        %v3829 = vld [vmem:[#allocation14 + $0x28] sm:$0xf]
        %v3830 = vld [vmem:[#allocation14 + $0x2c] sm:$0xf]
        %v3831 = vld [vmem:[#allocation14 + $0x30] sm:$0xf]
        %v3832 = vld [vmem:[#allocation14 + $0x34] sm:$0xf]
        %v3833 = vld [vmem:[#allocation14 + $0x38] sm:$0xf]
        %v3834 = vld [vmem:[#allocation14 + $0x3c] sm:$0xf]
        %v3835 = vld [vmem:[%s10] sm:$0x1]
        %v3837 = vlaneseq
        %v3838 = vshrl.u32 %v3837, 7
        %v3839 = vsub.s32 0, %v3838
        %v3840 = vrot.slane %v3835, %v3839
        %v3858 = vunpack.c.l.b16 %v3819
        %v3859 = vunpack.c.l.b16 %v3820
        %v3860 = vunpack.c.l.b16 %v3821
        %v3861 = vunpack.c.l.b16 %v3822
        %v3862 = vunpack.c.l.b16 %v3823
        %v3863 = vunpack.c.l.b16 %v3824
        %v3864 = vunpack.c.l.b16 %v3825
        %v3865 = vunpack.c.l.b16 %v3826
        %v3866 = vunpack.c.l.b16 %v3827
        %v3867 = vunpack.c.l.b16 %v3828
        %v3868 = vunpack.c.l.b16 %v3829
        %v3869 = vunpack.c.l.b16 %v3830
        %v3870 = vunpack.c.l.b16 %v3831
        %v3871 = vunpack.c.l.b16 %v3832
        %v3872 = vunpack.c.l.b16 %v3833
        %v3873 = vunpack.c.l.b16 %v3834
        %v3874 = vpack.c.b16 %v3859, %v3858
        %v3875 = vpack.c.b16 %v3861, %v3860
        %v3876 = vpack.c.b16 %v3863, %v3862
        %v3877 = vpack.c.b16 %v3865, %v3864
        %v3878 = vpack.c.b16 %v3867, %v3866
        %v3879 = vpack.c.b16 %v3869, %v3868
        %v3880 = vpack.c.b16 %v3871, %v3870
        %v3881 = vpack.c.b16 %v3873, %v3872
        %3890 = vmatprep.subr.bf16.mxu0 0
        %3891 = vmatpush1.bf16.msra.mxu0 %v3881
        %3892 = vmatprep.subr.bf16.mxu0 0
        %3893 = vmatpush1.bf16.msra.mxu0 %v3880
        %3894 = vmatprep.subr.bf16.mxu0 0
        %3895 = vmatpush1.bf16.msra.mxu0 %v3879
        %3896 = vmatprep.subr.bf16.mxu0 0
        %3897 = vmatpush1.bf16.msra.mxu0 %v3878
        %3898 = vmatprep.subr.bf16.mxu0 0
        %3899 = vmatpush1.bf16.msra.mxu0 %v3877
        %3900 = vmatprep.subr.bf16.mxu0 0
        %3901 = vmatpush1.bf16.msra.mxu0 %v3876
        %3902 = vmatprep.subr.bf16.mxu0 0
        %3903 = vmatpush1.bf16.msra.mxu0 %v3875
        %3904 = vmatprep.subr.bf16.mxu0 0
        %3905 = vmatpush1.bf16.msra.mxu0 %v3874
        %3906 = vmatprep.subr.bf16.mxu0 0
        %3907 = vmatpush2.bf16.msra.mxu0 0
        %3908 = vmatprep.subr.bf16.mxu0 0
        %3909 = vmatpush2.bf16.msra.mxu0 0
        %3910 = vmatprep.subr.bf16.mxu0 0
        %3911 = vmatpush2.bf16.msra.mxu0 0
        %3912 = vmatprep.subr.bf16.mxu0 0
        %3913 = vmatpush2.bf16.msra.mxu0 0
        %3914 = vmatprep.subr.bf16.mxu0 0
        %3915 = vmatpush2.bf16.msra.mxu0 0
        %3916 = vmatprep.subr.bf16.mxu0 0
        %3917 = vmatpush2.bf16.msra.mxu0 0
        %3918 = vmatprep.subr.bf16.mxu0 0
        %3919 = vmatpush2.bf16.msra.mxu0 0
        %3920 = vmatprep.subr.bf16.mxu0 0
        %3921 = vmatpush2.bf16.msra.mxu0 0
        %3922 = vmatprep.mubr.bf16.mxu0 0
        %3923 = vmatmul.mubr.bf16.gmra.mxu0 %v3811
        %v3924 = vpop.f32.mrf.mxu0
        %v3925 = vadd.f32 %v3840, %v3924
        %v3926 = vpop.f32.mrf.mxu0
        %v3927 = vpop.f32.mrf.mxu0
        %v3928 = vadd.f32 %v3840, %v3927
        %v3929 = vpop.f32.mrf.mxu0
        %3930 = vmatprep.mubr.bf16.mxu0 0
        %3931 = vmatmul.mubr.bf16.gmra.mxu0 %v3812
        %v3932 = vpop.f32.mrf.mxu0
        %v3933 = vadd.f32 %v3840, %v3932
        %v3934 = vpop.f32.mrf.mxu0
        %v3935 = vpop.f32.mrf.mxu0
        %v3936 = vadd.f32 %v3840, %v3935
        %v3937 = vpop.f32.mrf.mxu0
        %3938 = vmatprep.mubr.bf16.mxu0 0
        %3939 = vmatmul.mubr.bf16.gmra.mxu0 %v3813
        %v3940 = vpop.f32.mrf.mxu0
        %v3941 = vadd.f32 %v3840, %v3940
        %v3942 = vpop.f32.mrf.mxu0
        %v3943 = vpop.f32.mrf.mxu0
        %v3944 = vadd.f32 %v3840, %v3943
        %v3945 = vpop.f32.mrf.mxu0
        %3946 = vmatprep.mubr.bf16.mxu0 0
        %3947 = vmatmul.mubr.bf16.gmra.mxu0 %v3814
        %v3948 = vpop.f32.mrf.mxu0
        %v3949 = vadd.f32 %v3840, %v3948
        %v3950 = vpop.f32.mrf.mxu0
        %v3951 = vpop.f32.mrf.mxu0
        %v3952 = vadd.f32 %v3840, %v3951
        %v3953 = vpop.f32.mrf.mxu0
        %3954 = vmatprep.mubr.bf16.mxu0 0
        %3955 = vmatmul.mubr.bf16.gmra.mxu0 %v3815
        %v3956 = vpop.f32.mrf.mxu0
        %v3957 = vadd.f32 %v3840, %v3956
        %v3958 = vpop.f32.mrf.mxu0
        %v3959 = vpop.f32.mrf.mxu0
        %v3960 = vadd.f32 %v3840, %v3959
        %v3961 = vpop.f32.mrf.mxu0
        %3962 = vmatprep.mubr.bf16.mxu0 0
        %3963 = vmatmul.mubr.bf16.gmra.mxu0 %v3816
        %v3964 = vpop.f32.mrf.mxu0
        %v3965 = vadd.f32 %v3840, %v3964
        %v3966 = vpop.f32.mrf.mxu0
        %v3967 = vpop.f32.mrf.mxu0
        %v3968 = vadd.f32 %v3840, %v3967
        %v3969 = vpop.f32.mrf.mxu0
        %3970 = vmatprep.mubr.bf16.mxu0 0
        %3971 = vmatmul.mubr.bf16.gmra.mxu0 %v3817
        %v3972 = vpop.f32.mrf.mxu0
        %v3973 = vadd.f32 %v3840, %v3972
        %v3974 = vpop.f32.mrf.mxu0
        %v3975 = vpop.f32.mrf.mxu0
        %v3976 = vadd.f32 %v3840, %v3975
        %v3977 = vpop.f32.mrf.mxu0
        %3978 = vmatprep.mubr.bf16.mxu0 0
        %3979 = vmatmul.mubr.bf16.gmra.mxu0 %v3818
        %v3980 = vpop.f32.mrf.mxu0
        %v3981 = vadd.f32 %v3840, %v3980
        %v3982 = vpop.f32.mrf.mxu0
        %v3983 = vpop.f32.mrf.mxu0
        %v3984 = vadd.f32 %v3840, %v3983
        %v3985 = vpop.f32.mrf.mxu0
        %3986 = vdwg.mxu0
        %3987 = vst [vmem:[%s505] sm:$0xff] %v3925
        %3988 = vst [vmem:[%s505 + $0x8] sm:$0xff] %v3928
        %3989 = vst [vmem:[%s505 + $0x10] sm:$0xff] %v3933
        %3990 = vst [vmem:[%s505 + $0x18] sm:$0xff] %v3936
        %3991 = vst [vmem:[%s505 + $0x20] sm:$0xff] %v3941
        %3992 = vst [vmem:[%s505 + $0x28] sm:$0xff] %v3944
        %3993 = vst [vmem:[%s505 + $0x30] sm:$0xff] %v3949
        %3994 = vst [vmem:[%s505 + $0x38] sm:$0xff] %v3952
        %3995 = vst [vmem:[%s505 + $0x40] sm:$0xff] %v3957
        %3996 = vst [vmem:[%s505 + $0x48] sm:$0xff] %v3960
        %3997 = vst [vmem:[%s505 + $0x50] sm:$0xff] %v3965
        %3998 = vst [vmem:[%s505 + $0x58] sm:$0xff] %v3968
        %3999 = vst [vmem:[%s505 + $0x60] sm:$0xff] %v3973
        %4000 = vst [vmem:[%s505 + $0x68] sm:$0xff] %v3976
        %4001 = vst [vmem:[%s505 + $0x70] sm:$0xff] %v3981
        %4002 = vst [vmem:[%s505 + $0x78] sm:$0xff] %v3984
        %s4003 = sand.u32 %s276, 1
        %s4004 = scalar_lea.sflag [#allocation4], %s4003
        %s4005 = sand.u32 %s276, 1
        %s4006 = smul.addr %s4005, 128
        %s4007 = scalar_lea.vmem [#allocation16], %s4006
        // Predicated region
        $region97: #{tpu_custom_call.1} parent=63 // pred_check
          %p4008 = pneg %p286
        $region98: #{tpu_custom_call.1} parent=63 // pred_check_branch
          %4010 = sbr.rel (%p4008) target = $region100
        $region99: #{tpu_custom_call.1} parent=63 // pred_region
          %s4011 = smul.u32 16, %s32
          %s4013 = ssub.s32 2048, 2048
          %4014 = vsyncadd %s4004, %s4013
          %s4015 = smul.addr %s4011, 128
          %s4016 = scalar_lea.hbm %s11, %s4015
          %s4017 = sshll.u32 %s4007, 4
          %s4018 = int_to_ptr.vmem [resolvable:$true] %s4017
          %4023 = dma.vmem_to_hbm [thread:$0]  %s4018, 2048, %s4016, %s4004, 128, 128, 8
        $region100: #{tpu_custom_call.1} parent=63 // pred_fallthru
          _
      $region64: #{tpu_custom_call.1} parent=5 // pred_fallthru
        _
      %p4024 = scmp.le.s32.totalorder 2, %s27
      // Predicated region
      $region101: #{tpu_custom_call.1} parent=5 // pred_check
        %p4025 = pneg %p4024
      $region102: #{tpu_custom_call.1} parent=5 // pred_check_branch
        %4027 = sbr.rel (%p4025) target = $region104
      $region103: #{tpu_custom_call.1} parent=5 // pred_region
        %s4028 = ssub.s32 %s27, 2
        // Predicated region
        $region105: #{tpu_custom_call.1} parent=103 // pred_check
          %p4029 = pneg %p292
        $region106: #{tpu_custom_call.1} parent=103 // pred_check_branch
          %4031 = sbr.rel (%p4029) target = $region108
        $region107: #{tpu_custom_call.1} parent=103 // pred_region
          %s4032 = sand.u32 %s277, 1
          %s4033 = scalar_lea.sflag [#allocation4], %s4032
          %s4034 = sand.u32 %s277, 1
          %s4035 = smul.addr %s4034, 128
          %s4036 = scalar_lea.vmem [#allocation16], %s4035
          %4037 = dma.done %s4033, 2048
        $region108: #{tpu_custom_call.1} parent=103 // pred_fallthru
          _
      $region104: #{tpu_custom_call.1} parent=5 // pred_fallthru
        _
    $region6: #{tpu_custom_call.1} parent=1 // loop_footer
      %s31 = sadd.s32 1, %s27
    $region7: #{tpu_custom_call.1} parent=1 // loop_footer_branch
      %26 = sbr.rel target = $region3
    $region8: #{tpu_custom_call.1} parent=1 // loop_exit
      _
    %4038 = vsyncpa [#allocation3], 1
    %s4039 = scalar_lea.sflag [#allocation3], 1
    %4040 = vsyncpa %s4039, 1
    %4041 = vsyncpa [#allocation6], 1
    %4042 = vsyncpa [#allocation9], 1
    %4043 = vsyncpa [#allocation12], 1
    %4044 = vsyncpa [#allocation15], 1
    %4045 = vsyncpa [#allocation4], 1
    %s4046 = scalar_lea.sflag [#allocation4], 1
    %4047 = vsyncpa %s4046, 1

</llo_original>
